<compile_context>
chip_gen: v6e
topology: v6e:2x2x1
jax: 0.10.0
libtpu: 0.0.40
codegen_flags: <defaults>
</compile_context>

<pallas_src>
import functools

import jax
import jax.numpy as jnp
from jax.experimental import pallas as pl
from jax.experimental.pallas import tpu as pltpu

# ----------------------------- model hyper-params -----------------------------
NUM_FIELDS = 8
EMBED_DIM = 32
ATTN_SIZE = 16
FIELD_DIMS = (10,) * NUM_FIELDS          # small synthetic vocab per field
NUM_SHIFTS = NUM_FIELDS - 1              # 7 rotation shifts -> 56 = 2*28 pair slots
SCORE_LANES = 64                         # 56 real pair-score lanes, padded to 64

_OFFSETS = [0]
for _d in FIELD_DIMS[:-1]:
    _OFFSETS.append(_OFFSETS[-1] + _d)
TOTAL_DIM = sum(FIELD_DIMS)

# Static sanity checks (review: the roll-duplication / lane layout tricks only
# hold under these conditions -- fail loudly if hyper-params change).
assert NUM_FIELDS >= 2
assert NUM_SHIFTS * NUM_FIELDS <= SCORE_LANES <= 128
assert (NUM_FIELDS * EMBED_DIM) % 128 == 0
assert (NUM_FIELDS * ATTN_SIZE) % 128 == 0


def _pairs(num_fields):
    row, col = [], []
    for i in range(num_fields - 1):
        for j in range(i + 1, num_fields):
            row.append(i)
            col.append(j)
    return row, col


def _pick_tb(B):
    """Generation-aware batch tile.

    v5e / v6e have a single TensorCore: extra grid steps only add per-step
    overhead, so take one big tile.  v7x has two TensorCores: keep >= 2 grid
    steps so the 'parallel' axis can be sharded across cores, but still prefer
    large tiles (VMEM is nowhere near a constraint here).
    """
    try:
        kind = jax.devices()[0].device_kind.lower()
    except Exception:  # pragma: no cover - defensive
        kind = ""
    multi_tc = ("v7" in kind) or ("7x" in kind)
    caps = (512, 256, 128, 64, 32, 16, 8)
    if multi_tc:
        for c in caps:
            if B % c == 0 and B // c >= 2:
                return c
    for c in caps:
        if B % c == 0:
            return c
    return B


# --------------------------------- the kernel ---------------------------------
def gfrl_afm_kernel(emb_ref, wg_ref, bg_ref, watt_ref, batt_ref, p_ref, q_ref,
                    mask_ref, out_ref, *, num_fields, embed_dim, attn_size,
                    score_lanes):
    F, D, A = num_fields, embed_dim, attn_size
    tb = emb_ref.shape[0]

    emb_bf = emb_ref[...]                                    # (tb, F*D) bf16
    emb = emb_bf.astype(jnp.float32)

    # ---- FeaturesEmbeddingWithGlobalIn, type='glu' ----
    # TODO(synk): exact GFRL "global-in" source unavailable; modeled as a global
    # GLU gate over the flattened embedding: e * sigmoid(e @ Wg + bg).
    z = (jnp.dot(emb_bf, wg_ref[...], preferred_element_type=jnp.float32)
         + bg_ref[...])
    gated = emb * jax.nn.sigmoid(z)                          # (tb, F*D) f32

    watt_bd = watt_ref[...]                                  # (F*D, F*A) bf16 block-diag
    batt_full = jnp.broadcast_to(batt_ref[...], (tb, F * A))  # hoisted broadcast

    # Compact accumulators: one lane per (shift, field) pair slot.  Pad lanes
    # (>= 56) are initialized to -1e9 via the mask so they vanish in softmax.
    sc = jnp.broadcast_to(mask_ref[...], (tb, score_lanes))  # scores
    tv = jnp.zeros((tb, score_lanes), jnp.float32)           # per-pair ip . wfc

    # The 28 unordered pairs are swept as 7 block-rotations of the gated
    # embedding; every pair appears exactly twice with identical score and
    # value, which cancels exactly in the softmax-weighted average.
    for s in range(1, F):
        rolled = pltpu.roll(gated, shift=s * D, axis=1)
        ip_bf = (gated * rolled).astype(jnp.bfloat16)        # (tb, F*D), consumed now
        h = jnp.maximum(
            jnp.dot(ip_bf, watt_bd, preferred_element_type=jnp.float32)
            + batt_full, 0.0)                                # (tb, F*A)
        # Placement matmuls write this shift's 8 pair scores / pair values
        # directly into their own lanes of the compact accumulators, so all
        # downstream softmax math stays at (tb, 64) instead of (tb, F*D).
        # (bproj shifts every score equally -> dropped; softmax is invariant.)
        sc = sc + jnp.dot(h.astype(jnp.bfloat16), p_ref[s - 1],
                          preferred_element_type=jnp.float32)   # (tb, 64)
        tv = tv + jnp.dot(ip_bf, q_ref[s - 1],
                          preferred_element_type=jnp.float32)   # (tb, 64)

    # ---- single-pass compact softmax ----
    m = jnp.max(sc, axis=1, keepdims=True)                   # (tb, 1)
    e = jnp.exp(sc - m)
    l = jnp.sum(e, axis=1, keepdims=True)
    num = jnp.sum(e * tv, axis=1, keepdims=True)
    # TODO(synk): both F.dropout(p=0.5) calls are identity in eval mode.
    afm = num * pl.reciprocal(l, approx=False)               # exact reciprocal

    # Lane-dense output: broadcast the per-row scalar across 128 lanes so the
    # store is an unmasked full-lane vst; the wrapper reads column 0.
    # TODO(synk): could pack to (1, tb) to cut output DMA 128x at large B.
    out_ref[...] = jnp.broadcast_to(afm, out_ref.shape)


# ------------------------- parameter preparation (hoisted) --------------------
def prepare_kernel_weights(params):
    """Build kernel-ready expanded / block-diagonal / placement weights ONCE,
    outside the per-call forward path (review: hoist kron/tile expansions)."""
    F, D, A = NUM_FIELDS, EMBED_DIM, ATTN_SIZE
    S, L = NUM_SHIFTS, SCORE_LANES

    eye_f = jnp.eye(F, dtype=jnp.float32)
    watt_bd = jnp.kron(eye_f, params["watt"]).astype(jnp.bfloat16)    # (F*D, F*A)
    batt_t = jnp.tile(params["batt"], (1, F)).astype(jnp.float32)     # (1, F*A)

    # Placement one-hots: shift s (0-based), field-block i -> score lane s*F + i.
    lane = jnp.arange(L)
    target = jnp.arange(S)[:, None, None] * F + jnp.arange(F)[None, :, None]
    place = (lane[None, None, :] == target).astype(jnp.float32)       # (S, F, L)
    # P[s, i*A + a, l] = wproj[a] * place[s, i, l]   (hidden -> compact score)
    p_place = jnp.einsum("a,sil->sial", params["wproj"][:, 0],
                         place).reshape(S, F * A, L).astype(jnp.bfloat16)
    # Q[s, i*D + d, l] = wfc[d] * place[s, i, l]     (ip -> per-pair ip . wfc)
    q_place = jnp.einsum("d,sil->sidl", params["wfc"][:, 0],
                         place).reshape(S, F * D, L).astype(jnp.bfloat16)

    mask = jnp.where(lane < S * F, 0.0, -1e9).reshape(1, L).astype(jnp.float32)

    return {
        "wg": params["wg"].astype(jnp.bfloat16),
        "bg": params["bg"].astype(jnp.float32),
        "watt_bd": watt_bd,
        "batt_t": batt_t,
        "p_place": p_place,
        "q_place": q_place,
        "mask": mask,
    }


# --------------------------------- wrapper ------------------------------------
def gfrl_afm_forward(params, prep, x, *, tb=None):
    """x: int32 (B, num_fields). Returns float32 (B, 1)."""
    B, F = x.shape
    D, A = EMBED_DIM, ATTN_SIZE
    assert F == NUM_FIELDS
    if tb is None:
        tb = _pick_tb(B)
    assert B % tb == 0

    offsets = jnp.asarray(_OFFSETS, jnp.int32)
    xo = x + offsets[None, :]                                # (B, F)

    emb_flat = params["emb_table"][xo].reshape(B, F * D).astype(jnp.bfloat16)

    # FeaturesLinear stays in plain JAX glue (8 floats/row is not worth a DMA
    # stream); added to the kernel output together with the fc bias below.
    linear = (jnp.sum(params["lin_table"][xo][..., 0], axis=1, keepdims=True)
              + params["lin_bias"])

    kernel = functools.partial(gfrl_afm_kernel, num_fields=F, embed_dim=D,
                               attn_size=A, score_lanes=SCORE_LANES)

    OUT_LANES = 128
    # Grid-invariant weights: constant index maps -> DMA'd once across the grid.
    # TODO(synk): pipeline_mode=pl.Buffered(1) would also drop their second
    # pipeline buffer (~0.5 MiB); skipped for portability.
    full = lambda shape: pl.BlockSpec(shape, lambda b: tuple(0 for _ in shape))

    out_slab = pl.pallas_call(
        kernel,
        out_shape=jax.ShapeDtypeStruct((B, OUT_LANES), jnp.float32),
        grid=(B // tb,),
        in_specs=[
            pl.BlockSpec((tb, F * D), lambda b: (b, 0)),      # emb_flat (bf16)
            full((F * D, F * D)),                             # wg (bf16)
            full((1, F * D)),                                 # bg (f32)
            full((F * D, F * A)),                             # watt block-diag (bf16)
            full((1, F * A)),                                 # batt tiled (f32)
            full((NUM_SHIFTS, F * A, SCORE_LANES)),           # score placement (bf16)
            full((NUM_SHIFTS, F * D, SCORE_LANES)),           # ip.wfc placement (bf16)
            full((1, SCORE_LANES)),                           # pad-lane mask (f32)
        ],
        out_specs=pl.BlockSpec((tb, OUT_LANES), lambda b: (b, 0)),
        compiler_params=pltpu.CompilerParams(
            dimension_semantics=("parallel",),
            vmem_limit_bytes=32 * 1024 * 1024),
    )(emb_flat, prep["wg"], prep["bg"], prep["watt_bd"], prep["batt_t"],
      prep["p_place"], prep["q_place"], prep["mask"])

    afm = out_slab[:, :1]                                     # (B, 1)
    return linear + params["bfc"] + afm


# ------------------------------ pure-JAX reference ----------------------------
def reference_forward(params, x):
    offsets = jnp.asarray(_OFFSETS, jnp.int32)
    xo = x + offsets[None, :]
    emb = params["emb_table"][xo]                             # (B,F,D)
    lin = (jnp.sum(params["lin_table"][xo][..., 0], axis=1, keepdims=True)
           + params["lin_bias"])
    B, F, D = emb.shape
    flat = emb.reshape(B, F * D)
    gated = (flat * jax.nn.sigmoid(flat @ params["wg"] + params["bg"])
             ).reshape(B, F, D)
    row, col = _pairs(F)
    p = gated[:, jnp.asarray(row), :]
    q = gated[:, jnp.asarray(col), :]
    ip = p * q                                                # (B,P,D)
    h = jax.nn.relu(ip @ params["watt"] + params["batt"])
    s = h @ params["wproj"] + params["bproj"]                 # (B,P,1)
    a = jax.nn.softmax(s, axis=1)
    attn_out = jnp.sum(a * ip, axis=1)                        # (B,D)
    afm = attn_out @ params["wfc"] + params["bfc"]
    return lin + afm


# ----------------------------------- main --------------------------------------
def init_params(key):
    ks = jax.random.split(key, 12)
    FD = NUM_FIELDS * EMBED_DIM
    return {
        "emb_table": 0.1 * jax.random.normal(ks[0], (TOTAL_DIM, EMBED_DIM), jnp.float32),
        "lin_table": 0.1 * jax.random.normal(ks[1], (TOTAL_DIM, 1), jnp.float32),
        "lin_bias": 0.1 * jax.random.normal(ks[7], (1, 1), jnp.float32),
        "wg": 0.1 * jax.random.normal(ks[2], (FD, FD), jnp.float32),
        "bg": 0.01 * jax.random.normal(ks[8], (1, FD), jnp.float32),
        "watt": 0.1 * jax.random.normal(ks[3], (EMBED_DIM, ATTN_SIZE), jnp.float32),
        "batt": 0.01 * jax.random.normal(ks[4], (1, ATTN_SIZE), jnp.float32),
        "wproj": 0.1 * jax.random.normal(ks[5], (ATTN_SIZE, 1), jnp.float32),
        "bproj": 0.1 * jax.random.normal(ks[9], (1, 1), jnp.float32),
        "wfc": 0.1 * jax.random.normal(ks[6], (EMBED_DIM, 1), jnp.float32),
        "bfc": 0.1 * jax.random.normal(ks[10], (1, 1), jnp.float32),
    }


if __name__ == "__main__":
    key = jax.random.PRNGKey(0)
    pkey, xkey = jax.random.split(key)
    params = init_params(pkey)
    prep = prepare_kernel_weights(params)     # hoisted weight expansion

    B = 256   # v5e/v6e: single 256-row tile; v7x: 2x128 tiles across both TCs
    x = jax.random.randint(xkey, (B, NUM_FIELDS), 0, FIELD_DIMS[0], dtype=jnp.int32)

    out = jax.jit(gfrl_afm_forward)(params, prep, x)
    out = jax.block_until_ready(out)

    ref = reference_forward(params, x)
    assert out.shape == (B, 1), out.shape
    max_err = jnp.max(jnp.abs(out - ref))
    assert jnp.allclose(out, ref, atol=2e-3, rtol=2e-3), (max_err, out[:4], ref[:4])
    print("KERNEL_OK")
</pallas_src>

<mosaic_0001>
module attributes {stable_mosaic.version = 11 : i64} {
  func.func @gfrl_afm_kernel(%arg0: i32, %arg1: memref<256x256xbf16, #tpu.memory_space<vmem>>, %arg2: memref<256x256xbf16, #tpu.memory_space<vmem>>, %arg3: memref<1x256xf32, #tpu.memory_space<vmem>>, %arg4: memref<256x128xbf16, #tpu.memory_space<vmem>>, %arg5: memref<1x128xf32, #tpu.memory_space<vmem>>, %arg6: memref<7x128x64xbf16, #tpu.memory_space<vmem>>, %arg7: memref<7x256x64xbf16, #tpu.memory_space<vmem>>, %arg8: memref<1x64xf32, #tpu.memory_space<vmem>>, %arg9: memref<256x128xf32, #tpu.memory_space<vmem>>) attributes {dimension_semantics = [#tpu.dimension_semantics<parallel>], iteration_bounds = array<i64: 1>, scalar_prefetch = 0 : i64, scratch_operands = 0 : i64, tpu.core_type = #tpu.core_type<tc>, window_params = [{transform_indices = @transform_0, window_bounds = array<i64: 256, 256>}, {pipeline_mode = #tpu.pipeline_mode<synchronous>, transform_indices = @transform_1, window_bounds = array<i64: 256, 256>}, {pipeline_mode = #tpu.pipeline_mode<synchronous>, transform_indices = @transform_2, window_bounds = array<i64: 1, 256>}, {pipeline_mode = #tpu.pipeline_mode<synchronous>, transform_indices = @transform_3, window_bounds = array<i64: 256, 128>}, {pipeline_mode = #tpu.pipeline_mode<synchronous>, transform_indices = @transform_4, window_bounds = array<i64: 1, 128>}, {pipeline_mode = #tpu.pipeline_mode<synchronous>, transform_indices = @transform_5, window_bounds = array<i64: 7, 128, 64>}, {pipeline_mode = #tpu.pipeline_mode<synchronous>, transform_indices = @transform_6, window_bounds = array<i64: 7, 256, 64>}, {pipeline_mode = #tpu.pipeline_mode<synchronous>, transform_indices = @transform_7, window_bounds = array<i64: 1, 64>}, {transform_indices = @transform_8, window_bounds = array<i64: 256, 128>}]} {
    %c0 = arith.constant 0 : index
    %c0_0 = arith.constant 0 : index
    %0 = vector.load %arg1[%c0, %c0_0] : memref<256x256xbf16, #tpu.memory_space<vmem>>, vector<256x256xbf16>
    %1 = arith.extf %0 : vector<256x256xbf16> to vector<256x256xf32>
    %c0_1 = arith.constant 0 : index
    %c0_2 = arith.constant 0 : index
    %2 = vector.load %arg2[%c0_1, %c0_2] : memref<256x256xbf16, #tpu.memory_space<vmem>>, vector<256x256xbf16>
    %cst = arith.constant dense<0.000000e+00> : vector<256x256xf32>
    %3 = tpu.matmul %0, %2, %cst {dimension_numbers = #tpu.dot_dimension_numbers<[1], [0], [0], [1], [0, 0, 1, 1], [], []>} : vector<256x256xbf16>, vector<256x256xbf16>, vector<256x256xf32> -> vector<256x256xf32>
    %c0_3 = arith.constant 0 : index
    %c0_4 = arith.constant 0 : index
    %4 = vector.load %arg3[%c0_3, %c0_4] : memref<1x256xf32, #tpu.memory_space<vmem>>, vector<1x256xf32>
    %5 = vector.broadcast %4 : vector<1x256xf32> to vector<256x256xf32>
    %6 = arith.addf %3, %5 : vector<256x256xf32>
    %7 = arith.negf %6 : vector<256x256xf32>
    %8 = math.exp %7 : vector<256x256xf32>
    %cst_5 = arith.constant 1.000000e+00 : f32
    %9 = vector.broadcast %cst_5 : f32 to vector<256x256xf32>
    %10 = arith.addf %9, %8 : vector<256x256xf32>
    %11 = arith.divf %9, %10 : vector<256x256xf32>
    %12 = arith.mulf %1, %11 : vector<256x256xf32>
    %c0_6 = arith.constant 0 : index
    %c0_7 = arith.constant 0 : index
    %13 = vector.load %arg4[%c0_6, %c0_7] : memref<256x128xbf16, #tpu.memory_space<vmem>>, vector<256x128xbf16>
    %c0_8 = arith.constant 0 : index
    %c0_9 = arith.constant 0 : index
    %14 = vector.load %arg5[%c0_8, %c0_9] : memref<1x128xf32, #tpu.memory_space<vmem>>, vector<1x128xf32>
    %15 = vector.shape_cast %14 : vector<1x128xf32> to vector<1x128xf32>
    %16 = vector.broadcast %15 : vector<1x128xf32> to vector<256x128xf32>
    %c0_10 = arith.constant 0 : index
    %c0_11 = arith.constant 0 : index
    %17 = vector.load %arg8[%c0_10, %c0_11] : memref<1x64xf32, #tpu.memory_space<vmem>>, vector<1x64xf32>
    %18 = vector.shape_cast %17 : vector<1x64xf32> to vector<1x64xf32>
    %19 = vector.broadcast %18 : vector<1x64xf32> to vector<256x64xf32>
    %cst_12 = arith.constant 0.000000e+00 : f32
    %20 = vector.broadcast %cst_12 : f32 to vector<256x64xf32>
    %c32_i32 = arith.constant 32 : i32
    %21 = tpu.dynamic_rotate %12 by %c32_i32 dim 1 : vector<256x256xf32>, i32 -> vector<256x256xf32>
    %22 = arith.mulf %12, %21 : vector<256x256xf32>
    %23 = arith.truncf %22 : vector<256x256xf32> to vector<256x256xbf16>
    %cst_13 = arith.constant dense<0.000000e+00> : vector<256x128xf32>
    %24 = tpu.matmul %23, %13, %cst_13 {dimension_numbers = #tpu.dot_dimension_numbers<[1], [0], [0], [1], [0, 0, 1, 1], [], []>} : vector<256x256xbf16>, vector<256x128xbf16>, vector<256x128xf32> -> vector<256x128xf32>
    %25 = arith.addf %24, %16 : vector<256x128xf32>
    %cst_14 = arith.constant 0.000000e+00 : f32
    %26 = vector.broadcast %cst_14 : f32 to vector<256x128xf32>
    %27 = arith.maximumf %25, %26 : vector<256x128xf32>
    %28 = arith.truncf %27 : vector<256x128xf32> to vector<256x128xbf16>
    %c0_15 = arith.constant 0 : index
    %c0_16 = arith.constant 0 : index
    %c0_17 = arith.constant 0 : index
    %29 = vector.load %arg6[%c0_15, %c0_16, %c0_17] : memref<7x128x64xbf16, #tpu.memory_space<vmem>>, vector<1x128x64xbf16>
    %30 = vector.shape_cast %29 : vector<1x128x64xbf16> to vector<128x64xbf16>
    %cst_18 = arith.constant dense<0.000000e+00> : vector<256x64xf32>
    %31 = tpu.matmul %28, %30, %cst_18 {dimension_numbers = #tpu.dot_dimension_numbers<[1], [0], [0], [1], [0, 0, 1, 1], [], []>} : vector<256x128xbf16>, vector<128x64xbf16>, vector<256x64xf32> -> vector<256x64xf32>
    %32 = arith.addf %19, %31 : vector<256x64xf32>
    %c0_19 = arith.constant 0 : index
    %c0_20 = arith.constant 0 : index
    %c0_21 = arith.constant 0 : index
    %33 = vector.load %arg7[%c0_19, %c0_20, %c0_21] : memref<7x256x64xbf16, #tpu.memory_space<vmem>>, vector<1x256x64xbf16>
    %34 = vector.shape_cast %33 : vector<1x256x64xbf16> to vector<256x64xbf16>
    %cst_22 = arith.constant dense<0.000000e+00> : vector<256x64xf32>
    %35 = tpu.matmul %23, %34, %cst_22 {dimension_numbers = #tpu.dot_dimension_numbers<[1], [0], [0], [1], [0, 0, 1, 1], [], []>} : vector<256x256xbf16>, vector<256x64xbf16>, vector<256x64xf32> -> vector<256x64xf32>
    %36 = arith.addf %20, %35 : vector<256x64xf32>
    %c64_i32 = arith.constant 64 : i32
    %37 = tpu.dynamic_rotate %12 by %c64_i32 dim 1 : vector<256x256xf32>, i32 -> vector<256x256xf32>
    %38 = arith.mulf %12, %37 : vector<256x256xf32>
    %39 = arith.truncf %38 : vector<256x256xf32> to vector<256x256xbf16>
    %cst_23 = arith.constant dense<0.000000e+00> : vector<256x128xf32>
    %40 = tpu.matmul %39, %13, %cst_23 {dimension_numbers = #tpu.dot_dimension_numbers<[1], [0], [0], [1], [0, 0, 1, 1], [], []>} : vector<256x256xbf16>, vector<256x128xbf16>, vector<256x128xf32> -> vector<256x128xf32>
    %41 = arith.addf %40, %16 : vector<256x128xf32>
    %cst_24 = arith.constant 0.000000e+00 : f32
    %42 = vector.broadcast %cst_24 : f32 to vector<256x128xf32>
    %43 = arith.maximumf %41, %42 : vector<256x128xf32>
    %44 = arith.truncf %43 : vector<256x128xf32> to vector<256x128xbf16>
    %c1 = arith.constant 1 : index
    %c0_25 = arith.constant 0 : index
    %c0_26 = arith.constant 0 : index
    %45 = vector.load %arg6[%c1, %c0_25, %c0_26] : memref<7x128x64xbf16, #tpu.memory_space<vmem>>, vector<1x128x64xbf16>
    %46 = vector.shape_cast %45 : vector<1x128x64xbf16> to vector<128x64xbf16>
    %cst_27 = arith.constant dense<0.000000e+00> : vector<256x64xf32>
    %47 = tpu.matmul %44, %46, %cst_27 {dimension_numbers = #tpu.dot_dimension_numbers<[1], [0], [0], [1], [0, 0, 1, 1], [], []>} : vector<256x128xbf16>, vector<128x64xbf16>, vector<256x64xf32> -> vector<256x64xf32>
    %48 = arith.addf %32, %47 : vector<256x64xf32>
    %c1_28 = arith.constant 1 : index
    %c0_29 = arith.constant 0 : index
    %c0_30 = arith.constant 0 : index
    %49 = vector.load %arg7[%c1_28, %c0_29, %c0_30] : memref<7x256x64xbf16, #tpu.memory_space<vmem>>, vector<1x256x64xbf16>
    %50 = vector.shape_cast %49 : vector<1x256x64xbf16> to vector<256x64xbf16>
    %cst_31 = arith.constant dense<0.000000e+00> : vector<256x64xf32>
    %51 = tpu.matmul %39, %50, %cst_31 {dimension_numbers = #tpu.dot_dimension_numbers<[1], [0], [0], [1], [0, 0, 1, 1], [], []>} : vector<256x256xbf16>, vector<256x64xbf16>, vector<256x64xf32> -> vector<256x64xf32>
    %52 = arith.addf %36, %51 : vector<256x64xf32>
    %c96_i32 = arith.constant 96 : i32
    %53 = tpu.dynamic_rotate %12 by %c96_i32 dim 1 : vector<256x256xf32>, i32 -> vector<256x256xf32>
    %54 = arith.mulf %12, %53 : vector<256x256xf32>
    %55 = arith.truncf %54 : vector<256x256xf32> to vector<256x256xbf16>
    %cst_32 = arith.constant dense<0.000000e+00> : vector<256x128xf32>
    %56 = tpu.matmul %55, %13, %cst_32 {dimension_numbers = #tpu.dot_dimension_numbers<[1], [0], [0], [1], [0, 0, 1, 1], [], []>} : vector<256x256xbf16>, vector<256x128xbf16>, vector<256x128xf32> -> vector<256x128xf32>
    %57 = arith.addf %56, %16 : vector<256x128xf32>
    %cst_33 = arith.constant 0.000000e+00 : f32
    %58 = vector.broadcast %cst_33 : f32 to vector<256x128xf32>
    %59 = arith.maximumf %57, %58 : vector<256x128xf32>
    %60 = arith.truncf %59 : vector<256x128xf32> to vector<256x128xbf16>
    %c2 = arith.constant 2 : index
    %c0_34 = arith.constant 0 : index
    %c0_35 = arith.constant 0 : index
    %61 = vector.load %arg6[%c2, %c0_34, %c0_35] : memref<7x128x64xbf16, #tpu.memory_space<vmem>>, vector<1x128x64xbf16>
    %62 = vector.shape_cast %61 : vector<1x128x64xbf16> to vector<128x64xbf16>
    %cst_36 = arith.constant dense<0.000000e+00> : vector<256x64xf32>
    %63 = tpu.matmul %60, %62, %cst_36 {dimension_numbers = #tpu.dot_dimension_numbers<[1], [0], [0], [1], [0, 0, 1, 1], [], []>} : vector<256x128xbf16>, vector<128x64xbf16>, vector<256x64xf32> -> vector<256x64xf32>
    %64 = arith.addf %48, %63 : vector<256x64xf32>
    %c2_37 = arith.constant 2 : index
    %c0_38 = arith.constant 0 : index
    %c0_39 = arith.constant 0 : index
    %65 = vector.load %arg7[%c2_37, %c0_38, %c0_39] : memref<7x256x64xbf16, #tpu.memory_space<vmem>>, vector<1x256x64xbf16>
    %66 = vector.shape_cast %65 : vector<1x256x64xbf16> to vector<256x64xbf16>
    %cst_40 = arith.constant dense<0.000000e+00> : vector<256x64xf32>
    %67 = tpu.matmul %55, %66, %cst_40 {dimension_numbers = #tpu.dot_dimension_numbers<[1], [0], [0], [1], [0, 0, 1, 1], [], []>} : vector<256x256xbf16>, vector<256x64xbf16>, vector<256x64xf32> -> vector<256x64xf32>
    %68 = arith.addf %52, %67 : vector<256x64xf32>
    %c128_i32 = arith.constant 128 : i32
    %69 = tpu.dynamic_rotate %12 by %c128_i32 dim 1 : vector<256x256xf32>, i32 -> vector<256x256xf32>
    %70 = arith.mulf %12, %69 : vector<256x256xf32>
    %71 = arith.truncf %70 : vector<256x256xf32> to vector<256x256xbf16>
    %cst_41 = arith.constant dense<0.000000e+00> : vector<256x128xf32>
    %72 = tpu.matmul %71, %13, %cst_41 {dimension_numbers = #tpu.dot_dimension_numbers<[1], [0], [0], [1], [0, 0, 1, 1], [], []>} : vector<256x256xbf16>, vector<256x128xbf16>, vector<256x128xf32> -> vector<256x128xf32>
    %73 = arith.addf %72, %16 : vector<256x128xf32>
    %cst_42 = arith.constant 0.000000e+00 : f32
    %74 = vector.broadcast %cst_42 : f32 to vector<256x128xf32>
    %75 = arith.maximumf %73, %74 : vector<256x128xf32>
    %76 = arith.truncf %75 : vector<256x128xf32> to vector<256x128xbf16>
    %c3 = arith.constant 3 : index
    %c0_43 = arith.constant 0 : index
    %c0_44 = arith.constant 0 : index
    %77 = vector.load %arg6[%c3, %c0_43, %c0_44] : memref<7x128x64xbf16, #tpu.memory_space<vmem>>, vector<1x128x64xbf16>
    %78 = vector.shape_cast %77 : vector<1x128x64xbf16> to vector<128x64xbf16>
    %cst_45 = arith.constant dense<0.000000e+00> : vector<256x64xf32>
    %79 = tpu.matmul %76, %78, %cst_45 {dimension_numbers = #tpu.dot_dimension_numbers<[1], [0], [0], [1], [0, 0, 1, 1], [], []>} : vector<256x128xbf16>, vector<128x64xbf16>, vector<256x64xf32> -> vector<256x64xf32>
    %80 = arith.addf %64, %79 : vector<256x64xf32>
    %c3_46 = arith.constant 3 : index
    %c0_47 = arith.constant 0 : index
    %c0_48 = arith.constant 0 : index
    %81 = vector.load %arg7[%c3_46, %c0_47, %c0_48] : memref<7x256x64xbf16, #tpu.memory_space<vmem>>, vector<1x256x64xbf16>
    %82 = vector.shape_cast %81 : vector<1x256x64xbf16> to vector<256x64xbf16>
    %cst_49 = arith.constant dense<0.000000e+00> : vector<256x64xf32>
    %83 = tpu.matmul %71, %82, %cst_49 {dimension_numbers = #tpu.dot_dimension_numbers<[1], [0], [0], [1], [0, 0, 1, 1], [], []>} : vector<256x256xbf16>, vector<256x64xbf16>, vector<256x64xf32> -> vector<256x64xf32>
    %84 = arith.addf %68, %83 : vector<256x64xf32>
    %c160_i32 = arith.constant 160 : i32
    %85 = tpu.dynamic_rotate %12 by %c160_i32 dim 1 : vector<256x256xf32>, i32 -> vector<256x256xf32>
    %86 = arith.mulf %12, %85 : vector<256x256xf32>
    %87 = arith.truncf %86 : vector<256x256xf32> to vector<256x256xbf16>
    %cst_50 = arith.constant dense<0.000000e+00> : vector<256x128xf32>
    %88 = tpu.matmul %87, %13, %cst_50 {dimension_numbers = #tpu.dot_dimension_numbers<[1], [0], [0], [1], [0, 0, 1, 1], [], []>} : vector<256x256xbf16>, vector<256x128xbf16>, vector<256x128xf32> -> vector<256x128xf32>
    %89 = arith.addf %88, %16 : vector<256x128xf32>
    %cst_51 = arith.constant 0.000000e+00 : f32
    %90 = vector.broadcast %cst_51 : f32 to vector<256x128xf32>
    %91 = arith.maximumf %89, %90 : vector<256x128xf32>
    %92 = arith.truncf %91 : vector<256x128xf32> to vector<256x128xbf16>
    %c4 = arith.constant 4 : index
    %c0_52 = arith.constant 0 : index
    %c0_53 = arith.constant 0 : index
    %93 = vector.load %arg6[%c4, %c0_52, %c0_53] : memref<7x128x64xbf16, #tpu.memory_space<vmem>>, vector<1x128x64xbf16>
    %94 = vector.shape_cast %93 : vector<1x128x64xbf16> to vector<128x64xbf16>
    %cst_54 = arith.constant dense<0.000000e+00> : vector<256x64xf32>
    %95 = tpu.matmul %92, %94, %cst_54 {dimension_numbers = #tpu.dot_dimension_numbers<[1], [0], [0], [1], [0, 0, 1, 1], [], []>} : vector<256x128xbf16>, vector<128x64xbf16>, vector<256x64xf32> -> vector<256x64xf32>
    %96 = arith.addf %80, %95 : vector<256x64xf32>
    %c4_55 = arith.constant 4 : index
    %c0_56 = arith.constant 0 : index
    %c0_57 = arith.constant 0 : index
    %97 = vector.load %arg7[%c4_55, %c0_56, %c0_57] : memref<7x256x64xbf16, #tpu.memory_space<vmem>>, vector<1x256x64xbf16>
    %98 = vector.shape_cast %97 : vector<1x256x64xbf16> to vector<256x64xbf16>
    %cst_58 = arith.constant dense<0.000000e+00> : vector<256x64xf32>
    %99 = tpu.matmul %87, %98, %cst_58 {dimension_numbers = #tpu.dot_dimension_numbers<[1], [0], [0], [1], [0, 0, 1, 1], [], []>} : vector<256x256xbf16>, vector<256x64xbf16>, vector<256x64xf32> -> vector<256x64xf32>
    %100 = arith.addf %84, %99 : vector<256x64xf32>
    %c192_i32 = arith.constant 192 : i32
    %101 = tpu.dynamic_rotate %12 by %c192_i32 dim 1 : vector<256x256xf32>, i32 -> vector<256x256xf32>
    %102 = arith.mulf %12, %101 : vector<256x256xf32>
    %103 = arith.truncf %102 : vector<256x256xf32> to vector<256x256xbf16>
    %cst_59 = arith.constant dense<0.000000e+00> : vector<256x128xf32>
    %104 = tpu.matmul %103, %13, %cst_59 {dimension_numbers = #tpu.dot_dimension_numbers<[1], [0], [0], [1], [0, 0, 1, 1], [], []>} : vector<256x256xbf16>, vector<256x128xbf16>, vector<256x128xf32> -> vector<256x128xf32>
    %105 = arith.addf %104, %16 : vector<256x128xf32>
    %cst_60 = arith.constant 0.000000e+00 : f32
    %106 = vector.broadcast %cst_60 : f32 to vector<256x128xf32>
    %107 = arith.maximumf %105, %106 : vector<256x128xf32>
    %108 = arith.truncf %107 : vector<256x128xf32> to vector<256x128xbf16>
    %c5 = arith.constant 5 : index
    %c0_61 = arith.constant 0 : index
    %c0_62 = arith.constant 0 : index
    %109 = vector.load %arg6[%c5, %c0_61, %c0_62] : memref<7x128x64xbf16, #tpu.memory_space<vmem>>, vector<1x128x64xbf16>
    %110 = vector.shape_cast %109 : vector<1x128x64xbf16> to vector<128x64xbf16>
    %cst_63 = arith.constant dense<0.000000e+00> : vector<256x64xf32>
    %111 = tpu.matmul %108, %110, %cst_63 {dimension_numbers = #tpu.dot_dimension_numbers<[1], [0], [0], [1], [0, 0, 1, 1], [], []>} : vector<256x128xbf16>, vector<128x64xbf16>, vector<256x64xf32> -> vector<256x64xf32>
    %112 = arith.addf %96, %111 : vector<256x64xf32>
    %c5_64 = arith.constant 5 : index
    %c0_65 = arith.constant 0 : index
    %c0_66 = arith.constant 0 : index
    %113 = vector.load %arg7[%c5_64, %c0_65, %c0_66] : memref<7x256x64xbf16, #tpu.memory_space<vmem>>, vector<1x256x64xbf16>
    %114 = vector.shape_cast %113 : vector<1x256x64xbf16> to vector<256x64xbf16>
    %cst_67 = arith.constant dense<0.000000e+00> : vector<256x64xf32>
    %115 = tpu.matmul %103, %114, %cst_67 {dimension_numbers = #tpu.dot_dimension_numbers<[1], [0], [0], [1], [0, 0, 1, 1], [], []>} : vector<256x256xbf16>, vector<256x64xbf16>, vector<256x64xf32> -> vector<256x64xf32>
    %116 = arith.addf %100, %115 : vector<256x64xf32>
    %c224_i32 = arith.constant 224 : i32
    %117 = tpu.dynamic_rotate %12 by %c224_i32 dim 1 : vector<256x256xf32>, i32 -> vector<256x256xf32>
    %118 = arith.mulf %12, %117 : vector<256x256xf32>
    %119 = arith.truncf %118 : vector<256x256xf32> to vector<256x256xbf16>
    %cst_68 = arith.constant dense<0.000000e+00> : vector<256x128xf32>
    %120 = tpu.matmul %119, %13, %cst_68 {dimension_numbers = #tpu.dot_dimension_numbers<[1], [0], [0], [1], [0, 0, 1, 1], [], []>} : vector<256x256xbf16>, vector<256x128xbf16>, vector<256x128xf32> -> vector<256x128xf32>
    %121 = arith.addf %120, %16 : vector<256x128xf32>
    %cst_69 = arith.constant 0.000000e+00 : f32
    %122 = vector.broadcast %cst_69 : f32 to vector<256x128xf32>
    %123 = arith.maximumf %121, %122 : vector<256x128xf32>
    %124 = arith.truncf %123 : vector<256x128xf32> to vector<256x128xbf16>
    %c6 = arith.constant 6 : index
    %c0_70 = arith.constant 0 : index
    %c0_71 = arith.constant 0 : index
    %125 = vector.load %arg6[%c6, %c0_70, %c0_71] : memref<7x128x64xbf16, #tpu.memory_space<vmem>>, vector<1x128x64xbf16>
    %126 = vector.shape_cast %125 : vector<1x128x64xbf16> to vector<128x64xbf16>
    %cst_72 = arith.constant dense<0.000000e+00> : vector<256x64xf32>
    %127 = tpu.matmul %124, %126, %cst_72 {dimension_numbers = #tpu.dot_dimension_numbers<[1], [0], [0], [1], [0, 0, 1, 1], [], []>} : vector<256x128xbf16>, vector<128x64xbf16>, vector<256x64xf32> -> vector<256x64xf32>
    %128 = arith.addf %112, %127 : vector<256x64xf32>
    %c6_73 = arith.constant 6 : index
    %c0_74 = arith.constant 0 : index
    %c0_75 = arith.constant 0 : index
    %129 = vector.load %arg7[%c6_73, %c0_74, %c0_75] : memref<7x256x64xbf16, #tpu.memory_space<vmem>>, vector<1x256x64xbf16>
    %130 = vector.shape_cast %129 : vector<1x256x64xbf16> to vector<256x64xbf16>
    %cst_76 = arith.constant dense<0.000000e+00> : vector<256x64xf32>
    %131 = tpu.matmul %119, %130, %cst_76 {dimension_numbers = #tpu.dot_dimension_numbers<[1], [0], [0], [1], [0, 0, 1, 1], [], []>} : vector<256x256xbf16>, vector<256x64xbf16>, vector<256x64xf32> -> vector<256x64xf32>
    %132 = arith.addf %116, %131 : vector<256x64xf32>
    %cst_77 = arith.constant dense<0xFF800000> : vector<256xf32>
    %133 = vector.multi_reduction <maximumf>, %128, %cst_77 [1] : vector<256x64xf32> to vector<256xf32>
    %134 = vector.shape_cast %133 : vector<256xf32> to vector<256x1xf32>
    %135 = vector.broadcast %134 : vector<256x1xf32> to vector<256x64xf32>
    %136 = arith.subf %128, %135 : vector<256x64xf32>
    %137 = math.exp %136 : vector<256x64xf32>
    %cst_78 = arith.constant dense<0.000000e+00> : vector<256xf32>
    %138 = vector.multi_reduction <add>, %137, %cst_78 [1] : vector<256x64xf32> to vector<256xf32>
    %139 = vector.shape_cast %138 : vector<256xf32> to vector<256x1xf32>
    %140 = arith.mulf %137, %132 : vector<256x64xf32>
    %cst_79 = arith.constant dense<0.000000e+00> : vector<256xf32>
    %141 = vector.multi_reduction <add>, %140, %cst_79 [1] : vector<256x64xf32> to vector<256xf32>
    %142 = vector.shape_cast %141 : vector<256xf32> to vector<256x1xf32>
    %143 = tpu.reciprocal %139 : vector<256x1xf32> -> vector<256x1xf32>
    %144 = arith.mulf %142, %143 : vector<256x1xf32>
    %145 = vector.shape_cast %144 : vector<256x1xf32> to vector<256x1xf32>
    %146 = vector.broadcast %145 : vector<256x1xf32> to vector<256x128xf32>
    %c0_80 = arith.constant 0 : index
    %c0_81 = arith.constant 0 : index
    %147 = vector.load %arg9[%c0_80, %c0_81] : memref<256x128xf32, #tpu.memory_space<vmem>>, vector<256x128xf32>
    tpu.vector_store %arg9[%c0_80, %c0_81], %146 {strides = array<i32>} : memref<256x128xf32, #tpu.memory_space<vmem>>, vector<256x128xf32>,
    return
  }
  func.func @transform_0(%arg0: i32) -> (i32, i32) {
    %c0_i32 = arith.constant 0 : i32
    %c0_i32_0 = arith.constant 0 : i32
    return %arg0, %c0_i32 : i32, i32
  }
  func.func @transform_1(%arg0: i32) -> (i32, i32) {
    %c0_i32 = arith.constant 0 : i32
    %c0_i32_0 = arith.constant 0 : i32
    %c0_i32_1 = arith.constant 0 : i32
    return %c0_i32, %c0_i32_0 : i32, i32
  }
  func.func @transform_2(%arg0: i32) -> (i32, i32) {
    %c0_i32 = arith.constant 0 : i32
    %c0_i32_0 = arith.constant 0 : i32
    %c0_i32_1 = arith.constant 0 : i32
    return %c0_i32, %c0_i32_0 : i32, i32
  }
  func.func @transform_3(%arg0: i32) -> (i32, i32) {
    %c0_i32 = arith.constant 0 : i32
    %c0_i32_0 = arith.constant 0 : i32
    %c0_i32_1 = arith.constant 0 : i32
    return %c0_i32, %c0_i32_0 : i32, i32
  }
  func.func @transform_4(%arg0: i32) -> (i32, i32) {
    %c0_i32 = arith.constant 0 : i32
    %c0_i32_0 = arith.constant 0 : i32
    %c0_i32_1 = arith.constant 0 : i32
    return %c0_i32, %c0_i32_0 : i32, i32
  }
  func.func @transform_5(%arg0: i32) -> (i32, i32, i32) {
    %c0_i32 = arith.constant 0 : i32
    %c0_i32_0 = arith.constant 0 : i32
    %c0_i32_1 = arith.constant 0 : i32
    %c0_i32_2 = arith.constant 0 : i32
    return %c0_i32, %c0_i32_0, %c0_i32_1 : i32, i32, i32
  }
  func.func @transform_6(%arg0: i32) -> (i32, i32, i32) {
    %c0_i32 = arith.constant 0 : i32
    %c0_i32_0 = arith.constant 0 : i32
    %c0_i32_1 = arith.constant 0 : i32
    %c0_i32_2 = arith.constant 0 : i32
    return %c0_i32, %c0_i32_0, %c0_i32_1 : i32, i32, i32
  }
  func.func @transform_7(%arg0: i32) -> (i32, i32) {
    %c0_i32 = arith.constant 0 : i32
    %c0_i32_0 = arith.constant 0 : i32
    %c0_i32_1 = arith.constant 0 : i32
    return %c0_i32, %c0_i32_0 : i32, i32
  }
  func.func @transform_8(%arg0: i32) -> (i32, i32) {
    %c0_i32 = arith.constant 0 : i32
    %c0_i32_0 = arith.constant 0 : i32
    return %arg0, %c0_i32 : i32, i32
  }
}

</mosaic_0001>

<llo_original>
// kernel: gfrl_afm_forward.1
$region0: #{gfrl_afm_forward.1}
  #allocation0 [shape = 'u32[]', space=smem, size = 0x4, offset = 0x4, fixed_abs, tag = 'smem constant byte address 0x4 - core index']
  #allocation1 [shape = 'u32[144,128]{1,0:T(1,128)}', space=vmem, size = 0x12000, scoped, tag = 'internal scratch']
  %s0 = inlined_call_operand.vmem [shape: bf16[256,256], index: 0, kind: input, shape index: {}]
  %s1 = inlined_call_operand.vmem [shape: bf16[256,256], index: 1, kind: input, shape index: {}]
  %s2 = inlined_call_operand.vmem [shape: f32[1,256], index: 2, kind: input, shape index: {}]
  %s3 = inlined_call_operand.vmem [shape: bf16[256,128], index: 3, kind: input, shape index: {}]
  %s4 = inlined_call_operand.vmem [shape: f32[1,128], index: 4, kind: input, shape index: {}]
  %s5 = inlined_call_operand.vmem [shape: bf16[7,128,64], index: 5, kind: input, shape index: {}]
  %s6 = inlined_call_operand.vmem [shape: bf16[7,256,64], index: 6, kind: input, shape index: {}]
  %s7 = inlined_call_operand.vmem [shape: f32[1,64], index: 7, kind: input, shape index: {}]
  %s8 = inlined_call_operand.vmem [shape: f32[256,128], index: 8, kind: output, shape index: {}]
  %s9 = sld [smem:[#allocation0]]
  $region42: #{gfrl_afm_forward.1} parent=0
    _
  %s11 = ssub.s32 1, %s9
  %s12 = scalar_select 0, %s11, %s9
  // Predicated region
  $region2: #{gfrl_afm_forward.1} parent=0 // pred_check
    _
  $region3: #{gfrl_afm_forward.1} parent=0 // pred_check_branch
    %14 = sbr.rel (0) target = $region5
  $region4: #{gfrl_afm_forward.1} parent=0 // pred_region
    _
  $region5: #{gfrl_afm_forward.1} parent=0 // pred_fallthru
    _
  // Predicated region
  $region6: #{gfrl_afm_forward.1} parent=0 // pred_check
    _
  $region7: #{gfrl_afm_forward.1} parent=0 // pred_check_branch
    %16 = sbr.rel (0) target = $region9
  $region8: #{gfrl_afm_forward.1} parent=0 // pred_region
    _
  $region9: #{gfrl_afm_forward.1} parent=0 // pred_fallthru
    _
  // Predicated region
  $region10: #{gfrl_afm_forward.1} parent=0 // pred_check
    _
  $region11: #{gfrl_afm_forward.1} parent=0 // pred_check_branch
    %18 = sbr.rel (0) target = $region13
  $region12: #{gfrl_afm_forward.1} parent=0 // pred_region
    _
  $region13: #{gfrl_afm_forward.1} parent=0 // pred_fallthru
    _
  // Predicated region
  $region14: #{gfrl_afm_forward.1} parent=0 // pred_check
    _
  $region15: #{gfrl_afm_forward.1} parent=0 // pred_check_branch
    %20 = sbr.rel (0) target = $region17
  $region16: #{gfrl_afm_forward.1} parent=0 // pred_region
    _
  $region17: #{gfrl_afm_forward.1} parent=0 // pred_fallthru
    _
  // Predicated region
  $region18: #{gfrl_afm_forward.1} parent=0 // pred_check
    _
  $region19: #{gfrl_afm_forward.1} parent=0 // pred_check_branch
    %22 = sbr.rel (0) target = $region21
  $region20: #{gfrl_afm_forward.1} parent=0 // pred_region
    _
  $region21: #{gfrl_afm_forward.1} parent=0 // pred_fallthru
    _
  // Predicated region
  $region22: #{gfrl_afm_forward.1} parent=0 // pred_check
    _
  $region23: #{gfrl_afm_forward.1} parent=0 // pred_check_branch
    %24 = sbr.rel (0) target = $region25
  $region24: #{gfrl_afm_forward.1} parent=0 // pred_region
    _
  $region25: #{gfrl_afm_forward.1} parent=0 // pred_fallthru
    _
  // Predicated region
  $region26: #{gfrl_afm_forward.1} parent=0 // pred_check
    _
  $region27: #{gfrl_afm_forward.1} parent=0 // pred_check_branch
    %26 = sbr.rel (0) target = $region29
  $region28: #{gfrl_afm_forward.1} parent=0 // pred_region
    _
  $region29: #{gfrl_afm_forward.1} parent=0 // pred_fallthru
    _
  // Predicated region
  $region30: #{gfrl_afm_forward.1} parent=0 // pred_check
    _
  $region31: #{gfrl_afm_forward.1} parent=0 // pred_check_branch
    %28 = sbr.rel (0) target = $region33
  $region32: #{gfrl_afm_forward.1} parent=0 // pred_region
    _
  $region33: #{gfrl_afm_forward.1} parent=0 // pred_fallthru
    _
  %v30 = vld [vmem:[%s0] sm:$0xff]
  %v31 = vld [vmem:[%s0 + $0x8] sm:$0xff]
  %v32 = vld [vmem:[%s0 + $0x10] sm:$0xff]
  %v33 = vld [vmem:[%s0 + $0x18] sm:$0xff]
  %v34 = vld [vmem:[%s0 + $0x20] sm:$0xff]
  %v35 = vld [vmem:[%s0 + $0x28] sm:$0xff]
  %v36 = vld [vmem:[%s0 + $0x30] sm:$0xff]
  %v37 = vld [vmem:[%s0 + $0x38] sm:$0xff]
  %v38 = vld [vmem:[%s0 + $0x40] sm:$0xff]
  %v39 = vld [vmem:[%s0 + $0x48] sm:$0xff]
  %v40 = vld [vmem:[%s0 + $0x50] sm:$0xff]
  %v41 = vld [vmem:[%s0 + $0x58] sm:$0xff]
  %v42 = vld [vmem:[%s0 + $0x60] sm:$0xff]
  %v43 = vld [vmem:[%s0 + $0x68] sm:$0xff]
  %v44 = vld [vmem:[%s0 + $0x70] sm:$0xff]
  %v45 = vld [vmem:[%s0 + $0x78] sm:$0xff]
  %v46 = vld [vmem:[%s0 + $0x80] sm:$0xff]
  %v47 = vld [vmem:[%s0 + $0x88] sm:$0xff]
  %v48 = vld [vmem:[%s0 + $0x90] sm:$0xff]
  %v49 = vld [vmem:[%s0 + $0x98] sm:$0xff]
  %v50 = vld [vmem:[%s0 + $0xa0] sm:$0xff]
  %v51 = vld [vmem:[%s0 + $0xa8] sm:$0xff]
  %v52 = vld [vmem:[%s0 + $0xb0] sm:$0xff]
  %v53 = vld [vmem:[%s0 + $0xb8] sm:$0xff]
  %v54 = vld [vmem:[%s0 + $0xc0] sm:$0xff]
  %v55 = vld [vmem:[%s0 + $0xc8] sm:$0xff]
  %v56 = vld [vmem:[%s0 + $0xd0] sm:$0xff]
  %v57 = vld [vmem:[%s0 + $0xd8] sm:$0xff]
  %v58 = vld [vmem:[%s0 + $0xe0] sm:$0xff]
  %v59 = vld [vmem:[%s0 + $0xe8] sm:$0xff]
  %v60 = vld [vmem:[%s0 + $0xf0] sm:$0xff]
  %v61 = vld [vmem:[%s0 + $0xf8] sm:$0xff]
  %v62 = vunpack.c.l.bf16 %v30
  %v63 = vunpack.c.h.bf16 %v30
  %v64 = vunpack.c.l.bf16 %v31
  %v65 = vunpack.c.h.bf16 %v31
  %v66 = vunpack.c.l.bf16 %v32
  %v67 = vunpack.c.h.bf16 %v32
  %v68 = vunpack.c.l.bf16 %v33
  %v69 = vunpack.c.h.bf16 %v33
  %v70 = vunpack.c.l.bf16 %v34
  %v71 = vunpack.c.h.bf16 %v34
  %v72 = vunpack.c.l.bf16 %v35
  %v73 = vunpack.c.h.bf16 %v35
  %v74 = vunpack.c.l.bf16 %v36
  %v75 = vunpack.c.h.bf16 %v36
  %v76 = vunpack.c.l.bf16 %v37
  %v77 = vunpack.c.h.bf16 %v37
  %v78 = vunpack.c.l.bf16 %v38
  %v79 = vunpack.c.h.bf16 %v38
  %v80 = vunpack.c.l.bf16 %v39
  %v81 = vunpack.c.h.bf16 %v39
  %v82 = vunpack.c.l.bf16 %v40
  %v83 = vunpack.c.h.bf16 %v40
  %v84 = vunpack.c.l.bf16 %v41
  %v85 = vunpack.c.h.bf16 %v41
  %v86 = vunpack.c.l.bf16 %v42
  %v87 = vunpack.c.h.bf16 %v42
  %v88 = vunpack.c.l.bf16 %v43
  %v89 = vunpack.c.h.bf16 %v43
  %v90 = vunpack.c.l.bf16 %v44
  %v91 = vunpack.c.h.bf16 %v44
  %v92 = vunpack.c.l.bf16 %v45
  %v93 = vunpack.c.h.bf16 %v45
  %v94 = vunpack.c.l.bf16 %v46
  %v95 = vunpack.c.h.bf16 %v46
  %v96 = vunpack.c.l.bf16 %v47
  %v97 = vunpack.c.h.bf16 %v47
  %v98 = vunpack.c.l.bf16 %v48
  %v99 = vunpack.c.h.bf16 %v48
  %v100 = vunpack.c.l.bf16 %v49
  %v101 = vunpack.c.h.bf16 %v49
  %v102 = vunpack.c.l.bf16 %v50
  %v103 = vunpack.c.h.bf16 %v50
  %v104 = vunpack.c.l.bf16 %v51
  %v105 = vunpack.c.h.bf16 %v51
  %v106 = vunpack.c.l.bf16 %v52
  %v107 = vunpack.c.h.bf16 %v52
  %v108 = vunpack.c.l.bf16 %v53
  %v109 = vunpack.c.h.bf16 %v53
  %v110 = vunpack.c.l.bf16 %v54
  %v111 = vunpack.c.h.bf16 %v54
  %v112 = vunpack.c.l.bf16 %v55
  %v113 = vunpack.c.h.bf16 %v55
  %v114 = vunpack.c.l.bf16 %v56
  %v115 = vunpack.c.h.bf16 %v56
  %v116 = vunpack.c.l.bf16 %v57
  %v117 = vunpack.c.h.bf16 %v57
  %v118 = vunpack.c.l.bf16 %v58
  %v119 = vunpack.c.h.bf16 %v58
  %v120 = vunpack.c.l.bf16 %v59
  %v121 = vunpack.c.h.bf16 %v59
  %v122 = vunpack.c.l.bf16 %v60
  %v123 = vunpack.c.h.bf16 %v60
  %v124 = vunpack.c.l.bf16 %v61
  %v125 = vunpack.c.h.bf16 %v61
  %v126 = vld [vmem:[%s1] sm:$0xff]
  %v127 = vld [vmem:[%s1 + $0x8] sm:$0xff]
  %v128 = vld [vmem:[%s1 + $0x10] sm:$0xff]
  %v129 = vld [vmem:[%s1 + $0x18] sm:$0xff]
  %v130 = vld [vmem:[%s1 + $0x20] sm:$0xff]
  %v131 = vld [vmem:[%s1 + $0x28] sm:$0xff]
  %v132 = vld [vmem:[%s1 + $0x30] sm:$0xff]
  %v133 = vld [vmem:[%s1 + $0x38] sm:$0xff]
  %v134 = vld [vmem:[%s1 + $0x40] sm:$0xff]
  %v135 = vld [vmem:[%s1 + $0x48] sm:$0xff]
  %v136 = vld [vmem:[%s1 + $0x50] sm:$0xff]
  %v137 = vld [vmem:[%s1 + $0x58] sm:$0xff]
  %v138 = vld [vmem:[%s1 + $0x60] sm:$0xff]
  %v139 = vld [vmem:[%s1 + $0x68] sm:$0xff]
  %v140 = vld [vmem:[%s1 + $0x70] sm:$0xff]
  %v141 = vld [vmem:[%s1 + $0x78] sm:$0xff]
  %v142 = vld [vmem:[%s1 + $0x80] sm:$0xff]
  %v143 = vld [vmem:[%s1 + $0x88] sm:$0xff]
  %v144 = vld [vmem:[%s1 + $0x90] sm:$0xff]
  %v145 = vld [vmem:[%s1 + $0x98] sm:$0xff]
  %v146 = vld [vmem:[%s1 + $0xa0] sm:$0xff]
  %v147 = vld [vmem:[%s1 + $0xa8] sm:$0xff]
  %v148 = vld [vmem:[%s1 + $0xb0] sm:$0xff]
  %v149 = vld [vmem:[%s1 + $0xb8] sm:$0xff]
  %v150 = vld [vmem:[%s1 + $0xc0] sm:$0xff]
  %v151 = vld [vmem:[%s1 + $0xc8] sm:$0xff]
  %v152 = vld [vmem:[%s1 + $0xd0] sm:$0xff]
  %v153 = vld [vmem:[%s1 + $0xd8] sm:$0xff]
  %v154 = vld [vmem:[%s1 + $0xe0] sm:$0xff]
  %v155 = vld [vmem:[%s1 + $0xe8] sm:$0xff]
  %v156 = vld [vmem:[%s1 + $0xf0] sm:$0xff]
  %v157 = vld [vmem:[%s1 + $0xf8] sm:$0xff]
  %v158 = vld [vmem:[%s2] sm:$0x3]
  %v160 = vlaneseq
  %v161 = vshrl.u32 %v160, 7
  %v162 = vsub.s32 0, %v161
  %v163 = vrot.slane %v158, %v162
  %v164 = vlaneseq
  %v165 = vshrl.u32 %v164, 7
  %v166 = vsub.s32 1, %v165
  %v167 = vrot.slane %v158, %v166
  %v202 = vunpack.c.l.b16 %v30
  %v203 = vunpack.c.h.b16 %v30
  %v204 = vunpack.c.l.b16 %v31
  %v205 = vunpack.c.h.b16 %v31
  %v206 = vunpack.c.l.b16 %v32
  %v207 = vunpack.c.h.b16 %v32
  %v208 = vunpack.c.l.b16 %v33
  %v209 = vunpack.c.h.b16 %v33
  %v210 = vunpack.c.l.b16 %v34
  %v211 = vunpack.c.h.b16 %v34
  %v212 = vunpack.c.l.b16 %v35
  %v213 = vunpack.c.h.b16 %v35
  %v214 = vunpack.c.l.b16 %v36
  %v215 = vunpack.c.h.b16 %v36
  %v216 = vunpack.c.l.b16 %v37
  %v217 = vunpack.c.h.b16 %v37
  %v218 = vunpack.c.l.b16 %v38
  %v219 = vunpack.c.h.b16 %v38
  %v220 = vunpack.c.l.b16 %v39
  %v221 = vunpack.c.h.b16 %v39
  %v222 = vunpack.c.l.b16 %v40
  %v223 = vunpack.c.h.b16 %v40
  %v224 = vunpack.c.l.b16 %v41
  %v225 = vunpack.c.h.b16 %v41
  %v226 = vunpack.c.l.b16 %v42
  %v227 = vunpack.c.h.b16 %v42
  %v228 = vunpack.c.l.b16 %v43
  %v229 = vunpack.c.h.b16 %v43
  %v230 = vunpack.c.l.b16 %v44
  %v231 = vunpack.c.h.b16 %v44
  %v232 = vunpack.c.l.b16 %v45
  %v233 = vunpack.c.h.b16 %v45
  %v234 = vunpack.c.l.b16 %v46
  %v235 = vunpack.c.h.b16 %v46
  %v236 = vunpack.c.l.b16 %v47
  %v237 = vunpack.c.h.b16 %v47
  %v238 = vunpack.c.l.b16 %v48
  %v239 = vunpack.c.h.b16 %v48
  %v240 = vunpack.c.l.b16 %v49
  %v241 = vunpack.c.h.b16 %v49
  %v242 = vunpack.c.l.b16 %v50
  %v243 = vunpack.c.h.b16 %v50
  %v244 = vunpack.c.l.b16 %v51
  %v245 = vunpack.c.h.b16 %v51
  %v246 = vunpack.c.l.b16 %v52
  %v247 = vunpack.c.h.b16 %v52
  %v248 = vunpack.c.l.b16 %v53
  %v249 = vunpack.c.h.b16 %v53
  %v250 = vunpack.c.l.b16 %v54
  %v251 = vunpack.c.h.b16 %v54
  %v252 = vunpack.c.l.b16 %v55
  %v253 = vunpack.c.h.b16 %v55
  %v254 = vunpack.c.l.b16 %v56
  %v255 = vunpack.c.h.b16 %v56
  %v256 = vunpack.c.l.b16 %v57
  %v257 = vunpack.c.h.b16 %v57
  %v258 = vunpack.c.l.b16 %v58
  %v259 = vunpack.c.h.b16 %v58
  %v260 = vunpack.c.l.b16 %v59
  %v261 = vunpack.c.h.b16 %v59
  %v262 = vunpack.c.l.b16 %v60
  %v263 = vunpack.c.h.b16 %v60
  %v264 = vunpack.c.l.b16 %v61
  %v265 = vunpack.c.h.b16 %v61
  %v266 = vpack.c.b16 %v204, %v202
  %v267 = vpack.c.b16 %v205, %v203
  %v268 = vpack.c.b16 %v208, %v206
  %v269 = vpack.c.b16 %v209, %v207
  %v270 = vpack.c.b16 %v212, %v210
  %v271 = vpack.c.b16 %v213, %v211
  %v272 = vpack.c.b16 %v216, %v214
  %v273 = vpack.c.b16 %v217, %v215
  %v274 = vpack.c.b16 %v220, %v218
  %v275 = vpack.c.b16 %v221, %v219
  %v276 = vpack.c.b16 %v224, %v222
  %v277 = vpack.c.b16 %v225, %v223
  %v278 = vpack.c.b16 %v228, %v226
  %v279 = vpack.c.b16 %v229, %v227
  %v280 = vpack.c.b16 %v232, %v230
  %v281 = vpack.c.b16 %v233, %v231
  %v282 = vpack.c.b16 %v236, %v234
  %v283 = vpack.c.b16 %v237, %v235
  %v284 = vpack.c.b16 %v240, %v238
  %v285 = vpack.c.b16 %v241, %v239
  %v286 = vpack.c.b16 %v244, %v242
  %v287 = vpack.c.b16 %v245, %v243
  %v288 = vpack.c.b16 %v248, %v246
  %v289 = vpack.c.b16 %v249, %v247
  %v290 = vpack.c.b16 %v252, %v250
  %v291 = vpack.c.b16 %v253, %v251
  %v292 = vpack.c.b16 %v256, %v254
  %v293 = vpack.c.b16 %v257, %v255
  %v294 = vpack.c.b16 %v260, %v258
  %v295 = vpack.c.b16 %v261, %v259
  %v296 = vpack.c.b16 %v264, %v262
  %v297 = vpack.c.b16 %v265, %v263
  %v362 = vunpack.c.l.b16 %v126
  %v363 = vunpack.c.h.b16 %v126
  %v364 = vunpack.c.l.b16 %v127
  %v365 = vunpack.c.h.b16 %v127
  %v366 = vunpack.c.l.b16 %v128
  %v367 = vunpack.c.h.b16 %v128
  %v368 = vunpack.c.l.b16 %v129
  %v369 = vunpack.c.h.b16 %v129
  %v370 = vunpack.c.l.b16 %v130
  %v371 = vunpack.c.h.b16 %v130
  %v372 = vunpack.c.l.b16 %v131
  %v373 = vunpack.c.h.b16 %v131
  %v374 = vunpack.c.l.b16 %v132
  %v375 = vunpack.c.h.b16 %v132
  %v376 = vunpack.c.l.b16 %v133
  %v377 = vunpack.c.h.b16 %v133
  %v378 = vunpack.c.l.b16 %v134
  %v379 = vunpack.c.h.b16 %v134
  %v380 = vunpack.c.l.b16 %v135
  %v381 = vunpack.c.h.b16 %v135
  %v382 = vunpack.c.l.b16 %v136
  %v383 = vunpack.c.h.b16 %v136
  %v384 = vunpack.c.l.b16 %v137
  %v385 = vunpack.c.h.b16 %v137
  %v386 = vunpack.c.l.b16 %v138
  %v387 = vunpack.c.h.b16 %v138
  %v388 = vunpack.c.l.b16 %v139
  %v389 = vunpack.c.h.b16 %v139
  %v390 = vunpack.c.l.b16 %v140
  %v391 = vunpack.c.h.b16 %v140
  %v392 = vunpack.c.l.b16 %v141
  %v393 = vunpack.c.h.b16 %v141
  %v394 = vunpack.c.l.b16 %v142
  %v395 = vunpack.c.h.b16 %v142
  %v396 = vunpack.c.l.b16 %v143
  %v397 = vunpack.c.h.b16 %v143
  %v398 = vunpack.c.l.b16 %v144
  %v399 = vunpack.c.h.b16 %v144
  %v400 = vunpack.c.l.b16 %v145
  %v401 = vunpack.c.h.b16 %v145
  %v402 = vunpack.c.l.b16 %v146
  %v403 = vunpack.c.h.b16 %v146
  %v404 = vunpack.c.l.b16 %v147
  %v405 = vunpack.c.h.b16 %v147
  %v406 = vunpack.c.l.b16 %v148
  %v407 = vunpack.c.h.b16 %v148
  %v408 = vunpack.c.l.b16 %v149
  %v409 = vunpack.c.h.b16 %v149
  %v410 = vunpack.c.l.b16 %v150
  %v411 = vunpack.c.h.b16 %v150
  %v412 = vunpack.c.l.b16 %v151
  %v413 = vunpack.c.h.b16 %v151
  %v414 = vunpack.c.l.b16 %v152
  %v415 = vunpack.c.h.b16 %v152
  %v416 = vunpack.c.l.b16 %v153
  %v417 = vunpack.c.h.b16 %v153
  %v418 = vunpack.c.l.b16 %v154
  %v419 = vunpack.c.h.b16 %v154
  %v420 = vunpack.c.l.b16 %v155
  %v421 = vunpack.c.h.b16 %v155
  %v422 = vunpack.c.l.b16 %v156
  %v423 = vunpack.c.h.b16 %v156
  %v424 = vunpack.c.l.b16 %v157
  %v425 = vunpack.c.h.b16 %v157
  %v426 = vpack.c.b16 %v364, %v362
  %v427 = vpack.c.b16 %v365, %v363
  %v428 = vpack.c.b16 %v368, %v366
  %v429 = vpack.c.b16 %v369, %v367
  %v430 = vpack.c.b16 %v372, %v370
  %v431 = vpack.c.b16 %v373, %v371
  %v432 = vpack.c.b16 %v376, %v374
  %v433 = vpack.c.b16 %v377, %v375
  %v434 = vpack.c.b16 %v380, %v378
  %v435 = vpack.c.b16 %v381, %v379
  %v436 = vpack.c.b16 %v384, %v382
  %v437 = vpack.c.b16 %v385, %v383
  %v438 = vpack.c.b16 %v388, %v386
  %v439 = vpack.c.b16 %v389, %v387
  %v440 = vpack.c.b16 %v392, %v390
  %v441 = vpack.c.b16 %v393, %v391
  %v442 = vpack.c.b16 %v396, %v394
  %v443 = vpack.c.b16 %v397, %v395
  %v444 = vpack.c.b16 %v400, %v398
  %v445 = vpack.c.b16 %v401, %v399
  %v446 = vpack.c.b16 %v404, %v402
  %v447 = vpack.c.b16 %v405, %v403
  %v448 = vpack.c.b16 %v408, %v406
  %v449 = vpack.c.b16 %v409, %v407
  %v450 = vpack.c.b16 %v412, %v410
  %v451 = vpack.c.b16 %v413, %v411
  %v452 = vpack.c.b16 %v416, %v414
  %v453 = vpack.c.b16 %v417, %v415
  %v454 = vpack.c.b16 %v420, %v418
  %v455 = vpack.c.b16 %v421, %v419
  %v456 = vpack.c.b16 %v424, %v422
  %v457 = vpack.c.b16 %v425, %v423
  %490 = vmatprep.subr.bf16.mxu0 %v441
  %491 = vmatpush1.bf16.msra.mxu0 %v440
  %492 = vmatprep.subr.bf16.mxu0 %v439
  %493 = vmatpush1.bf16.msra.mxu0 %v438
  %494 = vmatprep.subr.bf16.mxu0 %v437
  %495 = vmatpush1.bf16.msra.mxu0 %v436
  %496 = vmatprep.subr.bf16.mxu0 %v435
  %497 = vmatpush1.bf16.msra.mxu0 %v434
  %498 = vmatprep.subr.bf16.mxu0 %v433
  %499 = vmatpush1.bf16.msra.mxu0 %v432
  %500 = vmatprep.subr.bf16.mxu0 %v431
  %501 = vmatpush1.bf16.msra.mxu0 %v430
  %502 = vmatprep.subr.bf16.mxu0 %v429
  %503 = vmatpush1.bf16.msra.mxu0 %v428
  %504 = vmatprep.subr.bf16.mxu0 %v427
  %505 = vmatpush1.bf16.msra.mxu0 %v426
  %506 = vmatprep.subr.bf16.mxu0 %v457
  %507 = vmatpush2.bf16.msra.mxu0 %v456
  %508 = vmatprep.subr.bf16.mxu0 %v455
  %509 = vmatpush2.bf16.msra.mxu0 %v454
  %510 = vmatprep.subr.bf16.mxu0 %v453
  %511 = vmatpush2.bf16.msra.mxu0 %v452
  %512 = vmatprep.subr.bf16.mxu0 %v451
  %513 = vmatpush2.bf16.msra.mxu0 %v450
  %514 = vmatprep.subr.bf16.mxu0 %v449
  %515 = vmatpush2.bf16.msra.mxu0 %v448
  %516 = vmatprep.subr.bf16.mxu0 %v447
  %517 = vmatpush2.bf16.msra.mxu0 %v446
  %518 = vmatprep.subr.bf16.mxu0 %v445
  %519 = vmatpush2.bf16.msra.mxu0 %v444
  %520 = vmatprep.subr.bf16.mxu0 %v443
  %521 = vmatpush2.bf16.msra.mxu0 %v442
  %522 = vmatprep.mubr.bf16.mxu0 %v267
  %523 = vmatmul.mubr.bf16.gmra.mxu0 %v266
  %v524 = vpop.f32.mrf.mxu0
  %v525 = vadd.f32 %v163, %v524
  %v526 = vpop.f32.mrf.mxu0
  %v527 = vadd.f32 %v167, %v526
  %v528 = vpop.f32.mrf.mxu0
  %v529 = vadd.f32 %v163, %v528
  %v530 = vpop.f32.mrf.mxu0
  %v531 = vadd.f32 %v167, %v530
  %532 = vmatprep.mubr.bf16.mxu0 %v269
  %533 = vmatmul.mubr.bf16.gmra.mxu0 %v268
  %v534 = vpop.f32.mrf.mxu0
  %v535 = vadd.f32 %v163, %v534
  %v536 = vpop.f32.mrf.mxu0
  %v537 = vadd.f32 %v167, %v536
  %v538 = vpop.f32.mrf.mxu0
  %v539 = vadd.f32 %v163, %v538
  %v540 = vpop.f32.mrf.mxu0
  %v541 = vadd.f32 %v167, %v540
  %542 = vmatprep.mubr.bf16.mxu0 %v271
  %543 = vmatmul.mubr.bf16.gmra.mxu0 %v270
  %v544 = vpop.f32.mrf.mxu0
  %v545 = vadd.f32 %v163, %v544
  %v546 = vpop.f32.mrf.mxu0
  %v547 = vadd.f32 %v167, %v546
  %v548 = vpop.f32.mrf.mxu0
  %v549 = vadd.f32 %v163, %v548
  %v550 = vpop.f32.mrf.mxu0
  %v551 = vadd.f32 %v167, %v550
  %552 = vmatprep.mubr.bf16.mxu0 %v273
  %553 = vmatmul.mubr.bf16.gmra.mxu0 %v272
  %v554 = vpop.f32.mrf.mxu0
  %v555 = vadd.f32 %v163, %v554
  %v556 = vpop.f32.mrf.mxu0
  %v557 = vadd.f32 %v167, %v556
  %v558 = vpop.f32.mrf.mxu0
  %v559 = vadd.f32 %v163, %v558
  %v560 = vpop.f32.mrf.mxu0
  %v561 = vadd.f32 %v167, %v560
  %562 = vmatprep.mubr.bf16.mxu0 %v275
  %563 = vmatmul.mubr.bf16.gmra.mxu0 %v274
  %v564 = vpop.f32.mrf.mxu0
  %v565 = vadd.f32 %v163, %v564
  %v566 = vpop.f32.mrf.mxu0
  %v567 = vadd.f32 %v167, %v566
  %v568 = vpop.f32.mrf.mxu0
  %v569 = vadd.f32 %v163, %v568
  %v570 = vpop.f32.mrf.mxu0
  %v571 = vadd.f32 %v167, %v570
  %572 = vmatprep.mubr.bf16.mxu0 %v277
  %573 = vmatmul.mubr.bf16.gmra.mxu0 %v276
  %v574 = vpop.f32.mrf.mxu0
  %v575 = vadd.f32 %v163, %v574
  %v576 = vpop.f32.mrf.mxu0
  %v577 = vadd.f32 %v167, %v576
  %v578 = vpop.f32.mrf.mxu0
  %v579 = vadd.f32 %v163, %v578
  %v580 = vpop.f32.mrf.mxu0
  %v581 = vadd.f32 %v167, %v580
  %582 = vmatprep.mubr.bf16.mxu0 %v279
  %583 = vmatmul.mubr.bf16.gmra.mxu0 %v278
  %v584 = vpop.f32.mrf.mxu0
  %v585 = vadd.f32 %v163, %v584
  %v586 = vpop.f32.mrf.mxu0
  %v587 = vadd.f32 %v167, %v586
  %v588 = vpop.f32.mrf.mxu0
  %v589 = vadd.f32 %v163, %v588
  %v590 = vpop.f32.mrf.mxu0
  %v591 = vadd.f32 %v167, %v590
  %592 = vmatprep.mubr.bf16.mxu0 %v281
  %593 = vmatmul.mubr.bf16.gmra.mxu0 %v280
  %v594 = vpop.f32.mrf.mxu0
  %v595 = vadd.f32 %v163, %v594
  %v596 = vpop.f32.mrf.mxu0
  %v597 = vadd.f32 %v167, %v596
  %v598 = vpop.f32.mrf.mxu0
  %v599 = vadd.f32 %v163, %v598
  %v600 = vpop.f32.mrf.mxu0
  %v601 = vadd.f32 %v167, %v600
  %602 = vmatprep.mubr.bf16.mxu0 %v283
  %603 = vmatmul.mubr.bf16.gmra.mxu0 %v282
  %v604 = vpop.f32.mrf.mxu0
  %v605 = vadd.f32 %v163, %v604
  %v606 = vpop.f32.mrf.mxu0
  %v607 = vadd.f32 %v167, %v606
  %v608 = vpop.f32.mrf.mxu0
  %v609 = vadd.f32 %v163, %v608
  %v610 = vpop.f32.mrf.mxu0
  %v611 = vadd.f32 %v167, %v610
  %612 = vmatprep.mubr.bf16.mxu0 %v285
  %613 = vmatmul.mubr.bf16.gmra.mxu0 %v284
  %v614 = vpop.f32.mrf.mxu0
  %v615 = vadd.f32 %v163, %v614
  %v616 = vpop.f32.mrf.mxu0
  %v617 = vadd.f32 %v167, %v616
  %v618 = vpop.f32.mrf.mxu0
  %v619 = vadd.f32 %v163, %v618
  %v620 = vpop.f32.mrf.mxu0
  %v621 = vadd.f32 %v167, %v620
  %622 = vmatprep.mubr.bf16.mxu0 %v287
  %623 = vmatmul.mubr.bf16.gmra.mxu0 %v286
  %v624 = vpop.f32.mrf.mxu0
  %v625 = vadd.f32 %v163, %v624
  %v626 = vpop.f32.mrf.mxu0
  %v627 = vadd.f32 %v167, %v626
  %v628 = vpop.f32.mrf.mxu0
  %v629 = vadd.f32 %v163, %v628
  %v630 = vpop.f32.mrf.mxu0
  %v631 = vadd.f32 %v167, %v630
  %632 = vmatprep.mubr.bf16.mxu0 %v289
  %633 = vmatmul.mubr.bf16.gmra.mxu0 %v288
  %v634 = vpop.f32.mrf.mxu0
  %v635 = vadd.f32 %v163, %v634
  %v636 = vpop.f32.mrf.mxu0
  %v637 = vadd.f32 %v167, %v636
  %v638 = vpop.f32.mrf.mxu0
  %v639 = vadd.f32 %v163, %v638
  %v640 = vpop.f32.mrf.mxu0
  %v641 = vadd.f32 %v167, %v640
  %642 = vmatprep.mubr.bf16.mxu0 %v291
  %643 = vmatmul.mubr.bf16.gmra.mxu0 %v290
  %v644 = vpop.f32.mrf.mxu0
  %v645 = vadd.f32 %v163, %v644
  %v646 = vpop.f32.mrf.mxu0
  %v647 = vadd.f32 %v167, %v646
  %v648 = vpop.f32.mrf.mxu0
  %v649 = vadd.f32 %v163, %v648
  %v650 = vpop.f32.mrf.mxu0
  %v651 = vadd.f32 %v167, %v650
  %652 = vmatprep.mubr.bf16.mxu0 %v293
  %653 = vmatmul.mubr.bf16.gmra.mxu0 %v292
  %v654 = vpop.f32.mrf.mxu0
  %v655 = vadd.f32 %v163, %v654
  %v656 = vpop.f32.mrf.mxu0
  %v657 = vadd.f32 %v167, %v656
  %v658 = vpop.f32.mrf.mxu0
  %v659 = vadd.f32 %v163, %v658
  %v660 = vpop.f32.mrf.mxu0
  %v661 = vadd.f32 %v167, %v660
  %662 = vmatprep.mubr.bf16.mxu0 %v295
  %663 = vmatmul.mubr.bf16.gmra.mxu0 %v294
  %v664 = vpop.f32.mrf.mxu0
  %v665 = vadd.f32 %v163, %v664
  %v666 = vpop.f32.mrf.mxu0
  %v667 = vadd.f32 %v167, %v666
  %v668 = vpop.f32.mrf.mxu0
  %v669 = vadd.f32 %v163, %v668
  %v670 = vpop.f32.mrf.mxu0
  %v671 = vadd.f32 %v167, %v670
  %672 = vmatprep.mubr.bf16.mxu0 %v297
  %673 = vmatmul.mubr.bf16.gmra.mxu0 %v296
  %v674 = vpop.f32.mrf.mxu0
  %v675 = vadd.f32 %v163, %v674
  %v676 = vpop.f32.mrf.mxu0
  %v677 = vadd.f32 %v167, %v676
  %v678 = vpop.f32.mrf.mxu0
  %v679 = vadd.f32 %v163, %v678
  %v680 = vpop.f32.mrf.mxu0
  %v681 = vadd.f32 %v167, %v680
  %682 = vdwg.mxu0
  %v683 = vxor.u32 %v525, 2147483648
  %v684 = vxor.u32 %v527, 2147483648
  %v685 = vxor.u32 %v529, 2147483648
  %v686 = vxor.u32 %v531, 2147483648
  %v687 = vxor.u32 %v535, 2147483648
  %v688 = vxor.u32 %v537, 2147483648
  %v689 = vxor.u32 %v539, 2147483648
  %v690 = vxor.u32 %v541, 2147483648
  %v691 = vxor.u32 %v545, 2147483648
  %v692 = vxor.u32 %v547, 2147483648
  %v693 = vxor.u32 %v549, 2147483648
  %v694 = vxor.u32 %v551, 2147483648
  %v695 = vxor.u32 %v555, 2147483648
  %v696 = vxor.u32 %v557, 2147483648
  %v697 = vxor.u32 %v559, 2147483648
  %v698 = vxor.u32 %v561, 2147483648
  %v699 = vxor.u32 %v565, 2147483648
  %v700 = vxor.u32 %v567, 2147483648
  %v701 = vxor.u32 %v569, 2147483648
  %v702 = vxor.u32 %v571, 2147483648
  %v703 = vxor.u32 %v575, 2147483648
  %v704 = vxor.u32 %v577, 2147483648
  %v705 = vxor.u32 %v579, 2147483648
  %v706 = vxor.u32 %v581, 2147483648
  %v707 = vxor.u32 %v585, 2147483648
  %v708 = vxor.u32 %v587, 2147483648
  %v709 = vxor.u32 %v589, 2147483648
  %v710 = vxor.u32 %v591, 2147483648
  %v711 = vxor.u32 %v595, 2147483648
  %v712 = vxor.u32 %v597, 2147483648
  %v713 = vxor.u32 %v599, 2147483648
  %v714 = vxor.u32 %v601, 2147483648
  %v715 = vxor.u32 %v605, 2147483648
  %v716 = vxor.u32 %v607, 2147483648
  %v717 = vxor.u32 %v609, 2147483648
  %v718 = vxor.u32 %v611, 2147483648
  %v719 = vxor.u32 %v615, 2147483648
  %v720 = vxor.u32 %v617, 2147483648
  %v721 = vxor.u32 %v619, 2147483648
  %v722 = vxor.u32 %v621, 2147483648
  %v723 = vxor.u32 %v625, 2147483648
  %v724 = vxor.u32 %v627, 2147483648
  %v725 = vxor.u32 %v629, 2147483648
  %v726 = vxor.u32 %v631, 2147483648
  %v727 = vxor.u32 %v635, 2147483648
  %v728 = vxor.u32 %v637, 2147483648
  %v729 = vxor.u32 %v639, 2147483648
  %v730 = vxor.u32 %v641, 2147483648
  %v731 = vxor.u32 %v645, 2147483648
  %v732 = vxor.u32 %v647, 2147483648
  %v733 = vxor.u32 %v649, 2147483648
  %v734 = vxor.u32 %v651, 2147483648
  %v735 = vxor.u32 %v655, 2147483648
  %v736 = vxor.u32 %v657, 2147483648
  %v737 = vxor.u32 %v659, 2147483648
  %v738 = vxor.u32 %v661, 2147483648
  %v739 = vxor.u32 %v665, 2147483648
  %v740 = vxor.u32 %v667, 2147483648
  %v741 = vxor.u32 %v669, 2147483648
  %v742 = vxor.u32 %v671, 2147483648
  %v743 = vxor.u32 %v675, 2147483648
  %v744 = vxor.u32 %v677, 2147483648
  %v745 = vxor.u32 %v679, 2147483648
  %v746 = vxor.u32 %v681, 2147483648
  %v747 = vmul.f32 %v683, 1.442695
  %v748 = vpow.pop %v747
  %v749 = vmul.f32 %v684, 1.442695
  %v750 = vpow.pop %v749
  %v751 = vmul.f32 %v685, 1.442695
  %v752 = vpow.pop %v751
  %v753 = vmul.f32 %v686, 1.442695
  %v754 = vpow.pop %v753
  %v755 = vmul.f32 %v687, 1.442695
  %v756 = vpow.pop %v755
  %v757 = vmul.f32 %v688, 1.442695
  %v758 = vpow.pop %v757
  %v759 = vmul.f32 %v689, 1.442695
  %v760 = vpow.pop %v759
  %v761 = vmul.f32 %v690, 1.442695
  %v762 = vpow.pop %v761
  %v763 = vmul.f32 %v691, 1.442695
  %v764 = vpow.pop %v763
  %v765 = vmul.f32 %v692, 1.442695
  %v766 = vpow.pop %v765
  %v767 = vmul.f32 %v693, 1.442695
  %v768 = vpow.pop %v767
  %v769 = vmul.f32 %v694, 1.442695
  %v770 = vpow.pop %v769
  %v771 = vmul.f32 %v695, 1.442695
  %v772 = vpow.pop %v771
  %v773 = vmul.f32 %v696, 1.442695
  %v774 = vpow.pop %v773
  %v775 = vmul.f32 %v697, 1.442695
  %v776 = vpow.pop %v775
  %v777 = vmul.f32 %v698, 1.442695
  %v778 = vpow.pop %v777
  %v779 = vmul.f32 %v699, 1.442695
  %v780 = vpow.pop %v779
  %v781 = vmul.f32 %v700, 1.442695
  %v782 = vpow.pop %v781
  %v783 = vmul.f32 %v701, 1.442695
  %v784 = vpow.pop %v783
  %v785 = vmul.f32 %v702, 1.442695
  %v786 = vpow.pop %v785
  %v787 = vmul.f32 %v703, 1.442695
  %v788 = vpow.pop %v787
  %v789 = vmul.f32 %v704, 1.442695
  %v790 = vpow.pop %v789
  %v791 = vmul.f32 %v705, 1.442695
  %v792 = vpow.pop %v791
  %v793 = vmul.f32 %v706, 1.442695
  %v794 = vpow.pop %v793
  %v795 = vmul.f32 %v707, 1.442695
  %v796 = vpow.pop %v795
  %v797 = vmul.f32 %v708, 1.442695
  %v798 = vpow.pop %v797
  %v799 = vmul.f32 %v709, 1.442695
  %v800 = vpow.pop %v799
  %v801 = vmul.f32 %v710, 1.442695
  %v802 = vpow.pop %v801
  %v803 = vmul.f32 %v711, 1.442695
  %v804 = vpow.pop %v803
  %v805 = vmul.f32 %v712, 1.442695
  %v806 = vpow.pop %v805
  %v807 = vmul.f32 %v713, 1.442695
  %v808 = vpow.pop %v807
  %v809 = vmul.f32 %v714, 1.442695
  %v810 = vpow.pop %v809
  %v811 = vmul.f32 %v715, 1.442695
  %v812 = vpow.pop %v811
  %v813 = vmul.f32 %v716, 1.442695
  %v814 = vpow.pop %v813
  %v815 = vmul.f32 %v717, 1.442695
  %v816 = vpow.pop %v815
  %v817 = vmul.f32 %v718, 1.442695
  %v818 = vpow.pop %v817
  %v819 = vmul.f32 %v719, 1.442695
  %v820 = vpow.pop %v819
  %v821 = vmul.f32 %v720, 1.442695
  %v822 = vpow.pop %v821
  %v823 = vmul.f32 %v721, 1.442695
  %v824 = vpow.pop %v823
  %v825 = vmul.f32 %v722, 1.442695
  %v826 = vpow.pop %v825
  %v827 = vmul.f32 %v723, 1.442695
  %v828 = vpow.pop %v827
  %v829 = vmul.f32 %v724, 1.442695
  %v830 = vpow.pop %v829
  %v831 = vmul.f32 %v725, 1.442695
  %v832 = vpow.pop %v831
  %v833 = vmul.f32 %v726, 1.442695
  %v834 = vpow.pop %v833
  %v835 = vmul.f32 %v727, 1.442695
  %v836 = vpow.pop %v835
  %v837 = vmul.f32 %v728, 1.442695
  %v838 = vpow.pop %v837
  %v839 = vmul.f32 %v729, 1.442695
  %v840 = vpow.pop %v839
  %v841 = vmul.f32 %v730, 1.442695
  %v842 = vpow.pop %v841
  %v843 = vmul.f32 %v731, 1.442695
  %v844 = vpow.pop %v843
  %v845 = vmul.f32 %v732, 1.442695
  %v846 = vpow.pop %v845
  %v847 = vmul.f32 %v733, 1.442695
  %v848 = vpow.pop %v847
  %v849 = vmul.f32 %v734, 1.442695
  %v850 = vpow.pop %v849
  %v851 = vmul.f32 %v735, 1.442695
  %v852 = vpow.pop %v851
  %v853 = vmul.f32 %v736, 1.442695
  %v854 = vpow.pop %v853
  %v855 = vmul.f32 %v737, 1.442695
  %v856 = vpow.pop %v855
  %v857 = vmul.f32 %v738, 1.442695
  %v858 = vpow.pop %v857
  %v859 = vmul.f32 %v739, 1.442695
  %v860 = vpow.pop %v859
  %v861 = vmul.f32 %v740, 1.442695
  %v862 = vpow.pop %v861
  %v863 = vmul.f32 %v741, 1.442695
  %v864 = vpow.pop %v863
  %v865 = vmul.f32 %v742, 1.442695
  %v866 = vpow.pop %v865
  %v867 = vmul.f32 %v743, 1.442695
  %v868 = vpow.pop %v867
  %v869 = vmul.f32 %v744, 1.442695
  %v870 = vpow.pop %v869
  %v871 = vmul.f32 %v745, 1.442695
  %v872 = vpow.pop %v871
  %v873 = vmul.f32 %v746, 1.442695
  %v874 = vpow.pop %v873
  %v875 = vadd.f32 %v748, 1.0
  %v876 = vadd.f32 %v750, 1.0
  %v877 = vadd.f32 %v752, 1.0
  %v878 = vadd.f32 %v754, 1.0
  %v879 = vadd.f32 %v756, 1.0
  %v880 = vadd.f32 %v758, 1.0
  %v881 = vadd.f32 %v760, 1.0
  %v882 = vadd.f32 %v762, 1.0
  %v883 = vadd.f32 %v764, 1.0
  %v884 = vadd.f32 %v766, 1.0
  %v885 = vadd.f32 %v768, 1.0
  %v886 = vadd.f32 %v770, 1.0
  %v887 = vadd.f32 %v772, 1.0
  %v888 = vadd.f32 %v774, 1.0
  %v889 = vadd.f32 %v776, 1.0
  %v890 = vadd.f32 %v778, 1.0
  %v891 = vadd.f32 %v780, 1.0
  %v892 = vadd.f32 %v782, 1.0
  %v893 = vadd.f32 %v784, 1.0
  %v894 = vadd.f32 %v786, 1.0
  %v895 = vadd.f32 %v788, 1.0
  %v896 = vadd.f32 %v790, 1.0
  %v897 = vadd.f32 %v792, 1.0
  %v898 = vadd.f32 %v794, 1.0
  %v899 = vadd.f32 %v796, 1.0
  %v900 = vadd.f32 %v798, 1.0
  %v901 = vadd.f32 %v800, 1.0
  %v902 = vadd.f32 %v802, 1.0
  %v903 = vadd.f32 %v804, 1.0
  %v904 = vadd.f32 %v806, 1.0
  %v905 = vadd.f32 %v808, 1.0
  %v906 = vadd.f32 %v810, 1.0
  %v907 = vadd.f32 %v812, 1.0
  %v908 = vadd.f32 %v814, 1.0
  %v909 = vadd.f32 %v816, 1.0
  %v910 = vadd.f32 %v818, 1.0
  %v911 = vadd.f32 %v820, 1.0
  %v912 = vadd.f32 %v822, 1.0
  %v913 = vadd.f32 %v824, 1.0
  %v914 = vadd.f32 %v826, 1.0
  %v915 = vadd.f32 %v828, 1.0
  %v916 = vadd.f32 %v830, 1.0
  %v917 = vadd.f32 %v832, 1.0
  %v918 = vadd.f32 %v834, 1.0
  %v919 = vadd.f32 %v836, 1.0
  %v920 = vadd.f32 %v838, 1.0
  %v921 = vadd.f32 %v840, 1.0
  %v922 = vadd.f32 %v842, 1.0
  %v923 = vadd.f32 %v844, 1.0
  %v924 = vadd.f32 %v846, 1.0
  %v925 = vadd.f32 %v848, 1.0
  %v926 = vadd.f32 %v850, 1.0
  %v927 = vadd.f32 %v852, 1.0
  %v928 = vadd.f32 %v854, 1.0
  %v929 = vadd.f32 %v856, 1.0
  %v930 = vadd.f32 %v858, 1.0
  %v931 = vadd.f32 %v860, 1.0
  %v932 = vadd.f32 %v862, 1.0
  %v933 = vadd.f32 %v864, 1.0
  %v934 = vadd.f32 %v866, 1.0
  %v935 = vadd.f32 %v868, 1.0
  %v936 = vadd.f32 %v870, 1.0
  %v937 = vadd.f32 %v872, 1.0
  %v938 = vadd.f32 %v874, 1.0
  %v939 = vrcp.pop %v875
  %v940 = vmul.f32 1.0, %v939
  %v941 = vrcp.pop %v876
  %v942 = vmul.f32 1.0, %v941
  %v943 = vrcp.pop %v877
  %v944 = vmul.f32 1.0, %v943
  %v945 = vrcp.pop %v878
  %v946 = vmul.f32 1.0, %v945
  %v947 = vrcp.pop %v879
  %v948 = vmul.f32 1.0, %v947
  %v949 = vrcp.pop %v880
  %v950 = vmul.f32 1.0, %v949
  %v951 = vrcp.pop %v881
  %v952 = vmul.f32 1.0, %v951
  %v953 = vrcp.pop %v882
  %v954 = vmul.f32 1.0, %v953
  %v955 = vrcp.pop %v883
  %v956 = vmul.f32 1.0, %v955
  %v957 = vrcp.pop %v884
  %v958 = vmul.f32 1.0, %v957
  %v959 = vrcp.pop %v885
  %v960 = vmul.f32 1.0, %v959
  %v961 = vrcp.pop %v886
  %v962 = vmul.f32 1.0, %v961
  %v963 = vrcp.pop %v887
  %v964 = vmul.f32 1.0, %v963
  %v965 = vrcp.pop %v888
  %v966 = vmul.f32 1.0, %v965
  %v967 = vrcp.pop %v889
  %v968 = vmul.f32 1.0, %v967
  %v969 = vrcp.pop %v890
  %v970 = vmul.f32 1.0, %v969
  %v971 = vrcp.pop %v891
  %v972 = vmul.f32 1.0, %v971
  %v973 = vrcp.pop %v892
  %v974 = vmul.f32 1.0, %v973
  %v975 = vrcp.pop %v893
  %v976 = vmul.f32 1.0, %v975
  %v977 = vrcp.pop %v894
  %v978 = vmul.f32 1.0, %v977
  %v979 = vrcp.pop %v895
  %v980 = vmul.f32 1.0, %v979
  %v981 = vrcp.pop %v896
  %v982 = vmul.f32 1.0, %v981
  %v983 = vrcp.pop %v897
  %v984 = vmul.f32 1.0, %v983
  %v985 = vrcp.pop %v898
  %v986 = vmul.f32 1.0, %v985
  %v987 = vrcp.pop %v899
  %v988 = vmul.f32 1.0, %v987
  %v989 = vrcp.pop %v900
  %v990 = vmul.f32 1.0, %v989
  %v991 = vrcp.pop %v901
  %v992 = vmul.f32 1.0, %v991
  %v993 = vrcp.pop %v902
  %v994 = vmul.f32 1.0, %v993
  %v995 = vrcp.pop %v903
  %v996 = vmul.f32 1.0, %v995
  %v997 = vrcp.pop %v904
  %v998 = vmul.f32 1.0, %v997
  %v999 = vrcp.pop %v905
  %v1000 = vmul.f32 1.0, %v999
  %v1001 = vrcp.pop %v906
  %v1002 = vmul.f32 1.0, %v1001
  %v1003 = vrcp.pop %v907
  %v1004 = vmul.f32 1.0, %v1003
  %v1005 = vrcp.pop %v908
  %v1006 = vmul.f32 1.0, %v1005
  %v1007 = vrcp.pop %v909
  %v1008 = vmul.f32 1.0, %v1007
  %v1009 = vrcp.pop %v910
  %v1010 = vmul.f32 1.0, %v1009
  %v1011 = vrcp.pop %v911
  %v1012 = vmul.f32 1.0, %v1011
  %v1013 = vrcp.pop %v912
  %v1014 = vmul.f32 1.0, %v1013
  %v1015 = vrcp.pop %v913
  %v1016 = vmul.f32 1.0, %v1015
  %v1017 = vrcp.pop %v914
  %v1018 = vmul.f32 1.0, %v1017
  %v1019 = vrcp.pop %v915
  %v1020 = vmul.f32 1.0, %v1019
  %v1021 = vrcp.pop %v916
  %v1022 = vmul.f32 1.0, %v1021
  %v1023 = vrcp.pop %v917
  %v1024 = vmul.f32 1.0, %v1023
  %v1025 = vrcp.pop %v918
  %v1026 = vmul.f32 1.0, %v1025
  %v1027 = vrcp.pop %v919
  %v1028 = vmul.f32 1.0, %v1027
  %v1029 = vrcp.pop %v920
  %v1030 = vmul.f32 1.0, %v1029
  %v1031 = vrcp.pop %v921
  %v1032 = vmul.f32 1.0, %v1031
  %v1033 = vrcp.pop %v922
  %v1034 = vmul.f32 1.0, %v1033
  %v1035 = vrcp.pop %v923
  %v1036 = vmul.f32 1.0, %v1035
  %v1037 = vrcp.pop %v924
  %v1038 = vmul.f32 1.0, %v1037
  %v1039 = vrcp.pop %v925
  %v1040 = vmul.f32 1.0, %v1039
  %v1041 = vrcp.pop %v926
  %v1042 = vmul.f32 1.0, %v1041
  %v1043 = vrcp.pop %v927
  %v1044 = vmul.f32 1.0, %v1043
  %v1045 = vrcp.pop %v928
  %v1046 = vmul.f32 1.0, %v1045
  %v1047 = vrcp.pop %v929
  %v1048 = vmul.f32 1.0, %v1047
  %v1049 = vrcp.pop %v930
  %v1050 = vmul.f32 1.0, %v1049
  %v1051 = vrcp.pop %v931
  %v1052 = vmul.f32 1.0, %v1051
  %v1053 = vrcp.pop %v932
  %v1054 = vmul.f32 1.0, %v1053
  %v1055 = vrcp.pop %v933
  %v1056 = vmul.f32 1.0, %v1055
  %v1057 = vrcp.pop %v934
  %v1058 = vmul.f32 1.0, %v1057
  %v1059 = vrcp.pop %v935
  %v1060 = vmul.f32 1.0, %v1059
  %v1061 = vrcp.pop %v936
  %v1062 = vmul.f32 1.0, %v1061
  %v1063 = vrcp.pop %v937
  %v1064 = vmul.f32 1.0, %v1063
  %v1065 = vrcp.pop %v938
  %v1066 = vmul.f32 1.0, %v1065
  %v1067 = vmul.f32 %v62, %v940
  %v1068 = vmul.f32 %v63, %v942
  %v1069 = vmul.f32 %v64, %v944
  %v1070 = vmul.f32 %v65, %v946
  %v1071 = vmul.f32 %v66, %v948
  %v1072 = vmul.f32 %v67, %v950
  %v1073 = vmul.f32 %v68, %v952
  %v1074 = vmul.f32 %v69, %v954
  %v1075 = vmul.f32 %v70, %v956
  %v1076 = vmul.f32 %v71, %v958
  %v1077 = vmul.f32 %v72, %v960
  %v1078 = vmul.f32 %v73, %v962
  %v1079 = vmul.f32 %v74, %v964
  %v1080 = vmul.f32 %v75, %v966
  %v1081 = vmul.f32 %v76, %v968
  %v1082 = vmul.f32 %v77, %v970
  %v1083 = vmul.f32 %v78, %v972
  %v1084 = vmul.f32 %v79, %v974
  %v1085 = vmul.f32 %v80, %v976
  %v1086 = vmul.f32 %v81, %v978
  %v1087 = vmul.f32 %v82, %v980
  %v1088 = vmul.f32 %v83, %v982
  %v1089 = vmul.f32 %v84, %v984
  %v1090 = vmul.f32 %v85, %v986
  %v1091 = vmul.f32 %v86, %v988
  %v1092 = vmul.f32 %v87, %v990
  %v1093 = vmul.f32 %v88, %v992
  %v1094 = vmul.f32 %v89, %v994
  %v1095 = vmul.f32 %v90, %v996
  %v1096 = vmul.f32 %v91, %v998
  %v1097 = vmul.f32 %v92, %v1000
  %v1098 = vmul.f32 %v93, %v1002
  %v1099 = vmul.f32 %v94, %v1004
  %v1100 = vmul.f32 %v95, %v1006
  %v1101 = vmul.f32 %v96, %v1008
  %v1102 = vmul.f32 %v97, %v1010
  %v1103 = vmul.f32 %v98, %v1012
  %v1104 = vmul.f32 %v99, %v1014
  %v1105 = vmul.f32 %v100, %v1016
  %v1106 = vmul.f32 %v101, %v1018
  %v1107 = vmul.f32 %v102, %v1020
  %v1108 = vmul.f32 %v103, %v1022
  %v1109 = vmul.f32 %v104, %v1024
  %v1110 = vmul.f32 %v105, %v1026
  %v1111 = vmul.f32 %v106, %v1028
  %v1112 = vmul.f32 %v107, %v1030
  %v1113 = vmul.f32 %v108, %v1032
  %v1114 = vmul.f32 %v109, %v1034
  %v1115 = vmul.f32 %v110, %v1036
  %v1116 = vmul.f32 %v111, %v1038
  %v1117 = vmul.f32 %v112, %v1040
  %v1118 = vmul.f32 %v113, %v1042
  %v1119 = vmul.f32 %v114, %v1044
  %v1120 = vmul.f32 %v115, %v1046
  %v1121 = vmul.f32 %v116, %v1048
  %v1122 = vmul.f32 %v117, %v1050
  %v1123 = vmul.f32 %v118, %v1052
  %v1124 = vmul.f32 %v119, %v1054
  %v1125 = vmul.f32 %v120, %v1056
  %v1126 = vmul.f32 %v121, %v1058
  %v1127 = vmul.f32 %v122, %v1060
  %v1128 = vmul.f32 %v123, %v1062
  %v1129 = vmul.f32 %v124, %v1064
  %v1130 = vmul.f32 %v125, %v1066
  %v1131 = vld [vmem:[%s3] sm:$0xf]
  %v1132 = vld [vmem:[%s3 + $0x4] sm:$0xf]
  %v1133 = vld [vmem:[%s3 + $0x8] sm:$0xf]
  %v1134 = vld [vmem:[%s3 + $0xc] sm:$0xf]
  %v1135 = vld [vmem:[%s3 + $0x10] sm:$0xf]
  %v1136 = vld [vmem:[%s3 + $0x14] sm:$0xf]
  %v1137 = vld [vmem:[%s3 + $0x18] sm:$0xf]
  %v1138 = vld [vmem:[%s3 + $0x1c] sm:$0xf]
  %v1139 = vld [vmem:[%s3 + $0x20] sm:$0xf]
  %v1140 = vld [vmem:[%s3 + $0x24] sm:$0xf]
  %v1141 = vld [vmem:[%s3 + $0x28] sm:$0xf]
  %v1142 = vld [vmem:[%s3 + $0x2c] sm:$0xf]
  %v1143 = vld [vmem:[%s3 + $0x30] sm:$0xf]
  %v1144 = vld [vmem:[%s3 + $0x34] sm:$0xf]
  %v1145 = vld [vmem:[%s3 + $0x38] sm:$0xf]
  %v1146 = vld [vmem:[%s3 + $0x3c] sm:$0xf]
  %v1147 = vld [vmem:[%s3 + $0x40] sm:$0xf]
  %v1148 = vld [vmem:[%s3 + $0x44] sm:$0xf]
  %v1149 = vld [vmem:[%s3 + $0x48] sm:$0xf]
  %v1150 = vld [vmem:[%s3 + $0x4c] sm:$0xf]
  %v1151 = vld [vmem:[%s3 + $0x50] sm:$0xf]
  %v1152 = vld [vmem:[%s3 + $0x54] sm:$0xf]
  %v1153 = vld [vmem:[%s3 + $0x58] sm:$0xf]
  %v1154 = vld [vmem:[%s3 + $0x5c] sm:$0xf]
  %v1155 = vld [vmem:[%s3 + $0x60] sm:$0xf]
  %v1156 = vld [vmem:[%s3 + $0x64] sm:$0xf]
  %v1157 = vld [vmem:[%s3 + $0x68] sm:$0xf]
  %v1158 = vld [vmem:[%s3 + $0x6c] sm:$0xf]
  %v1159 = vld [vmem:[%s3 + $0x70] sm:$0xf]
  %v1160 = vld [vmem:[%s3 + $0x74] sm:$0xf]
  %v1161 = vld [vmem:[%s3 + $0x78] sm:$0xf]
  %v1162 = vld [vmem:[%s3 + $0x7c] sm:$0xf]
  %v1163 = vld [vmem:[%s4] sm:$0x1]
  %v1165 = vlaneseq
  %v1166 = vshrl.u32 %v1165, 7
  %v1167 = vsub.s32 0, %v1166
  %v1168 = vrot.slane %v1163, %v1167
  %v1170 = vld [vmem:[%s7] sm:$0x1]
  %v1172 = vlaneseq
  %v1173 = vshrl.u32 %v1172, 7
  %v1174 = vsub.s32 0, %v1173
  %v1175 = vrot.slane %v1170, %v1174
  %1177 = vrot.lane.b32.xlu0 %v1067, 32
  %v1178 = vpop.permute.xlu0 %1177
  %1179 = vrot.lane.b32.xlu0 %v1069, 32
  %v1180 = vpop.permute.xlu0 %1179
  %1181 = vrot.lane.b32.xlu0 %v1071, 32
  %v1182 = vpop.permute.xlu0 %1181
  %1183 = vrot.lane.b32.xlu0 %v1073, 32
  %v1184 = vpop.permute.xlu0 %1183
  %1185 = vrot.lane.b32.xlu0 %v1075, 32
  %v1186 = vpop.permute.xlu0 %1185
  %1187 = vrot.lane.b32.xlu0 %v1077, 32
  %v1188 = vpop.permute.xlu0 %1187
  %1189 = vrot.lane.b32.xlu0 %v1079, 32
  %v1190 = vpop.permute.xlu0 %1189
  %1191 = vrot.lane.b32.xlu0 %v1081, 32
  %v1192 = vpop.permute.xlu0 %1191
  %1193 = vrot.lane.b32.xlu0 %v1083, 32
  %v1194 = vpop.permute.xlu0 %1193
  %1195 = vrot.lane.b32.xlu0 %v1085, 32
  %v1196 = vpop.permute.xlu0 %1195
  %1197 = vrot.lane.b32.xlu0 %v1087, 32
  %v1198 = vpop.permute.xlu0 %1197
  %1199 = vrot.lane.b32.xlu0 %v1089, 32
  %v1200 = vpop.permute.xlu0 %1199
  %1201 = vrot.lane.b32.xlu0 %v1091, 32
  %v1202 = vpop.permute.xlu0 %1201
  %1203 = vrot.lane.b32.xlu0 %v1093, 32
  %v1204 = vpop.permute.xlu0 %1203
  %1205 = vrot.lane.b32.xlu0 %v1095, 32
  %v1206 = vpop.permute.xlu0 %1205
  %1207 = vrot.lane.b32.xlu0 %v1097, 32
  %v1208 = vpop.permute.xlu0 %1207
  %1209 = vrot.lane.b32.xlu0 %v1099, 32
  %v1210 = vpop.permute.xlu0 %1209
  %1211 = vrot.lane.b32.xlu0 %v1101, 32
  %v1212 = vpop.permute.xlu0 %1211
  %1213 = vrot.lane.b32.xlu0 %v1103, 32
  %v1214 = vpop.permute.xlu0 %1213
  %1215 = vrot.lane.b32.xlu0 %v1105, 32
  %v1216 = vpop.permute.xlu0 %1215
  %1217 = vrot.lane.b32.xlu0 %v1107, 32
  %v1218 = vpop.permute.xlu0 %1217
  %1219 = vrot.lane.b32.xlu0 %v1109, 32
  %v1220 = vpop.permute.xlu0 %1219
  %1221 = vrot.lane.b32.xlu0 %v1111, 32
  %v1222 = vpop.permute.xlu0 %1221
  %1223 = vrot.lane.b32.xlu0 %v1113, 32
  %v1224 = vpop.permute.xlu0 %1223
  %1225 = vrot.lane.b32.xlu0 %v1115, 32
  %v1226 = vpop.permute.xlu0 %1225
  %1227 = vrot.lane.b32.xlu0 %v1117, 32
  %v1228 = vpop.permute.xlu0 %1227
  %1229 = vrot.lane.b32.xlu0 %v1119, 32
  %v1230 = vpop.permute.xlu0 %1229
  %1231 = vrot.lane.b32.xlu0 %v1121, 32
  %v1232 = vpop.permute.xlu0 %1231
  %1233 = vrot.lane.b32.xlu0 %v1123, 32
  %v1234 = vpop.permute.xlu0 %1233
  %1235 = vrot.lane.b32.xlu0 %v1125, 32
  %v1236 = vpop.permute.xlu0 %1235
  %1237 = vrot.lane.b32.xlu0 %v1127, 32
  %v1238 = vpop.permute.xlu0 %1237
  %1239 = vrot.lane.b32.xlu0 %v1129, 32
  %v1240 = vpop.permute.xlu0 %1239
  %1241 = vrot.lane.b32.xlu0 %v1068, 32
  %v1242 = vpop.permute.xlu0 %1241
  %1243 = vrot.lane.b32.xlu0 %v1070, 32
  %v1244 = vpop.permute.xlu0 %1243
  %1245 = vrot.lane.b32.xlu0 %v1072, 32
  %v1246 = vpop.permute.xlu0 %1245
  %1247 = vrot.lane.b32.xlu0 %v1074, 32
  %v1248 = vpop.permute.xlu0 %1247
  %1249 = vrot.lane.b32.xlu0 %v1076, 32
  %v1250 = vpop.permute.xlu0 %1249
  %1251 = vrot.lane.b32.xlu0 %v1078, 32
  %v1252 = vpop.permute.xlu0 %1251
  %1253 = vrot.lane.b32.xlu0 %v1080, 32
  %v1254 = vpop.permute.xlu0 %1253
  %1255 = vrot.lane.b32.xlu0 %v1082, 32
  %v1256 = vpop.permute.xlu0 %1255
  %1257 = vrot.lane.b32.xlu0 %v1084, 32
  %v1258 = vpop.permute.xlu0 %1257
  %1259 = vrot.lane.b32.xlu0 %v1086, 32
  %v1260 = vpop.permute.xlu0 %1259
  %1261 = vrot.lane.b32.xlu0 %v1088, 32
  %v1262 = vpop.permute.xlu0 %1261
  %1263 = vrot.lane.b32.xlu0 %v1090, 32
  %v1264 = vpop.permute.xlu0 %1263
  %1265 = vrot.lane.b32.xlu0 %v1092, 32
  %v1266 = vpop.permute.xlu0 %1265
  %1267 = vrot.lane.b32.xlu0 %v1094, 32
  %v1268 = vpop.permute.xlu0 %1267
  %1269 = vrot.lane.b32.xlu0 %v1096, 32
  %v1270 = vpop.permute.xlu0 %1269
  %1271 = vrot.lane.b32.xlu0 %v1098, 32
  %v1272 = vpop.permute.xlu0 %1271
  %1273 = vrot.lane.b32.xlu0 %v1100, 32
  %v1274 = vpop.permute.xlu0 %1273
  %1275 = vrot.lane.b32.xlu0 %v1102, 32
  %v1276 = vpop.permute.xlu0 %1275
  %1277 = vrot.lane.b32.xlu0 %v1104, 32
  %v1278 = vpop.permute.xlu0 %1277
  %1279 = vrot.lane.b32.xlu0 %v1106, 32
  %v1280 = vpop.permute.xlu0 %1279
  %1281 = vrot.lane.b32.xlu0 %v1108, 32
  %v1282 = vpop.permute.xlu0 %1281
  %1283 = vrot.lane.b32.xlu0 %v1110, 32
  %v1284 = vpop.permute.xlu0 %1283
  %1285 = vrot.lane.b32.xlu0 %v1112, 32
  %v1286 = vpop.permute.xlu0 %1285
  %1287 = vrot.lane.b32.xlu0 %v1114, 32
  %v1288 = vpop.permute.xlu0 %1287
  %1289 = vrot.lane.b32.xlu0 %v1116, 32
  %v1290 = vpop.permute.xlu0 %1289
  %1291 = vrot.lane.b32.xlu0 %v1118, 32
  %v1292 = vpop.permute.xlu0 %1291
  %1293 = vrot.lane.b32.xlu0 %v1120, 32
  %v1294 = vpop.permute.xlu0 %1293
  %1295 = vrot.lane.b32.xlu0 %v1122, 32
  %v1296 = vpop.permute.xlu0 %1295
  %1297 = vrot.lane.b32.xlu0 %v1124, 32
  %v1298 = vpop.permute.xlu0 %1297
  %1299 = vrot.lane.b32.xlu0 %v1126, 32
  %v1300 = vpop.permute.xlu0 %1299
  %1301 = vrot.lane.b32.xlu0 %v1128, 32
  %v1302 = vpop.permute.xlu0 %1301
  %1303 = vrot.lane.b32.xlu0 %v1130, 32
  %v1304 = vpop.permute.xlu0 %1303
  %v1305 = vlaneseq
  %v1306 = vand.u32 %v1305, 127
  %vm1307 = vcmp.lt.s32.totalorder %v1306, 32
  %v1308 = vsel %vm1307, %v1178, %v1242
  %v1309 = vsel %vm1307, %v1180, %v1244
  %v1310 = vsel %vm1307, %v1182, %v1246
  %v1311 = vsel %vm1307, %v1184, %v1248
  %v1312 = vsel %vm1307, %v1186, %v1250
  %v1313 = vsel %vm1307, %v1188, %v1252
  %v1314 = vsel %vm1307, %v1190, %v1254
  %v1315 = vsel %vm1307, %v1192, %v1256
  %v1316 = vsel %vm1307, %v1194, %v1258
  %v1317 = vsel %vm1307, %v1196, %v1260
  %v1318 = vsel %vm1307, %v1198, %v1262
  %v1319 = vsel %vm1307, %v1200, %v1264
  %v1320 = vsel %vm1307, %v1202, %v1266
  %v1321 = vsel %vm1307, %v1204, %v1268
  %v1322 = vsel %vm1307, %v1206, %v1270
  %v1323 = vsel %vm1307, %v1208, %v1272
  %v1324 = vsel %vm1307, %v1210, %v1274
  %v1325 = vsel %vm1307, %v1212, %v1276
  %v1326 = vsel %vm1307, %v1214, %v1278
  %v1327 = vsel %vm1307, %v1216, %v1280
  %v1328 = vsel %vm1307, %v1218, %v1282
  %v1329 = vsel %vm1307, %v1220, %v1284
  %v1330 = vsel %vm1307, %v1222, %v1286
  %v1331 = vsel %vm1307, %v1224, %v1288
  %v1332 = vsel %vm1307, %v1226, %v1290
  %v1333 = vsel %vm1307, %v1228, %v1292
  %v1334 = vsel %vm1307, %v1230, %v1294
  %v1335 = vsel %vm1307, %v1232, %v1296
  %v1336 = vsel %vm1307, %v1234, %v1298
  %v1337 = vsel %vm1307, %v1236, %v1300
  %v1338 = vsel %vm1307, %v1238, %v1302
  %v1339 = vsel %vm1307, %v1240, %v1304
  %v1340 = vsel %vm1307, %v1242, %v1178
  %v1341 = vsel %vm1307, %v1244, %v1180
  %v1342 = vsel %vm1307, %v1246, %v1182
  %v1343 = vsel %vm1307, %v1248, %v1184
  %v1344 = vsel %vm1307, %v1250, %v1186
  %v1345 = vsel %vm1307, %v1252, %v1188
  %v1346 = vsel %vm1307, %v1254, %v1190
  %v1347 = vsel %vm1307, %v1256, %v1192
  %v1348 = vsel %vm1307, %v1258, %v1194
  %v1349 = vsel %vm1307, %v1260, %v1196
  %v1350 = vsel %vm1307, %v1262, %v1198
  %v1351 = vsel %vm1307, %v1264, %v1200
  %v1352 = vsel %vm1307, %v1266, %v1202
  %v1353 = vsel %vm1307, %v1268, %v1204
  %v1354 = vsel %vm1307, %v1270, %v1206
  %v1355 = vsel %vm1307, %v1272, %v1208
  %v1356 = vsel %vm1307, %v1274, %v1210
  %v1357 = vsel %vm1307, %v1276, %v1212
  %v1358 = vsel %vm1307, %v1278, %v1214
  %v1359 = vsel %vm1307, %v1280, %v1216
  %v1360 = vsel %vm1307, %v1282, %v1218
  %v1361 = vsel %vm1307, %v1284, %v1220
  %v1362 = vsel %vm1307, %v1286, %v1222
  %v1363 = vsel %vm1307, %v1288, %v1224
  %v1364 = vsel %vm1307, %v1290, %v1226
  %v1365 = vsel %vm1307, %v1292, %v1228
  %v1366 = vsel %vm1307, %v1294, %v1230
  %v1367 = vsel %vm1307, %v1296, %v1232
  %v1368 = vsel %vm1307, %v1298, %v1234
  %v1369 = vsel %vm1307, %v1300, %v1236
  %v1370 = vsel %vm1307, %v1302, %v1238
  %v1371 = vsel %vm1307, %v1304, %v1240
  %v1372 = vmul.f32 %v1067, %v1340
  %v1373 = vmul.f32 %v1068, %v1308
  %v1374 = vmul.f32 %v1069, %v1341
  %v1375 = vmul.f32 %v1070, %v1309
  %v1376 = vmul.f32 %v1071, %v1342
  %v1377 = vmul.f32 %v1072, %v1310
  %v1378 = vmul.f32 %v1073, %v1343
  %v1379 = vmul.f32 %v1074, %v1311
  %v1380 = vmul.f32 %v1075, %v1344
  %v1381 = vmul.f32 %v1076, %v1312
  %v1382 = vmul.f32 %v1077, %v1345
  %v1383 = vmul.f32 %v1078, %v1313
  %v1384 = vmul.f32 %v1079, %v1346
  %v1385 = vmul.f32 %v1080, %v1314
  %v1386 = vmul.f32 %v1081, %v1347
  %v1387 = vmul.f32 %v1082, %v1315
  %v1388 = vmul.f32 %v1083, %v1348
  %v1389 = vmul.f32 %v1084, %v1316
  %v1390 = vmul.f32 %v1085, %v1349
  %v1391 = vmul.f32 %v1086, %v1317
  %v1392 = vmul.f32 %v1087, %v1350
  %v1393 = vmul.f32 %v1088, %v1318
  %v1394 = vmul.f32 %v1089, %v1351
  %v1395 = vmul.f32 %v1090, %v1319
  %v1396 = vmul.f32 %v1091, %v1352
  %v1397 = vmul.f32 %v1092, %v1320
  %v1398 = vmul.f32 %v1093, %v1353
  %v1399 = vmul.f32 %v1094, %v1321
  %v1400 = vmul.f32 %v1095, %v1354
  %v1401 = vmul.f32 %v1096, %v1322
  %v1402 = vmul.f32 %v1097, %v1355
  %v1403 = vmul.f32 %v1098, %v1323
  %v1404 = vmul.f32 %v1099, %v1356
  %v1405 = vmul.f32 %v1100, %v1324
  %v1406 = vmul.f32 %v1101, %v1357
  %v1407 = vmul.f32 %v1102, %v1325
  %v1408 = vmul.f32 %v1103, %v1358
  %v1409 = vmul.f32 %v1104, %v1326
  %v1410 = vmul.f32 %v1105, %v1359
  %v1411 = vmul.f32 %v1106, %v1327
  %v1412 = vmul.f32 %v1107, %v1360
  %v1413 = vmul.f32 %v1108, %v1328
  %v1414 = vmul.f32 %v1109, %v1361
  %v1415 = vmul.f32 %v1110, %v1329
  %v1416 = vmul.f32 %v1111, %v1362
  %v1417 = vmul.f32 %v1112, %v1330
  %v1418 = vmul.f32 %v1113, %v1363
  %v1419 = vmul.f32 %v1114, %v1331
  %v1420 = vmul.f32 %v1115, %v1364
  %v1421 = vmul.f32 %v1116, %v1332
  %v1422 = vmul.f32 %v1117, %v1365
  %v1423 = vmul.f32 %v1118, %v1333
  %v1424 = vmul.f32 %v1119, %v1366
  %v1425 = vmul.f32 %v1120, %v1334
  %v1426 = vmul.f32 %v1121, %v1367
  %v1427 = vmul.f32 %v1122, %v1335
  %v1428 = vmul.f32 %v1123, %v1368
  %v1429 = vmul.f32 %v1124, %v1336
  %v1430 = vmul.f32 %v1125, %v1369
  %v1431 = vmul.f32 %v1126, %v1337
  %v1432 = vmul.f32 %v1127, %v1370
  %v1433 = vmul.f32 %v1128, %v1338
  %v1434 = vmul.f32 %v1129, %v1371
  %v1435 = vmul.f32 %v1130, %v1339
  %v1436 = vpack.c.bf16 %v1374, %v1372
  %v1437 = vpack.c.bf16 %v1375, %v1373
  %v1438 = vpack.c.bf16 %v1378, %v1376
  %v1439 = vpack.c.bf16 %v1379, %v1377
  %v1440 = vpack.c.bf16 %v1382, %v1380
  %v1441 = vpack.c.bf16 %v1383, %v1381
  %v1442 = vpack.c.bf16 %v1386, %v1384
  %v1443 = vpack.c.bf16 %v1387, %v1385
  %v1444 = vpack.c.bf16 %v1390, %v1388
  %v1445 = vpack.c.bf16 %v1391, %v1389
  %v1446 = vpack.c.bf16 %v1394, %v1392
  %v1447 = vpack.c.bf16 %v1395, %v1393
  %v1448 = vpack.c.bf16 %v1398, %v1396
  %v1449 = vpack.c.bf16 %v1399, %v1397
  %v1450 = vpack.c.bf16 %v1402, %v1400
  %v1451 = vpack.c.bf16 %v1403, %v1401
  %v1452 = vpack.c.bf16 %v1406, %v1404
  %v1453 = vpack.c.bf16 %v1407, %v1405
  %v1454 = vpack.c.bf16 %v1410, %v1408
  %v1455 = vpack.c.bf16 %v1411, %v1409
  %v1456 = vpack.c.bf16 %v1414, %v1412
  %v1457 = vpack.c.bf16 %v1415, %v1413
  %v1458 = vpack.c.bf16 %v1418, %v1416
  %v1459 = vpack.c.bf16 %v1419, %v1417
  %v1460 = vpack.c.bf16 %v1422, %v1420
  %v1461 = vpack.c.bf16 %v1423, %v1421
  %v1462 = vpack.c.bf16 %v1426, %v1424
  %v1463 = vpack.c.bf16 %v1427, %v1425
  %v1464 = vpack.c.bf16 %v1430, %v1428
  %v1465 = vpack.c.bf16 %v1431, %v1429
  %v1466 = vpack.c.bf16 %v1434, %v1432
  %v1467 = vpack.c.bf16 %v1435, %v1433
  %v1500 = vunpack.c.l.b16 %v1131
  %v1501 = vunpack.c.l.b16 %v1132
  %v1502 = vunpack.c.l.b16 %v1133
  %v1503 = vunpack.c.l.b16 %v1134
  %v1504 = vunpack.c.l.b16 %v1135
  %v1505 = vunpack.c.l.b16 %v1136
  %v1506 = vunpack.c.l.b16 %v1137
  %v1507 = vunpack.c.l.b16 %v1138
  %v1508 = vunpack.c.l.b16 %v1139
  %v1509 = vunpack.c.l.b16 %v1140
  %v1510 = vunpack.c.l.b16 %v1141
  %v1511 = vunpack.c.l.b16 %v1142
  %v1512 = vunpack.c.l.b16 %v1143
  %v1513 = vunpack.c.l.b16 %v1144
  %v1514 = vunpack.c.l.b16 %v1145
  %v1515 = vunpack.c.l.b16 %v1146
  %v1516 = vunpack.c.l.b16 %v1147
  %v1517 = vunpack.c.l.b16 %v1148
  %v1518 = vunpack.c.l.b16 %v1149
  %v1519 = vunpack.c.l.b16 %v1150
  %v1520 = vunpack.c.l.b16 %v1151
  %v1521 = vunpack.c.l.b16 %v1152
  %v1522 = vunpack.c.l.b16 %v1153
  %v1523 = vunpack.c.l.b16 %v1154
  %v1524 = vunpack.c.l.b16 %v1155
  %v1525 = vunpack.c.l.b16 %v1156
  %v1526 = vunpack.c.l.b16 %v1157
  %v1527 = vunpack.c.l.b16 %v1158
  %v1528 = vunpack.c.l.b16 %v1159
  %v1529 = vunpack.c.l.b16 %v1160
  %v1530 = vunpack.c.l.b16 %v1161
  %v1531 = vunpack.c.l.b16 %v1162
  %v1532 = vpack.c.b16 %v1501, %v1500
  %v1533 = vpack.c.b16 %v1503, %v1502
  %v1534 = vpack.c.b16 %v1505, %v1504
  %v1535 = vpack.c.b16 %v1507, %v1506
  %v1536 = vpack.c.b16 %v1509, %v1508
  %v1537 = vpack.c.b16 %v1511, %v1510
  %v1538 = vpack.c.b16 %v1513, %v1512
  %v1539 = vpack.c.b16 %v1515, %v1514
  %v1540 = vpack.c.b16 %v1517, %v1516
  %v1541 = vpack.c.b16 %v1519, %v1518
  %v1542 = vpack.c.b16 %v1521, %v1520
  %v1543 = vpack.c.b16 %v1523, %v1522
  %v1544 = vpack.c.b16 %v1525, %v1524
  %v1545 = vpack.c.b16 %v1527, %v1526
  %v1546 = vpack.c.b16 %v1529, %v1528
  %v1547 = vpack.c.b16 %v1531, %v1530
  %1564 = vmatprep.subr.bf16.mxu0 0
  %1565 = vmatpush1.bf16.msra.mxu0 %v1539
  %1566 = vmatprep.subr.bf16.mxu0 0
  %1567 = vmatpush1.bf16.msra.mxu0 %v1538
  %1568 = vmatprep.subr.bf16.mxu0 0
  %1569 = vmatpush1.bf16.msra.mxu0 %v1537
  %1570 = vmatprep.subr.bf16.mxu0 0
  %1571 = vmatpush1.bf16.msra.mxu0 %v1536
  %1572 = vmatprep.subr.bf16.mxu0 0
  %1573 = vmatpush1.bf16.msra.mxu0 %v1535
  %1574 = vmatprep.subr.bf16.mxu0 0
  %1575 = vmatpush1.bf16.msra.mxu0 %v1534
  %1576 = vmatprep.subr.bf16.mxu0 0
  %1577 = vmatpush1.bf16.msra.mxu0 %v1533
  %1578 = vmatprep.subr.bf16.mxu0 0
  %1579 = vmatpush1.bf16.msra.mxu0 %v1532
  %1580 = vmatprep.subr.bf16.mxu0 0
  %1581 = vmatpush2.bf16.msra.mxu0 %v1547
  %1582 = vmatprep.subr.bf16.mxu0 0
  %1583 = vmatpush2.bf16.msra.mxu0 %v1546
  %1584 = vmatprep.subr.bf16.mxu0 0
  %1585 = vmatpush2.bf16.msra.mxu0 %v1545
  %1586 = vmatprep.subr.bf16.mxu0 0
  %1587 = vmatpush2.bf16.msra.mxu0 %v1544
  %1588 = vmatprep.subr.bf16.mxu0 0
  %1589 = vmatpush2.bf16.msra.mxu0 %v1543
  %1590 = vmatprep.subr.bf16.mxu0 0
  %1591 = vmatpush2.bf16.msra.mxu0 %v1542
  %1592 = vmatprep.subr.bf16.mxu0 0
  %1593 = vmatpush2.bf16.msra.mxu0 %v1541
  %1594 = vmatprep.subr.bf16.mxu0 0
  %1595 = vmatpush2.bf16.msra.mxu0 %v1540
  %1596 = vmatprep.mubr.bf16.mxu0 %v1437
  %1597 = vmatmul.mubr.bf16.gmra.mxu0 %v1436
  %v1598 = vpop.f32.mrf.mxu0
  %v1599 = vadd.f32 %v1168, %v1598
  %v1600 = vpop.f32.mrf.mxu0
  %v1601 = vpop.f32.mrf.mxu0
  %v1602 = vadd.f32 %v1168, %v1601
  %v1603 = vpop.f32.mrf.mxu0
  %1604 = vmatprep.mubr.bf16.mxu0 %v1439
  %1605 = vmatmul.mubr.bf16.gmra.mxu0 %v1438
  %v1606 = vpop.f32.mrf.mxu0
  %v1607 = vadd.f32 %v1168, %v1606
  %v1608 = vpop.f32.mrf.mxu0
  %v1609 = vpop.f32.mrf.mxu0
  %v1610 = vadd.f32 %v1168, %v1609
  %v1611 = vpop.f32.mrf.mxu0
  %1612 = vmatprep.mubr.bf16.mxu0 %v1441
  %1613 = vmatmul.mubr.bf16.gmra.mxu0 %v1440
  %v1614 = vpop.f32.mrf.mxu0
  %v1615 = vadd.f32 %v1168, %v1614
  %v1616 = vpop.f32.mrf.mxu0
  %v1617 = vpop.f32.mrf.mxu0
  %v1618 = vadd.f32 %v1168, %v1617
  %v1619 = vpop.f32.mrf.mxu0
  %1620 = vmatprep.mubr.bf16.mxu0 %v1443
  %1621 = vmatmul.mubr.bf16.gmra.mxu0 %v1442
  %v1622 = vpop.f32.mrf.mxu0
  %v1623 = vadd.f32 %v1168, %v1622
  %v1624 = vpop.f32.mrf.mxu0
  %v1625 = vpop.f32.mrf.mxu0
  %v1626 = vadd.f32 %v1168, %v1625
  %v1627 = vpop.f32.mrf.mxu0
  %1628 = vmatprep.mubr.bf16.mxu0 %v1445
  %1629 = vmatmul.mubr.bf16.gmra.mxu0 %v1444
  %v1630 = vpop.f32.mrf.mxu0
  %v1631 = vadd.f32 %v1168, %v1630
  %v1632 = vpop.f32.mrf.mxu0
  %v1633 = vpop.f32.mrf.mxu0
  %v1634 = vadd.f32 %v1168, %v1633
  %v1635 = vpop.f32.mrf.mxu0
  %1636 = vmatprep.mubr.bf16.mxu0 %v1447
  %1637 = vmatmul.mubr.bf16.gmra.mxu0 %v1446
  %v1638 = vpop.f32.mrf.mxu0
  %v1639 = vadd.f32 %v1168, %v1638
  %v1640 = vpop.f32.mrf.mxu0
  %v1641 = vpop.f32.mrf.mxu0
  %v1642 = vadd.f32 %v1168, %v1641
  %v1643 = vpop.f32.mrf.mxu0
  %1644 = vmatprep.mubr.bf16.mxu0 %v1449
  %1645 = vmatmul.mubr.bf16.gmra.mxu0 %v1448
  %v1646 = vpop.f32.mrf.mxu0
  %v1647 = vadd.f32 %v1168, %v1646
  %v1648 = vpop.f32.mrf.mxu0
  %v1649 = vpop.f32.mrf.mxu0
  %v1650 = vadd.f32 %v1168, %v1649
  %v1651 = vpop.f32.mrf.mxu0
  %1652 = vmatprep.mubr.bf16.mxu0 %v1451
  %1653 = vmatmul.mubr.bf16.gmra.mxu0 %v1450
  %v1654 = vpop.f32.mrf.mxu0
  %v1655 = vadd.f32 %v1168, %v1654
  %v1656 = vpop.f32.mrf.mxu0
  %v1657 = vpop.f32.mrf.mxu0
  %v1658 = vadd.f32 %v1168, %v1657
  %v1659 = vpop.f32.mrf.mxu0
  %1660 = vmatprep.mubr.bf16.mxu0 %v1453
  %1661 = vmatmul.mubr.bf16.gmra.mxu0 %v1452
  %v1662 = vpop.f32.mrf.mxu0
  %v1663 = vadd.f32 %v1168, %v1662
  %v1664 = vpop.f32.mrf.mxu0
  %v1665 = vpop.f32.mrf.mxu0
  %v1666 = vadd.f32 %v1168, %v1665
  %v1667 = vpop.f32.mrf.mxu0
  %1668 = vmatprep.mubr.bf16.mxu0 %v1455
  %1669 = vmatmul.mubr.bf16.gmra.mxu0 %v1454
  %v1670 = vpop.f32.mrf.mxu0
  %v1671 = vadd.f32 %v1168, %v1670
  %v1672 = vpop.f32.mrf.mxu0
  %v1673 = vpop.f32.mrf.mxu0
  %v1674 = vadd.f32 %v1168, %v1673
  %v1675 = vpop.f32.mrf.mxu0
  %1676 = vmatprep.mubr.bf16.mxu0 %v1457
  %1677 = vmatmul.mubr.bf16.gmra.mxu0 %v1456
  %v1678 = vpop.f32.mrf.mxu0
  %v1679 = vadd.f32 %v1168, %v1678
  %v1680 = vpop.f32.mrf.mxu0
  %v1681 = vpop.f32.mrf.mxu0
  %v1682 = vadd.f32 %v1168, %v1681
  %v1683 = vpop.f32.mrf.mxu0
  %1684 = vmatprep.mubr.bf16.mxu0 %v1459
  %1685 = vmatmul.mubr.bf16.gmra.mxu0 %v1458
  %v1686 = vpop.f32.mrf.mxu0
  %v1687 = vadd.f32 %v1168, %v1686
  %v1688 = vpop.f32.mrf.mxu0
  %v1689 = vpop.f32.mrf.mxu0
  %v1690 = vadd.f32 %v1168, %v1689
  %v1691 = vpop.f32.mrf.mxu0
  %1692 = vmatprep.mubr.bf16.mxu0 %v1461
  %1693 = vmatmul.mubr.bf16.gmra.mxu0 %v1460
  %v1694 = vpop.f32.mrf.mxu0
  %v1695 = vadd.f32 %v1168, %v1694
  %v1696 = vpop.f32.mrf.mxu0
  %v1697 = vpop.f32.mrf.mxu0
  %v1698 = vadd.f32 %v1168, %v1697
  %v1699 = vpop.f32.mrf.mxu0
  %1700 = vmatprep.mubr.bf16.mxu0 %v1463
  %1701 = vmatmul.mubr.bf16.gmra.mxu0 %v1462
  %v1702 = vpop.f32.mrf.mxu0
  %v1703 = vadd.f32 %v1168, %v1702
  %v1704 = vpop.f32.mrf.mxu0
  %v1705 = vpop.f32.mrf.mxu0
  %v1706 = vadd.f32 %v1168, %v1705
  %v1707 = vpop.f32.mrf.mxu0
  %1708 = vmatprep.mubr.bf16.mxu0 %v1465
  %1709 = vmatmul.mubr.bf16.gmra.mxu0 %v1464
  %v1710 = vpop.f32.mrf.mxu0
  %v1711 = vadd.f32 %v1168, %v1710
  %v1712 = vpop.f32.mrf.mxu0
  %v1713 = vpop.f32.mrf.mxu0
  %v1714 = vadd.f32 %v1168, %v1713
  %v1715 = vpop.f32.mrf.mxu0
  %1716 = vmatprep.mubr.bf16.mxu0 %v1467
  %1717 = vmatmul.mubr.bf16.gmra.mxu0 %v1466
  %v1718 = vpop.f32.mrf.mxu0
  %v1719 = vadd.f32 %v1168, %v1718
  %v1720 = vpop.f32.mrf.mxu0
  %v1721 = vpop.f32.mrf.mxu0
  %v1722 = vadd.f32 %v1168, %v1721
  %v1723 = vpop.f32.mrf.mxu0
  %1724 = vdwg.mxu0
  %v1725 = vmax.f32 %v1599, 0.0
  %v1726 = vmax.f32 %v1602, 0.0
  %v1727 = vmax.f32 %v1607, 0.0
  %v1728 = vmax.f32 %v1610, 0.0
  %v1729 = vmax.f32 %v1615, 0.0
  %v1730 = vmax.f32 %v1618, 0.0
  %v1731 = vmax.f32 %v1623, 0.0
  %v1732 = vmax.f32 %v1626, 0.0
  %v1733 = vmax.f32 %v1631, 0.0
  %v1734 = vmax.f32 %v1634, 0.0
  %v1735 = vmax.f32 %v1639, 0.0
  %v1736 = vmax.f32 %v1642, 0.0
  %v1737 = vmax.f32 %v1647, 0.0
  %v1738 = vmax.f32 %v1650, 0.0
  %v1739 = vmax.f32 %v1655, 0.0
  %v1740 = vmax.f32 %v1658, 0.0
  %v1741 = vmax.f32 %v1663, 0.0
  %v1742 = vmax.f32 %v1666, 0.0
  %v1743 = vmax.f32 %v1671, 0.0
  %v1744 = vmax.f32 %v1674, 0.0
  %v1745 = vmax.f32 %v1679, 0.0
  %v1746 = vmax.f32 %v1682, 0.0
  %v1747 = vmax.f32 %v1687, 0.0
  %v1748 = vmax.f32 %v1690, 0.0
  %v1749 = vmax.f32 %v1695, 0.0
  %v1750 = vmax.f32 %v1698, 0.0
  %v1751 = vmax.f32 %v1703, 0.0
  %v1752 = vmax.f32 %v1706, 0.0
  %v1753 = vmax.f32 %v1711, 0.0
  %v1754 = vmax.f32 %v1714, 0.0
  %v1755 = vmax.f32 %v1719, 0.0
  %v1756 = vmax.f32 %v1722, 0.0
  %v1757 = vpack.c.bf16 %v1726, %v1725
  %v1758 = vpack.c.bf16 %v1728, %v1727
  %v1759 = vpack.c.bf16 %v1730, %v1729
  %v1760 = vpack.c.bf16 %v1732, %v1731
  %v1761 = vpack.c.bf16 %v1734, %v1733
  %v1762 = vpack.c.bf16 %v1736, %v1735
  %v1763 = vpack.c.bf16 %v1738, %v1737
  %v1764 = vpack.c.bf16 %v1740, %v1739
  %v1765 = vpack.c.bf16 %v1742, %v1741
  %v1766 = vpack.c.bf16 %v1744, %v1743
  %v1767 = vpack.c.bf16 %v1746, %v1745
  %v1768 = vpack.c.bf16 %v1748, %v1747
  %v1769 = vpack.c.bf16 %v1750, %v1749
  %v1770 = vpack.c.bf16 %v1752, %v1751
  %v1771 = vpack.c.bf16 %v1754, %v1753
  %v1772 = vpack.c.bf16 %v1756, %v1755
  %v1773 = vld [vmem:[%s5] sm:$0xf]
  %v1774 = vld [vmem:[%s5 + $0x4] sm:$0xf]
  %v1775 = vld [vmem:[%s5 + $0x8] sm:$0xf]
  %v1776 = vld [vmem:[%s5 + $0xc] sm:$0xf]
  %v1777 = vld [vmem:[%s5 + $0x10] sm:$0xf]
  %v1778 = vld [vmem:[%s5 + $0x14] sm:$0xf]
  %v1779 = vld [vmem:[%s5 + $0x18] sm:$0xf]
  %v1780 = vld [vmem:[%s5 + $0x1c] sm:$0xf]
  %v1781 = vld [vmem:[%s5 + $0x20] sm:$0xf]
  %v1782 = vld [vmem:[%s5 + $0x24] sm:$0xf]
  %v1783 = vld [vmem:[%s5 + $0x28] sm:$0xf]
  %v1784 = vld [vmem:[%s5 + $0x2c] sm:$0xf]
  %v1785 = vld [vmem:[%s5 + $0x30] sm:$0xf]
  %v1786 = vld [vmem:[%s5 + $0x34] sm:$0xf]
  %v1787 = vld [vmem:[%s5 + $0x38] sm:$0xf]
  %v1788 = vld [vmem:[%s5 + $0x3c] sm:$0xf]
  %v1805 = vunpack.c.l.b16 %v1773
  %v1806 = vunpack.c.l.b16 %v1774
  %v1807 = vunpack.c.l.b16 %v1775
  %v1808 = vunpack.c.l.b16 %v1776
  %v1809 = vunpack.c.l.b16 %v1777
  %v1810 = vunpack.c.l.b16 %v1778
  %v1811 = vunpack.c.l.b16 %v1779
  %v1812 = vunpack.c.l.b16 %v1780
  %v1813 = vunpack.c.l.b16 %v1781
  %v1814 = vunpack.c.l.b16 %v1782
  %v1815 = vunpack.c.l.b16 %v1783
  %v1816 = vunpack.c.l.b16 %v1784
  %v1817 = vunpack.c.l.b16 %v1785
  %v1818 = vunpack.c.l.b16 %v1786
  %v1819 = vunpack.c.l.b16 %v1787
  %v1820 = vunpack.c.l.b16 %v1788
  %v1821 = vpack.c.b16 %v1806, %v1805
  %v1822 = vpack.c.b16 %v1808, %v1807
  %v1823 = vpack.c.b16 %v1810, %v1809
  %v1824 = vpack.c.b16 %v1812, %v1811
  %v1825 = vpack.c.b16 %v1814, %v1813
  %v1826 = vpack.c.b16 %v1816, %v1815
  %v1827 = vpack.c.b16 %v1818, %v1817
  %v1828 = vpack.c.b16 %v1820, %v1819
  %1837 = vmatprep.subr.bf16.mxu0 0
  %1838 = vmatpush1.bf16.msra.mxu0 %v1828
  %1839 = vmatprep.subr.bf16.mxu0 0
  %1840 = vmatpush1.bf16.msra.mxu0 %v1827
  %1841 = vmatprep.subr.bf16.mxu0 0
  %1842 = vmatpush1.bf16.msra.mxu0 %v1826
  %1843 = vmatprep.subr.bf16.mxu0 0
  %1844 = vmatpush1.bf16.msra.mxu0 %v1825
  %1845 = vmatprep.subr.bf16.mxu0 0
  %1846 = vmatpush1.bf16.msra.mxu0 %v1824
  %1847 = vmatprep.subr.bf16.mxu0 0
  %1848 = vmatpush1.bf16.msra.mxu0 %v1823
  %1849 = vmatprep.subr.bf16.mxu0 0
  %1850 = vmatpush1.bf16.msra.mxu0 %v1822
  %1851 = vmatprep.subr.bf16.mxu0 0
  %1852 = vmatpush1.bf16.msra.mxu0 %v1821
  %1853 = vmatprep.subr.bf16.mxu0 0
  %1854 = vmatpush2.bf16.msra.mxu0 0
  %1855 = vmatprep.subr.bf16.mxu0 0
  %1856 = vmatpush2.bf16.msra.mxu0 0
  %1857 = vmatprep.subr.bf16.mxu0 0
  %1858 = vmatpush2.bf16.msra.mxu0 0
  %1859 = vmatprep.subr.bf16.mxu0 0
  %1860 = vmatpush2.bf16.msra.mxu0 0
  %1861 = vmatprep.subr.bf16.mxu0 0
  %1862 = vmatpush2.bf16.msra.mxu0 0
  %1863 = vmatprep.subr.bf16.mxu0 0
  %1864 = vmatpush2.bf16.msra.mxu0 0
  %1865 = vmatprep.subr.bf16.mxu0 0
  %1866 = vmatpush2.bf16.msra.mxu0 0
  %1867 = vmatprep.subr.bf16.mxu0 0
  %1868 = vmatpush2.bf16.msra.mxu0 0
  %1869 = vmatprep.mubr.bf16.mxu0 0
  %1870 = vmatmul.mubr.bf16.gmra.mxu0 %v1757
  %v1871 = vpop.f32.mrf.mxu0
  %v1872 = vadd.f32 0.0, %v1871
  %v1873 = vpop.f32.mrf.mxu0
  %v1874 = vpop.f32.mrf.mxu0
  %v1875 = vadd.f32 0.0, %v1874
  %v1876 = vpop.f32.mrf.mxu0
  %1877 = vmatprep.mubr.bf16.mxu0 0
  %1878 = vmatmul.mubr.bf16.gmra.mxu0 %v1758
  %v1879 = vpop.f32.mrf.mxu0
  %v1880 = vadd.f32 0.0, %v1879
  %v1881 = vpop.f32.mrf.mxu0
  %v1882 = vpop.f32.mrf.mxu0
  %v1883 = vadd.f32 0.0, %v1882
  %v1884 = vpop.f32.mrf.mxu0
  %1885 = vmatprep.mubr.bf16.mxu0 0
  %1886 = vmatmul.mubr.bf16.gmra.mxu0 %v1759
  %v1887 = vpop.f32.mrf.mxu0
  %v1888 = vadd.f32 0.0, %v1887
  %v1889 = vpop.f32.mrf.mxu0
  %v1890 = vpop.f32.mrf.mxu0
  %v1891 = vadd.f32 0.0, %v1890
  %v1892 = vpop.f32.mrf.mxu0
  %1893 = vmatprep.mubr.bf16.mxu0 0
  %1894 = vmatmul.mubr.bf16.gmra.mxu0 %v1760
  %v1895 = vpop.f32.mrf.mxu0
  %v1896 = vadd.f32 0.0, %v1895
  %v1897 = vpop.f32.mrf.mxu0
  %v1898 = vpop.f32.mrf.mxu0
  %v1899 = vadd.f32 0.0, %v1898
  %v1900 = vpop.f32.mrf.mxu0
  %1901 = vmatprep.mubr.bf16.mxu0 0
  %1902 = vmatmul.mubr.bf16.gmra.mxu0 %v1761
  %v1903 = vpop.f32.mrf.mxu0
  %v1904 = vadd.f32 0.0, %v1903
  %v1905 = vpop.f32.mrf.mxu0
  %v1906 = vpop.f32.mrf.mxu0
  %v1907 = vadd.f32 0.0, %v1906
  %v1908 = vpop.f32.mrf.mxu0
  %1909 = vmatprep.mubr.bf16.mxu0 0
  %1910 = vmatmul.mubr.bf16.gmra.mxu0 %v1762
  %v1911 = vpop.f32.mrf.mxu0
  %v1912 = vadd.f32 0.0, %v1911
  %v1913 = vpop.f32.mrf.mxu0
  %v1914 = vpop.f32.mrf.mxu0
  %v1915 = vadd.f32 0.0, %v1914
  %v1916 = vpop.f32.mrf.mxu0
  %1917 = vmatprep.mubr.bf16.mxu0 0
  %1918 = vmatmul.mubr.bf16.gmra.mxu0 %v1763
  %v1919 = vpop.f32.mrf.mxu0
  %v1920 = vadd.f32 0.0, %v1919
  %v1921 = vpop.f32.mrf.mxu0
  %v1922 = vpop.f32.mrf.mxu0
  %v1923 = vadd.f32 0.0, %v1922
  %v1924 = vpop.f32.mrf.mxu0
  %1925 = vmatprep.mubr.bf16.mxu0 0
  %1926 = vmatmul.mubr.bf16.gmra.mxu0 %v1764
  %v1927 = vpop.f32.mrf.mxu0
  %v1928 = vadd.f32 0.0, %v1927
  %v1929 = vpop.f32.mrf.mxu0
  %v1930 = vpop.f32.mrf.mxu0
  %v1931 = vadd.f32 0.0, %v1930
  %v1932 = vpop.f32.mrf.mxu0
  %1933 = vmatprep.mubr.bf16.mxu0 0
  %1934 = vmatmul.mubr.bf16.gmra.mxu0 %v1765
  %v1935 = vpop.f32.mrf.mxu0
  %v1936 = vadd.f32 0.0, %v1935
  %v1937 = vpop.f32.mrf.mxu0
  %v1938 = vpop.f32.mrf.mxu0
  %v1939 = vadd.f32 0.0, %v1938
  %v1940 = vpop.f32.mrf.mxu0
  %1941 = vmatprep.mubr.bf16.mxu0 0
  %1942 = vmatmul.mubr.bf16.gmra.mxu0 %v1766
  %v1943 = vpop.f32.mrf.mxu0
  %v1944 = vadd.f32 0.0, %v1943
  %v1945 = vpop.f32.mrf.mxu0
  %v1946 = vpop.f32.mrf.mxu0
  %v1947 = vadd.f32 0.0, %v1946
  %v1948 = vpop.f32.mrf.mxu0
  %1949 = vmatprep.mubr.bf16.mxu0 0
  %1950 = vmatmul.mubr.bf16.gmra.mxu0 %v1767
  %v1951 = vpop.f32.mrf.mxu0
  %v1952 = vadd.f32 0.0, %v1951
  %v1953 = vpop.f32.mrf.mxu0
  %v1954 = vpop.f32.mrf.mxu0
  %v1955 = vadd.f32 0.0, %v1954
  %v1956 = vpop.f32.mrf.mxu0
  %1957 = vmatprep.mubr.bf16.mxu0 0
  %1958 = vmatmul.mubr.bf16.gmra.mxu0 %v1768
  %v1959 = vpop.f32.mrf.mxu0
  %v1960 = vadd.f32 0.0, %v1959
  %v1961 = vpop.f32.mrf.mxu0
  %v1962 = vpop.f32.mrf.mxu0
  %v1963 = vadd.f32 0.0, %v1962
  %v1964 = vpop.f32.mrf.mxu0
  %1965 = vmatprep.mubr.bf16.mxu0 0
  %1966 = vmatmul.mubr.bf16.gmra.mxu0 %v1769
  %v1967 = vpop.f32.mrf.mxu0
  %v1968 = vadd.f32 0.0, %v1967
  %v1969 = vpop.f32.mrf.mxu0
  %v1970 = vpop.f32.mrf.mxu0
  %v1971 = vadd.f32 0.0, %v1970
  %v1972 = vpop.f32.mrf.mxu0
  %1973 = vmatprep.mubr.bf16.mxu0 0
  %1974 = vmatmul.mubr.bf16.gmra.mxu0 %v1770
  %v1975 = vpop.f32.mrf.mxu0
  %v1976 = vadd.f32 0.0, %v1975
  %v1977 = vpop.f32.mrf.mxu0
  %v1978 = vpop.f32.mrf.mxu0
  %v1979 = vadd.f32 0.0, %v1978
  %v1980 = vpop.f32.mrf.mxu0
  %1981 = vmatprep.mubr.bf16.mxu0 0
  %1982 = vmatmul.mubr.bf16.gmra.mxu0 %v1771
  %v1983 = vpop.f32.mrf.mxu0
  %v1984 = vadd.f32 0.0, %v1983
  %v1985 = vpop.f32.mrf.mxu0
  %v1986 = vpop.f32.mrf.mxu0
  %v1987 = vadd.f32 0.0, %v1986
  %v1988 = vpop.f32.mrf.mxu0
  %1989 = vmatprep.mubr.bf16.mxu0 0
  %1990 = vmatmul.mubr.bf16.gmra.mxu0 %v1772
  %v1991 = vpop.f32.mrf.mxu0
  %v1992 = vadd.f32 0.0, %v1991
  %v1993 = vpop.f32.mrf.mxu0
  %v1994 = vpop.f32.mrf.mxu0
  %v1995 = vadd.f32 0.0, %v1994
  %v1996 = vpop.f32.mrf.mxu0
  %1997 = vdwg.mxu0
  %v1998 = vadd.f32 %v1175, %v1872
  %v1999 = vadd.f32 %v1175, %v1875
  %v2000 = vadd.f32 %v1175, %v1880
  %v2001 = vadd.f32 %v1175, %v1883
  %v2002 = vadd.f32 %v1175, %v1888
  %v2003 = vadd.f32 %v1175, %v1891
  %v2004 = vadd.f32 %v1175, %v1896
  %v2005 = vadd.f32 %v1175, %v1899
  %v2006 = vadd.f32 %v1175, %v1904
  %v2007 = vadd.f32 %v1175, %v1907
  %v2008 = vadd.f32 %v1175, %v1912
  %v2009 = vadd.f32 %v1175, %v1915
  %v2010 = vadd.f32 %v1175, %v1920
  %v2011 = vadd.f32 %v1175, %v1923
  %v2012 = vadd.f32 %v1175, %v1928
  %v2013 = vadd.f32 %v1175, %v1931
  %v2014 = vadd.f32 %v1175, %v1936
  %v2015 = vadd.f32 %v1175, %v1939
  %v2016 = vadd.f32 %v1175, %v1944
  %v2017 = vadd.f32 %v1175, %v1947
  %v2018 = vadd.f32 %v1175, %v1952
  %v2019 = vadd.f32 %v1175, %v1955
  %v2020 = vadd.f32 %v1175, %v1960
  %v2021 = vadd.f32 %v1175, %v1963
  %v2022 = vadd.f32 %v1175, %v1968
  %v2023 = vadd.f32 %v1175, %v1971
  %v2024 = vadd.f32 %v1175, %v1976
  %v2025 = vadd.f32 %v1175, %v1979
  %v2026 = vadd.f32 %v1175, %v1984
  %v2027 = vadd.f32 %v1175, %v1987
  %v2028 = vadd.f32 %v1175, %v1992
  %v2029 = vadd.f32 %v1175, %v1995
  %v2030 = vld [vmem:[%s6] sm:$0xf]
  %v2031 = vld [vmem:[%s6 + $0x4] sm:$0xf]
  %v2032 = vld [vmem:[%s6 + $0x8] sm:$0xf]
  %v2033 = vld [vmem:[%s6 + $0xc] sm:$0xf]
  %v2034 = vld [vmem:[%s6 + $0x10] sm:$0xf]
  %v2035 = vld [vmem:[%s6 + $0x14] sm:$0xf]
  %v2036 = vld [vmem:[%s6 + $0x18] sm:$0xf]
  %v2037 = vld [vmem:[%s6 + $0x1c] sm:$0xf]
  %v2038 = vld [vmem:[%s6 + $0x20] sm:$0xf]
  %v2039 = vld [vmem:[%s6 + $0x24] sm:$0xf]
  %v2040 = vld [vmem:[%s6 + $0x28] sm:$0xf]
  %v2041 = vld [vmem:[%s6 + $0x2c] sm:$0xf]
  %v2042 = vld [vmem:[%s6 + $0x30] sm:$0xf]
  %v2043 = vld [vmem:[%s6 + $0x34] sm:$0xf]
  %v2044 = vld [vmem:[%s6 + $0x38] sm:$0xf]
  %v2045 = vld [vmem:[%s6 + $0x3c] sm:$0xf]
  %v2046 = vld [vmem:[%s6 + $0x40] sm:$0xf]
  %v2047 = vld [vmem:[%s6 + $0x44] sm:$0xf]
  %v2048 = vld [vmem:[%s6 + $0x48] sm:$0xf]
  %v2049 = vld [vmem:[%s6 + $0x4c] sm:$0xf]
  %v2050 = vld [vmem:[%s6 + $0x50] sm:$0xf]
  %v2051 = vld [vmem:[%s6 + $0x54] sm:$0xf]
  %v2052 = vld [vmem:[%s6 + $0x58] sm:$0xf]
  %v2053 = vld [vmem:[%s6 + $0x5c] sm:$0xf]
  %v2054 = vld [vmem:[%s6 + $0x60] sm:$0xf]
  %v2055 = vld [vmem:[%s6 + $0x64] sm:$0xf]
  %v2056 = vld [vmem:[%s6 + $0x68] sm:$0xf]
  %v2057 = vld [vmem:[%s6 + $0x6c] sm:$0xf]
  %v2058 = vld [vmem:[%s6 + $0x70] sm:$0xf]
  %v2059 = vld [vmem:[%s6 + $0x74] sm:$0xf]
  %v2060 = vld [vmem:[%s6 + $0x78] sm:$0xf]
  %v2061 = vld [vmem:[%s6 + $0x7c] sm:$0xf]
  %2062 = vrot.lane.b32.xlu0 %v1067, 64
  %v2063 = vpop.permute.xlu0 %2062
  %2064 = vrot.lane.b32.xlu0 %v1069, 64
  %v2065 = vpop.permute.xlu0 %2064
  %2066 = vrot.lane.b32.xlu0 %v1071, 64
  %v2067 = vpop.permute.xlu0 %2066
  %2068 = vrot.lane.b32.xlu0 %v1073, 64
  %v2069 = vpop.permute.xlu0 %2068
  %2070 = vrot.lane.b32.xlu0 %v1075, 64
  %v2071 = vpop.permute.xlu0 %2070
  %2072 = vrot.lane.b32.xlu0 %v1077, 64
  %v2073 = vpop.permute.xlu0 %2072
  %2074 = vrot.lane.b32.xlu0 %v1079, 64
  %v2075 = vpop.permute.xlu0 %2074
  %2076 = vrot.lane.b32.xlu0 %v1081, 64
  %v2077 = vpop.permute.xlu0 %2076
  %2078 = vrot.lane.b32.xlu0 %v1083, 64
  %v2079 = vpop.permute.xlu0 %2078
  %2080 = vrot.lane.b32.xlu0 %v1085, 64
  %v2081 = vpop.permute.xlu0 %2080
  %2082 = vrot.lane.b32.xlu0 %v1087, 64
  %v2083 = vpop.permute.xlu0 %2082
  %2084 = vrot.lane.b32.xlu0 %v1089, 64
  %v2085 = vpop.permute.xlu0 %2084
  %2086 = vrot.lane.b32.xlu0 %v1091, 64
  %v2087 = vpop.permute.xlu0 %2086
  %2088 = vrot.lane.b32.xlu0 %v1093, 64
  %v2089 = vpop.permute.xlu0 %2088
  %2090 = vrot.lane.b32.xlu0 %v1095, 64
  %v2091 = vpop.permute.xlu0 %2090
  %2092 = vrot.lane.b32.xlu0 %v1097, 64
  %v2093 = vpop.permute.xlu0 %2092
  %2094 = vrot.lane.b32.xlu0 %v1099, 64
  %v2095 = vpop.permute.xlu0 %2094
  %2096 = vrot.lane.b32.xlu0 %v1101, 64
  %v2097 = vpop.permute.xlu0 %2096
  %2098 = vrot.lane.b32.xlu0 %v1103, 64
  %v2099 = vpop.permute.xlu0 %2098
  %2100 = vrot.lane.b32.xlu0 %v1105, 64
  %v2101 = vpop.permute.xlu0 %2100
  %2102 = vrot.lane.b32.xlu0 %v1107, 64
  %v2103 = vpop.permute.xlu0 %2102
  %2104 = vrot.lane.b32.xlu0 %v1109, 64
  %v2105 = vpop.permute.xlu0 %2104
  %2106 = vrot.lane.b32.xlu0 %v1111, 64
  %v2107 = vpop.permute.xlu0 %2106
  %2108 = vrot.lane.b32.xlu0 %v1113, 64
  %v2109 = vpop.permute.xlu0 %2108
  %2110 = vrot.lane.b32.xlu0 %v1115, 64
  %v2111 = vpop.permute.xlu0 %2110
  %2112 = vrot.lane.b32.xlu0 %v1117, 64
  %v2113 = vpop.permute.xlu0 %2112
  %2114 = vrot.lane.b32.xlu0 %v1119, 64
  %v2115 = vpop.permute.xlu0 %2114
  %2116 = vrot.lane.b32.xlu0 %v1121, 64
  %v2117 = vpop.permute.xlu0 %2116
  %2118 = vrot.lane.b32.xlu0 %v1123, 64
  %v2119 = vpop.permute.xlu0 %2118
  %2120 = vrot.lane.b32.xlu0 %v1125, 64
  %v2121 = vpop.permute.xlu0 %2120
  %2122 = vrot.lane.b32.xlu0 %v1127, 64
  %v2123 = vpop.permute.xlu0 %2122
  %2124 = vrot.lane.b32.xlu0 %v1129, 64
  %v2125 = vpop.permute.xlu0 %2124
  %2126 = vrot.lane.b32.xlu0 %v1068, 64
  %v2127 = vpop.permute.xlu0 %2126
  %2128 = vrot.lane.b32.xlu0 %v1070, 64
  %v2129 = vpop.permute.xlu0 %2128
  %2130 = vrot.lane.b32.xlu0 %v1072, 64
  %v2131 = vpop.permute.xlu0 %2130
  %2132 = vrot.lane.b32.xlu0 %v1074, 64
  %v2133 = vpop.permute.xlu0 %2132
  %2134 = vrot.lane.b32.xlu0 %v1076, 64
  %v2135 = vpop.permute.xlu0 %2134
  %2136 = vrot.lane.b32.xlu0 %v1078, 64
  %v2137 = vpop.permute.xlu0 %2136
  %2138 = vrot.lane.b32.xlu0 %v1080, 64
  %v2139 = vpop.permute.xlu0 %2138
  %2140 = vrot.lane.b32.xlu0 %v1082, 64
  %v2141 = vpop.permute.xlu0 %2140
  %2142 = vrot.lane.b32.xlu0 %v1084, 64
  %v2143 = vpop.permute.xlu0 %2142
  %2144 = vrot.lane.b32.xlu0 %v1086, 64
  %v2145 = vpop.permute.xlu0 %2144
  %2146 = vrot.lane.b32.xlu0 %v1088, 64
  %v2147 = vpop.permute.xlu0 %2146
  %2148 = vrot.lane.b32.xlu0 %v1090, 64
  %v2149 = vpop.permute.xlu0 %2148
  %2150 = vrot.lane.b32.xlu0 %v1092, 64
  %v2151 = vpop.permute.xlu0 %2150
  %2152 = vrot.lane.b32.xlu0 %v1094, 64
  %v2153 = vpop.permute.xlu0 %2152
  %2154 = vrot.lane.b32.xlu0 %v1096, 64
  %v2155 = vpop.permute.xlu0 %2154
  %2156 = vrot.lane.b32.xlu0 %v1098, 64
  %v2157 = vpop.permute.xlu0 %2156
  %2158 = vrot.lane.b32.xlu0 %v1100, 64
  %v2159 = vpop.permute.xlu0 %2158
  %2160 = vrot.lane.b32.xlu0 %v1102, 64
  %v2161 = vpop.permute.xlu0 %2160
  %2162 = vrot.lane.b32.xlu0 %v1104, 64
  %v2163 = vpop.permute.xlu0 %2162
  %2164 = vrot.lane.b32.xlu0 %v1106, 64
  %v2165 = vpop.permute.xlu0 %2164
  %2166 = vrot.lane.b32.xlu0 %v1108, 64
  %v2167 = vpop.permute.xlu0 %2166
  %2168 = vrot.lane.b32.xlu0 %v1110, 64
  %v2169 = vpop.permute.xlu0 %2168
  %2170 = vrot.lane.b32.xlu0 %v1112, 64
  %v2171 = vpop.permute.xlu0 %2170
  %2172 = vrot.lane.b32.xlu0 %v1114, 64
  %v2173 = vpop.permute.xlu0 %2172
  %2174 = vrot.lane.b32.xlu0 %v1116, 64
  %v2175 = vpop.permute.xlu0 %2174
  %2176 = vrot.lane.b32.xlu0 %v1118, 64
  %v2177 = vpop.permute.xlu0 %2176
  %2178 = vrot.lane.b32.xlu0 %v1120, 64
  %v2179 = vpop.permute.xlu0 %2178
  %2180 = vrot.lane.b32.xlu0 %v1122, 64
  %v2181 = vpop.permute.xlu0 %2180
  %2182 = vrot.lane.b32.xlu0 %v1124, 64
  %v2183 = vpop.permute.xlu0 %2182
  %2184 = vrot.lane.b32.xlu0 %v1126, 64
  %v2185 = vpop.permute.xlu0 %2184
  %2186 = vrot.lane.b32.xlu0 %v1128, 64
  %v2187 = vpop.permute.xlu0 %2186
  %2188 = vrot.lane.b32.xlu0 %v1130, 64
  %v2189 = vpop.permute.xlu0 %2188
  %vm2190 = vcmp.lt.s32.totalorder %v1306, 64
  %v2191 = vsel %vm2190, %v2063, %v2127
  %v2192 = vsel %vm2190, %v2065, %v2129
  %v2193 = vsel %vm2190, %v2067, %v2131
  %v2194 = vsel %vm2190, %v2069, %v2133
  %v2195 = vsel %vm2190, %v2071, %v2135
  %v2196 = vsel %vm2190, %v2073, %v2137
  %v2197 = vsel %vm2190, %v2075, %v2139
  %v2198 = vsel %vm2190, %v2077, %v2141
  %v2199 = vsel %vm2190, %v2079, %v2143
  %v2200 = vsel %vm2190, %v2081, %v2145
  %v2201 = vsel %vm2190, %v2083, %v2147
  %v2202 = vsel %vm2190, %v2085, %v2149
  %v2203 = vsel %vm2190, %v2087, %v2151
  %v2204 = vsel %vm2190, %v2089, %v2153
  %v2205 = vsel %vm2190, %v2091, %v2155
  %v2206 = vsel %vm2190, %v2093, %v2157
  %v2207 = vsel %vm2190, %v2095, %v2159
  %v2208 = vsel %vm2190, %v2097, %v2161
  %v2209 = vsel %vm2190, %v2099, %v2163
  %v2210 = vsel %vm2190, %v2101, %v2165
  %v2211 = vsel %vm2190, %v2103, %v2167
  %v2212 = vsel %vm2190, %v2105, %v2169
  %v2213 = vsel %vm2190, %v2107, %v2171
  %v2214 = vsel %vm2190, %v2109, %v2173
  %v2215 = vsel %vm2190, %v2111, %v2175
  %v2216 = vsel %vm2190, %v2113, %v2177
  %v2217 = vsel %vm2190, %v2115, %v2179
  %v2218 = vsel %vm2190, %v2117, %v2181
  %v2219 = vsel %vm2190, %v2119, %v2183
  %v2220 = vsel %vm2190, %v2121, %v2185
  %v2221 = vsel %vm2190, %v2123, %v2187
  %v2222 = vsel %vm2190, %v2125, %v2189
  %v2223 = vsel %vm2190, %v2127, %v2063
  %v2224 = vsel %vm2190, %v2129, %v2065
  %v2225 = vsel %vm2190, %v2131, %v2067
  %v2226 = vsel %vm2190, %v2133, %v2069
  %v2227 = vsel %vm2190, %v2135, %v2071
  %v2228 = vsel %vm2190, %v2137, %v2073
  %v2229 = vsel %vm2190, %v2139, %v2075
  %v2230 = vsel %vm2190, %v2141, %v2077
  %v2231 = vsel %vm2190, %v2143, %v2079
  %v2232 = vsel %vm2190, %v2145, %v2081
  %v2233 = vsel %vm2190, %v2147, %v2083
  %v2234 = vsel %vm2190, %v2149, %v2085
  %v2235 = vsel %vm2190, %v2151, %v2087
  %v2236 = vsel %vm2190, %v2153, %v2089
  %v2237 = vsel %vm2190, %v2155, %v2091
  %v2238 = vsel %vm2190, %v2157, %v2093
  %v2239 = vsel %vm2190, %v2159, %v2095
  %v2240 = vsel %vm2190, %v2161, %v2097
  %v2241 = vsel %vm2190, %v2163, %v2099
  %v2242 = vsel %vm2190, %v2165, %v2101
  %v2243 = vsel %vm2190, %v2167, %v2103
  %v2244 = vsel %vm2190, %v2169, %v2105
  %v2245 = vsel %vm2190, %v2171, %v2107
  %v2246 = vsel %vm2190, %v2173, %v2109
  %v2247 = vsel %vm2190, %v2175, %v2111
  %v2248 = vsel %vm2190, %v2177, %v2113
  %v2249 = vsel %vm2190, %v2179, %v2115
  %v2250 = vsel %vm2190, %v2181, %v2117
  %v2251 = vsel %vm2190, %v2183, %v2119
  %v2252 = vsel %vm2190, %v2185, %v2121
  %v2253 = vsel %vm2190, %v2187, %v2123
  %v2254 = vsel %vm2190, %v2189, %v2125
  %v2255 = vmul.f32 %v1067, %v2223
  %v2256 = vmul.f32 %v1068, %v2191
  %v2257 = vmul.f32 %v1069, %v2224
  %v2258 = vmul.f32 %v1070, %v2192
  %v2259 = vmul.f32 %v1071, %v2225
  %v2260 = vmul.f32 %v1072, %v2193
  %v2261 = vmul.f32 %v1073, %v2226
  %v2262 = vmul.f32 %v1074, %v2194
  %v2263 = vmul.f32 %v1075, %v2227
  %v2264 = vmul.f32 %v1076, %v2195
  %v2265 = vmul.f32 %v1077, %v2228
  %v2266 = vmul.f32 %v1078, %v2196
  %v2267 = vmul.f32 %v1079, %v2229
  %v2268 = vmul.f32 %v1080, %v2197
  %v2269 = vmul.f32 %v1081, %v2230
  %v2270 = vmul.f32 %v1082, %v2198
  %v2271 = vmul.f32 %v1083, %v2231
  %v2272 = vmul.f32 %v1084, %v2199
  %v2273 = vmul.f32 %v1085, %v2232
  %v2274 = vmul.f32 %v1086, %v2200
  %v2275 = vmul.f32 %v1087, %v2233
  %v2276 = vmul.f32 %v1088, %v2201
  %v2277 = vmul.f32 %v1089, %v2234
  %v2278 = vmul.f32 %v1090, %v2202
  %v2279 = vmul.f32 %v1091, %v2235
  %v2280 = vmul.f32 %v1092, %v2203
  %v2281 = vmul.f32 %v1093, %v2236
  %v2282 = vmul.f32 %v1094, %v2204
  %v2283 = vmul.f32 %v1095, %v2237
  %v2284 = vmul.f32 %v1096, %v2205
  %v2285 = vmul.f32 %v1097, %v2238
  %v2286 = vmul.f32 %v1098, %v2206
  %v2287 = vmul.f32 %v1099, %v2239
  %v2288 = vmul.f32 %v1100, %v2207
  %v2289 = vmul.f32 %v1101, %v2240
  %v2290 = vmul.f32 %v1102, %v2208
  %v2291 = vmul.f32 %v1103, %v2241
  %v2292 = vmul.f32 %v1104, %v2209
  %v2293 = vmul.f32 %v1105, %v2242
  %v2294 = vmul.f32 %v1106, %v2210
  %v2295 = vmul.f32 %v1107, %v2243
  %v2296 = vmul.f32 %v1108, %v2211
  %v2297 = vmul.f32 %v1109, %v2244
  %v2298 = vmul.f32 %v1110, %v2212
  %v2299 = vmul.f32 %v1111, %v2245
  %v2300 = vmul.f32 %v1112, %v2213
  %v2301 = vmul.f32 %v1113, %v2246
  %v2302 = vmul.f32 %v1114, %v2214
  %v2303 = vmul.f32 %v1115, %v2247
  %v2304 = vmul.f32 %v1116, %v2215
  %v2305 = vmul.f32 %v1117, %v2248
  %v2306 = vmul.f32 %v1118, %v2216
  %v2307 = vmul.f32 %v1119, %v2249
  %v2308 = vmul.f32 %v1120, %v2217
  %v2309 = vmul.f32 %v1121, %v2250
  %v2310 = vmul.f32 %v1122, %v2218
  %v2311 = vmul.f32 %v1123, %v2251
  %v2312 = vmul.f32 %v1124, %v2219
  %v2313 = vmul.f32 %v1125, %v2252
  %v2314 = vmul.f32 %v1126, %v2220
  %v2315 = vmul.f32 %v1127, %v2253
  %v2316 = vmul.f32 %v1128, %v2221
  %v2317 = vmul.f32 %v1129, %v2254
  %v2318 = vmul.f32 %v1130, %v2222
  %v2319 = vpack.c.bf16 %v2257, %v2255
  %v2320 = vpack.c.bf16 %v2258, %v2256
  %v2321 = vpack.c.bf16 %v2261, %v2259
  %v2322 = vpack.c.bf16 %v2262, %v2260
  %v2323 = vpack.c.bf16 %v2265, %v2263
  %v2324 = vpack.c.bf16 %v2266, %v2264
  %v2325 = vpack.c.bf16 %v2269, %v2267
  %v2326 = vpack.c.bf16 %v2270, %v2268
  %v2327 = vpack.c.bf16 %v2273, %v2271
  %v2328 = vpack.c.bf16 %v2274, %v2272
  %v2329 = vpack.c.bf16 %v2277, %v2275
  %v2330 = vpack.c.bf16 %v2278, %v2276
  %v2331 = vpack.c.bf16 %v2281, %v2279
  %v2332 = vpack.c.bf16 %v2282, %v2280
  %v2333 = vpack.c.bf16 %v2285, %v2283
  %v2334 = vpack.c.bf16 %v2286, %v2284
  %v2335 = vpack.c.bf16 %v2289, %v2287
  %v2336 = vpack.c.bf16 %v2290, %v2288
  %v2337 = vpack.c.bf16 %v2293, %v2291
  %v2338 = vpack.c.bf16 %v2294, %v2292
  %v2339 = vpack.c.bf16 %v2297, %v2295
  %v2340 = vpack.c.bf16 %v2298, %v2296
  %v2341 = vpack.c.bf16 %v2301, %v2299
  %v2342 = vpack.c.bf16 %v2302, %v2300
  %v2343 = vpack.c.bf16 %v2305, %v2303
  %v2344 = vpack.c.bf16 %v2306, %v2304
  %v2345 = vpack.c.bf16 %v2309, %v2307
  %v2346 = vpack.c.bf16 %v2310, %v2308
  %v2347 = vpack.c.bf16 %v2313, %v2311
  %v2348 = vpack.c.bf16 %v2314, %v2312
  %v2349 = vpack.c.bf16 %v2317, %v2315
  %v2350 = vpack.c.bf16 %v2318, %v2316
  %2351 = vmatprep.subr.bf16.mxu0 0
  %2352 = vmatpush1.bf16.msra.mxu0 %v1539
  %2353 = vmatprep.subr.bf16.mxu0 0
  %2354 = vmatpush1.bf16.msra.mxu0 %v1538
  %2355 = vmatprep.subr.bf16.mxu0 0
  %2356 = vmatpush1.bf16.msra.mxu0 %v1537
  %2357 = vmatprep.subr.bf16.mxu0 0
  %2358 = vmatpush1.bf16.msra.mxu0 %v1536
  %2359 = vmatprep.subr.bf16.mxu0 0
  %2360 = vmatpush1.bf16.msra.mxu0 %v1535
  %2361 = vmatprep.subr.bf16.mxu0 0
  %2362 = vmatpush1.bf16.msra.mxu0 %v1534
  %2363 = vmatprep.subr.bf16.mxu0 0
  %2364 = vmatpush1.bf16.msra.mxu0 %v1533
  %2365 = vmatprep.subr.bf16.mxu0 0
  %2366 = vmatpush1.bf16.msra.mxu0 %v1532
  %2367 = vmatprep.subr.bf16.mxu0 0
  %2368 = vmatpush2.bf16.msra.mxu0 %v1547
  %2369 = vmatprep.subr.bf16.mxu0 0
  %2370 = vmatpush2.bf16.msra.mxu0 %v1546
  %2371 = vmatprep.subr.bf16.mxu0 0
  %2372 = vmatpush2.bf16.msra.mxu0 %v1545
  %2373 = vmatprep.subr.bf16.mxu0 0
  %2374 = vmatpush2.bf16.msra.mxu0 %v1544
  %2375 = vmatprep.subr.bf16.mxu0 0
  %2376 = vmatpush2.bf16.msra.mxu0 %v1543
  %2377 = vmatprep.subr.bf16.mxu0 0
  %2378 = vmatpush2.bf16.msra.mxu0 %v1542
  %2379 = vmatprep.subr.bf16.mxu0 0
  %2380 = vmatpush2.bf16.msra.mxu0 %v1541
  %2381 = vmatprep.subr.bf16.mxu0 0
  %2382 = vmatpush2.bf16.msra.mxu0 %v1540
  %2383 = vmatprep.mubr.bf16.mxu0 %v2320
  %2384 = vmatmul.mubr.bf16.gmra.mxu0 %v2319
  %v2385 = vpop.f32.mrf.mxu0
  %v2386 = vadd.f32 %v1168, %v2385
  %v2387 = vpop.f32.mrf.mxu0
  %v2388 = vpop.f32.mrf.mxu0
  %v2389 = vadd.f32 %v1168, %v2388
  %v2390 = vpop.f32.mrf.mxu0
  %2391 = vmatprep.mubr.bf16.mxu0 %v2322
  %2392 = vmatmul.mubr.bf16.gmra.mxu0 %v2321
  %v2393 = vpop.f32.mrf.mxu0
  %v2394 = vadd.f32 %v1168, %v2393
  %v2395 = vpop.f32.mrf.mxu0
  %v2396 = vpop.f32.mrf.mxu0
  %v2397 = vadd.f32 %v1168, %v2396
  %v2398 = vpop.f32.mrf.mxu0
  %2399 = vmatprep.mubr.bf16.mxu0 %v2324
  %2400 = vmatmul.mubr.bf16.gmra.mxu0 %v2323
  %v2401 = vpop.f32.mrf.mxu0
  %v2402 = vadd.f32 %v1168, %v2401
  %v2403 = vpop.f32.mrf.mxu0
  %v2404 = vpop.f32.mrf.mxu0
  %v2405 = vadd.f32 %v1168, %v2404
  %v2406 = vpop.f32.mrf.mxu0
  %2407 = vmatprep.mubr.bf16.mxu0 %v2326
  %2408 = vmatmul.mubr.bf16.gmra.mxu0 %v2325
  %v2409 = vpop.f32.mrf.mxu0
  %v2410 = vadd.f32 %v1168, %v2409
  %v2411 = vpop.f32.mrf.mxu0
  %v2412 = vpop.f32.mrf.mxu0
  %v2413 = vadd.f32 %v1168, %v2412
  %v2414 = vpop.f32.mrf.mxu0
  %2415 = vmatprep.mubr.bf16.mxu0 %v2328
  %2416 = vmatmul.mubr.bf16.gmra.mxu0 %v2327
  %v2417 = vpop.f32.mrf.mxu0
  %v2418 = vadd.f32 %v1168, %v2417
  %v2419 = vpop.f32.mrf.mxu0
  %v2420 = vpop.f32.mrf.mxu0
  %v2421 = vadd.f32 %v1168, %v2420
  %v2422 = vpop.f32.mrf.mxu0
  %2423 = vmatprep.mubr.bf16.mxu0 %v2330
  %2424 = vmatmul.mubr.bf16.gmra.mxu0 %v2329
  %v2425 = vpop.f32.mrf.mxu0
  %v2426 = vadd.f32 %v1168, %v2425
  %v2427 = vpop.f32.mrf.mxu0
  %v2428 = vpop.f32.mrf.mxu0
  %v2429 = vadd.f32 %v1168, %v2428
  %v2430 = vpop.f32.mrf.mxu0
  %2431 = vmatprep.mubr.bf16.mxu0 %v2332
  %2432 = vmatmul.mubr.bf16.gmra.mxu0 %v2331
  %v2433 = vpop.f32.mrf.mxu0
  %v2434 = vadd.f32 %v1168, %v2433
  %v2435 = vpop.f32.mrf.mxu0
  %v2436 = vpop.f32.mrf.mxu0
  %v2437 = vadd.f32 %v1168, %v2436
  %v2438 = vpop.f32.mrf.mxu0
  %2439 = vmatprep.mubr.bf16.mxu0 %v2334
  %2440 = vmatmul.mubr.bf16.gmra.mxu0 %v2333
  %v2441 = vpop.f32.mrf.mxu0
  %v2442 = vadd.f32 %v1168, %v2441
  %v2443 = vpop.f32.mrf.mxu0
  %v2444 = vpop.f32.mrf.mxu0
  %v2445 = vadd.f32 %v1168, %v2444
  %v2446 = vpop.f32.mrf.mxu0
  %2447 = vmatprep.mubr.bf16.mxu0 %v2336
  %2448 = vmatmul.mubr.bf16.gmra.mxu0 %v2335
  %v2449 = vpop.f32.mrf.mxu0
  %v2450 = vadd.f32 %v1168, %v2449
  %v2451 = vpop.f32.mrf.mxu0
  %v2452 = vpop.f32.mrf.mxu0
  %v2453 = vadd.f32 %v1168, %v2452
  %v2454 = vpop.f32.mrf.mxu0
  %2455 = vmatprep.mubr.bf16.mxu0 %v2338
  %2456 = vmatmul.mubr.bf16.gmra.mxu0 %v2337
  %v2457 = vpop.f32.mrf.mxu0
  %v2458 = vadd.f32 %v1168, %v2457
  %v2459 = vpop.f32.mrf.mxu0
  %v2460 = vpop.f32.mrf.mxu0
  %v2461 = vadd.f32 %v1168, %v2460
  %v2462 = vpop.f32.mrf.mxu0
  %2463 = vmatprep.mubr.bf16.mxu0 %v2340
  %2464 = vmatmul.mubr.bf16.gmra.mxu0 %v2339
  %v2465 = vpop.f32.mrf.mxu0
  %v2466 = vadd.f32 %v1168, %v2465
  %v2467 = vpop.f32.mrf.mxu0
  %v2468 = vpop.f32.mrf.mxu0
  %v2469 = vadd.f32 %v1168, %v2468
  %v2470 = vpop.f32.mrf.mxu0
  %2471 = vmatprep.mubr.bf16.mxu0 %v2342
  %2472 = vmatmul.mubr.bf16.gmra.mxu0 %v2341
  %v2473 = vpop.f32.mrf.mxu0
  %v2474 = vadd.f32 %v1168, %v2473
  %v2475 = vpop.f32.mrf.mxu0
  %v2476 = vpop.f32.mrf.mxu0
  %v2477 = vadd.f32 %v1168, %v2476
  %v2478 = vpop.f32.mrf.mxu0
  %2479 = vmatprep.mubr.bf16.mxu0 %v2344
  %2480 = vmatmul.mubr.bf16.gmra.mxu0 %v2343
  %v2481 = vpop.f32.mrf.mxu0
  %v2482 = vadd.f32 %v1168, %v2481
  %v2483 = vpop.f32.mrf.mxu0
  %v2484 = vpop.f32.mrf.mxu0
  %v2485 = vadd.f32 %v1168, %v2484
  %v2486 = vpop.f32.mrf.mxu0
  %2487 = vmatprep.mubr.bf16.mxu0 %v2346
  %2488 = vmatmul.mubr.bf16.gmra.mxu0 %v2345
  %v2489 = vpop.f32.mrf.mxu0
  %v2490 = vadd.f32 %v1168, %v2489
  %v2491 = vpop.f32.mrf.mxu0
  %v2492 = vpop.f32.mrf.mxu0
  %v2493 = vadd.f32 %v1168, %v2492
  %v2494 = vpop.f32.mrf.mxu0
  %2495 = vmatprep.mubr.bf16.mxu0 %v2348
  %2496 = vmatmul.mubr.bf16.gmra.mxu0 %v2347
  %v2497 = vpop.f32.mrf.mxu0
  %v2498 = vadd.f32 %v1168, %v2497
  %v2499 = vpop.f32.mrf.mxu0
  %v2500 = vpop.f32.mrf.mxu0
  %v2501 = vadd.f32 %v1168, %v2500
  %v2502 = vpop.f32.mrf.mxu0
  %2503 = vmatprep.mubr.bf16.mxu0 %v2350
  %2504 = vmatmul.mubr.bf16.gmra.mxu0 %v2349
  %v2505 = vpop.f32.mrf.mxu0
  %v2506 = vadd.f32 %v1168, %v2505
  %v2507 = vpop.f32.mrf.mxu0
  %v2508 = vpop.f32.mrf.mxu0
  %v2509 = vadd.f32 %v1168, %v2508
  %v2510 = vpop.f32.mrf.mxu0
  %2511 = vdwg.mxu0
  %v2512 = vmax.f32 %v2386, 0.0
  %v2513 = vmax.f32 %v2389, 0.0
  %v2514 = vmax.f32 %v2394, 0.0
  %v2515 = vmax.f32 %v2397, 0.0
  %v2516 = vmax.f32 %v2402, 0.0
  %v2517 = vmax.f32 %v2405, 0.0
  %v2518 = vmax.f32 %v2410, 0.0
  %v2519 = vmax.f32 %v2413, 0.0
  %v2520 = vmax.f32 %v2418, 0.0
  %v2521 = vmax.f32 %v2421, 0.0
  %v2522 = vmax.f32 %v2426, 0.0
  %v2523 = vmax.f32 %v2429, 0.0
  %v2524 = vmax.f32 %v2434, 0.0
  %v2525 = vmax.f32 %v2437, 0.0
  %v2526 = vmax.f32 %v2442, 0.0
  %v2527 = vmax.f32 %v2445, 0.0
  %v2528 = vmax.f32 %v2450, 0.0
  %v2529 = vmax.f32 %v2453, 0.0
  %v2530 = vmax.f32 %v2458, 0.0
  %v2531 = vmax.f32 %v2461, 0.0
  %v2532 = vmax.f32 %v2466, 0.0
  %v2533 = vmax.f32 %v2469, 0.0
  %v2534 = vmax.f32 %v2474, 0.0
  %v2535 = vmax.f32 %v2477, 0.0
  %v2536 = vmax.f32 %v2482, 0.0
  %v2537 = vmax.f32 %v2485, 0.0
  %v2538 = vmax.f32 %v2490, 0.0
  %v2539 = vmax.f32 %v2493, 0.0
  %v2540 = vmax.f32 %v2498, 0.0
  %v2541 = vmax.f32 %v2501, 0.0
  %v2542 = vmax.f32 %v2506, 0.0
  %v2543 = vmax.f32 %v2509, 0.0
  %v2544 = vpack.c.bf16 %v2513, %v2512
  %v2545 = vpack.c.bf16 %v2515, %v2514
  %v2546 = vpack.c.bf16 %v2517, %v2516
  %v2547 = vpack.c.bf16 %v2519, %v2518
  %v2548 = vpack.c.bf16 %v2521, %v2520
  %v2549 = vpack.c.bf16 %v2523, %v2522
  %v2550 = vpack.c.bf16 %v2525, %v2524
  %v2551 = vpack.c.bf16 %v2527, %v2526
  %v2552 = vpack.c.bf16 %v2529, %v2528
  %v2553 = vpack.c.bf16 %v2531, %v2530
  %v2554 = vpack.c.bf16 %v2533, %v2532
  %v2555 = vpack.c.bf16 %v2535, %v2534
  %v2556 = vpack.c.bf16 %v2537, %v2536
  %v2557 = vpack.c.bf16 %v2539, %v2538
  %v2558 = vpack.c.bf16 %v2541, %v2540
  %v2559 = vpack.c.bf16 %v2543, %v2542
  %s2560 = scalar_lea.vmem %s5, 64
  %v2561 = vld [vmem:[%s2560] sm:$0xf]
  %v2562 = vld [vmem:[%s2560 + $0x4] sm:$0xf]
  %v2563 = vld [vmem:[%s2560 + $0x8] sm:$0xf]
  %v2564 = vld [vmem:[%s2560 + $0xc] sm:$0xf]
  %v2565 = vld [vmem:[%s2560 + $0x10] sm:$0xf]
  %v2566 = vld [vmem:[%s2560 + $0x14] sm:$0xf]
  %v2567 = vld [vmem:[%s2560 + $0x18] sm:$0xf]
  %v2568 = vld [vmem:[%s2560 + $0x1c] sm:$0xf]
  %v2569 = vld [vmem:[%s2560 + $0x20] sm:$0xf]
  %v2570 = vld [vmem:[%s2560 + $0x24] sm:$0xf]
  %v2571 = vld [vmem:[%s2560 + $0x28] sm:$0xf]
  %v2572 = vld [vmem:[%s2560 + $0x2c] sm:$0xf]
  %v2573 = vld [vmem:[%s2560 + $0x30] sm:$0xf]
  %v2574 = vld [vmem:[%s2560 + $0x34] sm:$0xf]
  %v2575 = vld [vmem:[%s2560 + $0x38] sm:$0xf]
  %v2576 = vld [vmem:[%s2560 + $0x3c] sm:$0xf]
  %v2593 = vunpack.c.l.b16 %v2561
  %v2594 = vunpack.c.l.b16 %v2562
  %v2595 = vunpack.c.l.b16 %v2563
  %v2596 = vunpack.c.l.b16 %v2564
  %v2597 = vunpack.c.l.b16 %v2565
  %v2598 = vunpack.c.l.b16 %v2566
  %v2599 = vunpack.c.l.b16 %v2567
  %v2600 = vunpack.c.l.b16 %v2568
  %v2601 = vunpack.c.l.b16 %v2569
  %v2602 = vunpack.c.l.b16 %v2570
  %v2603 = vunpack.c.l.b16 %v2571
  %v2604 = vunpack.c.l.b16 %v2572
  %v2605 = vunpack.c.l.b16 %v2573
  %v2606 = vunpack.c.l.b16 %v2574
  %v2607 = vunpack.c.l.b16 %v2575
  %v2608 = vunpack.c.l.b16 %v2576
  %v2609 = vpack.c.b16 %v2594, %v2593
  %v2610 = vpack.c.b16 %v2596, %v2595
  %v2611 = vpack.c.b16 %v2598, %v2597
  %v2612 = vpack.c.b16 %v2600, %v2599
  %v2613 = vpack.c.b16 %v2602, %v2601
  %v2614 = vpack.c.b16 %v2604, %v2603
  %v2615 = vpack.c.b16 %v2606, %v2605
  %v2616 = vpack.c.b16 %v2608, %v2607
  %2625 = vmatprep.subr.bf16.mxu0 0
  %2626 = vmatpush1.bf16.msra.mxu0 %v2616
  %2627 = vmatprep.subr.bf16.mxu0 0
  %2628 = vmatpush1.bf16.msra.mxu0 %v2615
  %2629 = vmatprep.subr.bf16.mxu0 0
  %2630 = vmatpush1.bf16.msra.mxu0 %v2614
  %2631 = vmatprep.subr.bf16.mxu0 0
  %2632 = vmatpush1.bf16.msra.mxu0 %v2613
  %2633 = vmatprep.subr.bf16.mxu0 0
  %2634 = vmatpush1.bf16.msra.mxu0 %v2612
  %2635 = vmatprep.subr.bf16.mxu0 0
  %2636 = vmatpush1.bf16.msra.mxu0 %v2611
  %2637 = vmatprep.subr.bf16.mxu0 0
  %2638 = vmatpush1.bf16.msra.mxu0 %v2610
  %2639 = vmatprep.subr.bf16.mxu0 0
  %2640 = vmatpush1.bf16.msra.mxu0 %v2609
  %2641 = vmatprep.subr.bf16.mxu0 0
  %2642 = vmatpush2.bf16.msra.mxu0 0
  %2643 = vmatprep.subr.bf16.mxu0 0
  %2644 = vmatpush2.bf16.msra.mxu0 0
  %2645 = vmatprep.subr.bf16.mxu0 0
  %2646 = vmatpush2.bf16.msra.mxu0 0
  %2647 = vmatprep.subr.bf16.mxu0 0
  %2648 = vmatpush2.bf16.msra.mxu0 0
  %2649 = vmatprep.subr.bf16.mxu0 0
  %2650 = vmatpush2.bf16.msra.mxu0 0
  %2651 = vmatprep.subr.bf16.mxu0 0
  %2652 = vmatpush2.bf16.msra.mxu0 0
  %2653 = vmatprep.subr.bf16.mxu0 0
  %2654 = vmatpush2.bf16.msra.mxu0 0
  %2655 = vmatprep.subr.bf16.mxu0 0
  %2656 = vmatpush2.bf16.msra.mxu0 0
  %2657 = vmatprep.mubr.bf16.mxu0 0
  %2658 = vmatmul.mubr.bf16.gmra.mxu0 %v2544
  %v2659 = vpop.f32.mrf.mxu0
  %v2660 = vadd.f32 0.0, %v2659
  %v2661 = vpop.f32.mrf.mxu0
  %v2662 = vpop.f32.mrf.mxu0
  %v2663 = vadd.f32 0.0, %v2662
  %v2664 = vpop.f32.mrf.mxu0
  %2665 = vmatprep.mubr.bf16.mxu0 0
  %2666 = vmatmul.mubr.bf16.gmra.mxu0 %v2545
  %v2667 = vpop.f32.mrf.mxu0
  %v2668 = vadd.f32 0.0, %v2667
  %v2669 = vpop.f32.mrf.mxu0
  %v2670 = vpop.f32.mrf.mxu0
  %v2671 = vadd.f32 0.0, %v2670
  %v2672 = vpop.f32.mrf.mxu0
  %2673 = vmatprep.mubr.bf16.mxu0 0
  %2674 = vmatmul.mubr.bf16.gmra.mxu0 %v2546
  %v2675 = vpop.f32.mrf.mxu0
  %v2676 = vadd.f32 0.0, %v2675
  %v2677 = vpop.f32.mrf.mxu0
  %v2678 = vpop.f32.mrf.mxu0
  %v2679 = vadd.f32 0.0, %v2678
  %v2680 = vpop.f32.mrf.mxu0
  %2681 = vmatprep.mubr.bf16.mxu0 0
  %2682 = vmatmul.mubr.bf16.gmra.mxu0 %v2547
  %v2683 = vpop.f32.mrf.mxu0
  %v2684 = vadd.f32 0.0, %v2683
  %v2685 = vpop.f32.mrf.mxu0
  %v2686 = vpop.f32.mrf.mxu0
  %v2687 = vadd.f32 0.0, %v2686
  %v2688 = vpop.f32.mrf.mxu0
  %2689 = vmatprep.mubr.bf16.mxu0 0
  %2690 = vmatmul.mubr.bf16.gmra.mxu0 %v2548
  %v2691 = vpop.f32.mrf.mxu0
  %v2692 = vadd.f32 0.0, %v2691
  %v2693 = vpop.f32.mrf.mxu0
  %v2694 = vpop.f32.mrf.mxu0
  %v2695 = vadd.f32 0.0, %v2694
  %v2696 = vpop.f32.mrf.mxu0
  %2697 = vmatprep.mubr.bf16.mxu0 0
  %2698 = vmatmul.mubr.bf16.gmra.mxu0 %v2549
  %v2699 = vpop.f32.mrf.mxu0
  %v2700 = vadd.f32 0.0, %v2699
  %v2701 = vpop.f32.mrf.mxu0
  %v2702 = vpop.f32.mrf.mxu0
  %v2703 = vadd.f32 0.0, %v2702
  %v2704 = vpop.f32.mrf.mxu0
  %2705 = vmatprep.mubr.bf16.mxu0 0
  %2706 = vmatmul.mubr.bf16.gmra.mxu0 %v2550
  %v2707 = vpop.f32.mrf.mxu0
  %v2708 = vadd.f32 0.0, %v2707
  %v2709 = vpop.f32.mrf.mxu0
  %v2710 = vpop.f32.mrf.mxu0
  %v2711 = vadd.f32 0.0, %v2710
  %v2712 = vpop.f32.mrf.mxu0
  %2713 = vmatprep.mubr.bf16.mxu0 0
  %2714 = vmatmul.mubr.bf16.gmra.mxu0 %v2551
  %v2715 = vpop.f32.mrf.mxu0
  %v2716 = vadd.f32 0.0, %v2715
  %v2717 = vpop.f32.mrf.mxu0
  %v2718 = vpop.f32.mrf.mxu0
  %v2719 = vadd.f32 0.0, %v2718
  %v2720 = vpop.f32.mrf.mxu0
  %2721 = vmatprep.mubr.bf16.mxu0 0
  %2722 = vmatmul.mubr.bf16.gmra.mxu0 %v2552
  %v2723 = vpop.f32.mrf.mxu0
  %v2724 = vadd.f32 0.0, %v2723
  %v2725 = vpop.f32.mrf.mxu0
  %v2726 = vpop.f32.mrf.mxu0
  %v2727 = vadd.f32 0.0, %v2726
  %v2728 = vpop.f32.mrf.mxu0
  %2729 = vmatprep.mubr.bf16.mxu0 0
  %2730 = vmatmul.mubr.bf16.gmra.mxu0 %v2553
  %v2731 = vpop.f32.mrf.mxu0
  %v2732 = vadd.f32 0.0, %v2731
  %v2733 = vpop.f32.mrf.mxu0
  %v2734 = vpop.f32.mrf.mxu0
  %v2735 = vadd.f32 0.0, %v2734
  %v2736 = vpop.f32.mrf.mxu0
  %2737 = vmatprep.mubr.bf16.mxu0 0
  %2738 = vmatmul.mubr.bf16.gmra.mxu0 %v2554
  %v2739 = vpop.f32.mrf.mxu0
  %v2740 = vadd.f32 0.0, %v2739
  %v2741 = vpop.f32.mrf.mxu0
  %v2742 = vpop.f32.mrf.mxu0
  %v2743 = vadd.f32 0.0, %v2742
  %v2744 = vpop.f32.mrf.mxu0
  %2745 = vmatprep.mubr.bf16.mxu0 0
  %2746 = vmatmul.mubr.bf16.gmra.mxu0 %v2555
  %v2747 = vpop.f32.mrf.mxu0
  %v2748 = vadd.f32 0.0, %v2747
  %v2749 = vpop.f32.mrf.mxu0
  %v2750 = vpop.f32.mrf.mxu0
  %v2751 = vadd.f32 0.0, %v2750
  %v2752 = vpop.f32.mrf.mxu0
  %2753 = vmatprep.mubr.bf16.mxu0 0
  %2754 = vmatmul.mubr.bf16.gmra.mxu0 %v2556
  %v2755 = vpop.f32.mrf.mxu0
  %v2756 = vadd.f32 0.0, %v2755
  %v2757 = vpop.f32.mrf.mxu0
  %v2758 = vpop.f32.mrf.mxu0
  %v2759 = vadd.f32 0.0, %v2758
  %v2760 = vpop.f32.mrf.mxu0
  %2761 = vmatprep.mubr.bf16.mxu0 0
  %2762 = vmatmul.mubr.bf16.gmra.mxu0 %v2557
  %v2763 = vpop.f32.mrf.mxu0
  %v2764 = vadd.f32 0.0, %v2763
  %v2765 = vpop.f32.mrf.mxu0
  %v2766 = vpop.f32.mrf.mxu0
  %v2767 = vadd.f32 0.0, %v2766
  %v2768 = vpop.f32.mrf.mxu0
  %2769 = vmatprep.mubr.bf16.mxu0 0
  %2770 = vmatmul.mubr.bf16.gmra.mxu0 %v2558
  %v2771 = vpop.f32.mrf.mxu0
  %v2772 = vadd.f32 0.0, %v2771
  %v2773 = vpop.f32.mrf.mxu0
  %v2774 = vpop.f32.mrf.mxu0
  %v2775 = vadd.f32 0.0, %v2774
  %v2776 = vpop.f32.mrf.mxu0
  %2777 = vmatprep.mubr.bf16.mxu0 0
  %2778 = vmatmul.mubr.bf16.gmra.mxu0 %v2559
  %v2779 = vpop.f32.mrf.mxu0
  %v2780 = vadd.f32 0.0, %v2779
  %v2781 = vpop.f32.mrf.mxu0
  %v2782 = vpop.f32.mrf.mxu0
  %v2783 = vadd.f32 0.0, %v2782
  %v2784 = vpop.f32.mrf.mxu0
  %2785 = vdwg.mxu0
  %v2786 = vadd.f32 %v1998, %v2660
  %v2787 = vadd.f32 %v1999, %v2663
  %v2788 = vadd.f32 %v2000, %v2668
  %v2789 = vadd.f32 %v2001, %v2671
  %v2790 = vadd.f32 %v2002, %v2676
  %v2791 = vadd.f32 %v2003, %v2679
  %v2792 = vadd.f32 %v2004, %v2684
  %v2793 = vadd.f32 %v2005, %v2687
  %v2794 = vadd.f32 %v2006, %v2692
  %v2795 = vadd.f32 %v2007, %v2695
  %v2796 = vadd.f32 %v2008, %v2700
  %v2797 = vadd.f32 %v2009, %v2703
  %v2798 = vadd.f32 %v2010, %v2708
  %v2799 = vadd.f32 %v2011, %v2711
  %v2800 = vadd.f32 %v2012, %v2716
  %v2801 = vadd.f32 %v2013, %v2719
  %v2802 = vadd.f32 %v2014, %v2724
  %v2803 = vadd.f32 %v2015, %v2727
  %v2804 = vadd.f32 %v2016, %v2732
  %v2805 = vadd.f32 %v2017, %v2735
  %v2806 = vadd.f32 %v2018, %v2740
  %v2807 = vadd.f32 %v2019, %v2743
  %v2808 = vadd.f32 %v2020, %v2748
  %v2809 = vadd.f32 %v2021, %v2751
  %v2810 = vadd.f32 %v2022, %v2756
  %v2811 = vadd.f32 %v2023, %v2759
  %v2812 = vadd.f32 %v2024, %v2764
  %v2813 = vadd.f32 %v2025, %v2767
  %v2814 = vadd.f32 %v2026, %v2772
  %v2815 = vadd.f32 %v2027, %v2775
  %v2816 = vadd.f32 %v2028, %v2780
  %v2817 = vadd.f32 %v2029, %v2783
  %s2818 = scalar_lea.vmem %s6, 128
  %v2819 = vld [vmem:[%s2818] sm:$0xf]
  %v2820 = vld [vmem:[%s2818 + $0x4] sm:$0xf]
  %v2821 = vld [vmem:[%s2818 + $0x8] sm:$0xf]
  %v2822 = vld [vmem:[%s2818 + $0xc] sm:$0xf]
  %v2823 = vld [vmem:[%s2818 + $0x10] sm:$0xf]
  %v2824 = vld [vmem:[%s2818 + $0x14] sm:$0xf]
  %v2825 = vld [vmem:[%s2818 + $0x18] sm:$0xf]
  %v2826 = vld [vmem:[%s2818 + $0x1c] sm:$0xf]
  %v2827 = vld [vmem:[%s2818 + $0x20] sm:$0xf]
  %v2828 = vld [vmem:[%s2818 + $0x24] sm:$0xf]
  %v2829 = vld [vmem:[%s2818 + $0x28] sm:$0xf]
  %v2830 = vld [vmem:[%s2818 + $0x2c] sm:$0xf]
  %v2831 = vld [vmem:[%s2818 + $0x30] sm:$0xf]
  %v2832 = vld [vmem:[%s2818 + $0x34] sm:$0xf]
  %v2833 = vld [vmem:[%s2818 + $0x38] sm:$0xf]
  %v2834 = vld [vmem:[%s2818 + $0x3c] sm:$0xf]
  %v2835 = vld [vmem:[%s2818 + $0x40] sm:$0xf]
  %v2836 = vld [vmem:[%s2818 + $0x44] sm:$0xf]
  %v2837 = vld [vmem:[%s2818 + $0x48] sm:$0xf]
  %v2838 = vld [vmem:[%s2818 + $0x4c] sm:$0xf]
  %v2839 = vld [vmem:[%s2818 + $0x50] sm:$0xf]
  %v2840 = vld [vmem:[%s2818 + $0x54] sm:$0xf]
  %v2841 = vld [vmem:[%s2818 + $0x58] sm:$0xf]
  %v2842 = vld [vmem:[%s2818 + $0x5c] sm:$0xf]
  %v2843 = vld [vmem:[%s2818 + $0x60] sm:$0xf]
  %v2844 = vld [vmem:[%s2818 + $0x64] sm:$0xf]
  %v2845 = vld [vmem:[%s2818 + $0x68] sm:$0xf]
  %v2846 = vld [vmem:[%s2818 + $0x6c] sm:$0xf]
  %v2847 = vld [vmem:[%s2818 + $0x70] sm:$0xf]
  %v2848 = vld [vmem:[%s2818 + $0x74] sm:$0xf]
  %v2849 = vld [vmem:[%s2818 + $0x78] sm:$0xf]
  %v2850 = vld [vmem:[%s2818 + $0x7c] sm:$0xf]
  %v2883 = vunpack.c.l.b16 %v2819
  %v2884 = vunpack.c.l.b16 %v2820
  %v2885 = vunpack.c.l.b16 %v2821
  %v2886 = vunpack.c.l.b16 %v2822
  %v2887 = vunpack.c.l.b16 %v2823
  %v2888 = vunpack.c.l.b16 %v2824
  %v2889 = vunpack.c.l.b16 %v2825
  %v2890 = vunpack.c.l.b16 %v2826
  %v2891 = vunpack.c.l.b16 %v2827
  %v2892 = vunpack.c.l.b16 %v2828
  %v2893 = vunpack.c.l.b16 %v2829
  %v2894 = vunpack.c.l.b16 %v2830
  %v2895 = vunpack.c.l.b16 %v2831
  %v2896 = vunpack.c.l.b16 %v2832
  %v2897 = vunpack.c.l.b16 %v2833
  %v2898 = vunpack.c.l.b16 %v2834
  %v2899 = vunpack.c.l.b16 %v2835
  %v2900 = vunpack.c.l.b16 %v2836
  %v2901 = vunpack.c.l.b16 %v2837
  %v2902 = vunpack.c.l.b16 %v2838
  %v2903 = vunpack.c.l.b16 %v2839
  %v2904 = vunpack.c.l.b16 %v2840
  %v2905 = vunpack.c.l.b16 %v2841
  %v2906 = vunpack.c.l.b16 %v2842
  %v2907 = vunpack.c.l.b16 %v2843
  %v2908 = vunpack.c.l.b16 %v2844
  %v2909 = vunpack.c.l.b16 %v2845
  %v2910 = vunpack.c.l.b16 %v2846
  %v2911 = vunpack.c.l.b16 %v2847
  %v2912 = vunpack.c.l.b16 %v2848
  %v2913 = vunpack.c.l.b16 %v2849
  %v2914 = vunpack.c.l.b16 %v2850
  %v2915 = vpack.c.b16 %v2884, %v2883
  %v2916 = vpack.c.b16 %v2886, %v2885
  %v2917 = vpack.c.b16 %v2888, %v2887
  %v2918 = vpack.c.b16 %v2890, %v2889
  %v2919 = vpack.c.b16 %v2892, %v2891
  %v2920 = vpack.c.b16 %v2894, %v2893
  %v2921 = vpack.c.b16 %v2896, %v2895
  %v2922 = vpack.c.b16 %v2898, %v2897
  %v2923 = vpack.c.b16 %v2900, %v2899
  %v2924 = vpack.c.b16 %v2902, %v2901
  %v2925 = vpack.c.b16 %v2904, %v2903
  %v2926 = vpack.c.b16 %v2906, %v2905
  %v2927 = vpack.c.b16 %v2908, %v2907
  %v2928 = vpack.c.b16 %v2910, %v2909
  %v2929 = vpack.c.b16 %v2912, %v2911
  %v2930 = vpack.c.b16 %v2914, %v2913
  %2947 = vmatprep.subr.bf16.mxu0 0
  %2948 = vmatpush1.bf16.msra.mxu0 %v2922
  %2949 = vmatprep.subr.bf16.mxu0 0
  %2950 = vmatpush1.bf16.msra.mxu0 %v2921
  %2951 = vmatprep.subr.bf16.mxu0 0
  %2952 = vmatpush1.bf16.msra.mxu0 %v2920
  %2953 = vmatprep.subr.bf16.mxu0 0
  %2954 = vmatpush1.bf16.msra.mxu0 %v2919
  %2955 = vmatprep.subr.bf16.mxu0 0
  %2956 = vmatpush1.bf16.msra.mxu0 %v2918
  %2957 = vmatprep.subr.bf16.mxu0 0
  %2958 = vmatpush1.bf16.msra.mxu0 %v2917
  %2959 = vmatprep.subr.bf16.mxu0 0
  %2960 = vmatpush1.bf16.msra.mxu0 %v2916
  %2961 = vmatprep.subr.bf16.mxu0 0
  %2962 = vmatpush1.bf16.msra.mxu0 %v2915
  %2963 = vmatprep.subr.bf16.mxu0 0
  %2964 = vmatpush2.bf16.msra.mxu0 %v2930
  %2965 = vmatprep.subr.bf16.mxu0 0
  %2966 = vmatpush2.bf16.msra.mxu0 %v2929
  %2967 = vmatprep.subr.bf16.mxu0 0
  %2968 = vmatpush2.bf16.msra.mxu0 %v2928
  %2969 = vmatprep.subr.bf16.mxu0 0
  %2970 = vmatpush2.bf16.msra.mxu0 %v2927
  %2971 = vmatprep.subr.bf16.mxu0 0
  %2972 = vmatpush2.bf16.msra.mxu0 %v2926
  %2973 = vmatprep.subr.bf16.mxu0 0
  %2974 = vmatpush2.bf16.msra.mxu0 %v2925
  %2975 = vmatprep.subr.bf16.mxu0 0
  %2976 = vmatpush2.bf16.msra.mxu0 %v2924
  %2977 = vmatprep.subr.bf16.mxu0 0
  %2978 = vmatpush2.bf16.msra.mxu0 %v2923
  %2979 = vmatprep.mubr.bf16.mxu0 %v2320
  %2980 = vmatmul.mubr.bf16.gmra.mxu0 %v2319
  %v2981 = vpop.f32.mrf.mxu0
  %v2982 = vadd.f32 0.0, %v2981
  %v2983 = vpop.f32.mrf.mxu0
  %v2984 = vpop.f32.mrf.mxu0
  %v2985 = vadd.f32 0.0, %v2984
  %v2986 = vpop.f32.mrf.mxu0
  %2987 = vmatprep.mubr.bf16.mxu0 %v2322
  %2988 = vmatmul.mubr.bf16.gmra.mxu0 %v2321
  %v2989 = vpop.f32.mrf.mxu0
  %v2990 = vadd.f32 0.0, %v2989
  %v2991 = vpop.f32.mrf.mxu0
  %v2992 = vpop.f32.mrf.mxu0
  %v2993 = vadd.f32 0.0, %v2992
  %v2994 = vpop.f32.mrf.mxu0
  %2995 = vmatprep.mubr.bf16.mxu0 %v2324
  %2996 = vmatmul.mubr.bf16.gmra.mxu0 %v2323
  %v2997 = vpop.f32.mrf.mxu0
  %v2998 = vadd.f32 0.0, %v2997
  %v2999 = vpop.f32.mrf.mxu0
  %v3000 = vpop.f32.mrf.mxu0
  %v3001 = vadd.f32 0.0, %v3000
  %v3002 = vpop.f32.mrf.mxu0
  %3003 = vmatprep.mubr.bf16.mxu0 %v2326
  %3004 = vmatmul.mubr.bf16.gmra.mxu0 %v2325
  %v3005 = vpop.f32.mrf.mxu0
  %v3006 = vadd.f32 0.0, %v3005
  %v3007 = vpop.f32.mrf.mxu0
  %v3008 = vpop.f32.mrf.mxu0
  %v3009 = vadd.f32 0.0, %v3008
  %v3010 = vpop.f32.mrf.mxu0
  %3011 = vmatprep.mubr.bf16.mxu0 %v2328
  %3012 = vmatmul.mubr.bf16.gmra.mxu0 %v2327
  %v3013 = vpop.f32.mrf.mxu0
  %v3014 = vadd.f32 0.0, %v3013
  %v3015 = vpop.f32.mrf.mxu0
  %v3016 = vpop.f32.mrf.mxu0
  %v3017 = vadd.f32 0.0, %v3016
  %v3018 = vpop.f32.mrf.mxu0
  %3019 = vmatprep.mubr.bf16.mxu0 %v2330
  %3020 = vmatmul.mubr.bf16.gmra.mxu0 %v2329
  %v3021 = vpop.f32.mrf.mxu0
  %v3022 = vadd.f32 0.0, %v3021
  %v3023 = vpop.f32.mrf.mxu0
  %v3024 = vpop.f32.mrf.mxu0
  %v3025 = vadd.f32 0.0, %v3024
  %v3026 = vpop.f32.mrf.mxu0
  %3027 = vmatprep.mubr.bf16.mxu0 %v2332
  %3028 = vmatmul.mubr.bf16.gmra.mxu0 %v2331
  %v3029 = vpop.f32.mrf.mxu0
  %v3030 = vadd.f32 0.0, %v3029
  %v3031 = vpop.f32.mrf.mxu0
  %v3032 = vpop.f32.mrf.mxu0
  %v3033 = vadd.f32 0.0, %v3032
  %v3034 = vpop.f32.mrf.mxu0
  %3035 = vmatprep.mubr.bf16.mxu0 %v2334
  %3036 = vmatmul.mubr.bf16.gmra.mxu0 %v2333
  %v3037 = vpop.f32.mrf.mxu0
  %v3038 = vadd.f32 0.0, %v3037
  %v3039 = vpop.f32.mrf.mxu0
  %v3040 = vpop.f32.mrf.mxu0
  %v3041 = vadd.f32 0.0, %v3040
  %v3042 = vpop.f32.mrf.mxu0
  %3043 = vmatprep.mubr.bf16.mxu0 %v2336
  %3044 = vmatmul.mubr.bf16.gmra.mxu0 %v2335
  %v3045 = vpop.f32.mrf.mxu0
  %v3046 = vadd.f32 0.0, %v3045
  %v3047 = vpop.f32.mrf.mxu0
  %v3048 = vpop.f32.mrf.mxu0
  %v3049 = vadd.f32 0.0, %v3048
  %v3050 = vpop.f32.mrf.mxu0
  %3051 = vmatprep.mubr.bf16.mxu0 %v2338
  %3052 = vmatmul.mubr.bf16.gmra.mxu0 %v2337
  %v3053 = vpop.f32.mrf.mxu0
  %v3054 = vadd.f32 0.0, %v3053
  %v3055 = vpop.f32.mrf.mxu0
  %v3056 = vpop.f32.mrf.mxu0
  %v3057 = vadd.f32 0.0, %v3056
  %v3058 = vpop.f32.mrf.mxu0
  %3059 = vmatprep.mubr.bf16.mxu0 %v2340
  %3060 = vmatmul.mubr.bf16.gmra.mxu0 %v2339
  %v3061 = vpop.f32.mrf.mxu0
  %v3062 = vadd.f32 0.0, %v3061
  %v3063 = vpop.f32.mrf.mxu0
  %v3064 = vpop.f32.mrf.mxu0
  %v3065 = vadd.f32 0.0, %v3064
  %v3066 = vpop.f32.mrf.mxu0
  %3067 = vmatprep.mubr.bf16.mxu0 %v2342
  %3068 = vmatmul.mubr.bf16.gmra.mxu0 %v2341
  %v3069 = vpop.f32.mrf.mxu0
  %v3070 = vadd.f32 0.0, %v3069
  %v3071 = vpop.f32.mrf.mxu0
  %v3072 = vpop.f32.mrf.mxu0
  %v3073 = vadd.f32 0.0, %v3072
  %v3074 = vpop.f32.mrf.mxu0
  %3075 = vmatprep.mubr.bf16.mxu0 %v2344
  %3076 = vmatmul.mubr.bf16.gmra.mxu0 %v2343
  %v3077 = vpop.f32.mrf.mxu0
  %v3078 = vadd.f32 0.0, %v3077
  %v3079 = vpop.f32.mrf.mxu0
  %v3080 = vpop.f32.mrf.mxu0
  %v3081 = vadd.f32 0.0, %v3080
  %v3082 = vpop.f32.mrf.mxu0
  %3083 = vmatprep.mubr.bf16.mxu0 %v2346
  %3084 = vmatmul.mubr.bf16.gmra.mxu0 %v2345
  %v3085 = vpop.f32.mrf.mxu0
  %v3086 = vadd.f32 0.0, %v3085
  %v3087 = vpop.f32.mrf.mxu0
  %v3088 = vpop.f32.mrf.mxu0
  %v3089 = vadd.f32 0.0, %v3088
  %v3090 = vpop.f32.mrf.mxu0
  %3091 = vmatprep.mubr.bf16.mxu0 %v2348
  %3092 = vmatmul.mubr.bf16.gmra.mxu0 %v2347
  %v3093 = vpop.f32.mrf.mxu0
  %v3094 = vadd.f32 0.0, %v3093
  %v3095 = vpop.f32.mrf.mxu0
  %v3096 = vpop.f32.mrf.mxu0
  %v3097 = vadd.f32 0.0, %v3096
  %v3098 = vpop.f32.mrf.mxu0
  %3099 = vmatprep.mubr.bf16.mxu0 %v2350
  %3100 = vmatmul.mubr.bf16.gmra.mxu0 %v2349
  %v3101 = vpop.f32.mrf.mxu0
  %v3102 = vadd.f32 0.0, %v3101
  %v3103 = vpop.f32.mrf.mxu0
  %v3104 = vpop.f32.mrf.mxu0
  %v3105 = vadd.f32 0.0, %v3104
  %v3106 = vpop.f32.mrf.mxu0
  %3107 = vdwg.mxu0
  %v3140 = vunpack.c.l.b16 %v2030
  %v3141 = vunpack.c.l.b16 %v2031
  %v3142 = vunpack.c.l.b16 %v2032
  %v3143 = vunpack.c.l.b16 %v2033
  %v3144 = vunpack.c.l.b16 %v2034
  %v3145 = vunpack.c.l.b16 %v2035
  %v3146 = vunpack.c.l.b16 %v2036
  %v3147 = vunpack.c.l.b16 %v2037
  %v3148 = vunpack.c.l.b16 %v2038
  %v3149 = vunpack.c.l.b16 %v2039
  %v3150 = vunpack.c.l.b16 %v2040
  %v3151 = vunpack.c.l.b16 %v2041
  %v3152 = vunpack.c.l.b16 %v2042
  %v3153 = vunpack.c.l.b16 %v2043
  %v3154 = vunpack.c.l.b16 %v2044
  %v3155 = vunpack.c.l.b16 %v2045
  %v3156 = vunpack.c.l.b16 %v2046
  %v3157 = vunpack.c.l.b16 %v2047
  %v3158 = vunpack.c.l.b16 %v2048
  %v3159 = vunpack.c.l.b16 %v2049
  %v3160 = vunpack.c.l.b16 %v2050
  %v3161 = vunpack.c.l.b16 %v2051
  %v3162 = vunpack.c.l.b16 %v2052
  %v3163 = vunpack.c.l.b16 %v2053
  %v3164 = vunpack.c.l.b16 %v2054
  %v3165 = vunpack.c.l.b16 %v2055
  %v3166 = vunpack.c.l.b16 %v2056
  %v3167 = vunpack.c.l.b16 %v2057
  %v3168 = vunpack.c.l.b16 %v2058
  %v3169 = vunpack.c.l.b16 %v2059
  %v3170 = vunpack.c.l.b16 %v2060
  %v3171 = vunpack.c.l.b16 %v2061
  %v3172 = vpack.c.b16 %v3141, %v3140
  %v3173 = vpack.c.b16 %v3143, %v3142
  %v3174 = vpack.c.b16 %v3145, %v3144
  %v3175 = vpack.c.b16 %v3147, %v3146
  %v3176 = vpack.c.b16 %v3149, %v3148
  %v3177 = vpack.c.b16 %v3151, %v3150
  %v3178 = vpack.c.b16 %v3153, %v3152
  %v3179 = vpack.c.b16 %v3155, %v3154
  %v3180 = vpack.c.b16 %v3157, %v3156
  %v3181 = vpack.c.b16 %v3159, %v3158
  %v3182 = vpack.c.b16 %v3161, %v3160
  %v3183 = vpack.c.b16 %v3163, %v3162
  %v3184 = vpack.c.b16 %v3165, %v3164
  %v3185 = vpack.c.b16 %v3167, %v3166
  %v3186 = vpack.c.b16 %v3169, %v3168
  %v3187 = vpack.c.b16 %v3171, %v3170
  %3204 = vmatprep.subr.bf16.mxu0 0
  %3205 = vmatpush1.bf16.msra.mxu0 %v3179
  %3206 = vmatprep.subr.bf16.mxu0 0
  %3207 = vmatpush1.bf16.msra.mxu0 %v3178
  %3208 = vmatprep.subr.bf16.mxu0 0
  %3209 = vmatpush1.bf16.msra.mxu0 %v3177
  %3210 = vmatprep.subr.bf16.mxu0 0
  %3211 = vmatpush1.bf16.msra.mxu0 %v3176
  %3212 = vmatprep.subr.bf16.mxu0 0
  %3213 = vmatpush1.bf16.msra.mxu0 %v3175
  %3214 = vmatprep.subr.bf16.mxu0 0
  %3215 = vmatpush1.bf16.msra.mxu0 %v3174
  %3216 = vmatprep.subr.bf16.mxu0 0
  %3217 = vmatpush1.bf16.msra.mxu0 %v3173
  %3218 = vmatprep.subr.bf16.mxu0 0
  %3219 = vmatpush1.bf16.msra.mxu0 %v3172
  %3220 = vmatprep.subr.bf16.mxu0 0
  %3221 = vmatpush2.bf16.msra.mxu0 %v3187
  %3222 = vmatprep.subr.bf16.mxu0 0
  %3223 = vmatpush2.bf16.msra.mxu0 %v3186
  %3224 = vmatprep.subr.bf16.mxu0 0
  %3225 = vmatpush2.bf16.msra.mxu0 %v3185
  %3226 = vmatprep.subr.bf16.mxu0 0
  %3227 = vmatpush2.bf16.msra.mxu0 %v3184
  %3228 = vmatprep.subr.bf16.mxu0 0
  %3229 = vmatpush2.bf16.msra.mxu0 %v3183
  %3230 = vmatprep.subr.bf16.mxu0 0
  %3231 = vmatpush2.bf16.msra.mxu0 %v3182
  %3232 = vmatprep.subr.bf16.mxu0 0
  %3233 = vmatpush2.bf16.msra.mxu0 %v3181
  %3234 = vmatprep.subr.bf16.mxu0 0
  %3235 = vmatpush2.bf16.msra.mxu0 %v3180
  %3236 = vmatprep.mubr.bf16.mxu0 %v1437
  %3237 = vmatmul.mubr.bf16.gmra.mxu0 %v1436
  %v3238 = vpop.f32.mrf.mxu0
  %v3239 = vadd.f32 %v2982, %v3238
  %v3240 = vpop.f32.mrf.mxu0
  %v3241 = vpop.f32.mrf.mxu0
  %v3242 = vadd.f32 %v2985, %v3241
  %v3243 = vpop.f32.mrf.mxu0
  %3244 = vmatprep.mubr.bf16.mxu0 %v1439
  %3245 = vmatmul.mubr.bf16.gmra.mxu0 %v1438
  %v3246 = vpop.f32.mrf.mxu0
  %v3247 = vadd.f32 %v2990, %v3246
  %v3248 = vpop.f32.mrf.mxu0
  %v3249 = vpop.f32.mrf.mxu0
  %v3250 = vadd.f32 %v2993, %v3249
  %v3251 = vpop.f32.mrf.mxu0
  %3252 = vmatprep.mubr.bf16.mxu0 %v1441
  %3253 = vmatmul.mubr.bf16.gmra.mxu0 %v1440
  %v3254 = vpop.f32.mrf.mxu0
  %v3255 = vadd.f32 %v2998, %v3254
  %v3256 = vpop.f32.mrf.mxu0
  %v3257 = vpop.f32.mrf.mxu0
  %v3258 = vadd.f32 %v3001, %v3257
  %v3259 = vpop.f32.mrf.mxu0
  %3260 = vmatprep.mubr.bf16.mxu0 %v1443
  %3261 = vmatmul.mubr.bf16.gmra.mxu0 %v1442
  %v3262 = vpop.f32.mrf.mxu0
  %v3263 = vadd.f32 %v3006, %v3262
  %v3264 = vpop.f32.mrf.mxu0
  %v3265 = vpop.f32.mrf.mxu0
  %v3266 = vadd.f32 %v3009, %v3265
  %v3267 = vpop.f32.mrf.mxu0
  %3268 = vmatprep.mubr.bf16.mxu0 %v1445
  %3269 = vmatmul.mubr.bf16.gmra.mxu0 %v1444
  %v3270 = vpop.f32.mrf.mxu0
  %v3271 = vadd.f32 %v3014, %v3270
  %v3272 = vpop.f32.mrf.mxu0
  %v3273 = vpop.f32.mrf.mxu0
  %v3274 = vadd.f32 %v3017, %v3273
  %v3275 = vpop.f32.mrf.mxu0
  %3276 = vmatprep.mubr.bf16.mxu0 %v1447
  %3277 = vmatmul.mubr.bf16.gmra.mxu0 %v1446
  %v3278 = vpop.f32.mrf.mxu0
  %v3279 = vadd.f32 %v3022, %v3278
  %v3280 = vpop.f32.mrf.mxu0
  %v3281 = vpop.f32.mrf.mxu0
  %v3282 = vadd.f32 %v3025, %v3281
  %v3283 = vpop.f32.mrf.mxu0
  %3284 = vmatprep.mubr.bf16.mxu0 %v1449
  %3285 = vmatmul.mubr.bf16.gmra.mxu0 %v1448
  %v3286 = vpop.f32.mrf.mxu0
  %v3287 = vadd.f32 %v3030, %v3286
  %v3288 = vpop.f32.mrf.mxu0
  %v3289 = vpop.f32.mrf.mxu0
  %v3290 = vadd.f32 %v3033, %v3289
  %v3291 = vpop.f32.mrf.mxu0
  %3292 = vmatprep.mubr.bf16.mxu0 %v1451
  %3293 = vmatmul.mubr.bf16.gmra.mxu0 %v1450
  %v3294 = vpop.f32.mrf.mxu0
  %v3295 = vadd.f32 %v3038, %v3294
  %v3296 = vpop.f32.mrf.mxu0
  %v3297 = vpop.f32.mrf.mxu0
  %v3298 = vadd.f32 %v3041, %v3297
  %v3299 = vpop.f32.mrf.mxu0
  %3300 = vmatprep.mubr.bf16.mxu0 %v1453
  %3301 = vmatmul.mubr.bf16.gmra.mxu0 %v1452
  %v3302 = vpop.f32.mrf.mxu0
  %v3303 = vadd.f32 %v3046, %v3302
  %v3304 = vpop.f32.mrf.mxu0
  %v3305 = vpop.f32.mrf.mxu0
  %v3306 = vadd.f32 %v3049, %v3305
  %v3307 = vpop.f32.mrf.mxu0
  %3308 = vmatprep.mubr.bf16.mxu0 %v1455
  %3309 = vmatmul.mubr.bf16.gmra.mxu0 %v1454
  %v3310 = vpop.f32.mrf.mxu0
  %v3311 = vadd.f32 %v3054, %v3310
  %v3312 = vpop.f32.mrf.mxu0
  %v3313 = vpop.f32.mrf.mxu0
  %v3314 = vadd.f32 %v3057, %v3313
  %v3315 = vpop.f32.mrf.mxu0
  %3316 = vmatprep.mubr.bf16.mxu0 %v1457
  %3317 = vmatmul.mubr.bf16.gmra.mxu0 %v1456
  %v3318 = vpop.f32.mrf.mxu0
  %v3319 = vadd.f32 %v3062, %v3318
  %v3320 = vpop.f32.mrf.mxu0
  %v3321 = vpop.f32.mrf.mxu0
  %v3322 = vadd.f32 %v3065, %v3321
  %v3323 = vpop.f32.mrf.mxu0
  %3324 = vmatprep.mubr.bf16.mxu0 %v1459
  %3325 = vmatmul.mubr.bf16.gmra.mxu0 %v1458
  %v3326 = vpop.f32.mrf.mxu0
  %v3327 = vadd.f32 %v3070, %v3326
  %v3328 = vpop.f32.mrf.mxu0
  %v3329 = vpop.f32.mrf.mxu0
  %v3330 = vadd.f32 %v3073, %v3329
  %v3331 = vpop.f32.mrf.mxu0
  %3332 = vmatprep.mubr.bf16.mxu0 %v1461
  %3333 = vmatmul.mubr.bf16.gmra.mxu0 %v1460
  %v3334 = vpop.f32.mrf.mxu0
  %v3335 = vadd.f32 %v3078, %v3334
  %v3336 = vpop.f32.mrf.mxu0
  %v3337 = vpop.f32.mrf.mxu0
  %v3338 = vadd.f32 %v3081, %v3337
  %v3339 = vpop.f32.mrf.mxu0
  %3340 = vmatprep.mubr.bf16.mxu0 %v1463
  %3341 = vmatmul.mubr.bf16.gmra.mxu0 %v1462
  %v3342 = vpop.f32.mrf.mxu0
  %v3343 = vadd.f32 %v3086, %v3342
  %v3344 = vpop.f32.mrf.mxu0
  %v3345 = vpop.f32.mrf.mxu0
  %v3346 = vadd.f32 %v3089, %v3345
  %v3347 = vpop.f32.mrf.mxu0
  %3348 = vmatprep.mubr.bf16.mxu0 %v1465
  %3349 = vmatmul.mubr.bf16.gmra.mxu0 %v1464
  %v3350 = vpop.f32.mrf.mxu0
  %v3351 = vadd.f32 %v3094, %v3350
  %v3352 = vpop.f32.mrf.mxu0
  %v3353 = vpop.f32.mrf.mxu0
  %v3354 = vadd.f32 %v3097, %v3353
  %v3355 = vpop.f32.mrf.mxu0
  %3356 = vmatprep.mubr.bf16.mxu0 %v1467
  %3357 = vmatmul.mubr.bf16.gmra.mxu0 %v1466
  %v3358 = vpop.f32.mrf.mxu0
  %v3359 = vadd.f32 %v3102, %v3358
  %v3360 = vpop.f32.mrf.mxu0
  %v3361 = vpop.f32.mrf.mxu0
  %v3362 = vadd.f32 %v3105, %v3361
  %v3363 = vpop.f32.mrf.mxu0
  %3364 = vdwg.mxu0
  %3365 = vrot.lane.b32.xlu0 %v1067, 96
  %v3366 = vpop.permute.xlu0 %3365
  %3367 = vrot.lane.b32.xlu0 %v1069, 96
  %v3368 = vpop.permute.xlu0 %3367
  %3369 = vrot.lane.b32.xlu0 %v1071, 96
  %v3370 = vpop.permute.xlu0 %3369
  %3371 = vrot.lane.b32.xlu0 %v1073, 96
  %v3372 = vpop.permute.xlu0 %3371
  %3373 = vrot.lane.b32.xlu0 %v1075, 96
  %v3374 = vpop.permute.xlu0 %3373
  %3375 = vrot.lane.b32.xlu0 %v1077, 96
  %v3376 = vpop.permute.xlu0 %3375
  %3377 = vrot.lane.b32.xlu0 %v1079, 96
  %v3378 = vpop.permute.xlu0 %3377
  %3379 = vrot.lane.b32.xlu0 %v1081, 96
  %v3380 = vpop.permute.xlu0 %3379
  %3381 = vrot.lane.b32.xlu0 %v1083, 96
  %v3382 = vpop.permute.xlu0 %3381
  %3383 = vrot.lane.b32.xlu0 %v1085, 96
  %v3384 = vpop.permute.xlu0 %3383
  %3385 = vrot.lane.b32.xlu0 %v1087, 96
  %v3386 = vpop.permute.xlu0 %3385
  %3387 = vrot.lane.b32.xlu0 %v1089, 96
  %v3388 = vpop.permute.xlu0 %3387
  %3389 = vrot.lane.b32.xlu0 %v1091, 96
  %v3390 = vpop.permute.xlu0 %3389
  %3391 = vrot.lane.b32.xlu0 %v1093, 96
  %v3392 = vpop.permute.xlu0 %3391
  %3393 = vrot.lane.b32.xlu0 %v1095, 96
  %v3394 = vpop.permute.xlu0 %3393
  %3395 = vrot.lane.b32.xlu0 %v1097, 96
  %v3396 = vpop.permute.xlu0 %3395
  %3397 = vrot.lane.b32.xlu0 %v1099, 96
  %v3398 = vpop.permute.xlu0 %3397
  %3399 = vrot.lane.b32.xlu0 %v1101, 96
  %v3400 = vpop.permute.xlu0 %3399
  %3401 = vrot.lane.b32.xlu0 %v1103, 96
  %v3402 = vpop.permute.xlu0 %3401
  %3403 = vrot.lane.b32.xlu0 %v1105, 96
  %v3404 = vpop.permute.xlu0 %3403
  %3405 = vrot.lane.b32.xlu0 %v1107, 96
  %v3406 = vpop.permute.xlu0 %3405
  %3407 = vrot.lane.b32.xlu0 %v1109, 96
  %v3408 = vpop.permute.xlu0 %3407
  %3409 = vrot.lane.b32.xlu0 %v1111, 96
  %v3410 = vpop.permute.xlu0 %3409
  %3411 = vrot.lane.b32.xlu0 %v1113, 96
  %v3412 = vpop.permute.xlu0 %3411
  %3413 = vrot.lane.b32.xlu0 %v1115, 96
  %v3414 = vpop.permute.xlu0 %3413
  %3415 = vrot.lane.b32.xlu0 %v1117, 96
  %v3416 = vpop.permute.xlu0 %3415
  %3417 = vrot.lane.b32.xlu0 %v1119, 96
  %v3418 = vpop.permute.xlu0 %3417
  %3419 = vrot.lane.b32.xlu0 %v1121, 96
  %v3420 = vpop.permute.xlu0 %3419
  %3421 = vrot.lane.b32.xlu0 %v1123, 96
  %v3422 = vpop.permute.xlu0 %3421
  %3423 = vrot.lane.b32.xlu0 %v1125, 96
  %v3424 = vpop.permute.xlu0 %3423
  %3425 = vrot.lane.b32.xlu0 %v1127, 96
  %v3426 = vpop.permute.xlu0 %3425
  %3427 = vrot.lane.b32.xlu0 %v1129, 96
  %v3428 = vpop.permute.xlu0 %3427
  %3429 = vrot.lane.b32.xlu0 %v1068, 96
  %v3430 = vpop.permute.xlu0 %3429
  %3431 = vrot.lane.b32.xlu0 %v1070, 96
  %v3432 = vpop.permute.xlu0 %3431
  %3433 = vrot.lane.b32.xlu0 %v1072, 96
  %v3434 = vpop.permute.xlu0 %3433
  %3435 = vrot.lane.b32.xlu0 %v1074, 96
  %v3436 = vpop.permute.xlu0 %3435
  %3437 = vrot.lane.b32.xlu0 %v1076, 96
  %v3438 = vpop.permute.xlu0 %3437
  %3439 = vrot.lane.b32.xlu0 %v1078, 96
  %v3440 = vpop.permute.xlu0 %3439
  %3441 = vrot.lane.b32.xlu0 %v1080, 96
  %v3442 = vpop.permute.xlu0 %3441
  %3443 = vrot.lane.b32.xlu0 %v1082, 96
  %v3444 = vpop.permute.xlu0 %3443
  %3445 = vrot.lane.b32.xlu0 %v1084, 96
  %v3446 = vpop.permute.xlu0 %3445
  %3447 = vrot.lane.b32.xlu0 %v1086, 96
  %v3448 = vpop.permute.xlu0 %3447
  %3449 = vrot.lane.b32.xlu0 %v1088, 96
  %v3450 = vpop.permute.xlu0 %3449
  %3451 = vrot.lane.b32.xlu0 %v1090, 96
  %v3452 = vpop.permute.xlu0 %3451
  %3453 = vrot.lane.b32.xlu0 %v1092, 96
  %v3454 = vpop.permute.xlu0 %3453
  %3455 = vrot.lane.b32.xlu0 %v1094, 96
  %v3456 = vpop.permute.xlu0 %3455
  %3457 = vrot.lane.b32.xlu0 %v1096, 96
  %v3458 = vpop.permute.xlu0 %3457
  %3459 = vrot.lane.b32.xlu0 %v1098, 96
  %v3460 = vpop.permute.xlu0 %3459
  %3461 = vrot.lane.b32.xlu0 %v1100, 96
  %v3462 = vpop.permute.xlu0 %3461
  %3463 = vrot.lane.b32.xlu0 %v1102, 96
  %v3464 = vpop.permute.xlu0 %3463
  %3465 = vrot.lane.b32.xlu0 %v1104, 96
  %v3466 = vpop.permute.xlu0 %3465
  %3467 = vrot.lane.b32.xlu0 %v1106, 96
  %v3468 = vpop.permute.xlu0 %3467
  %3469 = vrot.lane.b32.xlu0 %v1108, 96
  %v3470 = vpop.permute.xlu0 %3469
  %3471 = vrot.lane.b32.xlu0 %v1110, 96
  %v3472 = vpop.permute.xlu0 %3471
  %3473 = vrot.lane.b32.xlu0 %v1112, 96
  %v3474 = vpop.permute.xlu0 %3473
  %3475 = vrot.lane.b32.xlu0 %v1114, 96
  %v3476 = vpop.permute.xlu0 %3475
  %3477 = vrot.lane.b32.xlu0 %v1116, 96
  %v3478 = vpop.permute.xlu0 %3477
  %3479 = vrot.lane.b32.xlu0 %v1118, 96
  %v3480 = vpop.permute.xlu0 %3479
  %3481 = vrot.lane.b32.xlu0 %v1120, 96
  %v3482 = vpop.permute.xlu0 %3481
  %3483 = vrot.lane.b32.xlu0 %v1122, 96
  %v3484 = vpop.permute.xlu0 %3483
  %3485 = vrot.lane.b32.xlu0 %v1124, 96
  %v3486 = vpop.permute.xlu0 %3485
  %3487 = vrot.lane.b32.xlu0 %v1126, 96
  %v3488 = vpop.permute.xlu0 %3487
  %3489 = vrot.lane.b32.xlu0 %v1128, 96
  %v3490 = vpop.permute.xlu0 %3489
  %3491 = vrot.lane.b32.xlu0 %v1130, 96
  %v3492 = vpop.permute.xlu0 %3491
  %vm3493 = vcmp.lt.s32.totalorder %v1306, 96
  %v3494 = vsel %vm3493, %v3366, %v3430
  %v3495 = vsel %vm3493, %v3368, %v3432
  %v3496 = vsel %vm3493, %v3370, %v3434
  %v3497 = vsel %vm3493, %v3372, %v3436
  %v3498 = vsel %vm3493, %v3374, %v3438
  %v3499 = vsel %vm3493, %v3376, %v3440
  %v3500 = vsel %vm3493, %v3378, %v3442
  %v3501 = vsel %vm3493, %v3380, %v3444
  %v3502 = vsel %vm3493, %v3382, %v3446
  %v3503 = vsel %vm3493, %v3384, %v3448
  %v3504 = vsel %vm3493, %v3386, %v3450
  %v3505 = vsel %vm3493, %v3388, %v3452
  %v3506 = vsel %vm3493, %v3390, %v3454
  %v3507 = vsel %vm3493, %v3392, %v3456
  %v3508 = vsel %vm3493, %v3394, %v3458
  %v3509 = vsel %vm3493, %v3396, %v3460
  %v3510 = vsel %vm3493, %v3398, %v3462
  %v3511 = vsel %vm3493, %v3400, %v3464
  %v3512 = vsel %vm3493, %v3402, %v3466
  %v3513 = vsel %vm3493, %v3404, %v3468
  %v3514 = vsel %vm3493, %v3406, %v3470
  %v3515 = vsel %vm3493, %v3408, %v3472
  %v3516 = vsel %vm3493, %v3410, %v3474
  %v3517 = vsel %vm3493, %v3412, %v3476
  %v3518 = vsel %vm3493, %v3414, %v3478
  %v3519 = vsel %vm3493, %v3416, %v3480
  %v3520 = vsel %vm3493, %v3418, %v3482
  %v3521 = vsel %vm3493, %v3420, %v3484
  %v3522 = vsel %vm3493, %v3422, %v3486
  %v3523 = vsel %vm3493, %v3424, %v3488
  %v3524 = vsel %vm3493, %v3426, %v3490
  %v3525 = vsel %vm3493, %v3428, %v3492
  %v3526 = vsel %vm3493, %v3430, %v3366
  %v3527 = vsel %vm3493, %v3432, %v3368
  %v3528 = vsel %vm3493, %v3434, %v3370
  %v3529 = vsel %vm3493, %v3436, %v3372
  %v3530 = vsel %vm3493, %v3438, %v3374
  %v3531 = vsel %vm3493, %v3440, %v3376
  %v3532 = vsel %vm3493, %v3442, %v3378
  %v3533 = vsel %vm3493, %v3444, %v3380
  %v3534 = vsel %vm3493, %v3446, %v3382
  %v3535 = vsel %vm3493, %v3448, %v3384
  %v3536 = vsel %vm3493, %v3450, %v3386
  %v3537 = vsel %vm3493, %v3452, %v3388
  %v3538 = vsel %vm3493, %v3454, %v3390
  %v3539 = vsel %vm3493, %v3456, %v3392
  %v3540 = vsel %vm3493, %v3458, %v3394
  %v3541 = vsel %vm3493, %v3460, %v3396
  %v3542 = vsel %vm3493, %v3462, %v3398
  %v3543 = vsel %vm3493, %v3464, %v3400
  %v3544 = vsel %vm3493, %v3466, %v3402
  %v3545 = vsel %vm3493, %v3468, %v3404
  %v3546 = vsel %vm3493, %v3470, %v3406
  %v3547 = vsel %vm3493, %v3472, %v3408
  %v3548 = vsel %vm3493, %v3474, %v3410
  %v3549 = vsel %vm3493, %v3476, %v3412
  %v3550 = vsel %vm3493, %v3478, %v3414
  %v3551 = vsel %vm3493, %v3480, %v3416
  %v3552 = vsel %vm3493, %v3482, %v3418
  %v3553 = vsel %vm3493, %v3484, %v3420
  %v3554 = vsel %vm3493, %v3486, %v3422
  %v3555 = vsel %vm3493, %v3488, %v3424
  %v3556 = vsel %vm3493, %v3490, %v3426
  %v3557 = vsel %vm3493, %v3492, %v3428
  %v3558 = vmul.f32 %v1067, %v3526
  %v3559 = vmul.f32 %v1068, %v3494
  %v3560 = vmul.f32 %v1069, %v3527
  %v3561 = vmul.f32 %v1070, %v3495
  %v3562 = vmul.f32 %v1071, %v3528
  %v3563 = vmul.f32 %v1072, %v3496
  %v3564 = vmul.f32 %v1073, %v3529
  %v3565 = vmul.f32 %v1074, %v3497
  %v3566 = vmul.f32 %v1075, %v3530
  %v3567 = vmul.f32 %v1076, %v3498
  %v3568 = vmul.f32 %v1077, %v3531
  %v3569 = vmul.f32 %v1078, %v3499
  %v3570 = vmul.f32 %v1079, %v3532
  %v3571 = vmul.f32 %v1080, %v3500
  %v3572 = vmul.f32 %v1081, %v3533
  %v3573 = vmul.f32 %v1082, %v3501
  %v3574 = vmul.f32 %v1083, %v3534
  %v3575 = vmul.f32 %v1084, %v3502
  %v3576 = vmul.f32 %v1085, %v3535
  %v3577 = vmul.f32 %v1086, %v3503
  %v3578 = vmul.f32 %v1087, %v3536
  %v3579 = vmul.f32 %v1088, %v3504
  %v3580 = vmul.f32 %v1089, %v3537
  %v3581 = vmul.f32 %v1090, %v3505
  %v3582 = vmul.f32 %v1091, %v3538
  %v3583 = vmul.f32 %v1092, %v3506
  %v3584 = vmul.f32 %v1093, %v3539
  %v3585 = vmul.f32 %v1094, %v3507
  %v3586 = vmul.f32 %v1095, %v3540
  %v3587 = vmul.f32 %v1096, %v3508
  %v3588 = vmul.f32 %v1097, %v3541
  %v3589 = vmul.f32 %v1098, %v3509
  %v3590 = vmul.f32 %v1099, %v3542
  %v3591 = vmul.f32 %v1100, %v3510
  %v3592 = vmul.f32 %v1101, %v3543
  %v3593 = vmul.f32 %v1102, %v3511
  %v3594 = vmul.f32 %v1103, %v3544
  %v3595 = vmul.f32 %v1104, %v3512
  %v3596 = vmul.f32 %v1105, %v3545
  %v3597 = vmul.f32 %v1106, %v3513
  %v3598 = vmul.f32 %v1107, %v3546
  %v3599 = vmul.f32 %v1108, %v3514
  %v3600 = vmul.f32 %v1109, %v3547
  %v3601 = vmul.f32 %v1110, %v3515
  %v3602 = vmul.f32 %v1111, %v3548
  %v3603 = vmul.f32 %v1112, %v3516
  %v3604 = vmul.f32 %v1113, %v3549
  %v3605 = vmul.f32 %v1114, %v3517
  %v3606 = vmul.f32 %v1115, %v3550
  %v3607 = vmul.f32 %v1116, %v3518
  %v3608 = vmul.f32 %v1117, %v3551
  %v3609 = vmul.f32 %v1118, %v3519
  %v3610 = vmul.f32 %v1119, %v3552
  %v3611 = vmul.f32 %v1120, %v3520
  %v3612 = vmul.f32 %v1121, %v3553
  %v3613 = vmul.f32 %v1122, %v3521
  %v3614 = vmul.f32 %v1123, %v3554
  %v3615 = vmul.f32 %v1124, %v3522
  %v3616 = vmul.f32 %v1125, %v3555
  %v3617 = vmul.f32 %v1126, %v3523
  %v3618 = vmul.f32 %v1127, %v3556
  %v3619 = vmul.f32 %v1128, %v3524
  %v3620 = vmul.f32 %v1129, %v3557
  %v3621 = vmul.f32 %v1130, %v3525
  %v3622 = vpack.c.bf16 %v3560, %v3558
  %v3623 = vpack.c.bf16 %v3561, %v3559
  %v3624 = vpack.c.bf16 %v3564, %v3562
  %v3625 = vpack.c.bf16 %v3565, %v3563
  %v3626 = vpack.c.bf16 %v3568, %v3566
  %v3627 = vpack.c.bf16 %v3569, %v3567
  %v3628 = vpack.c.bf16 %v3572, %v3570
  %v3629 = vpack.c.bf16 %v3573, %v3571
  %v3630 = vpack.c.bf16 %v3576, %v3574
  %v3631 = vpack.c.bf16 %v3577, %v3575
  %v3632 = vpack.c.bf16 %v3580, %v3578
  %v3633 = vpack.c.bf16 %v3581, %v3579
  %v3634 = vpack.c.bf16 %v3584, %v3582
  %v3635 = vpack.c.bf16 %v3585, %v3583
  %v3636 = vpack.c.bf16 %v3588, %v3586
  %v3637 = vpack.c.bf16 %v3589, %v3587
  %v3638 = vpack.c.bf16 %v3592, %v3590
  %v3639 = vpack.c.bf16 %v3593, %v3591
  %v3640 = vpack.c.bf16 %v3596, %v3594
  %v3641 = vpack.c.bf16 %v3597, %v3595
  %v3642 = vpack.c.bf16 %v3600, %v3598
  %v3643 = vpack.c.bf16 %v3601, %v3599
  %v3644 = vpack.c.bf16 %v3604, %v3602
  %v3645 = vpack.c.bf16 %v3605, %v3603
  %v3646 = vpack.c.bf16 %v3608, %v3606
  %v3647 = vpack.c.bf16 %v3609, %v3607
  %v3648 = vpack.c.bf16 %v3612, %v3610
  %v3649 = vpack.c.bf16 %v3613, %v3611
  %v3650 = vpack.c.bf16 %v3616, %v3614
  %v3651 = vpack.c.bf16 %v3617, %v3615
  %v3652 = vpack.c.bf16 %v3620, %v3618
  %v3653 = vpack.c.bf16 %v3621, %v3619
  %3654 = vmatprep.subr.bf16.mxu0 0
  %3655 = vmatpush1.bf16.msra.mxu0 %v1539
  %3656 = vmatprep.subr.bf16.mxu0 0
  %3657 = vmatpush1.bf16.msra.mxu0 %v1538
  %3658 = vmatprep.subr.bf16.mxu0 0
  %3659 = vmatpush1.bf16.msra.mxu0 %v1537
  %3660 = vmatprep.subr.bf16.mxu0 0
  %3661 = vmatpush1.bf16.msra.mxu0 %v1536
  %3662 = vmatprep.subr.bf16.mxu0 0
  %3663 = vmatpush1.bf16.msra.mxu0 %v1535
  %3664 = vmatprep.subr.bf16.mxu0 0
  %3665 = vmatpush1.bf16.msra.mxu0 %v1534
  %3666 = vmatprep.subr.bf16.mxu0 0
  %3667 = vmatpush1.bf16.msra.mxu0 %v1533
  %3668 = vmatprep.subr.bf16.mxu0 0
  %3669 = vmatpush1.bf16.msra.mxu0 %v1532
  %3670 = vmatprep.subr.bf16.mxu0 0
  %3671 = vmatpush2.bf16.msra.mxu0 %v1547
  %3672 = vmatprep.subr.bf16.mxu0 0
  %3673 = vmatpush2.bf16.msra.mxu0 %v1546
  %3674 = vmatprep.subr.bf16.mxu0 0
  %3675 = vmatpush2.bf16.msra.mxu0 %v1545
  %3676 = vmatprep.subr.bf16.mxu0 0
  %3677 = vmatpush2.bf16.msra.mxu0 %v1544
  %3678 = vmatprep.subr.bf16.mxu0 0
  %3679 = vmatpush2.bf16.msra.mxu0 %v1543
  %3680 = vmatprep.subr.bf16.mxu0 0
  %3681 = vmatpush2.bf16.msra.mxu0 %v1542
  %3682 = vmatprep.subr.bf16.mxu0 0
  %3683 = vmatpush2.bf16.msra.mxu0 %v1541
  %3684 = vmatprep.subr.bf16.mxu0 0
  %3685 = vmatpush2.bf16.msra.mxu0 %v1540
  %3686 = vmatprep.mubr.bf16.mxu0 %v3623
  %3687 = vmatmul.mubr.bf16.gmra.mxu0 %v3622
  %v3688 = vpop.f32.mrf.mxu0
  %v3689 = vadd.f32 %v1168, %v3688
  %v3690 = vpop.f32.mrf.mxu0
  %v3691 = vpop.f32.mrf.mxu0
  %v3692 = vadd.f32 %v1168, %v3691
  %v3693 = vpop.f32.mrf.mxu0
  %3694 = vmatprep.mubr.bf16.mxu0 %v3625
  %3695 = vmatmul.mubr.bf16.gmra.mxu0 %v3624
  %v3696 = vpop.f32.mrf.mxu0
  %v3697 = vadd.f32 %v1168, %v3696
  %v3698 = vpop.f32.mrf.mxu0
  %v3699 = vpop.f32.mrf.mxu0
  %v3700 = vadd.f32 %v1168, %v3699
  %v3701 = vpop.f32.mrf.mxu0
  %3702 = vmatprep.mubr.bf16.mxu0 %v3627
  %3703 = vmatmul.mubr.bf16.gmra.mxu0 %v3626
  %v3704 = vpop.f32.mrf.mxu0
  %v3705 = vadd.f32 %v1168, %v3704
  %v3706 = vpop.f32.mrf.mxu0
  %v3707 = vpop.f32.mrf.mxu0
  %v3708 = vadd.f32 %v1168, %v3707
  %v3709 = vpop.f32.mrf.mxu0
  %3710 = vmatprep.mubr.bf16.mxu0 %v3629
  %3711 = vmatmul.mubr.bf16.gmra.mxu0 %v3628
  %v3712 = vpop.f32.mrf.mxu0
  %v3713 = vadd.f32 %v1168, %v3712
  %v3714 = vpop.f32.mrf.mxu0
  %v3715 = vpop.f32.mrf.mxu0
  %v3716 = vadd.f32 %v1168, %v3715
  %v3717 = vpop.f32.mrf.mxu0
  %3718 = vmatprep.mubr.bf16.mxu0 %v3631
  %3719 = vmatmul.mubr.bf16.gmra.mxu0 %v3630
  %v3720 = vpop.f32.mrf.mxu0
  %v3721 = vadd.f32 %v1168, %v3720
  %v3722 = vpop.f32.mrf.mxu0
  %v3723 = vpop.f32.mrf.mxu0
  %v3724 = vadd.f32 %v1168, %v3723
  %v3725 = vpop.f32.mrf.mxu0
  %3726 = vmatprep.mubr.bf16.mxu0 %v3633
  %3727 = vmatmul.mubr.bf16.gmra.mxu0 %v3632
  %v3728 = vpop.f32.mrf.mxu0
  %v3729 = vadd.f32 %v1168, %v3728
  %v3730 = vpop.f32.mrf.mxu0
  %v3731 = vpop.f32.mrf.mxu0
  %v3732 = vadd.f32 %v1168, %v3731
  %v3733 = vpop.f32.mrf.mxu0
  %3734 = vmatprep.mubr.bf16.mxu0 %v3635
  %3735 = vmatmul.mubr.bf16.gmra.mxu0 %v3634
  %v3736 = vpop.f32.mrf.mxu0
  %v3737 = vadd.f32 %v1168, %v3736
  %v3738 = vpop.f32.mrf.mxu0
  %v3739 = vpop.f32.mrf.mxu0
  %v3740 = vadd.f32 %v1168, %v3739
  %v3741 = vpop.f32.mrf.mxu0
  %3742 = vmatprep.mubr.bf16.mxu0 %v3637
  %3743 = vmatmul.mubr.bf16.gmra.mxu0 %v3636
  %v3744 = vpop.f32.mrf.mxu0
  %v3745 = vadd.f32 %v1168, %v3744
  %v3746 = vpop.f32.mrf.mxu0
  %v3747 = vpop.f32.mrf.mxu0
  %v3748 = vadd.f32 %v1168, %v3747
  %v3749 = vpop.f32.mrf.mxu0
  %3750 = vmatprep.mubr.bf16.mxu0 %v3639
  %3751 = vmatmul.mubr.bf16.gmra.mxu0 %v3638
  %v3752 = vpop.f32.mrf.mxu0
  %v3753 = vadd.f32 %v1168, %v3752
  %v3754 = vpop.f32.mrf.mxu0
  %v3755 = vpop.f32.mrf.mxu0
  %v3756 = vadd.f32 %v1168, %v3755
  %v3757 = vpop.f32.mrf.mxu0
  %3758 = vmatprep.mubr.bf16.mxu0 %v3641
  %3759 = vmatmul.mubr.bf16.gmra.mxu0 %v3640
  %v3760 = vpop.f32.mrf.mxu0
  %v3761 = vadd.f32 %v1168, %v3760
  %v3762 = vpop.f32.mrf.mxu0
  %v3763 = vpop.f32.mrf.mxu0
  %v3764 = vadd.f32 %v1168, %v3763
  %v3765 = vpop.f32.mrf.mxu0
  %3766 = vmatprep.mubr.bf16.mxu0 %v3643
  %3767 = vmatmul.mubr.bf16.gmra.mxu0 %v3642
  %v3768 = vpop.f32.mrf.mxu0
  %v3769 = vadd.f32 %v1168, %v3768
  %v3770 = vpop.f32.mrf.mxu0
  %v3771 = vpop.f32.mrf.mxu0
  %v3772 = vadd.f32 %v1168, %v3771
  %v3773 = vpop.f32.mrf.mxu0
  %3774 = vmatprep.mubr.bf16.mxu0 %v3645
  %3775 = vmatmul.mubr.bf16.gmra.mxu0 %v3644
  %v3776 = vpop.f32.mrf.mxu0
  %v3777 = vadd.f32 %v1168, %v3776
  %v3778 = vpop.f32.mrf.mxu0
  %v3779 = vpop.f32.mrf.mxu0
  %v3780 = vadd.f32 %v1168, %v3779
  %v3781 = vpop.f32.mrf.mxu0
  %3782 = vmatprep.mubr.bf16.mxu0 %v3647
  %3783 = vmatmul.mubr.bf16.gmra.mxu0 %v3646
  %v3784 = vpop.f32.mrf.mxu0
  %v3785 = vadd.f32 %v1168, %v3784
  %v3786 = vpop.f32.mrf.mxu0
  %v3787 = vpop.f32.mrf.mxu0
  %v3788 = vadd.f32 %v1168, %v3787
  %v3789 = vpop.f32.mrf.mxu0
  %3790 = vmatprep.mubr.bf16.mxu0 %v3649
  %3791 = vmatmul.mubr.bf16.gmra.mxu0 %v3648
  %v3792 = vpop.f32.mrf.mxu0
  %v3793 = vadd.f32 %v1168, %v3792
  %v3794 = vpop.f32.mrf.mxu0
  %v3795 = vpop.f32.mrf.mxu0
  %v3796 = vadd.f32 %v1168, %v3795
  %v3797 = vpop.f32.mrf.mxu0
  %3798 = vmatprep.mubr.bf16.mxu0 %v3651
  %3799 = vmatmul.mubr.bf16.gmra.mxu0 %v3650
  %v3800 = vpop.f32.mrf.mxu0
  %v3801 = vadd.f32 %v1168, %v3800
  %v3802 = vpop.f32.mrf.mxu0
  %v3803 = vpop.f32.mrf.mxu0
  %v3804 = vadd.f32 %v1168, %v3803
  %v3805 = vpop.f32.mrf.mxu0
  %3806 = vmatprep.mubr.bf16.mxu0 %v3653
  %3807 = vmatmul.mubr.bf16.gmra.mxu0 %v3652
  %v3808 = vpop.f32.mrf.mxu0
  %v3809 = vadd.f32 %v1168, %v3808
  %v3810 = vpop.f32.mrf.mxu0
  %v3811 = vpop.f32.mrf.mxu0
  %v3812 = vadd.f32 %v1168, %v3811
  %v3813 = vpop.f32.mrf.mxu0
  %3814 = vdwg.mxu0
  %v3815 = vmax.f32 %v3689, 0.0
  %v3816 = vmax.f32 %v3692, 0.0
  %v3817 = vmax.f32 %v3697, 0.0
  %v3818 = vmax.f32 %v3700, 0.0
  %v3819 = vmax.f32 %v3705, 0.0
  %v3820 = vmax.f32 %v3708, 0.0
  %v3821 = vmax.f32 %v3713, 0.0
  %v3822 = vmax.f32 %v3716, 0.0
  %v3823 = vmax.f32 %v3721, 0.0
  %v3824 = vmax.f32 %v3724, 0.0
  %v3825 = vmax.f32 %v3729, 0.0
  %v3826 = vmax.f32 %v3732, 0.0
  %v3827 = vmax.f32 %v3737, 0.0
  %v3828 = vmax.f32 %v3740, 0.0
  %v3829 = vmax.f32 %v3745, 0.0
  %v3830 = vmax.f32 %v3748, 0.0
  %v3831 = vmax.f32 %v3753, 0.0
  %v3832 = vmax.f32 %v3756, 0.0
  %v3833 = vmax.f32 %v3761, 0.0
  %v3834 = vmax.f32 %v3764, 0.0
  %v3835 = vmax.f32 %v3769, 0.0
  %v3836 = vmax.f32 %v3772, 0.0
  %v3837 = vmax.f32 %v3777, 0.0
  %v3838 = vmax.f32 %v3780, 0.0
  %v3839 = vmax.f32 %v3785, 0.0
  %v3840 = vmax.f32 %v3788, 0.0
  %v3841 = vmax.f32 %v3793, 0.0
  %v3842 = vmax.f32 %v3796, 0.0
  %v3843 = vmax.f32 %v3801, 0.0
  %v3844 = vmax.f32 %v3804, 0.0
  %v3845 = vmax.f32 %v3809, 0.0
  %v3846 = vmax.f32 %v3812, 0.0
  %v3847 = vpack.c.bf16 %v3816, %v3815
  %v3848 = vpack.c.bf16 %v3818, %v3817
  %v3849 = vpack.c.bf16 %v3820, %v3819
  %v3850 = vpack.c.bf16 %v3822, %v3821
  %v3851 = vpack.c.bf16 %v3824, %v3823
  %v3852 = vpack.c.bf16 %v3826, %v3825
  %v3853 = vpack.c.bf16 %v3828, %v3827
  %v3854 = vpack.c.bf16 %v3830, %v3829
  %v3855 = vpack.c.bf16 %v3832, %v3831
  %v3856 = vpack.c.bf16 %v3834, %v3833
  %v3857 = vpack.c.bf16 %v3836, %v3835
  %v3858 = vpack.c.bf16 %v3838, %v3837
  %v3859 = vpack.c.bf16 %v3840, %v3839
  %v3860 = vpack.c.bf16 %v3842, %v3841
  %v3861 = vpack.c.bf16 %v3844, %v3843
  %v3862 = vpack.c.bf16 %v3846, %v3845
  %s3863 = scalar_lea.vmem %s5, 128
  %v3864 = vld [vmem:[%s3863] sm:$0xf]
  %v3865 = vld [vmem:[%s3863 + $0x4] sm:$0xf]
  %v3866 = vld [vmem:[%s3863 + $0x8] sm:$0xf]
  %v3867 = vld [vmem:[%s3863 + $0xc] sm:$0xf]
  %v3868 = vld [vmem:[%s3863 + $0x10] sm:$0xf]
  %v3869 = vld [vmem:[%s3863 + $0x14] sm:$0xf]
  %v3870 = vld [vmem:[%s3863 + $0x18] sm:$0xf]
  %v3871 = vld [vmem:[%s3863 + $0x1c] sm:$0xf]
  %v3872 = vld [vmem:[%s3863 + $0x20] sm:$0xf]
  %v3873 = vld [vmem:[%s3863 + $0x24] sm:$0xf]
  %v3874 = vld [vmem:[%s3863 + $0x28] sm:$0xf]
  %v3875 = vld [vmem:[%s3863 + $0x2c] sm:$0xf]
  %v3876 = vld [vmem:[%s3863 + $0x30] sm:$0xf]
  %v3877 = vld [vmem:[%s3863 + $0x34] sm:$0xf]
  %v3878 = vld [vmem:[%s3863 + $0x38] sm:$0xf]
  %v3879 = vld [vmem:[%s3863 + $0x3c] sm:$0xf]
  %v3896 = vunpack.c.l.b16 %v3864
  %v3897 = vunpack.c.l.b16 %v3865
  %v3898 = vunpack.c.l.b16 %v3866
  %v3899 = vunpack.c.l.b16 %v3867
  %v3900 = vunpack.c.l.b16 %v3868
  %v3901 = vunpack.c.l.b16 %v3869
  %v3902 = vunpack.c.l.b16 %v3870
  %v3903 = vunpack.c.l.b16 %v3871
  %v3904 = vunpack.c.l.b16 %v3872
  %v3905 = vunpack.c.l.b16 %v3873
  %v3906 = vunpack.c.l.b16 %v3874
  %v3907 = vunpack.c.l.b16 %v3875
  %v3908 = vunpack.c.l.b16 %v3876
  %v3909 = vunpack.c.l.b16 %v3877
  %v3910 = vunpack.c.l.b16 %v3878
  %v3911 = vunpack.c.l.b16 %v3879
  %v3912 = vpack.c.b16 %v3897, %v3896
  %v3913 = vpack.c.b16 %v3899, %v3898
  %v3914 = vpack.c.b16 %v3901, %v3900
  %v3915 = vpack.c.b16 %v3903, %v3902
  %v3916 = vpack.c.b16 %v3905, %v3904
  %v3917 = vpack.c.b16 %v3907, %v3906
  %v3918 = vpack.c.b16 %v3909, %v3908
  %v3919 = vpack.c.b16 %v3911, %v3910
  %3928 = vmatprep.subr.bf16.mxu0 0
  %3929 = vmatpush1.bf16.msra.mxu0 %v3919
  %3930 = vmatprep.subr.bf16.mxu0 0
  %3931 = vmatpush1.bf16.msra.mxu0 %v3918
  %3932 = vmatprep.subr.bf16.mxu0 0
  %3933 = vmatpush1.bf16.msra.mxu0 %v3917
  %3934 = vmatprep.subr.bf16.mxu0 0
  %3935 = vmatpush1.bf16.msra.mxu0 %v3916
  %3936 = vmatprep.subr.bf16.mxu0 0
  %3937 = vmatpush1.bf16.msra.mxu0 %v3915
  %3938 = vmatprep.subr.bf16.mxu0 0
  %3939 = vmatpush1.bf16.msra.mxu0 %v3914
  %3940 = vmatprep.subr.bf16.mxu0 0
  %3941 = vmatpush1.bf16.msra.mxu0 %v3913
  %3942 = vmatprep.subr.bf16.mxu0 0
  %3943 = vmatpush1.bf16.msra.mxu0 %v3912
  %3944 = vmatprep.subr.bf16.mxu0 0
  %3945 = vmatpush2.bf16.msra.mxu0 0
  %3946 = vmatprep.subr.bf16.mxu0 0
  %3947 = vmatpush2.bf16.msra.mxu0 0
  %3948 = vmatprep.subr.bf16.mxu0 0
  %3949 = vmatpush2.bf16.msra.mxu0 0
  %3950 = vmatprep.subr.bf16.mxu0 0
  %3951 = vmatpush2.bf16.msra.mxu0 0
  %3952 = vmatprep.subr.bf16.mxu0 0
  %3953 = vmatpush2.bf16.msra.mxu0 0
  %3954 = vmatprep.subr.bf16.mxu0 0
  %3955 = vmatpush2.bf16.msra.mxu0 0
  %3956 = vmatprep.subr.bf16.mxu0 0
  %3957 = vmatpush2.bf16.msra.mxu0 0
  %3958 = vmatprep.subr.bf16.mxu0 0
  %3959 = vmatpush2.bf16.msra.mxu0 0
  %3960 = vmatprep.mubr.bf16.mxu0 0
  %3961 = vmatmul.mubr.bf16.gmra.mxu0 %v3847
  %v3962 = vpop.f32.mrf.mxu0
  %v3963 = vadd.f32 0.0, %v3962
  %v3964 = vpop.f32.mrf.mxu0
  %v3965 = vpop.f32.mrf.mxu0
  %v3966 = vadd.f32 0.0, %v3965
  %v3967 = vpop.f32.mrf.mxu0
  %3968 = vmatprep.mubr.bf16.mxu0 0
  %3969 = vmatmul.mubr.bf16.gmra.mxu0 %v3848
  %v3970 = vpop.f32.mrf.mxu0
  %v3971 = vadd.f32 0.0, %v3970
  %v3972 = vpop.f32.mrf.mxu0
  %v3973 = vpop.f32.mrf.mxu0
  %v3974 = vadd.f32 0.0, %v3973
  %v3975 = vpop.f32.mrf.mxu0
  %3976 = vmatprep.mubr.bf16.mxu0 0
  %3977 = vmatmul.mubr.bf16.gmra.mxu0 %v3849
  %v3978 = vpop.f32.mrf.mxu0
  %v3979 = vadd.f32 0.0, %v3978
  %v3980 = vpop.f32.mrf.mxu0
  %v3981 = vpop.f32.mrf.mxu0
  %v3982 = vadd.f32 0.0, %v3981
  %v3983 = vpop.f32.mrf.mxu0
  %3984 = vmatprep.mubr.bf16.mxu0 0
  %3985 = vmatmul.mubr.bf16.gmra.mxu0 %v3850
  %v3986 = vpop.f32.mrf.mxu0
  %v3987 = vadd.f32 0.0, %v3986
  %v3988 = vpop.f32.mrf.mxu0
  %v3989 = vpop.f32.mrf.mxu0
  %v3990 = vadd.f32 0.0, %v3989
  %v3991 = vpop.f32.mrf.mxu0
  %3992 = vmatprep.mubr.bf16.mxu0 0
  %3993 = vmatmul.mubr.bf16.gmra.mxu0 %v3851
  %v3994 = vpop.f32.mrf.mxu0
  %v3995 = vadd.f32 0.0, %v3994
  %v3996 = vpop.f32.mrf.mxu0
  %v3997 = vpop.f32.mrf.mxu0
  %v3998 = vadd.f32 0.0, %v3997
  %v3999 = vpop.f32.mrf.mxu0
  %4000 = vmatprep.mubr.bf16.mxu0 0
  %4001 = vmatmul.mubr.bf16.gmra.mxu0 %v3852
  %v4002 = vpop.f32.mrf.mxu0
  %v4003 = vadd.f32 0.0, %v4002
  %v4004 = vpop.f32.mrf.mxu0
  %v4005 = vpop.f32.mrf.mxu0
  %v4006 = vadd.f32 0.0, %v4005
  %v4007 = vpop.f32.mrf.mxu0
  %4008 = vmatprep.mubr.bf16.mxu0 0
  %4009 = vmatmul.mubr.bf16.gmra.mxu0 %v3853
  %v4010 = vpop.f32.mrf.mxu0
  %v4011 = vadd.f32 0.0, %v4010
  %v4012 = vpop.f32.mrf.mxu0
  %v4013 = vpop.f32.mrf.mxu0
  %v4014 = vadd.f32 0.0, %v4013
  %v4015 = vpop.f32.mrf.mxu0
  %4016 = vmatprep.mubr.bf16.mxu0 0
  %4017 = vmatmul.mubr.bf16.gmra.mxu0 %v3854
  %v4018 = vpop.f32.mrf.mxu0
  %v4019 = vadd.f32 0.0, %v4018
  %v4020 = vpop.f32.mrf.mxu0
  %v4021 = vpop.f32.mrf.mxu0
  %v4022 = vadd.f32 0.0, %v4021
  %v4023 = vpop.f32.mrf.mxu0
  %4024 = vmatprep.mubr.bf16.mxu0 0
  %4025 = vmatmul.mubr.bf16.gmra.mxu0 %v3855
  %v4026 = vpop.f32.mrf.mxu0
  %v4027 = vadd.f32 0.0, %v4026
  %v4028 = vpop.f32.mrf.mxu0
  %v4029 = vpop.f32.mrf.mxu0
  %v4030 = vadd.f32 0.0, %v4029
  %v4031 = vpop.f32.mrf.mxu0
  %4032 = vmatprep.mubr.bf16.mxu0 0
  %4033 = vmatmul.mubr.bf16.gmra.mxu0 %v3856
  %v4034 = vpop.f32.mrf.mxu0
  %v4035 = vadd.f32 0.0, %v4034
  %v4036 = vpop.f32.mrf.mxu0
  %v4037 = vpop.f32.mrf.mxu0
  %v4038 = vadd.f32 0.0, %v4037
  %v4039 = vpop.f32.mrf.mxu0
  %4040 = vmatprep.mubr.bf16.mxu0 0
  %4041 = vmatmul.mubr.bf16.gmra.mxu0 %v3857
  %v4042 = vpop.f32.mrf.mxu0
  %v4043 = vadd.f32 0.0, %v4042
  %v4044 = vpop.f32.mrf.mxu0
  %v4045 = vpop.f32.mrf.mxu0
  %v4046 = vadd.f32 0.0, %v4045
  %v4047 = vpop.f32.mrf.mxu0
  %4048 = vmatprep.mubr.bf16.mxu0 0
  %4049 = vmatmul.mubr.bf16.gmra.mxu0 %v3858
  %v4050 = vpop.f32.mrf.mxu0
  %v4051 = vadd.f32 0.0, %v4050
  %v4052 = vpop.f32.mrf.mxu0
  %v4053 = vpop.f32.mrf.mxu0
  %v4054 = vadd.f32 0.0, %v4053
  %v4055 = vpop.f32.mrf.mxu0
  %4056 = vmatprep.mubr.bf16.mxu0 0
  %4057 = vmatmul.mubr.bf16.gmra.mxu0 %v3859
  %v4058 = vpop.f32.mrf.mxu0
  %v4059 = vadd.f32 0.0, %v4058
  %v4060 = vpop.f32.mrf.mxu0
  %v4061 = vpop.f32.mrf.mxu0
  %v4062 = vadd.f32 0.0, %v4061
  %v4063 = vpop.f32.mrf.mxu0
  %4064 = vmatprep.mubr.bf16.mxu0 0
  %4065 = vmatmul.mubr.bf16.gmra.mxu0 %v3860
  %v4066 = vpop.f32.mrf.mxu0
  %v4067 = vadd.f32 0.0, %v4066
  %v4068 = vpop.f32.mrf.mxu0
  %v4069 = vpop.f32.mrf.mxu0
  %v4070 = vadd.f32 0.0, %v4069
  %v4071 = vpop.f32.mrf.mxu0
  %4072 = vmatprep.mubr.bf16.mxu0 0
  %4073 = vmatmul.mubr.bf16.gmra.mxu0 %v3861
  %v4074 = vpop.f32.mrf.mxu0
  %v4075 = vadd.f32 0.0, %v4074
  %v4076 = vpop.f32.mrf.mxu0
  %v4077 = vpop.f32.mrf.mxu0
  %v4078 = vadd.f32 0.0, %v4077
  %v4079 = vpop.f32.mrf.mxu0
  %4080 = vmatprep.mubr.bf16.mxu0 0
  %4081 = vmatmul.mubr.bf16.gmra.mxu0 %v3862
  %v4082 = vpop.f32.mrf.mxu0
  %v4083 = vadd.f32 0.0, %v4082
  %v4084 = vpop.f32.mrf.mxu0
  %v4085 = vpop.f32.mrf.mxu0
  %v4086 = vadd.f32 0.0, %v4085
  %v4087 = vpop.f32.mrf.mxu0
  %4088 = vdwg.mxu0
  %v4089 = vadd.f32 %v2786, %v3963
  %v4090 = vadd.f32 %v2787, %v3966
  %v4091 = vadd.f32 %v2788, %v3971
  %v4092 = vadd.f32 %v2789, %v3974
  %v4093 = vadd.f32 %v2790, %v3979
  %v4094 = vadd.f32 %v2791, %v3982
  %v4095 = vadd.f32 %v2792, %v3987
  %v4096 = vadd.f32 %v2793, %v3990
  %v4097 = vadd.f32 %v2794, %v3995
  %v4098 = vadd.f32 %v2795, %v3998
  %v4099 = vadd.f32 %v2796, %v4003
  %v4100 = vadd.f32 %v2797, %v4006
  %v4101 = vadd.f32 %v2798, %v4011
  %v4102 = vadd.f32 %v2799, %v4014
  %v4103 = vadd.f32 %v2800, %v4019
  %v4104 = vadd.f32 %v2801, %v4022
  %v4105 = vadd.f32 %v2802, %v4027
  %v4106 = vadd.f32 %v2803, %v4030
  %v4107 = vadd.f32 %v2804, %v4035
  %v4108 = vadd.f32 %v2805, %v4038
  %v4109 = vadd.f32 %v2806, %v4043
  %v4110 = vadd.f32 %v2807, %v4046
  %v4111 = vadd.f32 %v2808, %v4051
  %v4112 = vadd.f32 %v2809, %v4054
  %v4113 = vadd.f32 %v2810, %v4059
  %v4114 = vadd.f32 %v2811, %v4062
  %v4115 = vadd.f32 %v2812, %v4067
  %v4116 = vadd.f32 %v2813, %v4070
  %v4117 = vadd.f32 %v2814, %v4075
  %v4118 = vadd.f32 %v2815, %v4078
  %v4119 = vadd.f32 %v2816, %v4083
  %v4120 = vadd.f32 %v2817, %v4086
  %s4121 = scalar_lea.vmem %s6, 256
  %v4122 = vld [vmem:[%s4121] sm:$0xf]
  %v4123 = vld [vmem:[%s4121 + $0x4] sm:$0xf]
  %v4124 = vld [vmem:[%s4121 + $0x8] sm:$0xf]
  %v4125 = vld [vmem:[%s4121 + $0xc] sm:$0xf]
  %v4126 = vld [vmem:[%s4121 + $0x10] sm:$0xf]
  %v4127 = vld [vmem:[%s4121 + $0x14] sm:$0xf]
  %v4128 = vld [vmem:[%s4121 + $0x18] sm:$0xf]
  %v4129 = vld [vmem:[%s4121 + $0x1c] sm:$0xf]
  %v4130 = vld [vmem:[%s4121 + $0x20] sm:$0xf]
  %v4131 = vld [vmem:[%s4121 + $0x24] sm:$0xf]
  %v4132 = vld [vmem:[%s4121 + $0x28] sm:$0xf]
  %v4133 = vld [vmem:[%s4121 + $0x2c] sm:$0xf]
  %v4134 = vld [vmem:[%s4121 + $0x30] sm:$0xf]
  %v4135 = vld [vmem:[%s4121 + $0x34] sm:$0xf]
  %v4136 = vld [vmem:[%s4121 + $0x38] sm:$0xf]
  %v4137 = vld [vmem:[%s4121 + $0x3c] sm:$0xf]
  %v4138 = vld [vmem:[%s4121 + $0x40] sm:$0xf]
  %v4139 = vld [vmem:[%s4121 + $0x44] sm:$0xf]
  %v4140 = vld [vmem:[%s4121 + $0x48] sm:$0xf]
  %v4141 = vld [vmem:[%s4121 + $0x4c] sm:$0xf]
  %v4142 = vld [vmem:[%s4121 + $0x50] sm:$0xf]
  %v4143 = vld [vmem:[%s4121 + $0x54] sm:$0xf]
  %v4144 = vld [vmem:[%s4121 + $0x58] sm:$0xf]
  %v4145 = vld [vmem:[%s4121 + $0x5c] sm:$0xf]
  %v4146 = vld [vmem:[%s4121 + $0x60] sm:$0xf]
  %v4147 = vld [vmem:[%s4121 + $0x64] sm:$0xf]
  %v4148 = vld [vmem:[%s4121 + $0x68] sm:$0xf]
  %v4149 = vld [vmem:[%s4121 + $0x6c] sm:$0xf]
  %v4150 = vld [vmem:[%s4121 + $0x70] sm:$0xf]
  %v4151 = vld [vmem:[%s4121 + $0x74] sm:$0xf]
  %v4152 = vld [vmem:[%s4121 + $0x78] sm:$0xf]
  %v4153 = vld [vmem:[%s4121 + $0x7c] sm:$0xf]
  %v4186 = vunpack.c.l.b16 %v4122
  %v4187 = vunpack.c.l.b16 %v4123
  %v4188 = vunpack.c.l.b16 %v4124
  %v4189 = vunpack.c.l.b16 %v4125
  %v4190 = vunpack.c.l.b16 %v4126
  %v4191 = vunpack.c.l.b16 %v4127
  %v4192 = vunpack.c.l.b16 %v4128
  %v4193 = vunpack.c.l.b16 %v4129
  %v4194 = vunpack.c.l.b16 %v4130
  %v4195 = vunpack.c.l.b16 %v4131
  %v4196 = vunpack.c.l.b16 %v4132
  %v4197 = vunpack.c.l.b16 %v4133
  %v4198 = vunpack.c.l.b16 %v4134
  %v4199 = vunpack.c.l.b16 %v4135
  %v4200 = vunpack.c.l.b16 %v4136
  %v4201 = vunpack.c.l.b16 %v4137
  %v4202 = vunpack.c.l.b16 %v4138
  %v4203 = vunpack.c.l.b16 %v4139
  %v4204 = vunpack.c.l.b16 %v4140
  %v4205 = vunpack.c.l.b16 %v4141
  %v4206 = vunpack.c.l.b16 %v4142
  %v4207 = vunpack.c.l.b16 %v4143
  %v4208 = vunpack.c.l.b16 %v4144
  %v4209 = vunpack.c.l.b16 %v4145
  %v4210 = vunpack.c.l.b16 %v4146
  %v4211 = vunpack.c.l.b16 %v4147
  %v4212 = vunpack.c.l.b16 %v4148
  %v4213 = vunpack.c.l.b16 %v4149
  %v4214 = vunpack.c.l.b16 %v4150
  %v4215 = vunpack.c.l.b16 %v4151
  %v4216 = vunpack.c.l.b16 %v4152
  %v4217 = vunpack.c.l.b16 %v4153
  %v4218 = vpack.c.b16 %v4187, %v4186
  %v4219 = vpack.c.b16 %v4189, %v4188
  %v4220 = vpack.c.b16 %v4191, %v4190
  %v4221 = vpack.c.b16 %v4193, %v4192
  %v4222 = vpack.c.b16 %v4195, %v4194
  %v4223 = vpack.c.b16 %v4197, %v4196
  %v4224 = vpack.c.b16 %v4199, %v4198
  %v4225 = vpack.c.b16 %v4201, %v4200
  %v4226 = vpack.c.b16 %v4203, %v4202
  %v4227 = vpack.c.b16 %v4205, %v4204
  %v4228 = vpack.c.b16 %v4207, %v4206
  %v4229 = vpack.c.b16 %v4209, %v4208
  %v4230 = vpack.c.b16 %v4211, %v4210
  %v4231 = vpack.c.b16 %v4213, %v4212
  %v4232 = vpack.c.b16 %v4215, %v4214
  %v4233 = vpack.c.b16 %v4217, %v4216
  %4250 = vmatprep.subr.bf16.mxu0 0
  %4251 = vmatpush1.bf16.msra.mxu0 %v4225
  %4252 = vmatprep.subr.bf16.mxu0 0
  %4253 = vmatpush1.bf16.msra.mxu0 %v4224
  %4254 = vmatprep.subr.bf16.mxu0 0
  %4255 = vmatpush1.bf16.msra.mxu0 %v4223
  %4256 = vmatprep.subr.bf16.mxu0 0
  %4257 = vmatpush1.bf16.msra.mxu0 %v4222
  %4258 = vmatprep.subr.bf16.mxu0 0
  %4259 = vmatpush1.bf16.msra.mxu0 %v4221
  %4260 = vmatprep.subr.bf16.mxu0 0
  %4261 = vmatpush1.bf16.msra.mxu0 %v4220
  %4262 = vmatprep.subr.bf16.mxu0 0
  %4263 = vmatpush1.bf16.msra.mxu0 %v4219
  %4264 = vmatprep.subr.bf16.mxu0 0
  %4265 = vmatpush1.bf16.msra.mxu0 %v4218
  %4266 = vmatprep.subr.bf16.mxu0 0
  %4267 = vmatpush2.bf16.msra.mxu0 %v4233
  %4268 = vmatprep.subr.bf16.mxu0 0
  %4269 = vmatpush2.bf16.msra.mxu0 %v4232
  %4270 = vmatprep.subr.bf16.mxu0 0
  %4271 = vmatpush2.bf16.msra.mxu0 %v4231
  %4272 = vmatprep.subr.bf16.mxu0 0
  %4273 = vmatpush2.bf16.msra.mxu0 %v4230
  %4274 = vmatprep.subr.bf16.mxu0 0
  %4275 = vmatpush2.bf16.msra.mxu0 %v4229
  %4276 = vmatprep.subr.bf16.mxu0 0
  %4277 = vmatpush2.bf16.msra.mxu0 %v4228
  %4278 = vmatprep.subr.bf16.mxu0 0
  %4279 = vmatpush2.bf16.msra.mxu0 %v4227
  %4280 = vmatprep.subr.bf16.mxu0 0
  %4281 = vmatpush2.bf16.msra.mxu0 %v4226
  %4282 = vmatprep.mubr.bf16.mxu0 %v3623
  %4283 = vmatmul.mubr.bf16.gmra.mxu0 %v3622
  %v4284 = vpop.f32.mrf.mxu0
  %v4285 = vadd.f32 0.0, %v4284
  %v4286 = vpop.f32.mrf.mxu0
  %v4287 = vpop.f32.mrf.mxu0
  %v4288 = vadd.f32 0.0, %v4287
  %v4289 = vpop.f32.mrf.mxu0
  %4290 = vmatprep.mubr.bf16.mxu0 %v3625
  %4291 = vmatmul.mubr.bf16.gmra.mxu0 %v3624
  %v4292 = vpop.f32.mrf.mxu0
  %v4293 = vadd.f32 0.0, %v4292
  %v4294 = vpop.f32.mrf.mxu0
  %v4295 = vpop.f32.mrf.mxu0
  %v4296 = vadd.f32 0.0, %v4295
  %v4297 = vpop.f32.mrf.mxu0
  %4298 = vmatprep.mubr.bf16.mxu0 %v3627
  %4299 = vmatmul.mubr.bf16.gmra.mxu0 %v3626
  %v4300 = vpop.f32.mrf.mxu0
  %v4301 = vadd.f32 0.0, %v4300
  %v4302 = vpop.f32.mrf.mxu0
  %v4303 = vpop.f32.mrf.mxu0
  %v4304 = vadd.f32 0.0, %v4303
  %v4305 = vpop.f32.mrf.mxu0
  %4306 = vmatprep.mubr.bf16.mxu0 %v3629
  %4307 = vmatmul.mubr.bf16.gmra.mxu0 %v3628
  %v4308 = vpop.f32.mrf.mxu0
  %v4309 = vadd.f32 0.0, %v4308
  %v4310 = vpop.f32.mrf.mxu0
  %v4311 = vpop.f32.mrf.mxu0
  %v4312 = vadd.f32 0.0, %v4311
  %v4313 = vpop.f32.mrf.mxu0
  %4314 = vmatprep.mubr.bf16.mxu0 %v3631
  %4315 = vmatmul.mubr.bf16.gmra.mxu0 %v3630
  %v4316 = vpop.f32.mrf.mxu0
  %v4317 = vadd.f32 0.0, %v4316
  %v4318 = vpop.f32.mrf.mxu0
  %v4319 = vpop.f32.mrf.mxu0
  %v4320 = vadd.f32 0.0, %v4319
  %v4321 = vpop.f32.mrf.mxu0
  %4322 = vmatprep.mubr.bf16.mxu0 %v3633
  %4323 = vmatmul.mubr.bf16.gmra.mxu0 %v3632
  %v4324 = vpop.f32.mrf.mxu0
  %v4325 = vadd.f32 0.0, %v4324
  %v4326 = vpop.f32.mrf.mxu0
  %v4327 = vpop.f32.mrf.mxu0
  %v4328 = vadd.f32 0.0, %v4327
  %v4329 = vpop.f32.mrf.mxu0
  %4330 = vmatprep.mubr.bf16.mxu0 %v3635
  %4331 = vmatmul.mubr.bf16.gmra.mxu0 %v3634
  %v4332 = vpop.f32.mrf.mxu0
  %v4333 = vadd.f32 0.0, %v4332
  %v4334 = vpop.f32.mrf.mxu0
  %v4335 = vpop.f32.mrf.mxu0
  %v4336 = vadd.f32 0.0, %v4335
  %v4337 = vpop.f32.mrf.mxu0
  %4338 = vmatprep.mubr.bf16.mxu0 %v3637
  %4339 = vmatmul.mubr.bf16.gmra.mxu0 %v3636
  %v4340 = vpop.f32.mrf.mxu0
  %v4341 = vadd.f32 0.0, %v4340
  %v4342 = vpop.f32.mrf.mxu0
  %v4343 = vpop.f32.mrf.mxu0
  %v4344 = vadd.f32 0.0, %v4343
  %v4345 = vpop.f32.mrf.mxu0
  %4346 = vmatprep.mubr.bf16.mxu0 %v3639
  %4347 = vmatmul.mubr.bf16.gmra.mxu0 %v3638
  %v4348 = vpop.f32.mrf.mxu0
  %v4349 = vadd.f32 0.0, %v4348
  %v4350 = vpop.f32.mrf.mxu0
  %v4351 = vpop.f32.mrf.mxu0
  %v4352 = vadd.f32 0.0, %v4351
  %v4353 = vpop.f32.mrf.mxu0
  %4354 = vmatprep.mubr.bf16.mxu0 %v3641
  %4355 = vmatmul.mubr.bf16.gmra.mxu0 %v3640
  %v4356 = vpop.f32.mrf.mxu0
  %v4357 = vadd.f32 0.0, %v4356
  %v4358 = vpop.f32.mrf.mxu0
  %v4359 = vpop.f32.mrf.mxu0
  %v4360 = vadd.f32 0.0, %v4359
  %v4361 = vpop.f32.mrf.mxu0
  %4362 = vmatprep.mubr.bf16.mxu0 %v3643
  %4363 = vmatmul.mubr.bf16.gmra.mxu0 %v3642
  %v4364 = vpop.f32.mrf.mxu0
  %v4365 = vadd.f32 0.0, %v4364
  %v4366 = vpop.f32.mrf.mxu0
  %v4367 = vpop.f32.mrf.mxu0
  %v4368 = vadd.f32 0.0, %v4367
  %v4369 = vpop.f32.mrf.mxu0
  %4370 = vmatprep.mubr.bf16.mxu0 %v3645
  %4371 = vmatmul.mubr.bf16.gmra.mxu0 %v3644
  %v4372 = vpop.f32.mrf.mxu0
  %v4373 = vadd.f32 0.0, %v4372
  %v4374 = vpop.f32.mrf.mxu0
  %v4375 = vpop.f32.mrf.mxu0
  %v4376 = vadd.f32 0.0, %v4375
  %v4377 = vpop.f32.mrf.mxu0
  %4378 = vmatprep.mubr.bf16.mxu0 %v3647
  %4379 = vmatmul.mubr.bf16.gmra.mxu0 %v3646
  %v4380 = vpop.f32.mrf.mxu0
  %v4381 = vadd.f32 0.0, %v4380
  %v4382 = vpop.f32.mrf.mxu0
  %v4383 = vpop.f32.mrf.mxu0
  %v4384 = vadd.f32 0.0, %v4383
  %v4385 = vpop.f32.mrf.mxu0
  %4386 = vmatprep.mubr.bf16.mxu0 %v3649
  %4387 = vmatmul.mubr.bf16.gmra.mxu0 %v3648
  %v4388 = vpop.f32.mrf.mxu0
  %v4389 = vadd.f32 0.0, %v4388
  %v4390 = vpop.f32.mrf.mxu0
  %v4391 = vpop.f32.mrf.mxu0
  %v4392 = vadd.f32 0.0, %v4391
  %v4393 = vpop.f32.mrf.mxu0
  %4394 = vmatprep.mubr.bf16.mxu0 %v3651
  %4395 = vmatmul.mubr.bf16.gmra.mxu0 %v3650
  %v4396 = vpop.f32.mrf.mxu0
  %v4397 = vadd.f32 0.0, %v4396
  %v4398 = vpop.f32.mrf.mxu0
  %v4399 = vpop.f32.mrf.mxu0
  %v4400 = vadd.f32 0.0, %v4399
  %v4401 = vpop.f32.mrf.mxu0
  %4402 = vmatprep.mubr.bf16.mxu0 %v3653
  %4403 = vmatmul.mubr.bf16.gmra.mxu0 %v3652
  %v4404 = vpop.f32.mrf.mxu0
  %v4405 = vadd.f32 0.0, %v4404
  %v4406 = vpop.f32.mrf.mxu0
  %v4407 = vpop.f32.mrf.mxu0
  %v4408 = vadd.f32 0.0, %v4407
  %v4409 = vpop.f32.mrf.mxu0
  %4410 = vdwg.mxu0
  %v4411 = vadd.f32 %v3239, %v4285
  %v4412 = vadd.f32 %v3242, %v4288
  %v4413 = vadd.f32 %v3247, %v4293
  %v4414 = vadd.f32 %v3250, %v4296
  %v4415 = vadd.f32 %v3255, %v4301
  %v4416 = vadd.f32 %v3258, %v4304
  %v4417 = vadd.f32 %v3263, %v4309
  %v4418 = vadd.f32 %v3266, %v4312
  %v4419 = vadd.f32 %v3271, %v4317
  %v4420 = vadd.f32 %v3274, %v4320
  %v4421 = vadd.f32 %v3279, %v4325
  %v4422 = vadd.f32 %v3282, %v4328
  %v4423 = vadd.f32 %v3287, %v4333
  %v4424 = vadd.f32 %v3290, %v4336
  %v4425 = vadd.f32 %v3295, %v4341
  %v4426 = vadd.f32 %v3298, %v4344
  %v4427 = vadd.f32 %v3303, %v4349
  %v4428 = vadd.f32 %v3306, %v4352
  %v4429 = vadd.f32 %v3311, %v4357
  %v4430 = vadd.f32 %v3314, %v4360
  %v4431 = vadd.f32 %v3319, %v4365
  %v4432 = vadd.f32 %v3322, %v4368
  %v4433 = vadd.f32 %v3327, %v4373
  %v4434 = vadd.f32 %v3330, %v4376
  %v4435 = vadd.f32 %v3335, %v4381
  %v4436 = vadd.f32 %v3338, %v4384
  %v4437 = vadd.f32 %v3343, %v4389
  %v4438 = vadd.f32 %v3346, %v4392
  %v4439 = vadd.f32 %v3351, %v4397
  %v4440 = vadd.f32 %v3354, %v4400
  %v4441 = vadd.f32 %v3359, %v4405
  %v4442 = vadd.f32 %v3362, %v4408
  %v4443 = vmul.f32 %v1067, %v1068
  %v4444 = vmul.f32 %v1069, %v1070
  %v4445 = vmul.f32 %v1071, %v1072
  %v4446 = vmul.f32 %v1073, %v1074
  %v4447 = vmul.f32 %v1075, %v1076
  %v4448 = vmul.f32 %v1077, %v1078
  %v4449 = vmul.f32 %v1079, %v1080
  %v4450 = vmul.f32 %v1081, %v1082
  %v4451 = vmul.f32 %v1083, %v1084
  %v4452 = vmul.f32 %v1085, %v1086
  %v4453 = vmul.f32 %v1087, %v1088
  %v4454 = vmul.f32 %v1089, %v1090
  %v4455 = vmul.f32 %v1091, %v1092
  %v4456 = vmul.f32 %v1093, %v1094
  %v4457 = vmul.f32 %v1095, %v1096
  %v4458 = vmul.f32 %v1097, %v1098
  %v4459 = vmul.f32 %v1099, %v1100
  %v4460 = vmul.f32 %v1101, %v1102
  %v4461 = vmul.f32 %v1103, %v1104
  %v4462 = vmul.f32 %v1105, %v1106
  %v4463 = vmul.f32 %v1107, %v1108
  %v4464 = vmul.f32 %v1109, %v1110
  %v4465 = vmul.f32 %v1111, %v1112
  %v4466 = vmul.f32 %v1113, %v1114
  %v4467 = vmul.f32 %v1115, %v1116
  %v4468 = vmul.f32 %v1117, %v1118
  %v4469 = vmul.f32 %v1119, %v1120
  %v4470 = vmul.f32 %v1121, %v1122
  %v4471 = vmul.f32 %v1123, %v1124
  %v4472 = vmul.f32 %v1125, %v1126
  %v4473 = vmul.f32 %v1127, %v1128
  %v4474 = vmul.f32 %v1129, %v1130
  %v4475 = vpack.c.bf16 %v4444, %v4443
  %v4476 = vpack.c.bf16 %v4446, %v4445
  %v4477 = vpack.c.bf16 %v4448, %v4447
  %v4478 = vpack.c.bf16 %v4450, %v4449
  %v4479 = vpack.c.bf16 %v4452, %v4451
  %v4480 = vpack.c.bf16 %v4454, %v4453
  %v4481 = vpack.c.bf16 %v4456, %v4455
  %v4482 = vpack.c.bf16 %v4458, %v4457
  %v4483 = vpack.c.bf16 %v4460, %v4459
  %v4484 = vpack.c.bf16 %v4462, %v4461
  %v4485 = vpack.c.bf16 %v4464, %v4463
  %v4486 = vpack.c.bf16 %v4466, %v4465
  %v4487 = vpack.c.bf16 %v4468, %v4467
  %v4488 = vpack.c.bf16 %v4470, %v4469
  %v4489 = vpack.c.bf16 %v4472, %v4471
  %v4490 = vpack.c.bf16 %v4474, %v4473
  %4491 = vmatprep.subr.bf16.mxu0 0
  %4492 = vmatpush1.bf16.msra.mxu0 %v1539
  %4493 = vmatprep.subr.bf16.mxu0 0
  %4494 = vmatpush1.bf16.msra.mxu0 %v1538
  %4495 = vmatprep.subr.bf16.mxu0 0
  %4496 = vmatpush1.bf16.msra.mxu0 %v1537
  %4497 = vmatprep.subr.bf16.mxu0 0
  %4498 = vmatpush1.bf16.msra.mxu0 %v1536
  %4499 = vmatprep.subr.bf16.mxu0 0
  %4500 = vmatpush1.bf16.msra.mxu0 %v1535
  %4501 = vmatprep.subr.bf16.mxu0 0
  %4502 = vmatpush1.bf16.msra.mxu0 %v1534
  %4503 = vmatprep.subr.bf16.mxu0 0
  %4504 = vmatpush1.bf16.msra.mxu0 %v1533
  %4505 = vmatprep.subr.bf16.mxu0 0
  %4506 = vmatpush1.bf16.msra.mxu0 %v1532
  %4507 = vmatprep.subr.bf16.mxu0 0
  %4508 = vmatpush2.bf16.msra.mxu0 %v1547
  %4509 = vmatprep.subr.bf16.mxu0 0
  %4510 = vmatpush2.bf16.msra.mxu0 %v1546
  %4511 = vmatprep.subr.bf16.mxu0 0
  %4512 = vmatpush2.bf16.msra.mxu0 %v1545
  %4513 = vmatprep.subr.bf16.mxu0 0
  %4514 = vmatpush2.bf16.msra.mxu0 %v1544
  %4515 = vmatprep.subr.bf16.mxu0 0
  %4516 = vmatpush2.bf16.msra.mxu0 %v1543
  %4517 = vmatprep.subr.bf16.mxu0 0
  %4518 = vmatpush2.bf16.msra.mxu0 %v1542
  %4519 = vmatprep.subr.bf16.mxu0 0
  %4520 = vmatpush2.bf16.msra.mxu0 %v1541
  %4521 = vmatprep.subr.bf16.mxu0 0
  %4522 = vmatpush2.bf16.msra.mxu0 %v1540
  %4523 = vmatprep.mubr.bf16.mxu0 %v4475
  %4524 = vmatmul.mubr.bf16.gmra.mxu0 %v4475
  %v4525 = vpop.f32.mrf.mxu0
  %v4526 = vadd.f32 %v1168, %v4525
  %v4527 = vpop.f32.mrf.mxu0
  %v4528 = vpop.f32.mrf.mxu0
  %v4529 = vadd.f32 %v1168, %v4528
  %v4530 = vpop.f32.mrf.mxu0
  %4531 = vmatprep.mubr.bf16.mxu0 %v4476
  %4532 = vmatmul.mubr.bf16.gmra.mxu0 %v4476
  %v4533 = vpop.f32.mrf.mxu0
  %v4534 = vadd.f32 %v1168, %v4533
  %v4535 = vpop.f32.mrf.mxu0
  %v4536 = vpop.f32.mrf.mxu0
  %v4537 = vadd.f32 %v1168, %v4536
  %v4538 = vpop.f32.mrf.mxu0
  %4539 = vmatprep.mubr.bf16.mxu0 %v4477
  %4540 = vmatmul.mubr.bf16.gmra.mxu0 %v4477
  %v4541 = vpop.f32.mrf.mxu0
  %v4542 = vadd.f32 %v1168, %v4541
  %v4543 = vpop.f32.mrf.mxu0
  %v4544 = vpop.f32.mrf.mxu0
  %v4545 = vadd.f32 %v1168, %v4544
  %v4546 = vpop.f32.mrf.mxu0
  %4547 = vmatprep.mubr.bf16.mxu0 %v4478
  %4548 = vmatmul.mubr.bf16.gmra.mxu0 %v4478
  %v4549 = vpop.f32.mrf.mxu0
  %v4550 = vadd.f32 %v1168, %v4549
  %v4551 = vpop.f32.mrf.mxu0
  %v4552 = vpop.f32.mrf.mxu0
  %v4553 = vadd.f32 %v1168, %v4552
  %v4554 = vpop.f32.mrf.mxu0
  %4555 = vmatprep.mubr.bf16.mxu0 %v4479
  %4556 = vmatmul.mubr.bf16.gmra.mxu0 %v4479
  %v4557 = vpop.f32.mrf.mxu0
  %v4558 = vadd.f32 %v1168, %v4557
  %v4559 = vpop.f32.mrf.mxu0
  %v4560 = vpop.f32.mrf.mxu0
  %v4561 = vadd.f32 %v1168, %v4560
  %v4562 = vpop.f32.mrf.mxu0
  %4563 = vmatprep.mubr.bf16.mxu0 %v4480
  %4564 = vmatmul.mubr.bf16.gmra.mxu0 %v4480
  %v4565 = vpop.f32.mrf.mxu0
  %v4566 = vadd.f32 %v1168, %v4565
  %v4567 = vpop.f32.mrf.mxu0
  %v4568 = vpop.f32.mrf.mxu0
  %v4569 = vadd.f32 %v1168, %v4568
  %v4570 = vpop.f32.mrf.mxu0
  %4571 = vmatprep.mubr.bf16.mxu0 %v4481
  %4572 = vmatmul.mubr.bf16.gmra.mxu0 %v4481
  %v4573 = vpop.f32.mrf.mxu0
  %v4574 = vadd.f32 %v1168, %v4573
  %v4575 = vpop.f32.mrf.mxu0
  %v4576 = vpop.f32.mrf.mxu0
  %v4577 = vadd.f32 %v1168, %v4576
  %v4578 = vpop.f32.mrf.mxu0
  %4579 = vmatprep.mubr.bf16.mxu0 %v4482
  %4580 = vmatmul.mubr.bf16.gmra.mxu0 %v4482
  %v4581 = vpop.f32.mrf.mxu0
  %v4582 = vadd.f32 %v1168, %v4581
  %v4583 = vpop.f32.mrf.mxu0
  %v4584 = vpop.f32.mrf.mxu0
  %v4585 = vadd.f32 %v1168, %v4584
  %v4586 = vpop.f32.mrf.mxu0
  %4587 = vmatprep.mubr.bf16.mxu0 %v4483
  %4588 = vmatmul.mubr.bf16.gmra.mxu0 %v4483
  %v4589 = vpop.f32.mrf.mxu0
  %v4590 = vadd.f32 %v1168, %v4589
  %v4591 = vpop.f32.mrf.mxu0
  %v4592 = vpop.f32.mrf.mxu0
  %v4593 = vadd.f32 %v1168, %v4592
  %v4594 = vpop.f32.mrf.mxu0
  %4595 = vmatprep.mubr.bf16.mxu0 %v4484
  %4596 = vmatmul.mubr.bf16.gmra.mxu0 %v4484
  %v4597 = vpop.f32.mrf.mxu0
  %v4598 = vadd.f32 %v1168, %v4597
  %v4599 = vpop.f32.mrf.mxu0
  %v4600 = vpop.f32.mrf.mxu0
  %v4601 = vadd.f32 %v1168, %v4600
  %v4602 = vpop.f32.mrf.mxu0
  %4603 = vmatprep.mubr.bf16.mxu0 %v4485
  %4604 = vmatmul.mubr.bf16.gmra.mxu0 %v4485
  %v4605 = vpop.f32.mrf.mxu0
  %v4606 = vadd.f32 %v1168, %v4605
  %v4607 = vpop.f32.mrf.mxu0
  %v4608 = vpop.f32.mrf.mxu0
  %v4609 = vadd.f32 %v1168, %v4608
  %v4610 = vpop.f32.mrf.mxu0
  %4611 = vmatprep.mubr.bf16.mxu0 %v4486
  %4612 = vmatmul.mubr.bf16.gmra.mxu0 %v4486
  %v4613 = vpop.f32.mrf.mxu0
  %v4614 = vadd.f32 %v1168, %v4613
  %v4615 = vpop.f32.mrf.mxu0
  %v4616 = vpop.f32.mrf.mxu0
  %v4617 = vadd.f32 %v1168, %v4616
  %v4618 = vpop.f32.mrf.mxu0
  %4619 = vmatprep.mubr.bf16.mxu0 %v4487
  %4620 = vmatmul.mubr.bf16.gmra.mxu0 %v4487
  %v4621 = vpop.f32.mrf.mxu0
  %v4622 = vadd.f32 %v1168, %v4621
  %v4623 = vpop.f32.mrf.mxu0
  %v4624 = vpop.f32.mrf.mxu0
  %v4625 = vadd.f32 %v1168, %v4624
  %v4626 = vpop.f32.mrf.mxu0
  %4627 = vmatprep.mubr.bf16.mxu0 %v4488
  %4628 = vmatmul.mubr.bf16.gmra.mxu0 %v4488
  %v4629 = vpop.f32.mrf.mxu0
  %v4630 = vadd.f32 %v1168, %v4629
  %v4631 = vpop.f32.mrf.mxu0
  %v4632 = vpop.f32.mrf.mxu0
  %v4633 = vadd.f32 %v1168, %v4632
  %v4634 = vpop.f32.mrf.mxu0
  %4635 = vmatprep.mubr.bf16.mxu0 %v4489
  %4636 = vmatmul.mubr.bf16.gmra.mxu0 %v4489
  %v4637 = vpop.f32.mrf.mxu0
  %v4638 = vadd.f32 %v1168, %v4637
  %v4639 = vpop.f32.mrf.mxu0
  %v4640 = vpop.f32.mrf.mxu0
  %v4641 = vadd.f32 %v1168, %v4640
  %v4642 = vpop.f32.mrf.mxu0
  %4643 = vmatprep.mubr.bf16.mxu0 %v4490
  %4644 = vmatmul.mubr.bf16.gmra.mxu0 %v4490
  %v4645 = vpop.f32.mrf.mxu0
  %v4646 = vadd.f32 %v1168, %v4645
  %v4647 = vpop.f32.mrf.mxu0
  %v4648 = vpop.f32.mrf.mxu0
  %v4649 = vadd.f32 %v1168, %v4648
  %v4650 = vpop.f32.mrf.mxu0
  %4651 = vdwg.mxu0
  %v4652 = vmax.f32 %v4526, 0.0
  %v4653 = vmax.f32 %v4529, 0.0
  %v4654 = vmax.f32 %v4534, 0.0
  %v4655 = vmax.f32 %v4537, 0.0
  %v4656 = vmax.f32 %v4542, 0.0
  %v4657 = vmax.f32 %v4545, 0.0
  %v4658 = vmax.f32 %v4550, 0.0
  %v4659 = vmax.f32 %v4553, 0.0
  %v4660 = vmax.f32 %v4558, 0.0
  %v4661 = vmax.f32 %v4561, 0.0
  %v4662 = vmax.f32 %v4566, 0.0
  %v4663 = vmax.f32 %v4569, 0.0
  %v4664 = vmax.f32 %v4574, 0.0
  %v4665 = vmax.f32 %v4577, 0.0
  %v4666 = vmax.f32 %v4582, 0.0
  %v4667 = vmax.f32 %v4585, 0.0
  %v4668 = vmax.f32 %v4590, 0.0
  %v4669 = vmax.f32 %v4593, 0.0
  %v4670 = vmax.f32 %v4598, 0.0
  %v4671 = vmax.f32 %v4601, 0.0
  %v4672 = vmax.f32 %v4606, 0.0
  %v4673 = vmax.f32 %v4609, 0.0
  %v4674 = vmax.f32 %v4614, 0.0
  %v4675 = vmax.f32 %v4617, 0.0
  %v4676 = vmax.f32 %v4622, 0.0
  %v4677 = vmax.f32 %v4625, 0.0
  %v4678 = vmax.f32 %v4630, 0.0
  %v4679 = vmax.f32 %v4633, 0.0
  %v4680 = vmax.f32 %v4638, 0.0
  %v4681 = vmax.f32 %v4641, 0.0
  %v4682 = vmax.f32 %v4646, 0.0
  %v4683 = vmax.f32 %v4649, 0.0
  %v4684 = vpack.c.bf16 %v4653, %v4652
  %v4685 = vpack.c.bf16 %v4655, %v4654
  %v4686 = vpack.c.bf16 %v4657, %v4656
  %v4687 = vpack.c.bf16 %v4659, %v4658
  %v4688 = vpack.c.bf16 %v4661, %v4660
  %v4689 = vpack.c.bf16 %v4663, %v4662
  %v4690 = vpack.c.bf16 %v4665, %v4664
  %v4691 = vpack.c.bf16 %v4667, %v4666
  %v4692 = vpack.c.bf16 %v4669, %v4668
  %v4693 = vpack.c.bf16 %v4671, %v4670
  %v4694 = vpack.c.bf16 %v4673, %v4672
  %v4695 = vpack.c.bf16 %v4675, %v4674
  %v4696 = vpack.c.bf16 %v4677, %v4676
  %v4697 = vpack.c.bf16 %v4679, %v4678
  %v4698 = vpack.c.bf16 %v4681, %v4680
  %v4699 = vpack.c.bf16 %v4683, %v4682
  %s4700 = scalar_lea.vmem %s5, 192
  %v4701 = vld [vmem:[%s4700] sm:$0xf]
  %v4702 = vld [vmem:[%s4700 + $0x4] sm:$0xf]
  %v4703 = vld [vmem:[%s4700 + $0x8] sm:$0xf]
  %v4704 = vld [vmem:[%s4700 + $0xc] sm:$0xf]
  %v4705 = vld [vmem:[%s4700 + $0x10] sm:$0xf]
  %v4706 = vld [vmem:[%s4700 + $0x14] sm:$0xf]
  %v4707 = vld [vmem:[%s4700 + $0x18] sm:$0xf]
  %v4708 = vld [vmem:[%s4700 + $0x1c] sm:$0xf]
  %v4709 = vld [vmem:[%s4700 + $0x20] sm:$0xf]
  %v4710 = vld [vmem:[%s4700 + $0x24] sm:$0xf]
  %v4711 = vld [vmem:[%s4700 + $0x28] sm:$0xf]
  %v4712 = vld [vmem:[%s4700 + $0x2c] sm:$0xf]
  %v4713 = vld [vmem:[%s4700 + $0x30] sm:$0xf]
  %v4714 = vld [vmem:[%s4700 + $0x34] sm:$0xf]
  %v4715 = vld [vmem:[%s4700 + $0x38] sm:$0xf]
  %v4716 = vld [vmem:[%s4700 + $0x3c] sm:$0xf]
  %v4733 = vunpack.c.l.b16 %v4701
  %v4734 = vunpack.c.l.b16 %v4702
  %v4735 = vunpack.c.l.b16 %v4703
  %v4736 = vunpack.c.l.b16 %v4704
  %v4737 = vunpack.c.l.b16 %v4705
  %v4738 = vunpack.c.l.b16 %v4706
  %v4739 = vunpack.c.l.b16 %v4707
  %v4740 = vunpack.c.l.b16 %v4708
  %v4741 = vunpack.c.l.b16 %v4709
  %v4742 = vunpack.c.l.b16 %v4710
  %v4743 = vunpack.c.l.b16 %v4711
  %v4744 = vunpack.c.l.b16 %v4712
  %v4745 = vunpack.c.l.b16 %v4713
  %v4746 = vunpack.c.l.b16 %v4714
  %v4747 = vunpack.c.l.b16 %v4715
  %v4748 = vunpack.c.l.b16 %v4716
  %v4749 = vpack.c.b16 %v4734, %v4733
  %v4750 = vpack.c.b16 %v4736, %v4735
  %v4751 = vpack.c.b16 %v4738, %v4737
  %v4752 = vpack.c.b16 %v4740, %v4739
  %v4753 = vpack.c.b16 %v4742, %v4741
  %v4754 = vpack.c.b16 %v4744, %v4743
  %v4755 = vpack.c.b16 %v4746, %v4745
  %v4756 = vpack.c.b16 %v4748, %v4747
  %4765 = vmatprep.subr.bf16.mxu0 0
  %4766 = vmatpush1.bf16.msra.mxu0 %v4756
  %4767 = vmatprep.subr.bf16.mxu0 0
  %4768 = vmatpush1.bf16.msra.mxu0 %v4755
  %4769 = vmatprep.subr.bf16.mxu0 0
  %4770 = vmatpush1.bf16.msra.mxu0 %v4754
  %4771 = vmatprep.subr.bf16.mxu0 0
  %4772 = vmatpush1.bf16.msra.mxu0 %v4753
  %4773 = vmatprep.subr.bf16.mxu0 0
  %4774 = vmatpush1.bf16.msra.mxu0 %v4752
  %4775 = vmatprep.subr.bf16.mxu0 0
  %4776 = vmatpush1.bf16.msra.mxu0 %v4751
  %4777 = vmatprep.subr.bf16.mxu0 0
  %4778 = vmatpush1.bf16.msra.mxu0 %v4750
  %4779 = vmatprep.subr.bf16.mxu0 0
  %4780 = vmatpush1.bf16.msra.mxu0 %v4749
  %4781 = vmatprep.subr.bf16.mxu0 0
  %4782 = vmatpush2.bf16.msra.mxu0 0
  %4783 = vmatprep.subr.bf16.mxu0 0
  %4784 = vmatpush2.bf16.msra.mxu0 0
  %4785 = vmatprep.subr.bf16.mxu0 0
  %4786 = vmatpush2.bf16.msra.mxu0 0
  %4787 = vmatprep.subr.bf16.mxu0 0
  %4788 = vmatpush2.bf16.msra.mxu0 0
  %4789 = vmatprep.subr.bf16.mxu0 0
  %4790 = vmatpush2.bf16.msra.mxu0 0
  %4791 = vmatprep.subr.bf16.mxu0 0
  %4792 = vmatpush2.bf16.msra.mxu0 0
  %4793 = vmatprep.subr.bf16.mxu0 0
  %4794 = vmatpush2.bf16.msra.mxu0 0
  %4795 = vmatprep.subr.bf16.mxu0 0
  %4796 = vmatpush2.bf16.msra.mxu0 0
  %4797 = vmatprep.mubr.bf16.mxu0 0
  %4798 = vmatmul.mubr.bf16.gmra.mxu0 %v4684
  %v4799 = vpop.f32.mrf.mxu0
  %v4800 = vadd.f32 0.0, %v4799
  %v4801 = vpop.f32.mrf.mxu0
  %v4802 = vpop.f32.mrf.mxu0
  %v4803 = vadd.f32 0.0, %v4802
  %v4804 = vpop.f32.mrf.mxu0
  %4805 = vmatprep.mubr.bf16.mxu0 0
  %4806 = vmatmul.mubr.bf16.gmra.mxu0 %v4685
  %v4807 = vpop.f32.mrf.mxu0
  %v4808 = vadd.f32 0.0, %v4807
  %v4809 = vpop.f32.mrf.mxu0
  %v4810 = vpop.f32.mrf.mxu0
  %v4811 = vadd.f32 0.0, %v4810
  %v4812 = vpop.f32.mrf.mxu0
  %4813 = vmatprep.mubr.bf16.mxu0 0
  %4814 = vmatmul.mubr.bf16.gmra.mxu0 %v4686
  %v4815 = vpop.f32.mrf.mxu0
  %v4816 = vadd.f32 0.0, %v4815
  %v4817 = vpop.f32.mrf.mxu0
  %v4818 = vpop.f32.mrf.mxu0
  %v4819 = vadd.f32 0.0, %v4818
  %v4820 = vpop.f32.mrf.mxu0
  %4821 = vmatprep.mubr.bf16.mxu0 0
  %4822 = vmatmul.mubr.bf16.gmra.mxu0 %v4687
  %v4823 = vpop.f32.mrf.mxu0
  %v4824 = vadd.f32 0.0, %v4823
  %v4825 = vpop.f32.mrf.mxu0
  %v4826 = vpop.f32.mrf.mxu0
  %v4827 = vadd.f32 0.0, %v4826
  %v4828 = vpop.f32.mrf.mxu0
  %4829 = vmatprep.mubr.bf16.mxu0 0
  %4830 = vmatmul.mubr.bf16.gmra.mxu0 %v4688
  %v4831 = vpop.f32.mrf.mxu0
  %v4832 = vadd.f32 0.0, %v4831
  %v4833 = vpop.f32.mrf.mxu0
  %v4834 = vpop.f32.mrf.mxu0
  %v4835 = vadd.f32 0.0, %v4834
  %v4836 = vpop.f32.mrf.mxu0
  %4837 = vmatprep.mubr.bf16.mxu0 0
  %4838 = vmatmul.mubr.bf16.gmra.mxu0 %v4689
  %v4839 = vpop.f32.mrf.mxu0
  %v4840 = vadd.f32 0.0, %v4839
  %v4841 = vpop.f32.mrf.mxu0
  %v4842 = vpop.f32.mrf.mxu0
  %v4843 = vadd.f32 0.0, %v4842
  %v4844 = vpop.f32.mrf.mxu0
  %4845 = vmatprep.mubr.bf16.mxu0 0
  %4846 = vmatmul.mubr.bf16.gmra.mxu0 %v4690
  %v4847 = vpop.f32.mrf.mxu0
  %v4848 = vadd.f32 0.0, %v4847
  %v4849 = vpop.f32.mrf.mxu0
  %v4850 = vpop.f32.mrf.mxu0
  %v4851 = vadd.f32 0.0, %v4850
  %v4852 = vpop.f32.mrf.mxu0
  %4853 = vmatprep.mubr.bf16.mxu0 0
  %4854 = vmatmul.mubr.bf16.gmra.mxu0 %v4691
  %v4855 = vpop.f32.mrf.mxu0
  %v4856 = vadd.f32 0.0, %v4855
  %v4857 = vpop.f32.mrf.mxu0
  %v4858 = vpop.f32.mrf.mxu0
  %v4859 = vadd.f32 0.0, %v4858
  %v4860 = vpop.f32.mrf.mxu0
  %4861 = vmatprep.mubr.bf16.mxu0 0
  %4862 = vmatmul.mubr.bf16.gmra.mxu0 %v4692
  %v4863 = vpop.f32.mrf.mxu0
  %v4864 = vadd.f32 0.0, %v4863
  %v4865 = vpop.f32.mrf.mxu0
  %v4866 = vpop.f32.mrf.mxu0
  %v4867 = vadd.f32 0.0, %v4866
  %v4868 = vpop.f32.mrf.mxu0
  %4869 = vmatprep.mubr.bf16.mxu0 0
  %4870 = vmatmul.mubr.bf16.gmra.mxu0 %v4693
  %v4871 = vpop.f32.mrf.mxu0
  %v4872 = vadd.f32 0.0, %v4871
  %v4873 = vpop.f32.mrf.mxu0
  %v4874 = vpop.f32.mrf.mxu0
  %v4875 = vadd.f32 0.0, %v4874
  %v4876 = vpop.f32.mrf.mxu0
  %4877 = vmatprep.mubr.bf16.mxu0 0
  %4878 = vmatmul.mubr.bf16.gmra.mxu0 %v4694
  %v4879 = vpop.f32.mrf.mxu0
  %v4880 = vadd.f32 0.0, %v4879
  %v4881 = vpop.f32.mrf.mxu0
  %v4882 = vpop.f32.mrf.mxu0
  %v4883 = vadd.f32 0.0, %v4882
  %v4884 = vpop.f32.mrf.mxu0
  %4885 = vmatprep.mubr.bf16.mxu0 0
  %4886 = vmatmul.mubr.bf16.gmra.mxu0 %v4695
  %v4887 = vpop.f32.mrf.mxu0
  %v4888 = vadd.f32 0.0, %v4887
  %v4889 = vpop.f32.mrf.mxu0
  %v4890 = vpop.f32.mrf.mxu0
  %v4891 = vadd.f32 0.0, %v4890
  %v4892 = vpop.f32.mrf.mxu0
  %4893 = vmatprep.mubr.bf16.mxu0 0
  %4894 = vmatmul.mubr.bf16.gmra.mxu0 %v4696
  %v4895 = vpop.f32.mrf.mxu0
  %v4896 = vadd.f32 0.0, %v4895
  %v4897 = vpop.f32.mrf.mxu0
  %v4898 = vpop.f32.mrf.mxu0
  %v4899 = vadd.f32 0.0, %v4898
  %v4900 = vpop.f32.mrf.mxu0
  %4901 = vmatprep.mubr.bf16.mxu0 0
  %4902 = vmatmul.mubr.bf16.gmra.mxu0 %v4697
  %v4903 = vpop.f32.mrf.mxu0
  %v4904 = vadd.f32 0.0, %v4903
  %v4905 = vpop.f32.mrf.mxu0
  %v4906 = vpop.f32.mrf.mxu0
  %v4907 = vadd.f32 0.0, %v4906
  %v4908 = vpop.f32.mrf.mxu0
  %4909 = vmatprep.mubr.bf16.mxu0 0
  %4910 = vmatmul.mubr.bf16.gmra.mxu0 %v4698
  %v4911 = vpop.f32.mrf.mxu0
  %v4912 = vadd.f32 0.0, %v4911
  %v4913 = vpop.f32.mrf.mxu0
  %v4914 = vpop.f32.mrf.mxu0
  %v4915 = vadd.f32 0.0, %v4914
  %v4916 = vpop.f32.mrf.mxu0
  %4917 = vmatprep.mubr.bf16.mxu0 0
  %4918 = vmatmul.mubr.bf16.gmra.mxu0 %v4699
  %v4919 = vpop.f32.mrf.mxu0
  %v4920 = vadd.f32 0.0, %v4919
  %v4921 = vpop.f32.mrf.mxu0
  %v4922 = vpop.f32.mrf.mxu0
  %v4923 = vadd.f32 0.0, %v4922
  %v4924 = vpop.f32.mrf.mxu0
  %4925 = vdwg.mxu0
  %v4926 = vadd.f32 %v4089, %v4800
  %v4927 = vadd.f32 %v4090, %v4803
  %v4928 = vadd.f32 %v4091, %v4808
  %v4929 = vadd.f32 %v4092, %v4811
  %v4930 = vadd.f32 %v4093, %v4816
  %v4931 = vadd.f32 %v4094, %v4819
  %v4932 = vadd.f32 %v4095, %v4824
  %v4933 = vadd.f32 %v4096, %v4827
  %v4934 = vadd.f32 %v4097, %v4832
  %v4935 = vadd.f32 %v4098, %v4835
  %v4936 = vadd.f32 %v4099, %v4840
  %v4937 = vadd.f32 %v4100, %v4843
  %v4938 = vadd.f32 %v4101, %v4848
  %v4939 = vadd.f32 %v4102, %v4851
  %v4940 = vadd.f32 %v4103, %v4856
  %v4941 = vadd.f32 %v4104, %v4859
  %v4942 = vadd.f32 %v4105, %v4864
  %v4943 = vadd.f32 %v4106, %v4867
  %v4944 = vadd.f32 %v4107, %v4872
  %v4945 = vadd.f32 %v4108, %v4875
  %v4946 = vadd.f32 %v4109, %v4880
  %v4947 = vadd.f32 %v4110, %v4883
  %v4948 = vadd.f32 %v4111, %v4888
  %v4949 = vadd.f32 %v4112, %v4891
  %v4950 = vadd.f32 %v4113, %v4896
  %v4951 = vadd.f32 %v4114, %v4899
  %v4952 = vadd.f32 %v4115, %v4904
  %v4953 = vadd.f32 %v4116, %v4907
  %v4954 = vadd.f32 %v4117, %v4912
  %v4955 = vadd.f32 %v4118, %v4915
  %v4956 = vadd.f32 %v4119, %v4920
  %v4957 = vadd.f32 %v4120, %v4923
  %s4958 = scalar_lea.vmem %s6, 384
  %v4959 = vld [vmem:[%s4958] sm:$0xf]
  %v4960 = vld [vmem:[%s4958 + $0x4] sm:$0xf]
  %v4961 = vld [vmem:[%s4958 + $0x8] sm:$0xf]
  %v4962 = vld [vmem:[%s4958 + $0xc] sm:$0xf]
  %v4963 = vld [vmem:[%s4958 + $0x10] sm:$0xf]
  %v4964 = vld [vmem:[%s4958 + $0x14] sm:$0xf]
  %v4965 = vld [vmem:[%s4958 + $0x18] sm:$0xf]
  %v4966 = vld [vmem:[%s4958 + $0x1c] sm:$0xf]
  %v4967 = vld [vmem:[%s4958 + $0x20] sm:$0xf]
  %v4968 = vld [vmem:[%s4958 + $0x24] sm:$0xf]
  %v4969 = vld [vmem:[%s4958 + $0x28] sm:$0xf]
  %v4970 = vld [vmem:[%s4958 + $0x2c] sm:$0xf]
  %v4971 = vld [vmem:[%s4958 + $0x30] sm:$0xf]
  %v4972 = vld [vmem:[%s4958 + $0x34] sm:$0xf]
  %v4973 = vld [vmem:[%s4958 + $0x38] sm:$0xf]
  %v4974 = vld [vmem:[%s4958 + $0x3c] sm:$0xf]
  %v4975 = vld [vmem:[%s4958 + $0x40] sm:$0xf]
  %v4976 = vld [vmem:[%s4958 + $0x44] sm:$0xf]
  %v4977 = vld [vmem:[%s4958 + $0x48] sm:$0xf]
  %v4978 = vld [vmem:[%s4958 + $0x4c] sm:$0xf]
  %v4979 = vld [vmem:[%s4958 + $0x50] sm:$0xf]
  %v4980 = vld [vmem:[%s4958 + $0x54] sm:$0xf]
  %v4981 = vld [vmem:[%s4958 + $0x58] sm:$0xf]
  %v4982 = vld [vmem:[%s4958 + $0x5c] sm:$0xf]
  %v4983 = vld [vmem:[%s4958 + $0x60] sm:$0xf]
  %v4984 = vld [vmem:[%s4958 + $0x64] sm:$0xf]
  %v4985 = vld [vmem:[%s4958 + $0x68] sm:$0xf]
  %v4986 = vld [vmem:[%s4958 + $0x6c] sm:$0xf]
  %v4987 = vld [vmem:[%s4958 + $0x70] sm:$0xf]
  %v4988 = vld [vmem:[%s4958 + $0x74] sm:$0xf]
  %v4989 = vld [vmem:[%s4958 + $0x78] sm:$0xf]
  %v4990 = vld [vmem:[%s4958 + $0x7c] sm:$0xf]
  %v5023 = vunpack.c.l.b16 %v4959
  %v5024 = vunpack.c.l.b16 %v4960
  %v5025 = vunpack.c.l.b16 %v4961
  %v5026 = vunpack.c.l.b16 %v4962
  %v5027 = vunpack.c.l.b16 %v4963
  %v5028 = vunpack.c.l.b16 %v4964
  %v5029 = vunpack.c.l.b16 %v4965
  %v5030 = vunpack.c.l.b16 %v4966
  %v5031 = vunpack.c.l.b16 %v4967
  %v5032 = vunpack.c.l.b16 %v4968
  %v5033 = vunpack.c.l.b16 %v4969
  %v5034 = vunpack.c.l.b16 %v4970
  %v5035 = vunpack.c.l.b16 %v4971
  %v5036 = vunpack.c.l.b16 %v4972
  %v5037 = vunpack.c.l.b16 %v4973
  %v5038 = vunpack.c.l.b16 %v4974
  %v5039 = vunpack.c.l.b16 %v4975
  %v5040 = vunpack.c.l.b16 %v4976
  %v5041 = vunpack.c.l.b16 %v4977
  %v5042 = vunpack.c.l.b16 %v4978
  %v5043 = vunpack.c.l.b16 %v4979
  %v5044 = vunpack.c.l.b16 %v4980
  %v5045 = vunpack.c.l.b16 %v4981
  %v5046 = vunpack.c.l.b16 %v4982
  %v5047 = vunpack.c.l.b16 %v4983
  %v5048 = vunpack.c.l.b16 %v4984
  %v5049 = vunpack.c.l.b16 %v4985
  %v5050 = vunpack.c.l.b16 %v4986
  %v5051 = vunpack.c.l.b16 %v4987
  %v5052 = vunpack.c.l.b16 %v4988
  %v5053 = vunpack.c.l.b16 %v4989
  %v5054 = vunpack.c.l.b16 %v4990
  %v5055 = vpack.c.b16 %v5024, %v5023
  %v5056 = vpack.c.b16 %v5026, %v5025
  %v5057 = vpack.c.b16 %v5028, %v5027
  %v5058 = vpack.c.b16 %v5030, %v5029
  %v5059 = vpack.c.b16 %v5032, %v5031
  %v5060 = vpack.c.b16 %v5034, %v5033
  %v5061 = vpack.c.b16 %v5036, %v5035
  %v5062 = vpack.c.b16 %v5038, %v5037
  %v5063 = vpack.c.b16 %v5040, %v5039
  %v5064 = vpack.c.b16 %v5042, %v5041
  %v5065 = vpack.c.b16 %v5044, %v5043
  %v5066 = vpack.c.b16 %v5046, %v5045
  %v5067 = vpack.c.b16 %v5048, %v5047
  %v5068 = vpack.c.b16 %v5050, %v5049
  %v5069 = vpack.c.b16 %v5052, %v5051
  %v5070 = vpack.c.b16 %v5054, %v5053
  %5087 = vmatprep.subr.bf16.mxu0 0
  %5088 = vmatpush1.bf16.msra.mxu0 %v5062
  %5089 = vmatprep.subr.bf16.mxu0 0
  %5090 = vmatpush1.bf16.msra.mxu0 %v5061
  %5091 = vmatprep.subr.bf16.mxu0 0
  %5092 = vmatpush1.bf16.msra.mxu0 %v5060
  %5093 = vmatprep.subr.bf16.mxu0 0
  %5094 = vmatpush1.bf16.msra.mxu0 %v5059
  %5095 = vmatprep.subr.bf16.mxu0 0
  %5096 = vmatpush1.bf16.msra.mxu0 %v5058
  %5097 = vmatprep.subr.bf16.mxu0 0
  %5098 = vmatpush1.bf16.msra.mxu0 %v5057
  %5099 = vmatprep.subr.bf16.mxu0 0
  %5100 = vmatpush1.bf16.msra.mxu0 %v5056
  %5101 = vmatprep.subr.bf16.mxu0 0
  %5102 = vmatpush1.bf16.msra.mxu0 %v5055
  %5103 = vmatprep.subr.bf16.mxu0 0
  %5104 = vmatpush2.bf16.msra.mxu0 %v5070
  %5105 = vmatprep.subr.bf16.mxu0 0
  %5106 = vmatpush2.bf16.msra.mxu0 %v5069
  %5107 = vmatprep.subr.bf16.mxu0 0
  %5108 = vmatpush2.bf16.msra.mxu0 %v5068
  %5109 = vmatprep.subr.bf16.mxu0 0
  %5110 = vmatpush2.bf16.msra.mxu0 %v5067
  %5111 = vmatprep.subr.bf16.mxu0 0
  %5112 = vmatpush2.bf16.msra.mxu0 %v5066
  %5113 = vmatprep.subr.bf16.mxu0 0
  %5114 = vmatpush2.bf16.msra.mxu0 %v5065
  %5115 = vmatprep.subr.bf16.mxu0 0
  %5116 = vmatpush2.bf16.msra.mxu0 %v5064
  %5117 = vmatprep.subr.bf16.mxu0 0
  %5118 = vmatpush2.bf16.msra.mxu0 %v5063
  %5119 = vmatprep.mubr.bf16.mxu0 %v4475
  %5120 = vmatmul.mubr.bf16.gmra.mxu0 %v4475
  %v5121 = vpop.f32.mrf.mxu0
  %v5122 = vadd.f32 0.0, %v5121
  %v5123 = vpop.f32.mrf.mxu0
  %v5124 = vpop.f32.mrf.mxu0
  %v5125 = vadd.f32 0.0, %v5124
  %v5126 = vpop.f32.mrf.mxu0
  %5127 = vmatprep.mubr.bf16.mxu0 %v4476
  %5128 = vmatmul.mubr.bf16.gmra.mxu0 %v4476
  %v5129 = vpop.f32.mrf.mxu0
  %v5130 = vadd.f32 0.0, %v5129
  %v5131 = vpop.f32.mrf.mxu0
  %v5132 = vpop.f32.mrf.mxu0
  %v5133 = vadd.f32 0.0, %v5132
  %v5134 = vpop.f32.mrf.mxu0
  %5135 = vmatprep.mubr.bf16.mxu0 %v4477
  %5136 = vmatmul.mubr.bf16.gmra.mxu0 %v4477
  %v5137 = vpop.f32.mrf.mxu0
  %v5138 = vadd.f32 0.0, %v5137
  %v5139 = vpop.f32.mrf.mxu0
  %v5140 = vpop.f32.mrf.mxu0
  %v5141 = vadd.f32 0.0, %v5140
  %v5142 = vpop.f32.mrf.mxu0
  %5143 = vmatprep.mubr.bf16.mxu0 %v4478
  %5144 = vmatmul.mubr.bf16.gmra.mxu0 %v4478
  %v5145 = vpop.f32.mrf.mxu0
  %v5146 = vadd.f32 0.0, %v5145
  %v5147 = vpop.f32.mrf.mxu0
  %v5148 = vpop.f32.mrf.mxu0
  %v5149 = vadd.f32 0.0, %v5148
  %v5150 = vpop.f32.mrf.mxu0
  %5151 = vmatprep.mubr.bf16.mxu0 %v4479
  %5152 = vmatmul.mubr.bf16.gmra.mxu0 %v4479
  %v5153 = vpop.f32.mrf.mxu0
  %v5154 = vadd.f32 0.0, %v5153
  %v5155 = vpop.f32.mrf.mxu0
  %v5156 = vpop.f32.mrf.mxu0
  %v5157 = vadd.f32 0.0, %v5156
  %v5158 = vpop.f32.mrf.mxu0
  %5159 = vmatprep.mubr.bf16.mxu0 %v4480
  %5160 = vmatmul.mubr.bf16.gmra.mxu0 %v4480
  %v5161 = vpop.f32.mrf.mxu0
  %v5162 = vadd.f32 0.0, %v5161
  %v5163 = vpop.f32.mrf.mxu0
  %v5164 = vpop.f32.mrf.mxu0
  %v5165 = vadd.f32 0.0, %v5164
  %v5166 = vpop.f32.mrf.mxu0
  %5167 = vmatprep.mubr.bf16.mxu0 %v4481
  %5168 = vmatmul.mubr.bf16.gmra.mxu0 %v4481
  %v5169 = vpop.f32.mrf.mxu0
  %v5170 = vadd.f32 0.0, %v5169
  %v5171 = vpop.f32.mrf.mxu0
  %v5172 = vpop.f32.mrf.mxu0
  %v5173 = vadd.f32 0.0, %v5172
  %v5174 = vpop.f32.mrf.mxu0
  %5175 = vmatprep.mubr.bf16.mxu0 %v4482
  %5176 = vmatmul.mubr.bf16.gmra.mxu0 %v4482
  %v5177 = vpop.f32.mrf.mxu0
  %v5178 = vadd.f32 0.0, %v5177
  %v5179 = vpop.f32.mrf.mxu0
  %v5180 = vpop.f32.mrf.mxu0
  %v5181 = vadd.f32 0.0, %v5180
  %v5182 = vpop.f32.mrf.mxu0
  %5183 = vmatprep.mubr.bf16.mxu0 %v4483
  %5184 = vmatmul.mubr.bf16.gmra.mxu0 %v4483
  %v5185 = vpop.f32.mrf.mxu0
  %v5186 = vadd.f32 0.0, %v5185
  %v5187 = vpop.f32.mrf.mxu0
  %v5188 = vpop.f32.mrf.mxu0
  %v5189 = vadd.f32 0.0, %v5188
  %v5190 = vpop.f32.mrf.mxu0
  %5191 = vmatprep.mubr.bf16.mxu0 %v4484
  %5192 = vmatmul.mubr.bf16.gmra.mxu0 %v4484
  %v5193 = vpop.f32.mrf.mxu0
  %v5194 = vadd.f32 0.0, %v5193
  %v5195 = vpop.f32.mrf.mxu0
  %v5196 = vpop.f32.mrf.mxu0
  %v5197 = vadd.f32 0.0, %v5196
  %v5198 = vpop.f32.mrf.mxu0
  %5199 = vmatprep.mubr.bf16.mxu0 %v4485
  %5200 = vmatmul.mubr.bf16.gmra.mxu0 %v4485
  %v5201 = vpop.f32.mrf.mxu0
  %v5202 = vadd.f32 0.0, %v5201
  %v5203 = vpop.f32.mrf.mxu0
  %v5204 = vpop.f32.mrf.mxu0
  %v5205 = vadd.f32 0.0, %v5204
  %v5206 = vpop.f32.mrf.mxu0
  %5207 = vmatprep.mubr.bf16.mxu0 %v4486
  %5208 = vmatmul.mubr.bf16.gmra.mxu0 %v4486
  %v5209 = vpop.f32.mrf.mxu0
  %v5210 = vadd.f32 0.0, %v5209
  %v5211 = vpop.f32.mrf.mxu0
  %v5212 = vpop.f32.mrf.mxu0
  %v5213 = vadd.f32 0.0, %v5212
  %v5214 = vpop.f32.mrf.mxu0
  %5215 = vmatprep.mubr.bf16.mxu0 %v4487
  %5216 = vmatmul.mubr.bf16.gmra.mxu0 %v4487
  %v5217 = vpop.f32.mrf.mxu0
  %v5218 = vadd.f32 0.0, %v5217
  %v5219 = vpop.f32.mrf.mxu0
  %v5220 = vpop.f32.mrf.mxu0
  %v5221 = vadd.f32 0.0, %v5220
  %v5222 = vpop.f32.mrf.mxu0
  %5223 = vmatprep.mubr.bf16.mxu0 %v4488
  %5224 = vmatmul.mubr.bf16.gmra.mxu0 %v4488
  %v5225 = vpop.f32.mrf.mxu0
  %v5226 = vadd.f32 0.0, %v5225
  %v5227 = vpop.f32.mrf.mxu0
  %v5228 = vpop.f32.mrf.mxu0
  %v5229 = vadd.f32 0.0, %v5228
  %v5230 = vpop.f32.mrf.mxu0
  %5231 = vmatprep.mubr.bf16.mxu0 %v4489
  %5232 = vmatmul.mubr.bf16.gmra.mxu0 %v4489
  %v5233 = vpop.f32.mrf.mxu0
  %v5234 = vadd.f32 0.0, %v5233
  %v5235 = vpop.f32.mrf.mxu0
  %v5236 = vpop.f32.mrf.mxu0
  %v5237 = vadd.f32 0.0, %v5236
  %v5238 = vpop.f32.mrf.mxu0
  %5239 = vmatprep.mubr.bf16.mxu0 %v4490
  %5240 = vmatmul.mubr.bf16.gmra.mxu0 %v4490
  %v5241 = vpop.f32.mrf.mxu0
  %v5242 = vadd.f32 0.0, %v5241
  %v5243 = vpop.f32.mrf.mxu0
  %v5244 = vpop.f32.mrf.mxu0
  %v5245 = vadd.f32 0.0, %v5244
  %v5246 = vpop.f32.mrf.mxu0
  %5247 = vdwg.mxu0
  %v5248 = vadd.f32 %v4411, %v5122
  %v5249 = vadd.f32 %v4412, %v5125
  %v5250 = vadd.f32 %v4413, %v5130
  %v5251 = vadd.f32 %v4414, %v5133
  %v5252 = vadd.f32 %v4415, %v5138
  %v5253 = vadd.f32 %v4416, %v5141
  %v5254 = vadd.f32 %v4417, %v5146
  %v5255 = vadd.f32 %v4418, %v5149
  %v5256 = vadd.f32 %v4419, %v5154
  %v5257 = vadd.f32 %v4420, %v5157
  %v5258 = vadd.f32 %v4421, %v5162
  %v5259 = vadd.f32 %v4422, %v5165
  %v5260 = vadd.f32 %v4423, %v5170
  %v5261 = vadd.f32 %v4424, %v5173
  %v5262 = vadd.f32 %v4425, %v5178
  %v5263 = vadd.f32 %v4426, %v5181
  %v5264 = vadd.f32 %v4427, %v5186
  %v5265 = vadd.f32 %v4428, %v5189
  %v5266 = vadd.f32 %v4429, %v5194
  %v5267 = vadd.f32 %v4430, %v5197
  %v5268 = vadd.f32 %v4431, %v5202
  %v5269 = vadd.f32 %v4432, %v5205
  %v5270 = vadd.f32 %v4433, %v5210
  %v5271 = vadd.f32 %v4434, %v5213
  %v5272 = vadd.f32 %v4435, %v5218
  %v5273 = vadd.f32 %v4436, %v5221
  %v5274 = vadd.f32 %v4437, %v5226
  %v5275 = vadd.f32 %v4438, %v5229
  %v5276 = vadd.f32 %v4439, %v5234
  %v5277 = vadd.f32 %v4440, %v5237
  %v5278 = vadd.f32 %v4441, %v5242
  %v5279 = vadd.f32 %v4442, %v5245
  %v5280 = vmul.f32 %v1067, %v1308
  %v5281 = vmul.f32 %v1068, %v1340
  %v5282 = vmul.f32 %v1069, %v1309
  %v5283 = vmul.f32 %v1070, %v1341
  %v5284 = vmul.f32 %v1071, %v1310
  %v5285 = vmul.f32 %v1072, %v1342
  %v5286 = vmul.f32 %v1073, %v1311
  %v5287 = vmul.f32 %v1074, %v1343
  %v5288 = vmul.f32 %v1075, %v1312
  %v5289 = vmul.f32 %v1076, %v1344
  %v5290 = vmul.f32 %v1077, %v1313
  %v5291 = vmul.f32 %v1078, %v1345
  %v5292 = vmul.f32 %v1079, %v1314
  %v5293 = vmul.f32 %v1080, %v1346
  %v5294 = vmul.f32 %v1081, %v1315
  %v5295 = vmul.f32 %v1082, %v1347
  %v5296 = vmul.f32 %v1083, %v1316
  %v5297 = vmul.f32 %v1084, %v1348
  %v5298 = vmul.f32 %v1085, %v1317
  %v5299 = vmul.f32 %v1086, %v1349
  %v5300 = vmul.f32 %v1087, %v1318
  %v5301 = vmul.f32 %v1088, %v1350
  %v5302 = vmul.f32 %v1089, %v1319
  %v5303 = vmul.f32 %v1090, %v1351
  %v5304 = vmul.f32 %v1091, %v1320
  %v5305 = vmul.f32 %v1092, %v1352
  %v5306 = vmul.f32 %v1093, %v1321
  %v5307 = vmul.f32 %v1094, %v1353
  %v5308 = vmul.f32 %v1095, %v1322
  %v5309 = vmul.f32 %v1096, %v1354
  %v5310 = vmul.f32 %v1097, %v1323
  %v5311 = vmul.f32 %v1098, %v1355
  %v5312 = vmul.f32 %v1099, %v1324
  %v5313 = vmul.f32 %v1100, %v1356
  %v5314 = vmul.f32 %v1101, %v1325
  %v5315 = vmul.f32 %v1102, %v1357
  %v5316 = vmul.f32 %v1103, %v1326
  %v5317 = vmul.f32 %v1104, %v1358
  %v5318 = vmul.f32 %v1105, %v1327
  %v5319 = vmul.f32 %v1106, %v1359
  %v5320 = vmul.f32 %v1107, %v1328
  %v5321 = vmul.f32 %v1108, %v1360
  %v5322 = vmul.f32 %v1109, %v1329
  %v5323 = vmul.f32 %v1110, %v1361
  %v5324 = vmul.f32 %v1111, %v1330
  %v5325 = vmul.f32 %v1112, %v1362
  %v5326 = vmul.f32 %v1113, %v1331
  %v5327 = vmul.f32 %v1114, %v1363
  %v5328 = vmul.f32 %v1115, %v1332
  %v5329 = vmul.f32 %v1116, %v1364
  %v5330 = vmul.f32 %v1117, %v1333
  %v5331 = vmul.f32 %v1118, %v1365
  %v5332 = vmul.f32 %v1119, %v1334
  %v5333 = vmul.f32 %v1120, %v1366
  %v5334 = vmul.f32 %v1121, %v1335
  %v5335 = vmul.f32 %v1122, %v1367
  %v5336 = vmul.f32 %v1123, %v1336
  %v5337 = vmul.f32 %v1124, %v1368
  %v5338 = vmul.f32 %v1125, %v1337
  %v5339 = vmul.f32 %v1126, %v1369
  %v5340 = vmul.f32 %v1127, %v1338
  %v5341 = vmul.f32 %v1128, %v1370
  %v5342 = vmul.f32 %v1129, %v1339
  %v5343 = vmul.f32 %v1130, %v1371
  %v5344 = vpack.c.bf16 %v5282, %v5280
  %v5345 = vpack.c.bf16 %v5283, %v5281
  %v5346 = vpack.c.bf16 %v5286, %v5284
  %v5347 = vpack.c.bf16 %v5287, %v5285
  %v5348 = vpack.c.bf16 %v5290, %v5288
  %v5349 = vpack.c.bf16 %v5291, %v5289
  %v5350 = vpack.c.bf16 %v5294, %v5292
  %v5351 = vpack.c.bf16 %v5295, %v5293
  %v5352 = vpack.c.bf16 %v5298, %v5296
  %v5353 = vpack.c.bf16 %v5299, %v5297
  %v5354 = vpack.c.bf16 %v5302, %v5300
  %v5355 = vpack.c.bf16 %v5303, %v5301
  %v5356 = vpack.c.bf16 %v5306, %v5304
  %v5357 = vpack.c.bf16 %v5307, %v5305
  %v5358 = vpack.c.bf16 %v5310, %v5308
  %v5359 = vpack.c.bf16 %v5311, %v5309
  %v5360 = vpack.c.bf16 %v5314, %v5312
  %v5361 = vpack.c.bf16 %v5315, %v5313
  %v5362 = vpack.c.bf16 %v5318, %v5316
  %v5363 = vpack.c.bf16 %v5319, %v5317
  %v5364 = vpack.c.bf16 %v5322, %v5320
  %v5365 = vpack.c.bf16 %v5323, %v5321
  %v5366 = vpack.c.bf16 %v5326, %v5324
  %v5367 = vpack.c.bf16 %v5327, %v5325
  %v5368 = vpack.c.bf16 %v5330, %v5328
  %v5369 = vpack.c.bf16 %v5331, %v5329
  %v5370 = vpack.c.bf16 %v5334, %v5332
  %v5371 = vpack.c.bf16 %v5335, %v5333
  %v5372 = vpack.c.bf16 %v5338, %v5336
  %v5373 = vpack.c.bf16 %v5339, %v5337
  %v5374 = vpack.c.bf16 %v5342, %v5340
  %v5375 = vpack.c.bf16 %v5343, %v5341
  %5376 = vmatprep.subr.bf16.mxu0 0
  %5377 = vmatpush1.bf16.msra.mxu0 %v1539
  %5378 = vmatprep.subr.bf16.mxu0 0
  %5379 = vmatpush1.bf16.msra.mxu0 %v1538
  %5380 = vmatprep.subr.bf16.mxu0 0
  %5381 = vmatpush1.bf16.msra.mxu0 %v1537
  %5382 = vmatprep.subr.bf16.mxu0 0
  %5383 = vmatpush1.bf16.msra.mxu0 %v1536
  %5384 = vmatprep.subr.bf16.mxu0 0
  %5385 = vmatpush1.bf16.msra.mxu0 %v1535
  %5386 = vmatprep.subr.bf16.mxu0 0
  %5387 = vmatpush1.bf16.msra.mxu0 %v1534
  %5388 = vmatprep.subr.bf16.mxu0 0
  %5389 = vmatpush1.bf16.msra.mxu0 %v1533
  %5390 = vmatprep.subr.bf16.mxu0 0
  %5391 = vmatpush1.bf16.msra.mxu0 %v1532
  %5392 = vmatprep.subr.bf16.mxu0 0
  %5393 = vmatpush2.bf16.msra.mxu0 %v1547
  %5394 = vmatprep.subr.bf16.mxu0 0
  %5395 = vmatpush2.bf16.msra.mxu0 %v1546
  %5396 = vmatprep.subr.bf16.mxu0 0
  %5397 = vmatpush2.bf16.msra.mxu0 %v1545
  %5398 = vmatprep.subr.bf16.mxu0 0
  %5399 = vmatpush2.bf16.msra.mxu0 %v1544
  %5400 = vmatprep.subr.bf16.mxu0 0
  %5401 = vmatpush2.bf16.msra.mxu0 %v1543
  %5402 = vmatprep.subr.bf16.mxu0 0
  %5403 = vmatpush2.bf16.msra.mxu0 %v1542
  %5404 = vmatprep.subr.bf16.mxu0 0
  %5405 = vmatpush2.bf16.msra.mxu0 %v1541
  %5406 = vmatprep.subr.bf16.mxu0 0
  %5407 = vmatpush2.bf16.msra.mxu0 %v1540
  %5408 = vmatprep.mubr.bf16.mxu0 %v5345
  %5409 = vmatmul.mubr.bf16.gmra.mxu0 %v5344
  %v5410 = vpop.f32.mrf.mxu0
  %v5411 = vadd.f32 %v1168, %v5410
  %v5412 = vpop.f32.mrf.mxu0
  %v5413 = vpop.f32.mrf.mxu0
  %v5414 = vadd.f32 %v1168, %v5413
  %v5415 = vpop.f32.mrf.mxu0
  %5416 = vmatprep.mubr.bf16.mxu0 %v5347
  %5417 = vmatmul.mubr.bf16.gmra.mxu0 %v5346
  %v5418 = vpop.f32.mrf.mxu0
  %v5419 = vadd.f32 %v1168, %v5418
  %v5420 = vpop.f32.mrf.mxu0
  %v5421 = vpop.f32.mrf.mxu0
  %v5422 = vadd.f32 %v1168, %v5421
  %v5423 = vpop.f32.mrf.mxu0
  %5424 = vmatprep.mubr.bf16.mxu0 %v5349
  %5425 = vmatmul.mubr.bf16.gmra.mxu0 %v5348
  %v5426 = vpop.f32.mrf.mxu0
  %v5427 = vadd.f32 %v1168, %v5426
  %v5428 = vpop.f32.mrf.mxu0
  %v5429 = vpop.f32.mrf.mxu0
  %v5430 = vadd.f32 %v1168, %v5429
  %v5431 = vpop.f32.mrf.mxu0
  %5432 = vmatprep.mubr.bf16.mxu0 %v5351
  %5433 = vmatmul.mubr.bf16.gmra.mxu0 %v5350
  %v5434 = vpop.f32.mrf.mxu0
  %v5435 = vadd.f32 %v1168, %v5434
  %v5436 = vpop.f32.mrf.mxu0
  %v5437 = vpop.f32.mrf.mxu0
  %v5438 = vadd.f32 %v1168, %v5437
  %v5439 = vpop.f32.mrf.mxu0
  %5440 = vmatprep.mubr.bf16.mxu0 %v5353
  %5441 = vmatmul.mubr.bf16.gmra.mxu0 %v5352
  %v5442 = vpop.f32.mrf.mxu0
  %v5443 = vadd.f32 %v1168, %v5442
  %v5444 = vpop.f32.mrf.mxu0
  %v5445 = vpop.f32.mrf.mxu0
  %v5446 = vadd.f32 %v1168, %v5445
  %v5447 = vpop.f32.mrf.mxu0
  %5448 = vmatprep.mubr.bf16.mxu0 %v5355
  %5449 = vmatmul.mubr.bf16.gmra.mxu0 %v5354
  %v5450 = vpop.f32.mrf.mxu0
  %v5451 = vadd.f32 %v1168, %v5450
  %v5452 = vpop.f32.mrf.mxu0
  %v5453 = vpop.f32.mrf.mxu0
  %v5454 = vadd.f32 %v1168, %v5453
  %v5455 = vpop.f32.mrf.mxu0
  %5456 = vmatprep.mubr.bf16.mxu0 %v5357
  %5457 = vmatmul.mubr.bf16.gmra.mxu0 %v5356
  %v5458 = vpop.f32.mrf.mxu0
  %v5459 = vadd.f32 %v1168, %v5458
  %v5460 = vpop.f32.mrf.mxu0
  %v5461 = vpop.f32.mrf.mxu0
  %v5462 = vadd.f32 %v1168, %v5461
  %v5463 = vpop.f32.mrf.mxu0
  %5464 = vmatprep.mubr.bf16.mxu0 %v5359
  %5465 = vmatmul.mubr.bf16.gmra.mxu0 %v5358
  %v5466 = vpop.f32.mrf.mxu0
  %v5467 = vadd.f32 %v1168, %v5466
  %v5468 = vpop.f32.mrf.mxu0
  %v5469 = vpop.f32.mrf.mxu0
  %v5470 = vadd.f32 %v1168, %v5469
  %v5471 = vpop.f32.mrf.mxu0
  %5472 = vmatprep.mubr.bf16.mxu0 %v5361
  %5473 = vmatmul.mubr.bf16.gmra.mxu0 %v5360
  %v5474 = vpop.f32.mrf.mxu0
  %v5475 = vadd.f32 %v1168, %v5474
  %v5476 = vpop.f32.mrf.mxu0
  %v5477 = vpop.f32.mrf.mxu0
  %v5478 = vadd.f32 %v1168, %v5477
  %v5479 = vpop.f32.mrf.mxu0
  %5480 = vmatprep.mubr.bf16.mxu0 %v5363
  %5481 = vmatmul.mubr.bf16.gmra.mxu0 %v5362
  %v5482 = vpop.f32.mrf.mxu0
  %v5483 = vadd.f32 %v1168, %v5482
  %v5484 = vpop.f32.mrf.mxu0
  %v5485 = vpop.f32.mrf.mxu0
  %v5486 = vadd.f32 %v1168, %v5485
  %v5487 = vpop.f32.mrf.mxu0
  %5488 = vmatprep.mubr.bf16.mxu0 %v5365
  %5489 = vmatmul.mubr.bf16.gmra.mxu0 %v5364
  %v5490 = vpop.f32.mrf.mxu0
  %v5491 = vadd.f32 %v1168, %v5490
  %v5492 = vpop.f32.mrf.mxu0
  %v5493 = vpop.f32.mrf.mxu0
  %v5494 = vadd.f32 %v1168, %v5493
  %v5495 = vpop.f32.mrf.mxu0
  %5496 = vmatprep.mubr.bf16.mxu0 %v5367
  %5497 = vmatmul.mubr.bf16.gmra.mxu0 %v5366
  %v5498 = vpop.f32.mrf.mxu0
  %v5499 = vadd.f32 %v1168, %v5498
  %v5500 = vpop.f32.mrf.mxu0
  %v5501 = vpop.f32.mrf.mxu0
  %v5502 = vadd.f32 %v1168, %v5501
  %v5503 = vpop.f32.mrf.mxu0
  %5504 = vmatprep.mubr.bf16.mxu0 %v5369
  %5505 = vmatmul.mubr.bf16.gmra.mxu0 %v5368
  %v5506 = vpop.f32.mrf.mxu0
  %v5507 = vadd.f32 %v1168, %v5506
  %v5508 = vpop.f32.mrf.mxu0
  %v5509 = vpop.f32.mrf.mxu0
  %v5510 = vadd.f32 %v1168, %v5509
  %v5511 = vpop.f32.mrf.mxu0
  %5512 = vmatprep.mubr.bf16.mxu0 %v5371
  %5513 = vmatmul.mubr.bf16.gmra.mxu0 %v5370
  %v5514 = vpop.f32.mrf.mxu0
  %v5515 = vadd.f32 %v1168, %v5514
  %v5516 = vpop.f32.mrf.mxu0
  %v5517 = vpop.f32.mrf.mxu0
  %v5518 = vadd.f32 %v1168, %v5517
  %v5519 = vpop.f32.mrf.mxu0
  %5520 = vmatprep.mubr.bf16.mxu0 %v5373
  %5521 = vmatmul.mubr.bf16.gmra.mxu0 %v5372
  %v5522 = vpop.f32.mrf.mxu0
  %v5523 = vadd.f32 %v1168, %v5522
  %v5524 = vpop.f32.mrf.mxu0
  %v5525 = vpop.f32.mrf.mxu0
  %v5526 = vadd.f32 %v1168, %v5525
  %v5527 = vpop.f32.mrf.mxu0
  %5528 = vmatprep.mubr.bf16.mxu0 %v5375
  %5529 = vmatmul.mubr.bf16.gmra.mxu0 %v5374
  %v5530 = vpop.f32.mrf.mxu0
  %v5531 = vadd.f32 %v1168, %v5530
  %v5532 = vpop.f32.mrf.mxu0
  %v5533 = vpop.f32.mrf.mxu0
  %v5534 = vadd.f32 %v1168, %v5533
  %v5535 = vpop.f32.mrf.mxu0
  %5536 = vdwg.mxu0
  %v5537 = vmax.f32 %v5411, 0.0
  %v5538 = vmax.f32 %v5414, 0.0
  %v5539 = vmax.f32 %v5419, 0.0
  %v5540 = vmax.f32 %v5422, 0.0
  %v5541 = vmax.f32 %v5427, 0.0
  %v5542 = vmax.f32 %v5430, 0.0
  %v5543 = vmax.f32 %v5435, 0.0
  %v5544 = vmax.f32 %v5438, 0.0
  %v5545 = vmax.f32 %v5443, 0.0
  %v5546 = vmax.f32 %v5446, 0.0
  %v5547 = vmax.f32 %v5451, 0.0
  %v5548 = vmax.f32 %v5454, 0.0
  %v5549 = vmax.f32 %v5459, 0.0
  %v5550 = vmax.f32 %v5462, 0.0
  %v5551 = vmax.f32 %v5467, 0.0
  %v5552 = vmax.f32 %v5470, 0.0
  %v5553 = vmax.f32 %v5475, 0.0
  %v5554 = vmax.f32 %v5478, 0.0
  %v5555 = vmax.f32 %v5483, 0.0
  %v5556 = vmax.f32 %v5486, 0.0
  %v5557 = vmax.f32 %v5491, 0.0
  %v5558 = vmax.f32 %v5494, 0.0
  %v5559 = vmax.f32 %v5499, 0.0
  %v5560 = vmax.f32 %v5502, 0.0
  %v5561 = vmax.f32 %v5507, 0.0
  %v5562 = vmax.f32 %v5510, 0.0
  %v5563 = vmax.f32 %v5515, 0.0
  %v5564 = vmax.f32 %v5518, 0.0
  %v5565 = vmax.f32 %v5523, 0.0
  %v5566 = vmax.f32 %v5526, 0.0
  %v5567 = vmax.f32 %v5531, 0.0
  %v5568 = vmax.f32 %v5534, 0.0
  %v5569 = vpack.c.bf16 %v5538, %v5537
  %v5570 = vpack.c.bf16 %v5540, %v5539
  %v5571 = vpack.c.bf16 %v5542, %v5541
  %v5572 = vpack.c.bf16 %v5544, %v5543
  %v5573 = vpack.c.bf16 %v5546, %v5545
  %v5574 = vpack.c.bf16 %v5548, %v5547
  %v5575 = vpack.c.bf16 %v5550, %v5549
  %v5576 = vpack.c.bf16 %v5552, %v5551
  %v5577 = vpack.c.bf16 %v5554, %v5553
  %v5578 = vpack.c.bf16 %v5556, %v5555
  %v5579 = vpack.c.bf16 %v5558, %v5557
  %v5580 = vpack.c.bf16 %v5560, %v5559
  %v5581 = vpack.c.bf16 %v5562, %v5561
  %v5582 = vpack.c.bf16 %v5564, %v5563
  %v5583 = vpack.c.bf16 %v5566, %v5565
  %v5584 = vpack.c.bf16 %v5568, %v5567
  %s5585 = scalar_lea.vmem %s5, 256
  %v5586 = vld [vmem:[%s5585] sm:$0xf]
  %v5587 = vld [vmem:[%s5585 + $0x4] sm:$0xf]
  %v5588 = vld [vmem:[%s5585 + $0x8] sm:$0xf]
  %v5589 = vld [vmem:[%s5585 + $0xc] sm:$0xf]
  %v5590 = vld [vmem:[%s5585 + $0x10] sm:$0xf]
  %v5591 = vld [vmem:[%s5585 + $0x14] sm:$0xf]
  %v5592 = vld [vmem:[%s5585 + $0x18] sm:$0xf]
  %v5593 = vld [vmem:[%s5585 + $0x1c] sm:$0xf]
  %v5594 = vld [vmem:[%s5585 + $0x20] sm:$0xf]
  %v5595 = vld [vmem:[%s5585 + $0x24] sm:$0xf]
  %v5596 = vld [vmem:[%s5585 + $0x28] sm:$0xf]
  %v5597 = vld [vmem:[%s5585 + $0x2c] sm:$0xf]
  %v5598 = vld [vmem:[%s5585 + $0x30] sm:$0xf]
  %v5599 = vld [vmem:[%s5585 + $0x34] sm:$0xf]
  %v5600 = vld [vmem:[%s5585 + $0x38] sm:$0xf]
  %v5601 = vld [vmem:[%s5585 + $0x3c] sm:$0xf]
  %v5618 = vunpack.c.l.b16 %v5586
  %v5619 = vunpack.c.l.b16 %v5587
  %v5620 = vunpack.c.l.b16 %v5588
  %v5621 = vunpack.c.l.b16 %v5589
  %v5622 = vunpack.c.l.b16 %v5590
  %v5623 = vunpack.c.l.b16 %v5591
  %v5624 = vunpack.c.l.b16 %v5592
  %v5625 = vunpack.c.l.b16 %v5593
  %v5626 = vunpack.c.l.b16 %v5594
  %v5627 = vunpack.c.l.b16 %v5595
  %v5628 = vunpack.c.l.b16 %v5596
  %v5629 = vunpack.c.l.b16 %v5597
  %v5630 = vunpack.c.l.b16 %v5598
  %v5631 = vunpack.c.l.b16 %v5599
  %v5632 = vunpack.c.l.b16 %v5600
  %v5633 = vunpack.c.l.b16 %v5601
  %v5634 = vpack.c.b16 %v5619, %v5618
  %v5635 = vpack.c.b16 %v5621, %v5620
  %v5636 = vpack.c.b16 %v5623, %v5622
  %v5637 = vpack.c.b16 %v5625, %v5624
  %v5638 = vpack.c.b16 %v5627, %v5626
  %v5639 = vpack.c.b16 %v5629, %v5628
  %v5640 = vpack.c.b16 %v5631, %v5630
  %v5641 = vpack.c.b16 %v5633, %v5632
  %5650 = vmatprep.subr.bf16.mxu0 0
  %5651 = vmatpush1.bf16.msra.mxu0 %v5641
  %5652 = vmatprep.subr.bf16.mxu0 0
  %5653 = vmatpush1.bf16.msra.mxu0 %v5640
  %5654 = vmatprep.subr.bf16.mxu0 0
  %5655 = vmatpush1.bf16.msra.mxu0 %v5639
  %5656 = vmatprep.subr.bf16.mxu0 0
  %5657 = vmatpush1.bf16.msra.mxu0 %v5638
  %5658 = vmatprep.subr.bf16.mxu0 0
  %5659 = vmatpush1.bf16.msra.mxu0 %v5637
  %5660 = vmatprep.subr.bf16.mxu0 0
  %5661 = vmatpush1.bf16.msra.mxu0 %v5636
  %5662 = vmatprep.subr.bf16.mxu0 0
  %5663 = vmatpush1.bf16.msra.mxu0 %v5635
  %5664 = vmatprep.subr.bf16.mxu0 0
  %5665 = vmatpush1.bf16.msra.mxu0 %v5634
  %5666 = vmatprep.subr.bf16.mxu0 0
  %5667 = vmatpush2.bf16.msra.mxu0 0
  %5668 = vmatprep.subr.bf16.mxu0 0
  %5669 = vmatpush2.bf16.msra.mxu0 0
  %5670 = vmatprep.subr.bf16.mxu0 0
  %5671 = vmatpush2.bf16.msra.mxu0 0
  %5672 = vmatprep.subr.bf16.mxu0 0
  %5673 = vmatpush2.bf16.msra.mxu0 0
  %5674 = vmatprep.subr.bf16.mxu0 0
  %5675 = vmatpush2.bf16.msra.mxu0 0
  %5676 = vmatprep.subr.bf16.mxu0 0
  %5677 = vmatpush2.bf16.msra.mxu0 0
  %5678 = vmatprep.subr.bf16.mxu0 0
  %5679 = vmatpush2.bf16.msra.mxu0 0
  %5680 = vmatprep.subr.bf16.mxu0 0
  %5681 = vmatpush2.bf16.msra.mxu0 0
  %5682 = vmatprep.mubr.bf16.mxu0 0
  %5683 = vmatmul.mubr.bf16.gmra.mxu0 %v5569
  %v5684 = vpop.f32.mrf.mxu0
  %v5685 = vadd.f32 0.0, %v5684
  %v5686 = vpop.f32.mrf.mxu0
  %v5687 = vpop.f32.mrf.mxu0
  %v5688 = vadd.f32 0.0, %v5687
  %v5689 = vpop.f32.mrf.mxu0
  %5690 = vmatprep.mubr.bf16.mxu0 0
  %5691 = vmatmul.mubr.bf16.gmra.mxu0 %v5570
  %v5692 = vpop.f32.mrf.mxu0
  %v5693 = vadd.f32 0.0, %v5692
  %v5694 = vpop.f32.mrf.mxu0
  %v5695 = vpop.f32.mrf.mxu0
  %v5696 = vadd.f32 0.0, %v5695
  %v5697 = vpop.f32.mrf.mxu0
  %5698 = vmatprep.mubr.bf16.mxu0 0
  %5699 = vmatmul.mubr.bf16.gmra.mxu0 %v5571
  %v5700 = vpop.f32.mrf.mxu0
  %v5701 = vadd.f32 0.0, %v5700
  %v5702 = vpop.f32.mrf.mxu0
  %v5703 = vpop.f32.mrf.mxu0
  %v5704 = vadd.f32 0.0, %v5703
  %v5705 = vpop.f32.mrf.mxu0
  %5706 = vmatprep.mubr.bf16.mxu0 0
  %5707 = vmatmul.mubr.bf16.gmra.mxu0 %v5572
  %v5708 = vpop.f32.mrf.mxu0
  %v5709 = vadd.f32 0.0, %v5708
  %v5710 = vpop.f32.mrf.mxu0
  %v5711 = vpop.f32.mrf.mxu0
  %v5712 = vadd.f32 0.0, %v5711
  %v5713 = vpop.f32.mrf.mxu0
  %5714 = vmatprep.mubr.bf16.mxu0 0
  %5715 = vmatmul.mubr.bf16.gmra.mxu0 %v5573
  %v5716 = vpop.f32.mrf.mxu0
  %v5717 = vadd.f32 0.0, %v5716
  %v5718 = vpop.f32.mrf.mxu0
  %v5719 = vpop.f32.mrf.mxu0
  %v5720 = vadd.f32 0.0, %v5719
  %v5721 = vpop.f32.mrf.mxu0
  %5722 = vmatprep.mubr.bf16.mxu0 0
  %5723 = vmatmul.mubr.bf16.gmra.mxu0 %v5574
  %v5724 = vpop.f32.mrf.mxu0
  %v5725 = vadd.f32 0.0, %v5724
  %v5726 = vpop.f32.mrf.mxu0
  %v5727 = vpop.f32.mrf.mxu0
  %v5728 = vadd.f32 0.0, %v5727
  %v5729 = vpop.f32.mrf.mxu0
  %5730 = vmatprep.mubr.bf16.mxu0 0
  %5731 = vmatmul.mubr.bf16.gmra.mxu0 %v5575
  %v5732 = vpop.f32.mrf.mxu0
  %v5733 = vadd.f32 0.0, %v5732
  %v5734 = vpop.f32.mrf.mxu0
  %v5735 = vpop.f32.mrf.mxu0
  %v5736 = vadd.f32 0.0, %v5735
  %v5737 = vpop.f32.mrf.mxu0
  %5738 = vmatprep.mubr.bf16.mxu0 0
  %5739 = vmatmul.mubr.bf16.gmra.mxu0 %v5576
  %v5740 = vpop.f32.mrf.mxu0
  %v5741 = vadd.f32 0.0, %v5740
  %v5742 = vpop.f32.mrf.mxu0
  %v5743 = vpop.f32.mrf.mxu0
  %v5744 = vadd.f32 0.0, %v5743
  %v5745 = vpop.f32.mrf.mxu0
  %5746 = vmatprep.mubr.bf16.mxu0 0
  %5747 = vmatmul.mubr.bf16.gmra.mxu0 %v5577
  %v5748 = vpop.f32.mrf.mxu0
  %v5749 = vadd.f32 0.0, %v5748
  %v5750 = vpop.f32.mrf.mxu0
  %v5751 = vpop.f32.mrf.mxu0
  %v5752 = vadd.f32 0.0, %v5751
  %v5753 = vpop.f32.mrf.mxu0
  %5754 = vmatprep.mubr.bf16.mxu0 0
  %5755 = vmatmul.mubr.bf16.gmra.mxu0 %v5578
  %v5756 = vpop.f32.mrf.mxu0
  %v5757 = vadd.f32 0.0, %v5756
  %v5758 = vpop.f32.mrf.mxu0
  %v5759 = vpop.f32.mrf.mxu0
  %v5760 = vadd.f32 0.0, %v5759
  %v5761 = vpop.f32.mrf.mxu0
  %5762 = vmatprep.mubr.bf16.mxu0 0
  %5763 = vmatmul.mubr.bf16.gmra.mxu0 %v5579
  %v5764 = vpop.f32.mrf.mxu0
  %v5765 = vadd.f32 0.0, %v5764
  %v5766 = vpop.f32.mrf.mxu0
  %v5767 = vpop.f32.mrf.mxu0
  %v5768 = vadd.f32 0.0, %v5767
  %v5769 = vpop.f32.mrf.mxu0
  %5770 = vmatprep.mubr.bf16.mxu0 0
  %5771 = vmatmul.mubr.bf16.gmra.mxu0 %v5580
  %v5772 = vpop.f32.mrf.mxu0
  %v5773 = vadd.f32 0.0, %v5772
  %v5774 = vpop.f32.mrf.mxu0
  %v5775 = vpop.f32.mrf.mxu0
  %v5776 = vadd.f32 0.0, %v5775
  %v5777 = vpop.f32.mrf.mxu0
  %5778 = vmatprep.mubr.bf16.mxu0 0
  %5779 = vmatmul.mubr.bf16.gmra.mxu0 %v5581
  %v5780 = vpop.f32.mrf.mxu0
  %v5781 = vadd.f32 0.0, %v5780
  %v5782 = vpop.f32.mrf.mxu0
  %v5783 = vpop.f32.mrf.mxu0
  %v5784 = vadd.f32 0.0, %v5783
  %v5785 = vpop.f32.mrf.mxu0
  %5786 = vmatprep.mubr.bf16.mxu0 0
  %5787 = vmatmul.mubr.bf16.gmra.mxu0 %v5582
  %v5788 = vpop.f32.mrf.mxu0
  %v5789 = vadd.f32 0.0, %v5788
  %v5790 = vpop.f32.mrf.mxu0
  %v5791 = vpop.f32.mrf.mxu0
  %v5792 = vadd.f32 0.0, %v5791
  %v5793 = vpop.f32.mrf.mxu0
  %5794 = vmatprep.mubr.bf16.mxu0 0
  %5795 = vmatmul.mubr.bf16.gmra.mxu0 %v5583
  %v5796 = vpop.f32.mrf.mxu0
  %v5797 = vadd.f32 0.0, %v5796
  %v5798 = vpop.f32.mrf.mxu0
  %v5799 = vpop.f32.mrf.mxu0
  %v5800 = vadd.f32 0.0, %v5799
  %v5801 = vpop.f32.mrf.mxu0
  %5802 = vmatprep.mubr.bf16.mxu0 0
  %5803 = vmatmul.mubr.bf16.gmra.mxu0 %v5584
  %v5804 = vpop.f32.mrf.mxu0
  %v5805 = vadd.f32 0.0, %v5804
  %v5806 = vpop.f32.mrf.mxu0
  %v5807 = vpop.f32.mrf.mxu0
  %v5808 = vadd.f32 0.0, %v5807
  %v5809 = vpop.f32.mrf.mxu0
  %5810 = vdwg.mxu0
  %v5811 = vadd.f32 %v4926, %v5685
  %v5812 = vadd.f32 %v4927, %v5688
  %v5813 = vadd.f32 %v4928, %v5693
  %v5814 = vadd.f32 %v4929, %v5696
  %v5815 = vadd.f32 %v4930, %v5701
  %v5816 = vadd.f32 %v4931, %v5704
  %v5817 = vadd.f32 %v4932, %v5709
  %v5818 = vadd.f32 %v4933, %v5712
  %v5819 = vadd.f32 %v4934, %v5717
  %v5820 = vadd.f32 %v4935, %v5720
  %v5821 = vadd.f32 %v4936, %v5725
  %v5822 = vadd.f32 %v4937, %v5728
  %v5823 = vadd.f32 %v4938, %v5733
  %v5824 = vadd.f32 %v4939, %v5736
  %v5825 = vadd.f32 %v4940, %v5741
  %v5826 = vadd.f32 %v4941, %v5744
  %v5827 = vadd.f32 %v4942, %v5749
  %v5828 = vadd.f32 %v4943, %v5752
  %v5829 = vadd.f32 %v4944, %v5757
  %v5830 = vadd.f32 %v4945, %v5760
  %v5831 = vadd.f32 %v4946, %v5765
  %v5832 = vadd.f32 %v4947, %v5768
  %v5833 = vadd.f32 %v4948, %v5773
  %v5834 = vadd.f32 %v4949, %v5776
  %v5835 = vadd.f32 %v4950, %v5781
  %v5836 = vadd.f32 %v4951, %v5784
  %v5837 = vadd.f32 %v4952, %v5789
  %v5838 = vadd.f32 %v4953, %v5792
  %v5839 = vadd.f32 %v4954, %v5797
  %v5840 = vadd.f32 %v4955, %v5800
  %v5841 = vadd.f32 %v4956, %v5805
  %v5842 = vadd.f32 %v4957, %v5808
  %s5843 = scalar_lea.vmem %s6, 512
  %v5844 = vld [vmem:[%s5843] sm:$0xf]
  %v5845 = vld [vmem:[%s5843 + $0x4] sm:$0xf]
  %v5846 = vld [vmem:[%s5843 + $0x8] sm:$0xf]
  %v5847 = vld [vmem:[%s5843 + $0xc] sm:$0xf]
  %v5848 = vld [vmem:[%s5843 + $0x10] sm:$0xf]
  %v5849 = vld [vmem:[%s5843 + $0x14] sm:$0xf]
  %v5850 = vld [vmem:[%s5843 + $0x18] sm:$0xf]
  %v5851 = vld [vmem:[%s5843 + $0x1c] sm:$0xf]
  %v5852 = vld [vmem:[%s5843 + $0x20] sm:$0xf]
  %v5853 = vld [vmem:[%s5843 + $0x24] sm:$0xf]
  %v5854 = vld [vmem:[%s5843 + $0x28] sm:$0xf]
  %v5855 = vld [vmem:[%s5843 + $0x2c] sm:$0xf]
  %v5856 = vld [vmem:[%s5843 + $0x30] sm:$0xf]
  %v5857 = vld [vmem:[%s5843 + $0x34] sm:$0xf]
  %v5858 = vld [vmem:[%s5843 + $0x38] sm:$0xf]
  %v5859 = vld [vmem:[%s5843 + $0x3c] sm:$0xf]
  %v5860 = vld [vmem:[%s5843 + $0x40] sm:$0xf]
  %v5861 = vld [vmem:[%s5843 + $0x44] sm:$0xf]
  %v5862 = vld [vmem:[%s5843 + $0x48] sm:$0xf]
  %v5863 = vld [vmem:[%s5843 + $0x4c] sm:$0xf]
  %v5864 = vld [vmem:[%s5843 + $0x50] sm:$0xf]
  %v5865 = vld [vmem:[%s5843 + $0x54] sm:$0xf]
  %v5866 = vld [vmem:[%s5843 + $0x58] sm:$0xf]
  %v5867 = vld [vmem:[%s5843 + $0x5c] sm:$0xf]
  %v5868 = vld [vmem:[%s5843 + $0x60] sm:$0xf]
  %v5869 = vld [vmem:[%s5843 + $0x64] sm:$0xf]
  %v5870 = vld [vmem:[%s5843 + $0x68] sm:$0xf]
  %v5871 = vld [vmem:[%s5843 + $0x6c] sm:$0xf]
  %v5872 = vld [vmem:[%s5843 + $0x70] sm:$0xf]
  %v5873 = vld [vmem:[%s5843 + $0x74] sm:$0xf]
  %v5874 = vld [vmem:[%s5843 + $0x78] sm:$0xf]
  %v5875 = vld [vmem:[%s5843 + $0x7c] sm:$0xf]
  %v5908 = vunpack.c.l.b16 %v5844
  %v5909 = vunpack.c.l.b16 %v5845
  %v5910 = vunpack.c.l.b16 %v5846
  %v5911 = vunpack.c.l.b16 %v5847
  %v5912 = vunpack.c.l.b16 %v5848
  %v5913 = vunpack.c.l.b16 %v5849
  %v5914 = vunpack.c.l.b16 %v5850
  %v5915 = vunpack.c.l.b16 %v5851
  %v5916 = vunpack.c.l.b16 %v5852
  %v5917 = vunpack.c.l.b16 %v5853
  %v5918 = vunpack.c.l.b16 %v5854
  %v5919 = vunpack.c.l.b16 %v5855
  %v5920 = vunpack.c.l.b16 %v5856
  %v5921 = vunpack.c.l.b16 %v5857
  %v5922 = vunpack.c.l.b16 %v5858
  %v5923 = vunpack.c.l.b16 %v5859
  %v5924 = vunpack.c.l.b16 %v5860
  %v5925 = vunpack.c.l.b16 %v5861
  %v5926 = vunpack.c.l.b16 %v5862
  %v5927 = vunpack.c.l.b16 %v5863
  %v5928 = vunpack.c.l.b16 %v5864
  %v5929 = vunpack.c.l.b16 %v5865
  %v5930 = vunpack.c.l.b16 %v5866
  %v5931 = vunpack.c.l.b16 %v5867
  %v5932 = vunpack.c.l.b16 %v5868
  %v5933 = vunpack.c.l.b16 %v5869
  %v5934 = vunpack.c.l.b16 %v5870
  %v5935 = vunpack.c.l.b16 %v5871
  %v5936 = vunpack.c.l.b16 %v5872
  %v5937 = vunpack.c.l.b16 %v5873
  %v5938 = vunpack.c.l.b16 %v5874
  %v5939 = vunpack.c.l.b16 %v5875
  %v5940 = vpack.c.b16 %v5909, %v5908
  %v5941 = vpack.c.b16 %v5911, %v5910
  %v5942 = vpack.c.b16 %v5913, %v5912
  %v5943 = vpack.c.b16 %v5915, %v5914
  %v5944 = vpack.c.b16 %v5917, %v5916
  %v5945 = vpack.c.b16 %v5919, %v5918
  %v5946 = vpack.c.b16 %v5921, %v5920
  %v5947 = vpack.c.b16 %v5923, %v5922
  %v5948 = vpack.c.b16 %v5925, %v5924
  %v5949 = vpack.c.b16 %v5927, %v5926
  %v5950 = vpack.c.b16 %v5929, %v5928
  %v5951 = vpack.c.b16 %v5931, %v5930
  %v5952 = vpack.c.b16 %v5933, %v5932
  %v5953 = vpack.c.b16 %v5935, %v5934
  %v5954 = vpack.c.b16 %v5937, %v5936
  %v5955 = vpack.c.b16 %v5939, %v5938
  %5972 = vmatprep.subr.bf16.mxu0 0
  %5973 = vmatpush1.bf16.msra.mxu0 %v5947
  %5974 = vmatprep.subr.bf16.mxu0 0
  %5975 = vmatpush1.bf16.msra.mxu0 %v5946
  %5976 = vmatprep.subr.bf16.mxu0 0
  %5977 = vmatpush1.bf16.msra.mxu0 %v5945
  %5978 = vmatprep.subr.bf16.mxu0 0
  %5979 = vmatpush1.bf16.msra.mxu0 %v5944
  %5980 = vmatprep.subr.bf16.mxu0 0
  %5981 = vmatpush1.bf16.msra.mxu0 %v5943
  %5982 = vmatprep.subr.bf16.mxu0 0
  %5983 = vmatpush1.bf16.msra.mxu0 %v5942
  %5984 = vmatprep.subr.bf16.mxu0 0
  %5985 = vmatpush1.bf16.msra.mxu0 %v5941
  %5986 = vmatprep.subr.bf16.mxu0 0
  %5987 = vmatpush1.bf16.msra.mxu0 %v5940
  %5988 = vmatprep.subr.bf16.mxu0 0
  %5989 = vmatpush2.bf16.msra.mxu0 %v5955
  %5990 = vmatprep.subr.bf16.mxu0 0
  %5991 = vmatpush2.bf16.msra.mxu0 %v5954
  %5992 = vmatprep.subr.bf16.mxu0 0
  %5993 = vmatpush2.bf16.msra.mxu0 %v5953
  %5994 = vmatprep.subr.bf16.mxu0 0
  %5995 = vmatpush2.bf16.msra.mxu0 %v5952
  %5996 = vmatprep.subr.bf16.mxu0 0
  %5997 = vmatpush2.bf16.msra.mxu0 %v5951
  %5998 = vmatprep.subr.bf16.mxu0 0
  %5999 = vmatpush2.bf16.msra.mxu0 %v5950
  %6000 = vmatprep.subr.bf16.mxu0 0
  %6001 = vmatpush2.bf16.msra.mxu0 %v5949
  %6002 = vmatprep.subr.bf16.mxu0 0
  %6003 = vmatpush2.bf16.msra.mxu0 %v5948
  %6004 = vmatprep.mubr.bf16.mxu0 %v5345
  %6005 = vmatmul.mubr.bf16.gmra.mxu0 %v5344
  %v6006 = vpop.f32.mrf.mxu0
  %v6007 = vadd.f32 0.0, %v6006
  %v6008 = vpop.f32.mrf.mxu0
  %v6009 = vpop.f32.mrf.mxu0
  %v6010 = vadd.f32 0.0, %v6009
  %v6011 = vpop.f32.mrf.mxu0
  %6012 = vmatprep.mubr.bf16.mxu0 %v5347
  %6013 = vmatmul.mubr.bf16.gmra.mxu0 %v5346
  %v6014 = vpop.f32.mrf.mxu0
  %v6015 = vadd.f32 0.0, %v6014
  %v6016 = vpop.f32.mrf.mxu0
  %v6017 = vpop.f32.mrf.mxu0
  %v6018 = vadd.f32 0.0, %v6017
  %v6019 = vpop.f32.mrf.mxu0
  %6020 = vmatprep.mubr.bf16.mxu0 %v5349
  %6021 = vmatmul.mubr.bf16.gmra.mxu0 %v5348
  %v6022 = vpop.f32.mrf.mxu0
  %v6023 = vadd.f32 0.0, %v6022
  %v6024 = vpop.f32.mrf.mxu0
  %v6025 = vpop.f32.mrf.mxu0
  %v6026 = vadd.f32 0.0, %v6025
  %v6027 = vpop.f32.mrf.mxu0
  %6028 = vmatprep.mubr.bf16.mxu0 %v5351
  %6029 = vmatmul.mubr.bf16.gmra.mxu0 %v5350
  %v6030 = vpop.f32.mrf.mxu0
  %v6031 = vadd.f32 0.0, %v6030
  %v6032 = vpop.f32.mrf.mxu0
  %v6033 = vpop.f32.mrf.mxu0
  %v6034 = vadd.f32 0.0, %v6033
  %v6035 = vpop.f32.mrf.mxu0
  %6036 = vmatprep.mubr.bf16.mxu0 %v5353
  %6037 = vmatmul.mubr.bf16.gmra.mxu0 %v5352
  %v6038 = vpop.f32.mrf.mxu0
  %v6039 = vadd.f32 0.0, %v6038
  %v6040 = vpop.f32.mrf.mxu0
  %v6041 = vpop.f32.mrf.mxu0
  %v6042 = vadd.f32 0.0, %v6041
  %v6043 = vpop.f32.mrf.mxu0
  %6044 = vmatprep.mubr.bf16.mxu0 %v5355
  %6045 = vmatmul.mubr.bf16.gmra.mxu0 %v5354
  %v6046 = vpop.f32.mrf.mxu0
  %v6047 = vadd.f32 0.0, %v6046
  %v6048 = vpop.f32.mrf.mxu0
  %v6049 = vpop.f32.mrf.mxu0
  %v6050 = vadd.f32 0.0, %v6049
  %v6051 = vpop.f32.mrf.mxu0
  %6052 = vmatprep.mubr.bf16.mxu0 %v5357
  %6053 = vmatmul.mubr.bf16.gmra.mxu0 %v5356
  %v6054 = vpop.f32.mrf.mxu0
  %v6055 = vadd.f32 0.0, %v6054
  %v6056 = vpop.f32.mrf.mxu0
  %v6057 = vpop.f32.mrf.mxu0
  %v6058 = vadd.f32 0.0, %v6057
  %v6059 = vpop.f32.mrf.mxu0
  %6060 = vmatprep.mubr.bf16.mxu0 %v5359
  %6061 = vmatmul.mubr.bf16.gmra.mxu0 %v5358
  %v6062 = vpop.f32.mrf.mxu0
  %v6063 = vadd.f32 0.0, %v6062
  %v6064 = vpop.f32.mrf.mxu0
  %v6065 = vpop.f32.mrf.mxu0
  %v6066 = vadd.f32 0.0, %v6065
  %v6067 = vpop.f32.mrf.mxu0
  %6068 = vmatprep.mubr.bf16.mxu0 %v5361
  %6069 = vmatmul.mubr.bf16.gmra.mxu0 %v5360
  %v6070 = vpop.f32.mrf.mxu0
  %v6071 = vadd.f32 0.0, %v6070
  %v6072 = vpop.f32.mrf.mxu0
  %v6073 = vpop.f32.mrf.mxu0
  %v6074 = vadd.f32 0.0, %v6073
  %v6075 = vpop.f32.mrf.mxu0
  %6076 = vmatprep.mubr.bf16.mxu0 %v5363
  %6077 = vmatmul.mubr.bf16.gmra.mxu0 %v5362
  %v6078 = vpop.f32.mrf.mxu0
  %v6079 = vadd.f32 0.0, %v6078
  %v6080 = vpop.f32.mrf.mxu0
  %v6081 = vpop.f32.mrf.mxu0
  %v6082 = vadd.f32 0.0, %v6081
  %v6083 = vpop.f32.mrf.mxu0
  %6084 = vmatprep.mubr.bf16.mxu0 %v5365
  %6085 = vmatmul.mubr.bf16.gmra.mxu0 %v5364
  %v6086 = vpop.f32.mrf.mxu0
  %v6087 = vadd.f32 0.0, %v6086
  %v6088 = vpop.f32.mrf.mxu0
  %v6089 = vpop.f32.mrf.mxu0
  %v6090 = vadd.f32 0.0, %v6089
  %v6091 = vpop.f32.mrf.mxu0
  %6092 = vmatprep.mubr.bf16.mxu0 %v5367
  %6093 = vmatmul.mubr.bf16.gmra.mxu0 %v5366
  %v6094 = vpop.f32.mrf.mxu0
  %v6095 = vadd.f32 0.0, %v6094
  %v6096 = vpop.f32.mrf.mxu0
  %v6097 = vpop.f32.mrf.mxu0
  %v6098 = vadd.f32 0.0, %v6097
  %v6099 = vpop.f32.mrf.mxu0
  %6100 = vmatprep.mubr.bf16.mxu0 %v5369
  %6101 = vmatmul.mubr.bf16.gmra.mxu0 %v5368
  %v6102 = vpop.f32.mrf.mxu0
  %v6103 = vadd.f32 0.0, %v6102
  %v6104 = vpop.f32.mrf.mxu0
  %v6105 = vpop.f32.mrf.mxu0
  %v6106 = vadd.f32 0.0, %v6105
  %v6107 = vpop.f32.mrf.mxu0
  %6108 = vmatprep.mubr.bf16.mxu0 %v5371
  %6109 = vmatmul.mubr.bf16.gmra.mxu0 %v5370
  %v6110 = vpop.f32.mrf.mxu0
  %v6111 = vadd.f32 0.0, %v6110
  %v6112 = vpop.f32.mrf.mxu0
  %v6113 = vpop.f32.mrf.mxu0
  %v6114 = vadd.f32 0.0, %v6113
  %v6115 = vpop.f32.mrf.mxu0
  %6116 = vmatprep.mubr.bf16.mxu0 %v5373
  %6117 = vmatmul.mubr.bf16.gmra.mxu0 %v5372
  %v6118 = vpop.f32.mrf.mxu0
  %v6119 = vadd.f32 0.0, %v6118
  %v6120 = vpop.f32.mrf.mxu0
  %v6121 = vpop.f32.mrf.mxu0
  %v6122 = vadd.f32 0.0, %v6121
  %v6123 = vpop.f32.mrf.mxu0
  %6124 = vmatprep.mubr.bf16.mxu0 %v5375
  %6125 = vmatmul.mubr.bf16.gmra.mxu0 %v5374
  %v6126 = vpop.f32.mrf.mxu0
  %v6127 = vadd.f32 0.0, %v6126
  %v6128 = vpop.f32.mrf.mxu0
  %v6129 = vpop.f32.mrf.mxu0
  %v6130 = vadd.f32 0.0, %v6129
  %v6131 = vpop.f32.mrf.mxu0
  %6132 = vdwg.mxu0
  %v6133 = vadd.f32 %v5248, %v6007
  %v6134 = vadd.f32 %v5249, %v6010
  %v6135 = vadd.f32 %v5250, %v6015
  %v6136 = vadd.f32 %v5251, %v6018
  %v6137 = vadd.f32 %v5252, %v6023
  %v6138 = vadd.f32 %v5253, %v6026
  %v6139 = vadd.f32 %v5254, %v6031
  %v6140 = vadd.f32 %v5255, %v6034
  %v6141 = vadd.f32 %v5256, %v6039
  %v6142 = vadd.f32 %v5257, %v6042
  %v6143 = vadd.f32 %v5258, %v6047
  %v6144 = vadd.f32 %v5259, %v6050
  %v6145 = vadd.f32 %v5260, %v6055
  %v6146 = vadd.f32 %v5261, %v6058
  %v6147 = vadd.f32 %v5262, %v6063
  %v6148 = vadd.f32 %v5263, %v6066
  %v6149 = vadd.f32 %v5264, %v6071
  %v6150 = vadd.f32 %v5265, %v6074
  %v6151 = vadd.f32 %v5266, %v6079
  %v6152 = vadd.f32 %v5267, %v6082
  %v6153 = vadd.f32 %v5268, %v6087
  %v6154 = vadd.f32 %v5269, %v6090
  %v6155 = vadd.f32 %v5270, %v6095
  %v6156 = vadd.f32 %v5271, %v6098
  %v6157 = vadd.f32 %v5272, %v6103
  %v6158 = vadd.f32 %v5273, %v6106
  %v6159 = vadd.f32 %v5274, %v6111
  %v6160 = vadd.f32 %v5275, %v6114
  %v6161 = vadd.f32 %v5276, %v6119
  %v6162 = vadd.f32 %v5277, %v6122
  %v6163 = vadd.f32 %v5278, %v6127
  %v6164 = vadd.f32 %v5279, %v6130
  %v6165 = vmul.f32 %v1067, %v2191
  %v6166 = vmul.f32 %v1068, %v2223
  %v6167 = vmul.f32 %v1069, %v2192
  %v6168 = vmul.f32 %v1070, %v2224
  %v6169 = vmul.f32 %v1071, %v2193
  %v6170 = vmul.f32 %v1072, %v2225
  %v6171 = vmul.f32 %v1073, %v2194
  %v6172 = vmul.f32 %v1074, %v2226
  %v6173 = vmul.f32 %v1075, %v2195
  %v6174 = vmul.f32 %v1076, %v2227
  %v6175 = vmul.f32 %v1077, %v2196
  %v6176 = vmul.f32 %v1078, %v2228
  %v6177 = vmul.f32 %v1079, %v2197
  %v6178 = vmul.f32 %v1080, %v2229
  %v6179 = vmul.f32 %v1081, %v2198
  %v6180 = vmul.f32 %v1082, %v2230
  %v6181 = vmul.f32 %v1083, %v2199
  %v6182 = vmul.f32 %v1084, %v2231
  %v6183 = vmul.f32 %v1085, %v2200
  %v6184 = vmul.f32 %v1086, %v2232
  %v6185 = vmul.f32 %v1087, %v2201
  %v6186 = vmul.f32 %v1088, %v2233
  %v6187 = vmul.f32 %v1089, %v2202
  %v6188 = vmul.f32 %v1090, %v2234
  %v6189 = vmul.f32 %v1091, %v2203
  %v6190 = vmul.f32 %v1092, %v2235
  %v6191 = vmul.f32 %v1093, %v2204
  %v6192 = vmul.f32 %v1094, %v2236
  %v6193 = vmul.f32 %v1095, %v2205
  %v6194 = vmul.f32 %v1096, %v2237
  %v6195 = vmul.f32 %v1097, %v2206
  %v6196 = vmul.f32 %v1098, %v2238
  %v6197 = vmul.f32 %v1099, %v2207
  %v6198 = vmul.f32 %v1100, %v2239
  %v6199 = vmul.f32 %v1101, %v2208
  %v6200 = vmul.f32 %v1102, %v2240
  %v6201 = vmul.f32 %v1103, %v2209
  %v6202 = vmul.f32 %v1104, %v2241
  %v6203 = vmul.f32 %v1105, %v2210
  %v6204 = vmul.f32 %v1106, %v2242
  %v6205 = vmul.f32 %v1107, %v2211
  %v6206 = vmul.f32 %v1108, %v2243
  %v6207 = vmul.f32 %v1109, %v2212
  %v6208 = vmul.f32 %v1110, %v2244
  %v6209 = vmul.f32 %v1111, %v2213
  %v6210 = vmul.f32 %v1112, %v2245
  %v6211 = vmul.f32 %v1113, %v2214
  %v6212 = vmul.f32 %v1114, %v2246
  %v6213 = vmul.f32 %v1115, %v2215
  %v6214 = vmul.f32 %v1116, %v2247
  %v6215 = vmul.f32 %v1117, %v2216
  %v6216 = vmul.f32 %v1118, %v2248
  %v6217 = vmul.f32 %v1119, %v2217
  %v6218 = vmul.f32 %v1120, %v2249
  %v6219 = vmul.f32 %v1121, %v2218
  %v6220 = vmul.f32 %v1122, %v2250
  %v6221 = vmul.f32 %v1123, %v2219
  %v6222 = vmul.f32 %v1124, %v2251
  %v6223 = vmul.f32 %v1125, %v2220
  %v6224 = vmul.f32 %v1126, %v2252
  %v6225 = vmul.f32 %v1127, %v2221
  %v6226 = vmul.f32 %v1128, %v2253
  %v6227 = vmul.f32 %v1129, %v2222
  %v6228 = vmul.f32 %v1130, %v2254
  %v6229 = vpack.c.bf16 %v6167, %v6165
  %v6230 = vpack.c.bf16 %v6168, %v6166
  %v6231 = vpack.c.bf16 %v6171, %v6169
  %v6232 = vpack.c.bf16 %v6172, %v6170
  %v6233 = vpack.c.bf16 %v6175, %v6173
  %v6234 = vpack.c.bf16 %v6176, %v6174
  %v6235 = vpack.c.bf16 %v6179, %v6177
  %v6236 = vpack.c.bf16 %v6180, %v6178
  %v6237 = vpack.c.bf16 %v6183, %v6181
  %v6238 = vpack.c.bf16 %v6184, %v6182
  %v6239 = vpack.c.bf16 %v6187, %v6185
  %v6240 = vpack.c.bf16 %v6188, %v6186
  %v6241 = vpack.c.bf16 %v6191, %v6189
  %v6242 = vpack.c.bf16 %v6192, %v6190
  %v6243 = vpack.c.bf16 %v6195, %v6193
  %v6244 = vpack.c.bf16 %v6196, %v6194
  %v6245 = vpack.c.bf16 %v6199, %v6197
  %v6246 = vpack.c.bf16 %v6200, %v6198
  %v6247 = vpack.c.bf16 %v6203, %v6201
  %v6248 = vpack.c.bf16 %v6204, %v6202
  %v6249 = vpack.c.bf16 %v6207, %v6205
  %v6250 = vpack.c.bf16 %v6208, %v6206
  %v6251 = vpack.c.bf16 %v6211, %v6209
  %v6252 = vpack.c.bf16 %v6212, %v6210
  %v6253 = vpack.c.bf16 %v6215, %v6213
  %v6254 = vpack.c.bf16 %v6216, %v6214
  %v6255 = vpack.c.bf16 %v6219, %v6217
  %v6256 = vpack.c.bf16 %v6220, %v6218
  %v6257 = vpack.c.bf16 %v6223, %v6221
  %v6258 = vpack.c.bf16 %v6224, %v6222
  %v6259 = vpack.c.bf16 %v6227, %v6225
  %v6260 = vpack.c.bf16 %v6228, %v6226
  %6261 = vmatprep.subr.bf16.mxu0 0
  %6262 = vmatpush1.bf16.msra.mxu0 %v1539
  %6263 = vmatprep.subr.bf16.mxu0 0
  %6264 = vmatpush1.bf16.msra.mxu0 %v1538
  %6265 = vmatprep.subr.bf16.mxu0 0
  %6266 = vmatpush1.bf16.msra.mxu0 %v1537
  %6267 = vmatprep.subr.bf16.mxu0 0
  %6268 = vmatpush1.bf16.msra.mxu0 %v1536
  %6269 = vmatprep.subr.bf16.mxu0 0
  %6270 = vmatpush1.bf16.msra.mxu0 %v1535
  %6271 = vmatprep.subr.bf16.mxu0 0
  %6272 = vmatpush1.bf16.msra.mxu0 %v1534
  %6273 = vmatprep.subr.bf16.mxu0 0
  %6274 = vmatpush1.bf16.msra.mxu0 %v1533
  %6275 = vmatprep.subr.bf16.mxu0 0
  %6276 = vmatpush1.bf16.msra.mxu0 %v1532
  %6277 = vmatprep.subr.bf16.mxu0 0
  %6278 = vmatpush2.bf16.msra.mxu0 %v1547
  %6279 = vmatprep.subr.bf16.mxu0 0
  %6280 = vmatpush2.bf16.msra.mxu0 %v1546
  %6281 = vmatprep.subr.bf16.mxu0 0
  %6282 = vmatpush2.bf16.msra.mxu0 %v1545
  %6283 = vmatprep.subr.bf16.mxu0 0
  %6284 = vmatpush2.bf16.msra.mxu0 %v1544
  %6285 = vmatprep.subr.bf16.mxu0 0
  %6286 = vmatpush2.bf16.msra.mxu0 %v1543
  %6287 = vmatprep.subr.bf16.mxu0 0
  %6288 = vmatpush2.bf16.msra.mxu0 %v1542
  %6289 = vmatprep.subr.bf16.mxu0 0
  %6290 = vmatpush2.bf16.msra.mxu0 %v1541
  %6291 = vmatprep.subr.bf16.mxu0 0
  %6292 = vmatpush2.bf16.msra.mxu0 %v1540
  %6293 = vmatprep.mubr.bf16.mxu0 %v6230
  %6294 = vmatmul.mubr.bf16.gmra.mxu0 %v6229
  %v6295 = vpop.f32.mrf.mxu0
  %v6296 = vadd.f32 %v1168, %v6295
  %v6297 = vpop.f32.mrf.mxu0
  %v6298 = vpop.f32.mrf.mxu0
  %v6299 = vadd.f32 %v1168, %v6298
  %v6300 = vpop.f32.mrf.mxu0
  %6301 = vmatprep.mubr.bf16.mxu0 %v6232
  %6302 = vmatmul.mubr.bf16.gmra.mxu0 %v6231
  %v6303 = vpop.f32.mrf.mxu0
  %v6304 = vadd.f32 %v1168, %v6303
  %v6305 = vpop.f32.mrf.mxu0
  %v6306 = vpop.f32.mrf.mxu0
  %v6307 = vadd.f32 %v1168, %v6306
  %v6308 = vpop.f32.mrf.mxu0
  %6309 = vmatprep.mubr.bf16.mxu0 %v6234
  %6310 = vmatmul.mubr.bf16.gmra.mxu0 %v6233
  %v6311 = vpop.f32.mrf.mxu0
  %v6312 = vadd.f32 %v1168, %v6311
  %v6313 = vpop.f32.mrf.mxu0
  %v6314 = vpop.f32.mrf.mxu0
  %v6315 = vadd.f32 %v1168, %v6314
  %v6316 = vpop.f32.mrf.mxu0
  %6317 = vmatprep.mubr.bf16.mxu0 %v6236
  %6318 = vmatmul.mubr.bf16.gmra.mxu0 %v6235
  %v6319 = vpop.f32.mrf.mxu0
  %v6320 = vadd.f32 %v1168, %v6319
  %v6321 = vpop.f32.mrf.mxu0
  %v6322 = vpop.f32.mrf.mxu0
  %v6323 = vadd.f32 %v1168, %v6322
  %v6324 = vpop.f32.mrf.mxu0
  %6325 = vmatprep.mubr.bf16.mxu0 %v6238
  %6326 = vmatmul.mubr.bf16.gmra.mxu0 %v6237
  %v6327 = vpop.f32.mrf.mxu0
  %v6328 = vadd.f32 %v1168, %v6327
  %v6329 = vpop.f32.mrf.mxu0
  %v6330 = vpop.f32.mrf.mxu0
  %v6331 = vadd.f32 %v1168, %v6330
  %v6332 = vpop.f32.mrf.mxu0
  %6333 = vmatprep.mubr.bf16.mxu0 %v6240
  %6334 = vmatmul.mubr.bf16.gmra.mxu0 %v6239
  %v6335 = vpop.f32.mrf.mxu0
  %v6336 = vadd.f32 %v1168, %v6335
  %v6337 = vpop.f32.mrf.mxu0
  %v6338 = vpop.f32.mrf.mxu0
  %v6339 = vadd.f32 %v1168, %v6338
  %v6340 = vpop.f32.mrf.mxu0
  %6341 = vmatprep.mubr.bf16.mxu0 %v6242
  %6342 = vmatmul.mubr.bf16.gmra.mxu0 %v6241
  %v6343 = vpop.f32.mrf.mxu0
  %v6344 = vadd.f32 %v1168, %v6343
  %v6345 = vpop.f32.mrf.mxu0
  %v6346 = vpop.f32.mrf.mxu0
  %v6347 = vadd.f32 %v1168, %v6346
  %v6348 = vpop.f32.mrf.mxu0
  %6349 = vmatprep.mubr.bf16.mxu0 %v6244
  %6350 = vmatmul.mubr.bf16.gmra.mxu0 %v6243
  %v6351 = vpop.f32.mrf.mxu0
  %v6352 = vadd.f32 %v1168, %v6351
  %v6353 = vpop.f32.mrf.mxu0
  %v6354 = vpop.f32.mrf.mxu0
  %v6355 = vadd.f32 %v1168, %v6354
  %v6356 = vpop.f32.mrf.mxu0
  %6357 = vmatprep.mubr.bf16.mxu0 %v6246
  %6358 = vmatmul.mubr.bf16.gmra.mxu0 %v6245
  %v6359 = vpop.f32.mrf.mxu0
  %v6360 = vadd.f32 %v1168, %v6359
  %v6361 = vpop.f32.mrf.mxu0
  %v6362 = vpop.f32.mrf.mxu0
  %v6363 = vadd.f32 %v1168, %v6362
  %v6364 = vpop.f32.mrf.mxu0
  %6365 = vmatprep.mubr.bf16.mxu0 %v6248
  %6366 = vmatmul.mubr.bf16.gmra.mxu0 %v6247
  %v6367 = vpop.f32.mrf.mxu0
  %v6368 = vadd.f32 %v1168, %v6367
  %v6369 = vpop.f32.mrf.mxu0
  %v6370 = vpop.f32.mrf.mxu0
  %v6371 = vadd.f32 %v1168, %v6370
  %v6372 = vpop.f32.mrf.mxu0
  %6373 = vmatprep.mubr.bf16.mxu0 %v6250
  %6374 = vmatmul.mubr.bf16.gmra.mxu0 %v6249
  %v6375 = vpop.f32.mrf.mxu0
  %v6376 = vadd.f32 %v1168, %v6375
  %v6377 = vpop.f32.mrf.mxu0
  %v6378 = vpop.f32.mrf.mxu0
  %v6379 = vadd.f32 %v1168, %v6378
  %v6380 = vpop.f32.mrf.mxu0
  %6381 = vmatprep.mubr.bf16.mxu0 %v6252
  %6382 = vmatmul.mubr.bf16.gmra.mxu0 %v6251
  %v6383 = vpop.f32.mrf.mxu0
  %v6384 = vadd.f32 %v1168, %v6383
  %v6385 = vpop.f32.mrf.mxu0
  %v6386 = vpop.f32.mrf.mxu0
  %v6387 = vadd.f32 %v1168, %v6386
  %v6388 = vpop.f32.mrf.mxu0
  %6389 = vmatprep.mubr.bf16.mxu0 %v6254
  %6390 = vmatmul.mubr.bf16.gmra.mxu0 %v6253
  %v6391 = vpop.f32.mrf.mxu0
  %v6392 = vadd.f32 %v1168, %v6391
  %v6393 = vpop.f32.mrf.mxu0
  %v6394 = vpop.f32.mrf.mxu0
  %v6395 = vadd.f32 %v1168, %v6394
  %v6396 = vpop.f32.mrf.mxu0
  %6397 = vmatprep.mubr.bf16.mxu0 %v6256
  %6398 = vmatmul.mubr.bf16.gmra.mxu0 %v6255
  %v6399 = vpop.f32.mrf.mxu0
  %v6400 = vadd.f32 %v1168, %v6399
  %v6401 = vpop.f32.mrf.mxu0
  %v6402 = vpop.f32.mrf.mxu0
  %v6403 = vadd.f32 %v1168, %v6402
  %v6404 = vpop.f32.mrf.mxu0
  %6405 = vmatprep.mubr.bf16.mxu0 %v6258
  %6406 = vmatmul.mubr.bf16.gmra.mxu0 %v6257
  %v6407 = vpop.f32.mrf.mxu0
  %v6408 = vadd.f32 %v1168, %v6407
  %v6409 = vpop.f32.mrf.mxu0
  %v6410 = vpop.f32.mrf.mxu0
  %v6411 = vadd.f32 %v1168, %v6410
  %v6412 = vpop.f32.mrf.mxu0
  %6413 = vmatprep.mubr.bf16.mxu0 %v6260
  %6414 = vmatmul.mubr.bf16.gmra.mxu0 %v6259
  %v6415 = vpop.f32.mrf.mxu0
  %v6416 = vadd.f32 %v1168, %v6415
  %v6417 = vpop.f32.mrf.mxu0
  %v6418 = vpop.f32.mrf.mxu0
  %v6419 = vadd.f32 %v1168, %v6418
  %v6420 = vpop.f32.mrf.mxu0
  %6421 = vdwg.mxu0
  %v6422 = vmax.f32 %v6296, 0.0
  %v6423 = vmax.f32 %v6299, 0.0
  %v6424 = vmax.f32 %v6304, 0.0
  %v6425 = vmax.f32 %v6307, 0.0
  %v6426 = vmax.f32 %v6312, 0.0
  %v6427 = vmax.f32 %v6315, 0.0
  %v6428 = vmax.f32 %v6320, 0.0
  %v6429 = vmax.f32 %v6323, 0.0
  %v6430 = vmax.f32 %v6328, 0.0
  %v6431 = vmax.f32 %v6331, 0.0
  %v6432 = vmax.f32 %v6336, 0.0
  %v6433 = vmax.f32 %v6339, 0.0
  %v6434 = vmax.f32 %v6344, 0.0
  %v6435 = vmax.f32 %v6347, 0.0
  %v6436 = vmax.f32 %v6352, 0.0
  %v6437 = vmax.f32 %v6355, 0.0
  %v6438 = vmax.f32 %v6360, 0.0
  %v6439 = vmax.f32 %v6363, 0.0
  %v6440 = vmax.f32 %v6368, 0.0
  %v6441 = vmax.f32 %v6371, 0.0
  %v6442 = vmax.f32 %v6376, 0.0
  %v6443 = vmax.f32 %v6379, 0.0
  %v6444 = vmax.f32 %v6384, 0.0
  %v6445 = vmax.f32 %v6387, 0.0
  %v6446 = vmax.f32 %v6392, 0.0
  %v6447 = vmax.f32 %v6395, 0.0
  %v6448 = vmax.f32 %v6400, 0.0
  %v6449 = vmax.f32 %v6403, 0.0
  %v6450 = vmax.f32 %v6408, 0.0
  %v6451 = vmax.f32 %v6411, 0.0
  %v6452 = vmax.f32 %v6416, 0.0
  %v6453 = vmax.f32 %v6419, 0.0
  %v6454 = vpack.c.bf16 %v6423, %v6422
  %v6455 = vpack.c.bf16 %v6425, %v6424
  %v6456 = vpack.c.bf16 %v6427, %v6426
  %v6457 = vpack.c.bf16 %v6429, %v6428
  %v6458 = vpack.c.bf16 %v6431, %v6430
  %v6459 = vpack.c.bf16 %v6433, %v6432
  %v6460 = vpack.c.bf16 %v6435, %v6434
  %v6461 = vpack.c.bf16 %v6437, %v6436
  %v6462 = vpack.c.bf16 %v6439, %v6438
  %v6463 = vpack.c.bf16 %v6441, %v6440
  %v6464 = vpack.c.bf16 %v6443, %v6442
  %v6465 = vpack.c.bf16 %v6445, %v6444
  %v6466 = vpack.c.bf16 %v6447, %v6446
  %v6467 = vpack.c.bf16 %v6449, %v6448
  %v6468 = vpack.c.bf16 %v6451, %v6450
  %v6469 = vpack.c.bf16 %v6453, %v6452
  %s6470 = scalar_lea.vmem %s5, 320
  %v6471 = vld [vmem:[%s6470] sm:$0xf]
  %v6472 = vld [vmem:[%s6470 + $0x4] sm:$0xf]
  %v6473 = vld [vmem:[%s6470 + $0x8] sm:$0xf]
  %v6474 = vld [vmem:[%s6470 + $0xc] sm:$0xf]
  %v6475 = vld [vmem:[%s6470 + $0x10] sm:$0xf]
  %v6476 = vld [vmem:[%s6470 + $0x14] sm:$0xf]
  %v6477 = vld [vmem:[%s6470 + $0x18] sm:$0xf]
  %v6478 = vld [vmem:[%s6470 + $0x1c] sm:$0xf]
  %v6479 = vld [vmem:[%s6470 + $0x20] sm:$0xf]
  %v6480 = vld [vmem:[%s6470 + $0x24] sm:$0xf]
  %v6481 = vld [vmem:[%s6470 + $0x28] sm:$0xf]
  %v6482 = vld [vmem:[%s6470 + $0x2c] sm:$0xf]
  %v6483 = vld [vmem:[%s6470 + $0x30] sm:$0xf]
  %v6484 = vld [vmem:[%s6470 + $0x34] sm:$0xf]
  %v6485 = vld [vmem:[%s6470 + $0x38] sm:$0xf]
  %v6486 = vld [vmem:[%s6470 + $0x3c] sm:$0xf]
  %v6503 = vunpack.c.l.b16 %v6471
  %v6504 = vunpack.c.l.b16 %v6472
  %v6505 = vunpack.c.l.b16 %v6473
  %v6506 = vunpack.c.l.b16 %v6474
  %v6507 = vunpack.c.l.b16 %v6475
  %v6508 = vunpack.c.l.b16 %v6476
  %v6509 = vunpack.c.l.b16 %v6477
  %v6510 = vunpack.c.l.b16 %v6478
  %v6511 = vunpack.c.l.b16 %v6479
  %v6512 = vunpack.c.l.b16 %v6480
  %v6513 = vunpack.c.l.b16 %v6481
  %v6514 = vunpack.c.l.b16 %v6482
  %v6515 = vunpack.c.l.b16 %v6483
  %v6516 = vunpack.c.l.b16 %v6484
  %v6517 = vunpack.c.l.b16 %v6485
  %v6518 = vunpack.c.l.b16 %v6486
  %v6519 = vpack.c.b16 %v6504, %v6503
  %v6520 = vpack.c.b16 %v6506, %v6505
  %v6521 = vpack.c.b16 %v6508, %v6507
  %v6522 = vpack.c.b16 %v6510, %v6509
  %v6523 = vpack.c.b16 %v6512, %v6511
  %v6524 = vpack.c.b16 %v6514, %v6513
  %v6525 = vpack.c.b16 %v6516, %v6515
  %v6526 = vpack.c.b16 %v6518, %v6517
  %6535 = vmatprep.subr.bf16.mxu0 0
  %6536 = vmatpush1.bf16.msra.mxu0 %v6526
  %6537 = vmatprep.subr.bf16.mxu0 0
  %6538 = vmatpush1.bf16.msra.mxu0 %v6525
  %6539 = vmatprep.subr.bf16.mxu0 0
  %6540 = vmatpush1.bf16.msra.mxu0 %v6524
  %6541 = vmatprep.subr.bf16.mxu0 0
  %6542 = vmatpush1.bf16.msra.mxu0 %v6523
  %6543 = vmatprep.subr.bf16.mxu0 0
  %6544 = vmatpush1.bf16.msra.mxu0 %v6522
  %6545 = vmatprep.subr.bf16.mxu0 0
  %6546 = vmatpush1.bf16.msra.mxu0 %v6521
  %6547 = vmatprep.subr.bf16.mxu0 0
  %6548 = vmatpush1.bf16.msra.mxu0 %v6520
  %6549 = vmatprep.subr.bf16.mxu0 0
  %6550 = vmatpush1.bf16.msra.mxu0 %v6519
  %6551 = vmatprep.subr.bf16.mxu0 0
  %6552 = vmatpush2.bf16.msra.mxu0 0
  %6553 = vmatprep.subr.bf16.mxu0 0
  %6554 = vmatpush2.bf16.msra.mxu0 0
  %6555 = vmatprep.subr.bf16.mxu0 0
  %6556 = vmatpush2.bf16.msra.mxu0 0
  %6557 = vmatprep.subr.bf16.mxu0 0
  %6558 = vmatpush2.bf16.msra.mxu0 0
  %6559 = vmatprep.subr.bf16.mxu0 0
  %6560 = vmatpush2.bf16.msra.mxu0 0
  %6561 = vmatprep.subr.bf16.mxu0 0
  %6562 = vmatpush2.bf16.msra.mxu0 0
  %6563 = vmatprep.subr.bf16.mxu0 0
  %6564 = vmatpush2.bf16.msra.mxu0 0
  %6565 = vmatprep.subr.bf16.mxu0 0
  %6566 = vmatpush2.bf16.msra.mxu0 0
  %6567 = vmatprep.mubr.bf16.mxu0 0
  %6568 = vmatmul.mubr.bf16.gmra.mxu0 %v6454
  %v6569 = vpop.f32.mrf.mxu0
  %v6570 = vadd.f32 0.0, %v6569
  %v6571 = vpop.f32.mrf.mxu0
  %v6572 = vpop.f32.mrf.mxu0
  %v6573 = vadd.f32 0.0, %v6572
  %v6574 = vpop.f32.mrf.mxu0
  %6575 = vmatprep.mubr.bf16.mxu0 0
  %6576 = vmatmul.mubr.bf16.gmra.mxu0 %v6455
  %v6577 = vpop.f32.mrf.mxu0
  %v6578 = vadd.f32 0.0, %v6577
  %v6579 = vpop.f32.mrf.mxu0
  %v6580 = vpop.f32.mrf.mxu0
  %v6581 = vadd.f32 0.0, %v6580
  %v6582 = vpop.f32.mrf.mxu0
  %6583 = vmatprep.mubr.bf16.mxu0 0
  %6584 = vmatmul.mubr.bf16.gmra.mxu0 %v6456
  %v6585 = vpop.f32.mrf.mxu0
  %v6586 = vadd.f32 0.0, %v6585
  %v6587 = vpop.f32.mrf.mxu0
  %v6588 = vpop.f32.mrf.mxu0
  %v6589 = vadd.f32 0.0, %v6588
  %v6590 = vpop.f32.mrf.mxu0
  %6591 = vmatprep.mubr.bf16.mxu0 0
  %6592 = vmatmul.mubr.bf16.gmra.mxu0 %v6457
  %v6593 = vpop.f32.mrf.mxu0
  %v6594 = vadd.f32 0.0, %v6593
  %v6595 = vpop.f32.mrf.mxu0
  %v6596 = vpop.f32.mrf.mxu0
  %v6597 = vadd.f32 0.0, %v6596
  %v6598 = vpop.f32.mrf.mxu0
  %6599 = vmatprep.mubr.bf16.mxu0 0
  %6600 = vmatmul.mubr.bf16.gmra.mxu0 %v6458
  %v6601 = vpop.f32.mrf.mxu0
  %v6602 = vadd.f32 0.0, %v6601
  %v6603 = vpop.f32.mrf.mxu0
  %v6604 = vpop.f32.mrf.mxu0
  %v6605 = vadd.f32 0.0, %v6604
  %v6606 = vpop.f32.mrf.mxu0
  %6607 = vmatprep.mubr.bf16.mxu0 0
  %6608 = vmatmul.mubr.bf16.gmra.mxu0 %v6459
  %v6609 = vpop.f32.mrf.mxu0
  %v6610 = vadd.f32 0.0, %v6609
  %v6611 = vpop.f32.mrf.mxu0
  %v6612 = vpop.f32.mrf.mxu0
  %v6613 = vadd.f32 0.0, %v6612
  %v6614 = vpop.f32.mrf.mxu0
  %6615 = vmatprep.mubr.bf16.mxu0 0
  %6616 = vmatmul.mubr.bf16.gmra.mxu0 %v6460
  %v6617 = vpop.f32.mrf.mxu0
  %v6618 = vadd.f32 0.0, %v6617
  %v6619 = vpop.f32.mrf.mxu0
  %v6620 = vpop.f32.mrf.mxu0
  %v6621 = vadd.f32 0.0, %v6620
  %v6622 = vpop.f32.mrf.mxu0
  %6623 = vmatprep.mubr.bf16.mxu0 0
  %6624 = vmatmul.mubr.bf16.gmra.mxu0 %v6461
  %v6625 = vpop.f32.mrf.mxu0
  %v6626 = vadd.f32 0.0, %v6625
  %v6627 = vpop.f32.mrf.mxu0
  %v6628 = vpop.f32.mrf.mxu0
  %v6629 = vadd.f32 0.0, %v6628
  %v6630 = vpop.f32.mrf.mxu0
  %6631 = vmatprep.mubr.bf16.mxu0 0
  %6632 = vmatmul.mubr.bf16.gmra.mxu0 %v6462
  %v6633 = vpop.f32.mrf.mxu0
  %v6634 = vadd.f32 0.0, %v6633
  %v6635 = vpop.f32.mrf.mxu0
  %v6636 = vpop.f32.mrf.mxu0
  %v6637 = vadd.f32 0.0, %v6636
  %v6638 = vpop.f32.mrf.mxu0
  %6639 = vmatprep.mubr.bf16.mxu0 0
  %6640 = vmatmul.mubr.bf16.gmra.mxu0 %v6463
  %v6641 = vpop.f32.mrf.mxu0
  %v6642 = vadd.f32 0.0, %v6641
  %v6643 = vpop.f32.mrf.mxu0
  %v6644 = vpop.f32.mrf.mxu0
  %v6645 = vadd.f32 0.0, %v6644
  %v6646 = vpop.f32.mrf.mxu0
  %6647 = vmatprep.mubr.bf16.mxu0 0
  %6648 = vmatmul.mubr.bf16.gmra.mxu0 %v6464
  %v6649 = vpop.f32.mrf.mxu0
  %v6650 = vadd.f32 0.0, %v6649
  %v6651 = vpop.f32.mrf.mxu0
  %v6652 = vpop.f32.mrf.mxu0
  %v6653 = vadd.f32 0.0, %v6652
  %v6654 = vpop.f32.mrf.mxu0
  %6655 = vmatprep.mubr.bf16.mxu0 0
  %6656 = vmatmul.mubr.bf16.gmra.mxu0 %v6465
  %v6657 = vpop.f32.mrf.mxu0
  %v6658 = vadd.f32 0.0, %v6657
  %v6659 = vpop.f32.mrf.mxu0
  %v6660 = vpop.f32.mrf.mxu0
  %v6661 = vadd.f32 0.0, %v6660
  %v6662 = vpop.f32.mrf.mxu0
  %6663 = vmatprep.mubr.bf16.mxu0 0
  %6664 = vmatmul.mubr.bf16.gmra.mxu0 %v6466
  %v6665 = vpop.f32.mrf.mxu0
  %v6666 = vadd.f32 0.0, %v6665
  %v6667 = vpop.f32.mrf.mxu0
  %v6668 = vpop.f32.mrf.mxu0
  %v6669 = vadd.f32 0.0, %v6668
  %v6670 = vpop.f32.mrf.mxu0
  %6671 = vmatprep.mubr.bf16.mxu0 0
  %6672 = vmatmul.mubr.bf16.gmra.mxu0 %v6467
  %v6673 = vpop.f32.mrf.mxu0
  %v6674 = vadd.f32 0.0, %v6673
  %v6675 = vpop.f32.mrf.mxu0
  %v6676 = vpop.f32.mrf.mxu0
  %v6677 = vadd.f32 0.0, %v6676
  %v6678 = vpop.f32.mrf.mxu0
  %6679 = vmatprep.mubr.bf16.mxu0 0
  %6680 = vmatmul.mubr.bf16.gmra.mxu0 %v6468
  %v6681 = vpop.f32.mrf.mxu0
  %v6682 = vadd.f32 0.0, %v6681
  %v6683 = vpop.f32.mrf.mxu0
  %v6684 = vpop.f32.mrf.mxu0
  %v6685 = vadd.f32 0.0, %v6684
  %v6686 = vpop.f32.mrf.mxu0
  %6687 = vmatprep.mubr.bf16.mxu0 0
  %6688 = vmatmul.mubr.bf16.gmra.mxu0 %v6469
  %v6689 = vpop.f32.mrf.mxu0
  %v6690 = vadd.f32 0.0, %v6689
  %v6691 = vpop.f32.mrf.mxu0
  %v6692 = vpop.f32.mrf.mxu0
  %v6693 = vadd.f32 0.0, %v6692
  %v6694 = vpop.f32.mrf.mxu0
  %6695 = vdwg.mxu0
  %v6696 = vadd.f32 %v5811, %v6570
  %v6697 = vadd.f32 %v5812, %v6573
  %v6698 = vadd.f32 %v5813, %v6578
  %v6699 = vadd.f32 %v5814, %v6581
  %v6700 = vadd.f32 %v5815, %v6586
  %v6701 = vadd.f32 %v5816, %v6589
  %v6702 = vadd.f32 %v5817, %v6594
  %v6703 = vadd.f32 %v5818, %v6597
  %v6704 = vadd.f32 %v5819, %v6602
  %v6705 = vadd.f32 %v5820, %v6605
  %v6706 = vadd.f32 %v5821, %v6610
  %v6707 = vadd.f32 %v5822, %v6613
  %v6708 = vadd.f32 %v5823, %v6618
  %v6709 = vadd.f32 %v5824, %v6621
  %v6710 = vadd.f32 %v5825, %v6626
  %v6711 = vadd.f32 %v5826, %v6629
  %v6712 = vadd.f32 %v5827, %v6634
  %v6713 = vadd.f32 %v5828, %v6637
  %v6714 = vadd.f32 %v5829, %v6642
  %v6715 = vadd.f32 %v5830, %v6645
  %v6716 = vadd.f32 %v5831, %v6650
  %v6717 = vadd.f32 %v5832, %v6653
  %v6718 = vadd.f32 %v5833, %v6658
  %v6719 = vadd.f32 %v5834, %v6661
  %v6720 = vadd.f32 %v5835, %v6666
  %v6721 = vadd.f32 %v5836, %v6669
  %v6722 = vadd.f32 %v5837, %v6674
  %v6723 = vadd.f32 %v5838, %v6677
  %v6724 = vadd.f32 %v5839, %v6682
  %v6725 = vadd.f32 %v5840, %v6685
  %v6726 = vadd.f32 %v5841, %v6690
  %v6727 = vadd.f32 %v5842, %v6693
  %s6728 = scalar_lea.vmem %s6, 640
  %v6729 = vld [vmem:[%s6728] sm:$0xf]
  %v6730 = vld [vmem:[%s6728 + $0x4] sm:$0xf]
  %v6731 = vld [vmem:[%s6728 + $0x8] sm:$0xf]
  %v6732 = vld [vmem:[%s6728 + $0xc] sm:$0xf]
  %v6733 = vld [vmem:[%s6728 + $0x10] sm:$0xf]
  %v6734 = vld [vmem:[%s6728 + $0x14] sm:$0xf]
  %v6735 = vld [vmem:[%s6728 + $0x18] sm:$0xf]
  %v6736 = vld [vmem:[%s6728 + $0x1c] sm:$0xf]
  %v6737 = vld [vmem:[%s6728 + $0x20] sm:$0xf]
  %v6738 = vld [vmem:[%s6728 + $0x24] sm:$0xf]
  %v6739 = vld [vmem:[%s6728 + $0x28] sm:$0xf]
  %v6740 = vld [vmem:[%s6728 + $0x2c] sm:$0xf]
  %v6741 = vld [vmem:[%s6728 + $0x30] sm:$0xf]
  %v6742 = vld [vmem:[%s6728 + $0x34] sm:$0xf]
  %v6743 = vld [vmem:[%s6728 + $0x38] sm:$0xf]
  %v6744 = vld [vmem:[%s6728 + $0x3c] sm:$0xf]
  %v6745 = vld [vmem:[%s6728 + $0x40] sm:$0xf]
  %v6746 = vld [vmem:[%s6728 + $0x44] sm:$0xf]
  %v6747 = vld [vmem:[%s6728 + $0x48] sm:$0xf]
  %v6748 = vld [vmem:[%s6728 + $0x4c] sm:$0xf]
  %v6749 = vld [vmem:[%s6728 + $0x50] sm:$0xf]
  %v6750 = vld [vmem:[%s6728 + $0x54] sm:$0xf]
  %v6751 = vld [vmem:[%s6728 + $0x58] sm:$0xf]
  %v6752 = vld [vmem:[%s6728 + $0x5c] sm:$0xf]
  %v6753 = vld [vmem:[%s6728 + $0x60] sm:$0xf]
  %v6754 = vld [vmem:[%s6728 + $0x64] sm:$0xf]
  %v6755 = vld [vmem:[%s6728 + $0x68] sm:$0xf]
  %v6756 = vld [vmem:[%s6728 + $0x6c] sm:$0xf]
  %v6757 = vld [vmem:[%s6728 + $0x70] sm:$0xf]
  %v6758 = vld [vmem:[%s6728 + $0x74] sm:$0xf]
  %v6759 = vld [vmem:[%s6728 + $0x78] sm:$0xf]
  %v6760 = vld [vmem:[%s6728 + $0x7c] sm:$0xf]
  %v6793 = vunpack.c.l.b16 %v6729
  %v6794 = vunpack.c.l.b16 %v6730
  %v6795 = vunpack.c.l.b16 %v6731
  %v6796 = vunpack.c.l.b16 %v6732
  %v6797 = vunpack.c.l.b16 %v6733
  %v6798 = vunpack.c.l.b16 %v6734
  %v6799 = vunpack.c.l.b16 %v6735
  %v6800 = vunpack.c.l.b16 %v6736
  %v6801 = vunpack.c.l.b16 %v6737
  %v6802 = vunpack.c.l.b16 %v6738
  %v6803 = vunpack.c.l.b16 %v6739
  %v6804 = vunpack.c.l.b16 %v6740
  %v6805 = vunpack.c.l.b16 %v6741
  %v6806 = vunpack.c.l.b16 %v6742
  %v6807 = vunpack.c.l.b16 %v6743
  %v6808 = vunpack.c.l.b16 %v6744
  %v6809 = vunpack.c.l.b16 %v6745
  %v6810 = vunpack.c.l.b16 %v6746
  %v6811 = vunpack.c.l.b16 %v6747
  %v6812 = vunpack.c.l.b16 %v6748
  %v6813 = vunpack.c.l.b16 %v6749
  %v6814 = vunpack.c.l.b16 %v6750
  %v6815 = vunpack.c.l.b16 %v6751
  %v6816 = vunpack.c.l.b16 %v6752
  %v6817 = vunpack.c.l.b16 %v6753
  %v6818 = vunpack.c.l.b16 %v6754
  %v6819 = vunpack.c.l.b16 %v6755
  %v6820 = vunpack.c.l.b16 %v6756
  %v6821 = vunpack.c.l.b16 %v6757
  %v6822 = vunpack.c.l.b16 %v6758
  %v6823 = vunpack.c.l.b16 %v6759
  %v6824 = vunpack.c.l.b16 %v6760
  %v6825 = vpack.c.b16 %v6794, %v6793
  %v6826 = vpack.c.b16 %v6796, %v6795
  %v6827 = vpack.c.b16 %v6798, %v6797
  %v6828 = vpack.c.b16 %v6800, %v6799
  %v6829 = vpack.c.b16 %v6802, %v6801
  %v6830 = vpack.c.b16 %v6804, %v6803
  %v6831 = vpack.c.b16 %v6806, %v6805
  %v6832 = vpack.c.b16 %v6808, %v6807
  %v6833 = vpack.c.b16 %v6810, %v6809
  %v6834 = vpack.c.b16 %v6812, %v6811
  %v6835 = vpack.c.b16 %v6814, %v6813
  %v6836 = vpack.c.b16 %v6816, %v6815
  %v6837 = vpack.c.b16 %v6818, %v6817
  %v6838 = vpack.c.b16 %v6820, %v6819
  %v6839 = vpack.c.b16 %v6822, %v6821
  %v6840 = vpack.c.b16 %v6824, %v6823
  %6857 = vmatprep.subr.bf16.mxu0 0
  %6858 = vmatpush1.bf16.msra.mxu0 %v6832
  %6859 = vmatprep.subr.bf16.mxu0 0
  %6860 = vmatpush1.bf16.msra.mxu0 %v6831
  %6861 = vmatprep.subr.bf16.mxu0 0
  %6862 = vmatpush1.bf16.msra.mxu0 %v6830
  %6863 = vmatprep.subr.bf16.mxu0 0
  %6864 = vmatpush1.bf16.msra.mxu0 %v6829
  %6865 = vmatprep.subr.bf16.mxu0 0
  %6866 = vmatpush1.bf16.msra.mxu0 %v6828
  %6867 = vmatprep.subr.bf16.mxu0 0
  %6868 = vmatpush1.bf16.msra.mxu0 %v6827
  %6869 = vmatprep.subr.bf16.mxu0 0
  %6870 = vmatpush1.bf16.msra.mxu0 %v6826
  %6871 = vmatprep.subr.bf16.mxu0 0
  %6872 = vmatpush1.bf16.msra.mxu0 %v6825
  %6873 = vmatprep.subr.bf16.mxu0 0
  %6874 = vmatpush2.bf16.msra.mxu0 %v6840
  %6875 = vmatprep.subr.bf16.mxu0 0
  %6876 = vmatpush2.bf16.msra.mxu0 %v6839
  %6877 = vmatprep.subr.bf16.mxu0 0
  %6878 = vmatpush2.bf16.msra.mxu0 %v6838
  %6879 = vmatprep.subr.bf16.mxu0 0
  %6880 = vmatpush2.bf16.msra.mxu0 %v6837
  %6881 = vmatprep.subr.bf16.mxu0 0
  %6882 = vmatpush2.bf16.msra.mxu0 %v6836
  %6883 = vmatprep.subr.bf16.mxu0 0
  %6884 = vmatpush2.bf16.msra.mxu0 %v6835
  %6885 = vmatprep.subr.bf16.mxu0 0
  %6886 = vmatpush2.bf16.msra.mxu0 %v6834
  %6887 = vmatprep.subr.bf16.mxu0 0
  %6888 = vmatpush2.bf16.msra.mxu0 %v6833
  %6889 = vmatprep.mubr.bf16.mxu0 %v6230
  %6890 = vmatmul.mubr.bf16.gmra.mxu0 %v6229
  %v6891 = vpop.f32.mrf.mxu0
  %v6892 = vadd.f32 0.0, %v6891
  %v6893 = vpop.f32.mrf.mxu0
  %v6894 = vpop.f32.mrf.mxu0
  %v6895 = vadd.f32 0.0, %v6894
  %v6896 = vpop.f32.mrf.mxu0
  %6897 = vmatprep.mubr.bf16.mxu0 %v6232
  %6898 = vmatmul.mubr.bf16.gmra.mxu0 %v6231
  %v6899 = vpop.f32.mrf.mxu0
  %v6900 = vadd.f32 0.0, %v6899
  %v6901 = vpop.f32.mrf.mxu0
  %v6902 = vpop.f32.mrf.mxu0
  %v6903 = vadd.f32 0.0, %v6902
  %v6904 = vpop.f32.mrf.mxu0
  %6905 = vmatprep.mubr.bf16.mxu0 %v6234
  %6906 = vmatmul.mubr.bf16.gmra.mxu0 %v6233
  %v6907 = vpop.f32.mrf.mxu0
  %v6908 = vadd.f32 0.0, %v6907
  %v6909 = vpop.f32.mrf.mxu0
  %v6910 = vpop.f32.mrf.mxu0
  %v6911 = vadd.f32 0.0, %v6910
  %v6912 = vpop.f32.mrf.mxu0
  %6913 = vmatprep.mubr.bf16.mxu0 %v6236
  %6914 = vmatmul.mubr.bf16.gmra.mxu0 %v6235
  %v6915 = vpop.f32.mrf.mxu0
  %v6916 = vadd.f32 0.0, %v6915
  %v6917 = vpop.f32.mrf.mxu0
  %v6918 = vpop.f32.mrf.mxu0
  %v6919 = vadd.f32 0.0, %v6918
  %v6920 = vpop.f32.mrf.mxu0
  %6921 = vmatprep.mubr.bf16.mxu0 %v6238
  %6922 = vmatmul.mubr.bf16.gmra.mxu0 %v6237
  %v6923 = vpop.f32.mrf.mxu0
  %v6924 = vadd.f32 0.0, %v6923
  %v6925 = vpop.f32.mrf.mxu0
  %v6926 = vpop.f32.mrf.mxu0
  %v6927 = vadd.f32 0.0, %v6926
  %v6928 = vpop.f32.mrf.mxu0
  %6929 = vmatprep.mubr.bf16.mxu0 %v6240
  %6930 = vmatmul.mubr.bf16.gmra.mxu0 %v6239
  %v6931 = vpop.f32.mrf.mxu0
  %v6932 = vadd.f32 0.0, %v6931
  %v6933 = vpop.f32.mrf.mxu0
  %v6934 = vpop.f32.mrf.mxu0
  %v6935 = vadd.f32 0.0, %v6934
  %v6936 = vpop.f32.mrf.mxu0
  %6937 = vmatprep.mubr.bf16.mxu0 %v6242
  %6938 = vmatmul.mubr.bf16.gmra.mxu0 %v6241
  %v6939 = vpop.f32.mrf.mxu0
  %v6940 = vadd.f32 0.0, %v6939
  %v6941 = vpop.f32.mrf.mxu0
  %v6942 = vpop.f32.mrf.mxu0
  %v6943 = vadd.f32 0.0, %v6942
  %v6944 = vpop.f32.mrf.mxu0
  %6945 = vmatprep.mubr.bf16.mxu0 %v6244
  %6946 = vmatmul.mubr.bf16.gmra.mxu0 %v6243
  %v6947 = vpop.f32.mrf.mxu0
  %v6948 = vadd.f32 0.0, %v6947
  %v6949 = vpop.f32.mrf.mxu0
  %v6950 = vpop.f32.mrf.mxu0
  %v6951 = vadd.f32 0.0, %v6950
  %v6952 = vpop.f32.mrf.mxu0
  %6953 = vmatprep.mubr.bf16.mxu0 %v6246
  %6954 = vmatmul.mubr.bf16.gmra.mxu0 %v6245
  %v6955 = vpop.f32.mrf.mxu0
  %v6956 = vadd.f32 0.0, %v6955
  %v6957 = vpop.f32.mrf.mxu0
  %v6958 = vpop.f32.mrf.mxu0
  %v6959 = vadd.f32 0.0, %v6958
  %v6960 = vpop.f32.mrf.mxu0
  %6961 = vmatprep.mubr.bf16.mxu0 %v6248
  %6962 = vmatmul.mubr.bf16.gmra.mxu0 %v6247
  %v6963 = vpop.f32.mrf.mxu0
  %v6964 = vadd.f32 0.0, %v6963
  %v6965 = vpop.f32.mrf.mxu0
  %v6966 = vpop.f32.mrf.mxu0
  %v6967 = vadd.f32 0.0, %v6966
  %v6968 = vpop.f32.mrf.mxu0
  %6969 = vmatprep.mubr.bf16.mxu0 %v6250
  %6970 = vmatmul.mubr.bf16.gmra.mxu0 %v6249
  %v6971 = vpop.f32.mrf.mxu0
  %v6972 = vadd.f32 0.0, %v6971
  %v6973 = vpop.f32.mrf.mxu0
  %v6974 = vpop.f32.mrf.mxu0
  %v6975 = vadd.f32 0.0, %v6974
  %v6976 = vpop.f32.mrf.mxu0
  %6977 = vmatprep.mubr.bf16.mxu0 %v6252
  %6978 = vmatmul.mubr.bf16.gmra.mxu0 %v6251
  %v6979 = vpop.f32.mrf.mxu0
  %v6980 = vadd.f32 0.0, %v6979
  %v6981 = vpop.f32.mrf.mxu0
  %v6982 = vpop.f32.mrf.mxu0
  %v6983 = vadd.f32 0.0, %v6982
  %v6984 = vpop.f32.mrf.mxu0
  %6985 = vmatprep.mubr.bf16.mxu0 %v6254
  %6986 = vmatmul.mubr.bf16.gmra.mxu0 %v6253
  %v6987 = vpop.f32.mrf.mxu0
  %v6988 = vadd.f32 0.0, %v6987
  %v6989 = vpop.f32.mrf.mxu0
  %v6990 = vpop.f32.mrf.mxu0
  %v6991 = vadd.f32 0.0, %v6990
  %v6992 = vpop.f32.mrf.mxu0
  %6993 = vmatprep.mubr.bf16.mxu0 %v6256
  %6994 = vmatmul.mubr.bf16.gmra.mxu0 %v6255
  %v6995 = vpop.f32.mrf.mxu0
  %v6996 = vadd.f32 0.0, %v6995
  %v6997 = vpop.f32.mrf.mxu0
  %v6998 = vpop.f32.mrf.mxu0
  %v6999 = vadd.f32 0.0, %v6998
  %v7000 = vpop.f32.mrf.mxu0
  %7001 = vmatprep.mubr.bf16.mxu0 %v6258
  %7002 = vmatmul.mubr.bf16.gmra.mxu0 %v6257
  %v7003 = vpop.f32.mrf.mxu0
  %v7004 = vadd.f32 0.0, %v7003
  %v7005 = vpop.f32.mrf.mxu0
  %v7006 = vpop.f32.mrf.mxu0
  %v7007 = vadd.f32 0.0, %v7006
  %v7008 = vpop.f32.mrf.mxu0
  %7009 = vmatprep.mubr.bf16.mxu0 %v6260
  %7010 = vmatmul.mubr.bf16.gmra.mxu0 %v6259
  %v7011 = vpop.f32.mrf.mxu0
  %v7012 = vadd.f32 0.0, %v7011
  %v7013 = vpop.f32.mrf.mxu0
  %v7014 = vpop.f32.mrf.mxu0
  %v7015 = vadd.f32 0.0, %v7014
  %v7016 = vpop.f32.mrf.mxu0
  %7017 = vdwg.mxu0
  %v7018 = vadd.f32 %v6133, %v6892
  %v7019 = vadd.f32 %v6134, %v6895
  %v7020 = vadd.f32 %v6135, %v6900
  %v7021 = vadd.f32 %v6136, %v6903
  %v7022 = vadd.f32 %v6137, %v6908
  %v7023 = vadd.f32 %v6138, %v6911
  %v7024 = vadd.f32 %v6139, %v6916
  %v7025 = vadd.f32 %v6140, %v6919
  %v7026 = vadd.f32 %v6141, %v6924
  %v7027 = vadd.f32 %v6142, %v6927
  %v7028 = vadd.f32 %v6143, %v6932
  %v7029 = vadd.f32 %v6144, %v6935
  %v7030 = vadd.f32 %v6145, %v6940
  %v7031 = vadd.f32 %v6146, %v6943
  %v7032 = vadd.f32 %v6147, %v6948
  %v7033 = vadd.f32 %v6148, %v6951
  %v7034 = vadd.f32 %v6149, %v6956
  %v7035 = vadd.f32 %v6150, %v6959
  %v7036 = vadd.f32 %v6151, %v6964
  %v7037 = vadd.f32 %v6152, %v6967
  %v7038 = vadd.f32 %v6153, %v6972
  %v7039 = vadd.f32 %v6154, %v6975
  %v7040 = vadd.f32 %v6155, %v6980
  %v7041 = vadd.f32 %v6156, %v6983
  %v7042 = vadd.f32 %v6157, %v6988
  %v7043 = vadd.f32 %v6158, %v6991
  %v7044 = vadd.f32 %v6159, %v6996
  %v7045 = vadd.f32 %v6160, %v6999
  %v7046 = vadd.f32 %v6161, %v7004
  %v7047 = vadd.f32 %v6162, %v7007
  %v7048 = vadd.f32 %v6163, %v7012
  %v7049 = vadd.f32 %v6164, %v7015
  %v7050 = vmul.f32 %v1067, %v3494
  %v7051 = vmul.f32 %v1068, %v3526
  %v7052 = vmul.f32 %v1069, %v3495
  %v7053 = vmul.f32 %v1070, %v3527
  %v7054 = vmul.f32 %v1071, %v3496
  %v7055 = vmul.f32 %v1072, %v3528
  %v7056 = vmul.f32 %v1073, %v3497
  %v7057 = vmul.f32 %v1074, %v3529
  %v7058 = vmul.f32 %v1075, %v3498
  %v7059 = vmul.f32 %v1076, %v3530
  %v7060 = vmul.f32 %v1077, %v3499
  %v7061 = vmul.f32 %v1078, %v3531
  %v7062 = vmul.f32 %v1079, %v3500
  %v7063 = vmul.f32 %v1080, %v3532
  %v7064 = vmul.f32 %v1081, %v3501
  %v7065 = vmul.f32 %v1082, %v3533
  %v7066 = vmul.f32 %v1083, %v3502
  %v7067 = vmul.f32 %v1084, %v3534
  %v7068 = vmul.f32 %v1085, %v3503
  %v7069 = vmul.f32 %v1086, %v3535
  %v7070 = vmul.f32 %v1087, %v3504
  %v7071 = vmul.f32 %v1088, %v3536
  %v7072 = vmul.f32 %v1089, %v3505
  %v7073 = vmul.f32 %v1090, %v3537
  %v7074 = vmul.f32 %v1091, %v3506
  %v7075 = vmul.f32 %v1092, %v3538
  %v7076 = vmul.f32 %v1093, %v3507
  %v7077 = vmul.f32 %v1094, %v3539
  %v7078 = vmul.f32 %v1095, %v3508
  %v7079 = vmul.f32 %v1096, %v3540
  %v7080 = vmul.f32 %v1097, %v3509
  %v7081 = vmul.f32 %v1098, %v3541
  %v7082 = vmul.f32 %v1099, %v3510
  %v7083 = vmul.f32 %v1100, %v3542
  %v7084 = vmul.f32 %v1101, %v3511
  %v7085 = vmul.f32 %v1102, %v3543
  %v7086 = vmul.f32 %v1103, %v3512
  %v7087 = vmul.f32 %v1104, %v3544
  %v7088 = vmul.f32 %v1105, %v3513
  %v7089 = vmul.f32 %v1106, %v3545
  %v7090 = vmul.f32 %v1107, %v3514
  %v7091 = vmul.f32 %v1108, %v3546
  %v7092 = vmul.f32 %v1109, %v3515
  %v7093 = vmul.f32 %v1110, %v3547
  %v7094 = vmul.f32 %v1111, %v3516
  %v7095 = vmul.f32 %v1112, %v3548
  %v7096 = vmul.f32 %v1113, %v3517
  %v7097 = vmul.f32 %v1114, %v3549
  %v7098 = vmul.f32 %v1115, %v3518
  %v7099 = vmul.f32 %v1116, %v3550
  %v7100 = vmul.f32 %v1117, %v3519
  %v7101 = vmul.f32 %v1118, %v3551
  %v7102 = vmul.f32 %v1119, %v3520
  %v7103 = vmul.f32 %v1120, %v3552
  %v7104 = vmul.f32 %v1121, %v3521
  %v7105 = vmul.f32 %v1122, %v3553
  %v7106 = vmul.f32 %v1123, %v3522
  %v7107 = vmul.f32 %v1124, %v3554
  %v7108 = vmul.f32 %v1125, %v3523
  %v7109 = vmul.f32 %v1126, %v3555
  %v7110 = vmul.f32 %v1127, %v3524
  %v7111 = vmul.f32 %v1128, %v3556
  %v7112 = vmul.f32 %v1129, %v3525
  %v7113 = vmul.f32 %v1130, %v3557
  %v7114 = vpack.c.bf16 %v7052, %v7050
  %v7115 = vpack.c.bf16 %v7053, %v7051
  %v7116 = vpack.c.bf16 %v7056, %v7054
  %v7117 = vpack.c.bf16 %v7057, %v7055
  %v7118 = vpack.c.bf16 %v7060, %v7058
  %v7119 = vpack.c.bf16 %v7061, %v7059
  %v7120 = vpack.c.bf16 %v7064, %v7062
  %v7121 = vpack.c.bf16 %v7065, %v7063
  %v7122 = vpack.c.bf16 %v7068, %v7066
  %v7123 = vpack.c.bf16 %v7069, %v7067
  %v7124 = vpack.c.bf16 %v7072, %v7070
  %v7125 = vpack.c.bf16 %v7073, %v7071
  %v7126 = vpack.c.bf16 %v7076, %v7074
  %v7127 = vpack.c.bf16 %v7077, %v7075
  %v7128 = vpack.c.bf16 %v7080, %v7078
  %v7129 = vpack.c.bf16 %v7081, %v7079
  %v7130 = vpack.c.bf16 %v7084, %v7082
  %v7131 = vpack.c.bf16 %v7085, %v7083
  %v7132 = vpack.c.bf16 %v7088, %v7086
  %v7133 = vpack.c.bf16 %v7089, %v7087
  %v7134 = vpack.c.bf16 %v7092, %v7090
  %v7135 = vpack.c.bf16 %v7093, %v7091
  %v7136 = vpack.c.bf16 %v7096, %v7094
  %v7137 = vpack.c.bf16 %v7097, %v7095
  %v7138 = vpack.c.bf16 %v7100, %v7098
  %v7139 = vpack.c.bf16 %v7101, %v7099
  %v7140 = vpack.c.bf16 %v7104, %v7102
  %v7141 = vpack.c.bf16 %v7105, %v7103
  %v7142 = vpack.c.bf16 %v7108, %v7106
  %v7143 = vpack.c.bf16 %v7109, %v7107
  %v7144 = vpack.c.bf16 %v7112, %v7110
  %v7145 = vpack.c.bf16 %v7113, %v7111
  %7146 = vmatprep.subr.bf16.mxu0 0
  %7147 = vmatpush1.bf16.msra.mxu0 %v1539
  %7148 = vmatprep.subr.bf16.mxu0 0
  %7149 = vmatpush1.bf16.msra.mxu0 %v1538
  %7150 = vmatprep.subr.bf16.mxu0 0
  %7151 = vmatpush1.bf16.msra.mxu0 %v1537
  %7152 = vmatprep.subr.bf16.mxu0 0
  %7153 = vmatpush1.bf16.msra.mxu0 %v1536
  %7154 = vmatprep.subr.bf16.mxu0 0
  %7155 = vmatpush1.bf16.msra.mxu0 %v1535
  %7156 = vmatprep.subr.bf16.mxu0 0
  %7157 = vmatpush1.bf16.msra.mxu0 %v1534
  %7158 = vmatprep.subr.bf16.mxu0 0
  %7159 = vmatpush1.bf16.msra.mxu0 %v1533
  %7160 = vmatprep.subr.bf16.mxu0 0
  %7161 = vmatpush1.bf16.msra.mxu0 %v1532
  %7162 = vmatprep.subr.bf16.mxu0 0
  %7163 = vmatpush2.bf16.msra.mxu0 %v1547
  %7164 = vmatprep.subr.bf16.mxu0 0
  %7165 = vmatpush2.bf16.msra.mxu0 %v1546
  %7166 = vmatprep.subr.bf16.mxu0 0
  %7167 = vmatpush2.bf16.msra.mxu0 %v1545
  %7168 = vmatprep.subr.bf16.mxu0 0
  %7169 = vmatpush2.bf16.msra.mxu0 %v1544
  %7170 = vmatprep.subr.bf16.mxu0 0
  %7171 = vmatpush2.bf16.msra.mxu0 %v1543
  %7172 = vmatprep.subr.bf16.mxu0 0
  %7173 = vmatpush2.bf16.msra.mxu0 %v1542
  %7174 = vmatprep.subr.bf16.mxu0 0
  %7175 = vmatpush2.bf16.msra.mxu0 %v1541
  %7176 = vmatprep.subr.bf16.mxu0 0
  %7177 = vmatpush2.bf16.msra.mxu0 %v1540
  %7178 = vmatprep.mubr.bf16.mxu0 %v7115
  %7179 = vmatmul.mubr.bf16.gmra.mxu0 %v7114
  %v7180 = vpop.f32.mrf.mxu0
  %v7181 = vadd.f32 %v1168, %v7180
  %v7182 = vpop.f32.mrf.mxu0
  %v7183 = vpop.f32.mrf.mxu0
  %v7184 = vadd.f32 %v1168, %v7183
  %v7185 = vpop.f32.mrf.mxu0
  %7186 = vmatprep.mubr.bf16.mxu0 %v7117
  %7187 = vmatmul.mubr.bf16.gmra.mxu0 %v7116
  %v7188 = vpop.f32.mrf.mxu0
  %v7189 = vadd.f32 %v1168, %v7188
  %v7190 = vpop.f32.mrf.mxu0
  %v7191 = vpop.f32.mrf.mxu0
  %v7192 = vadd.f32 %v1168, %v7191
  %v7193 = vpop.f32.mrf.mxu0
  %7194 = vmatprep.mubr.bf16.mxu0 %v7119
  %7195 = vmatmul.mubr.bf16.gmra.mxu0 %v7118
  %v7196 = vpop.f32.mrf.mxu0
  %v7197 = vadd.f32 %v1168, %v7196
  %v7198 = vpop.f32.mrf.mxu0
  %v7199 = vpop.f32.mrf.mxu0
  %v7200 = vadd.f32 %v1168, %v7199
  %v7201 = vpop.f32.mrf.mxu0
  %7202 = vmatprep.mubr.bf16.mxu0 %v7121
  %7203 = vmatmul.mubr.bf16.gmra.mxu0 %v7120
  %v7204 = vpop.f32.mrf.mxu0
  %v7205 = vadd.f32 %v1168, %v7204
  %v7206 = vpop.f32.mrf.mxu0
  %v7207 = vpop.f32.mrf.mxu0
  %v7208 = vadd.f32 %v1168, %v7207
  %v7209 = vpop.f32.mrf.mxu0
  %7210 = vmatprep.mubr.bf16.mxu0 %v7123
  %7211 = vmatmul.mubr.bf16.gmra.mxu0 %v7122
  %v7212 = vpop.f32.mrf.mxu0
  %v7213 = vadd.f32 %v1168, %v7212
  %v7214 = vpop.f32.mrf.mxu0
  %v7215 = vpop.f32.mrf.mxu0
  %v7216 = vadd.f32 %v1168, %v7215
  %v7217 = vpop.f32.mrf.mxu0
  %7218 = vmatprep.mubr.bf16.mxu0 %v7125
  %7219 = vmatmul.mubr.bf16.gmra.mxu0 %v7124
  %v7220 = vpop.f32.mrf.mxu0
  %v7221 = vadd.f32 %v1168, %v7220
  %v7222 = vpop.f32.mrf.mxu0
  %v7223 = vpop.f32.mrf.mxu0
  %v7224 = vadd.f32 %v1168, %v7223
  %v7225 = vpop.f32.mrf.mxu0
  %7226 = vmatprep.mubr.bf16.mxu0 %v7127
  %7227 = vmatmul.mubr.bf16.gmra.mxu0 %v7126
  %v7228 = vpop.f32.mrf.mxu0
  %v7229 = vadd.f32 %v1168, %v7228
  %v7230 = vpop.f32.mrf.mxu0
  %v7231 = vpop.f32.mrf.mxu0
  %v7232 = vadd.f32 %v1168, %v7231
  %v7233 = vpop.f32.mrf.mxu0
  %7234 = vmatprep.mubr.bf16.mxu0 %v7129
  %7235 = vmatmul.mubr.bf16.gmra.mxu0 %v7128
  %v7236 = vpop.f32.mrf.mxu0
  %v7237 = vadd.f32 %v1168, %v7236
  %v7238 = vpop.f32.mrf.mxu0
  %v7239 = vpop.f32.mrf.mxu0
  %v7240 = vadd.f32 %v1168, %v7239
  %v7241 = vpop.f32.mrf.mxu0
  %7242 = vmatprep.mubr.bf16.mxu0 %v7131
  %7243 = vmatmul.mubr.bf16.gmra.mxu0 %v7130
  %v7244 = vpop.f32.mrf.mxu0
  %v7245 = vadd.f32 %v1168, %v7244
  %v7246 = vpop.f32.mrf.mxu0
  %v7247 = vpop.f32.mrf.mxu0
  %v7248 = vadd.f32 %v1168, %v7247
  %v7249 = vpop.f32.mrf.mxu0
  %7250 = vmatprep.mubr.bf16.mxu0 %v7133
  %7251 = vmatmul.mubr.bf16.gmra.mxu0 %v7132
  %v7252 = vpop.f32.mrf.mxu0
  %v7253 = vadd.f32 %v1168, %v7252
  %v7254 = vpop.f32.mrf.mxu0
  %v7255 = vpop.f32.mrf.mxu0
  %v7256 = vadd.f32 %v1168, %v7255
  %v7257 = vpop.f32.mrf.mxu0
  %7258 = vmatprep.mubr.bf16.mxu0 %v7135
  %7259 = vmatmul.mubr.bf16.gmra.mxu0 %v7134
  %v7260 = vpop.f32.mrf.mxu0
  %v7261 = vadd.f32 %v1168, %v7260
  %v7262 = vpop.f32.mrf.mxu0
  %v7263 = vpop.f32.mrf.mxu0
  %v7264 = vadd.f32 %v1168, %v7263
  %v7265 = vpop.f32.mrf.mxu0
  %7266 = vmatprep.mubr.bf16.mxu0 %v7137
  %7267 = vmatmul.mubr.bf16.gmra.mxu0 %v7136
  %v7268 = vpop.f32.mrf.mxu0
  %v7269 = vadd.f32 %v1168, %v7268
  %v7270 = vpop.f32.mrf.mxu0
  %v7271 = vpop.f32.mrf.mxu0
  %v7272 = vadd.f32 %v1168, %v7271
  %v7273 = vpop.f32.mrf.mxu0
  %7274 = vmatprep.mubr.bf16.mxu0 %v7139
  %7275 = vmatmul.mubr.bf16.gmra.mxu0 %v7138
  %v7276 = vpop.f32.mrf.mxu0
  %v7277 = vadd.f32 %v1168, %v7276
  %v7278 = vpop.f32.mrf.mxu0
  %v7279 = vpop.f32.mrf.mxu0
  %v7280 = vadd.f32 %v1168, %v7279
  %v7281 = vpop.f32.mrf.mxu0
  %7282 = vmatprep.mubr.bf16.mxu0 %v7141
  %7283 = vmatmul.mubr.bf16.gmra.mxu0 %v7140
  %v7284 = vpop.f32.mrf.mxu0
  %v7285 = vadd.f32 %v1168, %v7284
  %v7286 = vpop.f32.mrf.mxu0
  %v7287 = vpop.f32.mrf.mxu0
  %v7288 = vadd.f32 %v1168, %v7287
  %v7289 = vpop.f32.mrf.mxu0
  %7290 = vmatprep.mubr.bf16.mxu0 %v7143
  %7291 = vmatmul.mubr.bf16.gmra.mxu0 %v7142
  %v7292 = vpop.f32.mrf.mxu0
  %v7293 = vadd.f32 %v1168, %v7292
  %v7294 = vpop.f32.mrf.mxu0
  %v7295 = vpop.f32.mrf.mxu0
  %v7296 = vadd.f32 %v1168, %v7295
  %v7297 = vpop.f32.mrf.mxu0
  %7298 = vmatprep.mubr.bf16.mxu0 %v7145
  %7299 = vmatmul.mubr.bf16.gmra.mxu0 %v7144
  %v7300 = vpop.f32.mrf.mxu0
  %v7301 = vadd.f32 %v1168, %v7300
  %v7302 = vpop.f32.mrf.mxu0
  %v7303 = vpop.f32.mrf.mxu0
  %v7304 = vadd.f32 %v1168, %v7303
  %v7305 = vpop.f32.mrf.mxu0
  %7306 = vdwg.mxu0
  %v7307 = vmax.f32 %v7181, 0.0
  %v7308 = vmax.f32 %v7184, 0.0
  %v7309 = vmax.f32 %v7189, 0.0
  %v7310 = vmax.f32 %v7192, 0.0
  %v7311 = vmax.f32 %v7197, 0.0
  %v7312 = vmax.f32 %v7200, 0.0
  %v7313 = vmax.f32 %v7205, 0.0
  %v7314 = vmax.f32 %v7208, 0.0
  %v7315 = vmax.f32 %v7213, 0.0
  %v7316 = vmax.f32 %v7216, 0.0
  %v7317 = vmax.f32 %v7221, 0.0
  %v7318 = vmax.f32 %v7224, 0.0
  %v7319 = vmax.f32 %v7229, 0.0
  %v7320 = vmax.f32 %v7232, 0.0
  %v7321 = vmax.f32 %v7237, 0.0
  %v7322 = vmax.f32 %v7240, 0.0
  %v7323 = vmax.f32 %v7245, 0.0
  %v7324 = vmax.f32 %v7248, 0.0
  %v7325 = vmax.f32 %v7253, 0.0
  %v7326 = vmax.f32 %v7256, 0.0
  %v7327 = vmax.f32 %v7261, 0.0
  %v7328 = vmax.f32 %v7264, 0.0
  %v7329 = vmax.f32 %v7269, 0.0
  %v7330 = vmax.f32 %v7272, 0.0
  %v7331 = vmax.f32 %v7277, 0.0
  %v7332 = vmax.f32 %v7280, 0.0
  %v7333 = vmax.f32 %v7285, 0.0
  %v7334 = vmax.f32 %v7288, 0.0
  %v7335 = vmax.f32 %v7293, 0.0
  %v7336 = vmax.f32 %v7296, 0.0
  %v7337 = vmax.f32 %v7301, 0.0
  %v7338 = vmax.f32 %v7304, 0.0
  %v7339 = vpack.c.bf16 %v7308, %v7307
  %v7340 = vpack.c.bf16 %v7310, %v7309
  %v7341 = vpack.c.bf16 %v7312, %v7311
  %v7342 = vpack.c.bf16 %v7314, %v7313
  %v7343 = vpack.c.bf16 %v7316, %v7315
  %v7344 = vpack.c.bf16 %v7318, %v7317
  %v7345 = vpack.c.bf16 %v7320, %v7319
  %v7346 = vpack.c.bf16 %v7322, %v7321
  %v7347 = vpack.c.bf16 %v7324, %v7323
  %v7348 = vpack.c.bf16 %v7326, %v7325
  %v7349 = vpack.c.bf16 %v7328, %v7327
  %v7350 = vpack.c.bf16 %v7330, %v7329
  %v7351 = vpack.c.bf16 %v7332, %v7331
  %v7352 = vpack.c.bf16 %v7334, %v7333
  %v7353 = vpack.c.bf16 %v7336, %v7335
  %v7354 = vpack.c.bf16 %v7338, %v7337
  %s7355 = scalar_lea.vmem %s5, 384
  %v7356 = vld [vmem:[%s7355] sm:$0xf]
  %v7357 = vld [vmem:[%s7355 + $0x4] sm:$0xf]
  %v7358 = vld [vmem:[%s7355 + $0x8] sm:$0xf]
  %v7359 = vld [vmem:[%s7355 + $0xc] sm:$0xf]
  %v7360 = vld [vmem:[%s7355 + $0x10] sm:$0xf]
  %v7361 = vld [vmem:[%s7355 + $0x14] sm:$0xf]
  %v7362 = vld [vmem:[%s7355 + $0x18] sm:$0xf]
  %v7363 = vld [vmem:[%s7355 + $0x1c] sm:$0xf]
  %v7364 = vld [vmem:[%s7355 + $0x20] sm:$0xf]
  %v7365 = vld [vmem:[%s7355 + $0x24] sm:$0xf]
  %v7366 = vld [vmem:[%s7355 + $0x28] sm:$0xf]
  %v7367 = vld [vmem:[%s7355 + $0x2c] sm:$0xf]
  %v7368 = vld [vmem:[%s7355 + $0x30] sm:$0xf]
  %v7369 = vld [vmem:[%s7355 + $0x34] sm:$0xf]
  %v7370 = vld [vmem:[%s7355 + $0x38] sm:$0xf]
  %v7371 = vld [vmem:[%s7355 + $0x3c] sm:$0xf]
  %v7388 = vunpack.c.l.b16 %v7356
  %v7389 = vunpack.c.l.b16 %v7357
  %v7390 = vunpack.c.l.b16 %v7358
  %v7391 = vunpack.c.l.b16 %v7359
  %v7392 = vunpack.c.l.b16 %v7360
  %v7393 = vunpack.c.l.b16 %v7361
  %v7394 = vunpack.c.l.b16 %v7362
  %v7395 = vunpack.c.l.b16 %v7363
  %v7396 = vunpack.c.l.b16 %v7364
  %v7397 = vunpack.c.l.b16 %v7365
  %v7398 = vunpack.c.l.b16 %v7366
  %v7399 = vunpack.c.l.b16 %v7367
  %v7400 = vunpack.c.l.b16 %v7368
  %v7401 = vunpack.c.l.b16 %v7369
  %v7402 = vunpack.c.l.b16 %v7370
  %v7403 = vunpack.c.l.b16 %v7371
  %v7404 = vpack.c.b16 %v7389, %v7388
  %v7405 = vpack.c.b16 %v7391, %v7390
  %v7406 = vpack.c.b16 %v7393, %v7392
  %v7407 = vpack.c.b16 %v7395, %v7394
  %v7408 = vpack.c.b16 %v7397, %v7396
  %v7409 = vpack.c.b16 %v7399, %v7398
  %v7410 = vpack.c.b16 %v7401, %v7400
  %v7411 = vpack.c.b16 %v7403, %v7402
  %7420 = vmatprep.subr.bf16.mxu0 0
  %7421 = vmatpush1.bf16.msra.mxu0 %v7411
  %7422 = vmatprep.subr.bf16.mxu0 0
  %7423 = vmatpush1.bf16.msra.mxu0 %v7410
  %7424 = vmatprep.subr.bf16.mxu0 0
  %7425 = vmatpush1.bf16.msra.mxu0 %v7409
  %7426 = vmatprep.subr.bf16.mxu0 0
  %7427 = vmatpush1.bf16.msra.mxu0 %v7408
  %7428 = vmatprep.subr.bf16.mxu0 0
  %7429 = vmatpush1.bf16.msra.mxu0 %v7407
  %7430 = vmatprep.subr.bf16.mxu0 0
  %7431 = vmatpush1.bf16.msra.mxu0 %v7406
  %7432 = vmatprep.subr.bf16.mxu0 0
  %7433 = vmatpush1.bf16.msra.mxu0 %v7405
  %7434 = vmatprep.subr.bf16.mxu0 0
  %7435 = vmatpush1.bf16.msra.mxu0 %v7404
  %7436 = vmatprep.subr.bf16.mxu0 0
  %7437 = vmatpush2.bf16.msra.mxu0 0
  %7438 = vmatprep.subr.bf16.mxu0 0
  %7439 = vmatpush2.bf16.msra.mxu0 0
  %7440 = vmatprep.subr.bf16.mxu0 0
  %7441 = vmatpush2.bf16.msra.mxu0 0
  %7442 = vmatprep.subr.bf16.mxu0 0
  %7443 = vmatpush2.bf16.msra.mxu0 0
  %7444 = vmatprep.subr.bf16.mxu0 0
  %7445 = vmatpush2.bf16.msra.mxu0 0
  %7446 = vmatprep.subr.bf16.mxu0 0
  %7447 = vmatpush2.bf16.msra.mxu0 0
  %7448 = vmatprep.subr.bf16.mxu0 0
  %7449 = vmatpush2.bf16.msra.mxu0 0
  %7450 = vmatprep.subr.bf16.mxu0 0
  %7451 = vmatpush2.bf16.msra.mxu0 0
  %7452 = vmatprep.mubr.bf16.mxu0 0
  %7453 = vmatmul.mubr.bf16.gmra.mxu0 %v7339
  %v7454 = vpop.f32.mrf.mxu0
  %v7455 = vadd.f32 0.0, %v7454
  %v7456 = vpop.f32.mrf.mxu0
  %v7457 = vpop.f32.mrf.mxu0
  %v7458 = vadd.f32 0.0, %v7457
  %v7459 = vpop.f32.mrf.mxu0
  %7460 = vmatprep.mubr.bf16.mxu0 0
  %7461 = vmatmul.mubr.bf16.gmra.mxu0 %v7340
  %v7462 = vpop.f32.mrf.mxu0
  %v7463 = vadd.f32 0.0, %v7462
  %v7464 = vpop.f32.mrf.mxu0
  %v7465 = vpop.f32.mrf.mxu0
  %v7466 = vadd.f32 0.0, %v7465
  %v7467 = vpop.f32.mrf.mxu0
  %7468 = vmatprep.mubr.bf16.mxu0 0
  %7469 = vmatmul.mubr.bf16.gmra.mxu0 %v7341
  %v7470 = vpop.f32.mrf.mxu0
  %v7471 = vadd.f32 0.0, %v7470
  %v7472 = vpop.f32.mrf.mxu0
  %v7473 = vpop.f32.mrf.mxu0
  %v7474 = vadd.f32 0.0, %v7473
  %v7475 = vpop.f32.mrf.mxu0
  %7476 = vmatprep.mubr.bf16.mxu0 0
  %7477 = vmatmul.mubr.bf16.gmra.mxu0 %v7342
  %v7478 = vpop.f32.mrf.mxu0
  %v7479 = vadd.f32 0.0, %v7478
  %v7480 = vpop.f32.mrf.mxu0
  %v7481 = vpop.f32.mrf.mxu0
  %v7482 = vadd.f32 0.0, %v7481
  %v7483 = vpop.f32.mrf.mxu0
  %7484 = vmatprep.mubr.bf16.mxu0 0
  %7485 = vmatmul.mubr.bf16.gmra.mxu0 %v7343
  %v7486 = vpop.f32.mrf.mxu0
  %v7487 = vadd.f32 0.0, %v7486
  %v7488 = vpop.f32.mrf.mxu0
  %v7489 = vpop.f32.mrf.mxu0
  %v7490 = vadd.f32 0.0, %v7489
  %v7491 = vpop.f32.mrf.mxu0
  %7492 = vmatprep.mubr.bf16.mxu0 0
  %7493 = vmatmul.mubr.bf16.gmra.mxu0 %v7344
  %v7494 = vpop.f32.mrf.mxu0
  %v7495 = vadd.f32 0.0, %v7494
  %v7496 = vpop.f32.mrf.mxu0
  %v7497 = vpop.f32.mrf.mxu0
  %v7498 = vadd.f32 0.0, %v7497
  %v7499 = vpop.f32.mrf.mxu0
  %7500 = vmatprep.mubr.bf16.mxu0 0
  %7501 = vmatmul.mubr.bf16.gmra.mxu0 %v7345
  %v7502 = vpop.f32.mrf.mxu0
  %v7503 = vadd.f32 0.0, %v7502
  %v7504 = vpop.f32.mrf.mxu0
  %v7505 = vpop.f32.mrf.mxu0
  %v7506 = vadd.f32 0.0, %v7505
  %v7507 = vpop.f32.mrf.mxu0
  %7508 = vmatprep.mubr.bf16.mxu0 0
  %7509 = vmatmul.mubr.bf16.gmra.mxu0 %v7346
  %v7510 = vpop.f32.mrf.mxu0
  %v7511 = vadd.f32 0.0, %v7510
  %v7512 = vpop.f32.mrf.mxu0
  %v7513 = vpop.f32.mrf.mxu0
  %v7514 = vadd.f32 0.0, %v7513
  %v7515 = vpop.f32.mrf.mxu0
  %7516 = vmatprep.mubr.bf16.mxu0 0
  %7517 = vmatmul.mubr.bf16.gmra.mxu0 %v7347
  %v7518 = vpop.f32.mrf.mxu0
  %v7519 = vadd.f32 0.0, %v7518
  %v7520 = vpop.f32.mrf.mxu0
  %v7521 = vpop.f32.mrf.mxu0
  %v7522 = vadd.f32 0.0, %v7521
  %v7523 = vpop.f32.mrf.mxu0
  %7524 = vmatprep.mubr.bf16.mxu0 0
  %7525 = vmatmul.mubr.bf16.gmra.mxu0 %v7348
  %v7526 = vpop.f32.mrf.mxu0
  %v7527 = vadd.f32 0.0, %v7526
  %v7528 = vpop.f32.mrf.mxu0
  %v7529 = vpop.f32.mrf.mxu0
  %v7530 = vadd.f32 0.0, %v7529
  %v7531 = vpop.f32.mrf.mxu0
  %7532 = vmatprep.mubr.bf16.mxu0 0
  %7533 = vmatmul.mubr.bf16.gmra.mxu0 %v7349
  %v7534 = vpop.f32.mrf.mxu0
  %v7535 = vadd.f32 0.0, %v7534
  %v7536 = vpop.f32.mrf.mxu0
  %v7537 = vpop.f32.mrf.mxu0
  %v7538 = vadd.f32 0.0, %v7537
  %v7539 = vpop.f32.mrf.mxu0
  %7540 = vmatprep.mubr.bf16.mxu0 0
  %7541 = vmatmul.mubr.bf16.gmra.mxu0 %v7350
  %v7542 = vpop.f32.mrf.mxu0
  %v7543 = vadd.f32 0.0, %v7542
  %v7544 = vpop.f32.mrf.mxu0
  %v7545 = vpop.f32.mrf.mxu0
  %v7546 = vadd.f32 0.0, %v7545
  %v7547 = vpop.f32.mrf.mxu0
  %7548 = vmatprep.mubr.bf16.mxu0 0
  %7549 = vmatmul.mubr.bf16.gmra.mxu0 %v7351
  %v7550 = vpop.f32.mrf.mxu0
  %v7551 = vadd.f32 0.0, %v7550
  %v7552 = vpop.f32.mrf.mxu0
  %v7553 = vpop.f32.mrf.mxu0
  %v7554 = vadd.f32 0.0, %v7553
  %v7555 = vpop.f32.mrf.mxu0
  %7556 = vmatprep.mubr.bf16.mxu0 0
  %7557 = vmatmul.mubr.bf16.gmra.mxu0 %v7352
  %v7558 = vpop.f32.mrf.mxu0
  %v7559 = vadd.f32 0.0, %v7558
  %v7560 = vpop.f32.mrf.mxu0
  %v7561 = vpop.f32.mrf.mxu0
  %v7562 = vadd.f32 0.0, %v7561
  %v7563 = vpop.f32.mrf.mxu0
  %7564 = vmatprep.mubr.bf16.mxu0 0
  %7565 = vmatmul.mubr.bf16.gmra.mxu0 %v7353
  %v7566 = vpop.f32.mrf.mxu0
  %v7567 = vadd.f32 0.0, %v7566
  %v7568 = vpop.f32.mrf.mxu0
  %v7569 = vpop.f32.mrf.mxu0
  %v7570 = vadd.f32 0.0, %v7569
  %v7571 = vpop.f32.mrf.mxu0
  %7572 = vmatprep.mubr.bf16.mxu0 0
  %7573 = vmatmul.mubr.bf16.gmra.mxu0 %v7354
  %v7574 = vpop.f32.mrf.mxu0
  %v7575 = vadd.f32 0.0, %v7574
  %v7576 = vpop.f32.mrf.mxu0
  %v7577 = vpop.f32.mrf.mxu0
  %v7578 = vadd.f32 0.0, %v7577
  %v7579 = vpop.f32.mrf.mxu0
  %7580 = vdwg.mxu0
  %v7581 = vadd.f32 %v6696, %v7455
  %v7582 = vadd.f32 %v6697, %v7458
  %v7583 = vadd.f32 %v6698, %v7463
  %v7584 = vadd.f32 %v6699, %v7466
  %v7585 = vadd.f32 %v6700, %v7471
  %v7586 = vadd.f32 %v6701, %v7474
  %v7587 = vadd.f32 %v6702, %v7479
  %v7588 = vadd.f32 %v6703, %v7482
  %v7589 = vadd.f32 %v6704, %v7487
  %v7590 = vadd.f32 %v6705, %v7490
  %v7591 = vadd.f32 %v6706, %v7495
  %v7592 = vadd.f32 %v6707, %v7498
  %v7593 = vadd.f32 %v6708, %v7503
  %v7594 = vadd.f32 %v6709, %v7506
  %v7595 = vadd.f32 %v6710, %v7511
  %v7596 = vadd.f32 %v6711, %v7514
  %v7597 = vadd.f32 %v6712, %v7519
  %v7598 = vadd.f32 %v6713, %v7522
  %v7599 = vadd.f32 %v6714, %v7527
  %v7600 = vadd.f32 %v6715, %v7530
  %v7601 = vadd.f32 %v6716, %v7535
  %v7602 = vadd.f32 %v6717, %v7538
  %v7603 = vadd.f32 %v6718, %v7543
  %v7604 = vadd.f32 %v6719, %v7546
  %v7605 = vadd.f32 %v6720, %v7551
  %v7606 = vadd.f32 %v6721, %v7554
  %v7607 = vadd.f32 %v6722, %v7559
  %v7608 = vadd.f32 %v6723, %v7562
  %v7609 = vadd.f32 %v6724, %v7567
  %v7610 = vadd.f32 %v6725, %v7570
  %v7611 = vadd.f32 %v6726, %v7575
  %v7612 = vadd.f32 %v6727, %v7578
  %s7613 = scalar_lea.vmem %s6, 768
  %v7614 = vld [vmem:[%s7613] sm:$0xf]
  %v7615 = vld [vmem:[%s7613 + $0x4] sm:$0xf]
  %v7616 = vld [vmem:[%s7613 + $0x8] sm:$0xf]
  %v7617 = vld [vmem:[%s7613 + $0xc] sm:$0xf]
  %v7618 = vld [vmem:[%s7613 + $0x10] sm:$0xf]
  %v7619 = vld [vmem:[%s7613 + $0x14] sm:$0xf]
  %v7620 = vld [vmem:[%s7613 + $0x18] sm:$0xf]
  %v7621 = vld [vmem:[%s7613 + $0x1c] sm:$0xf]
  %v7622 = vld [vmem:[%s7613 + $0x20] sm:$0xf]
  %v7623 = vld [vmem:[%s7613 + $0x24] sm:$0xf]
  %v7624 = vld [vmem:[%s7613 + $0x28] sm:$0xf]
  %v7625 = vld [vmem:[%s7613 + $0x2c] sm:$0xf]
  %v7626 = vld [vmem:[%s7613 + $0x30] sm:$0xf]
  %v7627 = vld [vmem:[%s7613 + $0x34] sm:$0xf]
  %v7628 = vld [vmem:[%s7613 + $0x38] sm:$0xf]
  %v7629 = vld [vmem:[%s7613 + $0x3c] sm:$0xf]
  %v7630 = vld [vmem:[%s7613 + $0x40] sm:$0xf]
  %v7631 = vld [vmem:[%s7613 + $0x44] sm:$0xf]
  %v7632 = vld [vmem:[%s7613 + $0x48] sm:$0xf]
  %v7633 = vld [vmem:[%s7613 + $0x4c] sm:$0xf]
  %v7634 = vld [vmem:[%s7613 + $0x50] sm:$0xf]
  %v7635 = vld [vmem:[%s7613 + $0x54] sm:$0xf]
  %v7636 = vld [vmem:[%s7613 + $0x58] sm:$0xf]
  %v7637 = vld [vmem:[%s7613 + $0x5c] sm:$0xf]
  %v7638 = vld [vmem:[%s7613 + $0x60] sm:$0xf]
  %v7639 = vld [vmem:[%s7613 + $0x64] sm:$0xf]
  %v7640 = vld [vmem:[%s7613 + $0x68] sm:$0xf]
  %v7641 = vld [vmem:[%s7613 + $0x6c] sm:$0xf]
  %v7642 = vld [vmem:[%s7613 + $0x70] sm:$0xf]
  %v7643 = vld [vmem:[%s7613 + $0x74] sm:$0xf]
  %v7644 = vld [vmem:[%s7613 + $0x78] sm:$0xf]
  %v7645 = vld [vmem:[%s7613 + $0x7c] sm:$0xf]
  %v7678 = vunpack.c.l.b16 %v7614
  %v7679 = vunpack.c.l.b16 %v7615
  %v7680 = vunpack.c.l.b16 %v7616
  %v7681 = vunpack.c.l.b16 %v7617
  %v7682 = vunpack.c.l.b16 %v7618
  %v7683 = vunpack.c.l.b16 %v7619
  %v7684 = vunpack.c.l.b16 %v7620
  %v7685 = vunpack.c.l.b16 %v7621
  %v7686 = vunpack.c.l.b16 %v7622
  %v7687 = vunpack.c.l.b16 %v7623
  %v7688 = vunpack.c.l.b16 %v7624
  %v7689 = vunpack.c.l.b16 %v7625
  %v7690 = vunpack.c.l.b16 %v7626
  %v7691 = vunpack.c.l.b16 %v7627
  %v7692 = vunpack.c.l.b16 %v7628
  %v7693 = vunpack.c.l.b16 %v7629
  %v7694 = vunpack.c.l.b16 %v7630
  %v7695 = vunpack.c.l.b16 %v7631
  %v7696 = vunpack.c.l.b16 %v7632
  %v7697 = vunpack.c.l.b16 %v7633
  %v7698 = vunpack.c.l.b16 %v7634
  %v7699 = vunpack.c.l.b16 %v7635
  %v7700 = vunpack.c.l.b16 %v7636
  %v7701 = vunpack.c.l.b16 %v7637
  %v7702 = vunpack.c.l.b16 %v7638
  %v7703 = vunpack.c.l.b16 %v7639
  %v7704 = vunpack.c.l.b16 %v7640
  %v7705 = vunpack.c.l.b16 %v7641
  %v7706 = vunpack.c.l.b16 %v7642
  %v7707 = vunpack.c.l.b16 %v7643
  %v7708 = vunpack.c.l.b16 %v7644
  %v7709 = vunpack.c.l.b16 %v7645
  %v7710 = vpack.c.b16 %v7679, %v7678
  %v7711 = vpack.c.b16 %v7681, %v7680
  %v7712 = vpack.c.b16 %v7683, %v7682
  %v7713 = vpack.c.b16 %v7685, %v7684
  %v7714 = vpack.c.b16 %v7687, %v7686
  %v7715 = vpack.c.b16 %v7689, %v7688
  %v7716 = vpack.c.b16 %v7691, %v7690
  %v7717 = vpack.c.b16 %v7693, %v7692
  %v7718 = vpack.c.b16 %v7695, %v7694
  %v7719 = vpack.c.b16 %v7697, %v7696
  %v7720 = vpack.c.b16 %v7699, %v7698
  %v7721 = vpack.c.b16 %v7701, %v7700
  %v7722 = vpack.c.b16 %v7703, %v7702
  %v7723 = vpack.c.b16 %v7705, %v7704
  %v7724 = vpack.c.b16 %v7707, %v7706
  %v7725 = vpack.c.b16 %v7709, %v7708
  %7742 = vmatprep.subr.bf16.mxu0 0
  %7743 = vmatpush1.bf16.msra.mxu0 %v7717
  %7744 = vmatprep.subr.bf16.mxu0 0
  %7745 = vmatpush1.bf16.msra.mxu0 %v7716
  %7746 = vmatprep.subr.bf16.mxu0 0
  %7747 = vmatpush1.bf16.msra.mxu0 %v7715
  %7748 = vmatprep.subr.bf16.mxu0 0
  %7749 = vmatpush1.bf16.msra.mxu0 %v7714
  %7750 = vmatprep.subr.bf16.mxu0 0
  %7751 = vmatpush1.bf16.msra.mxu0 %v7713
  %7752 = vmatprep.subr.bf16.mxu0 0
  %7753 = vmatpush1.bf16.msra.mxu0 %v7712
  %7754 = vmatprep.subr.bf16.mxu0 0
  %7755 = vmatpush1.bf16.msra.mxu0 %v7711
  %7756 = vmatprep.subr.bf16.mxu0 0
  %7757 = vmatpush1.bf16.msra.mxu0 %v7710
  %7758 = vmatprep.subr.bf16.mxu0 0
  %7759 = vmatpush2.bf16.msra.mxu0 %v7725
  %7760 = vmatprep.subr.bf16.mxu0 0
  %7761 = vmatpush2.bf16.msra.mxu0 %v7724
  %7762 = vmatprep.subr.bf16.mxu0 0
  %7763 = vmatpush2.bf16.msra.mxu0 %v7723
  %7764 = vmatprep.subr.bf16.mxu0 0
  %7765 = vmatpush2.bf16.msra.mxu0 %v7722
  %7766 = vmatprep.subr.bf16.mxu0 0
  %7767 = vmatpush2.bf16.msra.mxu0 %v7721
  %7768 = vmatprep.subr.bf16.mxu0 0
  %7769 = vmatpush2.bf16.msra.mxu0 %v7720
  %7770 = vmatprep.subr.bf16.mxu0 0
  %7771 = vmatpush2.bf16.msra.mxu0 %v7719
  %7772 = vmatprep.subr.bf16.mxu0 0
  %7773 = vmatpush2.bf16.msra.mxu0 %v7718
  %7774 = vmatprep.mubr.bf16.mxu0 %v7115
  %7775 = vmatmul.mubr.bf16.gmra.mxu0 %v7114
  %v7776 = vpop.f32.mrf.mxu0
  %v7777 = vadd.f32 0.0, %v7776
  %v7778 = vpop.f32.mrf.mxu0
  %v7779 = vpop.f32.mrf.mxu0
  %v7780 = vadd.f32 0.0, %v7779
  %v7781 = vpop.f32.mrf.mxu0
  %7782 = vmatprep.mubr.bf16.mxu0 %v7117
  %7783 = vmatmul.mubr.bf16.gmra.mxu0 %v7116
  %v7784 = vpop.f32.mrf.mxu0
  %v7785 = vadd.f32 0.0, %v7784
  %v7786 = vpop.f32.mrf.mxu0
  %v7787 = vpop.f32.mrf.mxu0
  %v7788 = vadd.f32 0.0, %v7787
  %v7789 = vpop.f32.mrf.mxu0
  %7790 = vmatprep.mubr.bf16.mxu0 %v7119
  %7791 = vmatmul.mubr.bf16.gmra.mxu0 %v7118
  %v7792 = vpop.f32.mrf.mxu0
  %v7793 = vadd.f32 0.0, %v7792
  %v7794 = vpop.f32.mrf.mxu0
  %v7795 = vpop.f32.mrf.mxu0
  %v7796 = vadd.f32 0.0, %v7795
  %v7797 = vpop.f32.mrf.mxu0
  %7798 = vmatprep.mubr.bf16.mxu0 %v7121
  %7799 = vmatmul.mubr.bf16.gmra.mxu0 %v7120
  %v7800 = vpop.f32.mrf.mxu0
  %v7801 = vadd.f32 0.0, %v7800
  %v7802 = vpop.f32.mrf.mxu0
  %v7803 = vpop.f32.mrf.mxu0
  %v7804 = vadd.f32 0.0, %v7803
  %v7805 = vpop.f32.mrf.mxu0
  %7806 = vmatprep.mubr.bf16.mxu0 %v7123
  %7807 = vmatmul.mubr.bf16.gmra.mxu0 %v7122
  %v7808 = vpop.f32.mrf.mxu0
  %v7809 = vadd.f32 0.0, %v7808
  %v7810 = vpop.f32.mrf.mxu0
  %v7811 = vpop.f32.mrf.mxu0
  %v7812 = vadd.f32 0.0, %v7811
  %v7813 = vpop.f32.mrf.mxu0
  %7814 = vmatprep.mubr.bf16.mxu0 %v7125
  %7815 = vmatmul.mubr.bf16.gmra.mxu0 %v7124
  %v7816 = vpop.f32.mrf.mxu0
  %v7817 = vadd.f32 0.0, %v7816
  %v7818 = vpop.f32.mrf.mxu0
  %v7819 = vpop.f32.mrf.mxu0
  %v7820 = vadd.f32 0.0, %v7819
  %v7821 = vpop.f32.mrf.mxu0
  %7822 = vmatprep.mubr.bf16.mxu0 %v7127
  %7823 = vmatmul.mubr.bf16.gmra.mxu0 %v7126
  %v7824 = vpop.f32.mrf.mxu0
  %v7825 = vadd.f32 0.0, %v7824
  %v7826 = vpop.f32.mrf.mxu0
  %v7827 = vpop.f32.mrf.mxu0
  %v7828 = vadd.f32 0.0, %v7827
  %v7829 = vpop.f32.mrf.mxu0
  %7830 = vmatprep.mubr.bf16.mxu0 %v7129
  %7831 = vmatmul.mubr.bf16.gmra.mxu0 %v7128
  %v7832 = vpop.f32.mrf.mxu0
  %v7833 = vadd.f32 0.0, %v7832
  %v7834 = vpop.f32.mrf.mxu0
  %v7835 = vpop.f32.mrf.mxu0
  %v7836 = vadd.f32 0.0, %v7835
  %v7837 = vpop.f32.mrf.mxu0
  %7838 = vmatprep.mubr.bf16.mxu0 %v7131
  %7839 = vmatmul.mubr.bf16.gmra.mxu0 %v7130
  %v7840 = vpop.f32.mrf.mxu0
  %v7841 = vadd.f32 0.0, %v7840
  %v7842 = vpop.f32.mrf.mxu0
  %v7843 = vpop.f32.mrf.mxu0
  %v7844 = vadd.f32 0.0, %v7843
  %v7845 = vpop.f32.mrf.mxu0
  %7846 = vmatprep.mubr.bf16.mxu0 %v7133
  %7847 = vmatmul.mubr.bf16.gmra.mxu0 %v7132
  %v7848 = vpop.f32.mrf.mxu0
  %v7849 = vadd.f32 0.0, %v7848
  %v7850 = vpop.f32.mrf.mxu0
  %v7851 = vpop.f32.mrf.mxu0
  %v7852 = vadd.f32 0.0, %v7851
  %v7853 = vpop.f32.mrf.mxu0
  %7854 = vmatprep.mubr.bf16.mxu0 %v7135
  %7855 = vmatmul.mubr.bf16.gmra.mxu0 %v7134
  %v7856 = vpop.f32.mrf.mxu0
  %v7857 = vadd.f32 0.0, %v7856
  %v7858 = vpop.f32.mrf.mxu0
  %v7859 = vpop.f32.mrf.mxu0
  %v7860 = vadd.f32 0.0, %v7859
  %v7861 = vpop.f32.mrf.mxu0
  %7862 = vmatprep.mubr.bf16.mxu0 %v7137
  %7863 = vmatmul.mubr.bf16.gmra.mxu0 %v7136
  %v7864 = vpop.f32.mrf.mxu0
  %v7865 = vadd.f32 0.0, %v7864
  %v7866 = vpop.f32.mrf.mxu0
  %v7867 = vpop.f32.mrf.mxu0
  %v7868 = vadd.f32 0.0, %v7867
  %v7869 = vpop.f32.mrf.mxu0
  %7870 = vmatprep.mubr.bf16.mxu0 %v7139
  %7871 = vmatmul.mubr.bf16.gmra.mxu0 %v7138
  %v7872 = vpop.f32.mrf.mxu0
  %v7873 = vadd.f32 0.0, %v7872
  %v7874 = vpop.f32.mrf.mxu0
  %v7875 = vpop.f32.mrf.mxu0
  %v7876 = vadd.f32 0.0, %v7875
  %v7877 = vpop.f32.mrf.mxu0
  %7878 = vmatprep.mubr.bf16.mxu0 %v7141
  %7879 = vmatmul.mubr.bf16.gmra.mxu0 %v7140
  %v7880 = vpop.f32.mrf.mxu0
  %v7881 = vadd.f32 0.0, %v7880
  %v7882 = vpop.f32.mrf.mxu0
  %v7883 = vpop.f32.mrf.mxu0
  %v7884 = vadd.f32 0.0, %v7883
  %v7885 = vpop.f32.mrf.mxu0
  %7886 = vmatprep.mubr.bf16.mxu0 %v7143
  %7887 = vmatmul.mubr.bf16.gmra.mxu0 %v7142
  %v7888 = vpop.f32.mrf.mxu0
  %v7889 = vadd.f32 0.0, %v7888
  %v7890 = vpop.f32.mrf.mxu0
  %v7891 = vpop.f32.mrf.mxu0
  %v7892 = vadd.f32 0.0, %v7891
  %v7893 = vpop.f32.mrf.mxu0
  %7894 = vmatprep.mubr.bf16.mxu0 %v7145
  %7895 = vmatmul.mubr.bf16.gmra.mxu0 %v7144
  %v7896 = vpop.f32.mrf.mxu0
  %v7897 = vadd.f32 0.0, %v7896
  %v7898 = vpop.f32.mrf.mxu0
  %v7899 = vpop.f32.mrf.mxu0
  %v7900 = vadd.f32 0.0, %v7899
  %v7901 = vpop.f32.mrf.mxu0
  %7902 = vdwg.mxu0
  %v7903 = vadd.f32 %v7018, %v7777
  %v7904 = vadd.f32 %v7019, %v7780
  %v7905 = vadd.f32 %v7020, %v7785
  %v7906 = vadd.f32 %v7021, %v7788
  %v7907 = vadd.f32 %v7022, %v7793
  %v7908 = vadd.f32 %v7023, %v7796
  %v7909 = vadd.f32 %v7024, %v7801
  %v7910 = vadd.f32 %v7025, %v7804
  %v7911 = vadd.f32 %v7026, %v7809
  %v7912 = vadd.f32 %v7027, %v7812
  %v7913 = vadd.f32 %v7028, %v7817
  %v7914 = vadd.f32 %v7029, %v7820
  %v7915 = vadd.f32 %v7030, %v7825
  %v7916 = vadd.f32 %v7031, %v7828
  %v7917 = vadd.f32 %v7032, %v7833
  %v7918 = vadd.f32 %v7033, %v7836
  %v7919 = vadd.f32 %v7034, %v7841
  %v7920 = vadd.f32 %v7035, %v7844
  %v7921 = vadd.f32 %v7036, %v7849
  %v7922 = vadd.f32 %v7037, %v7852
  %v7923 = vadd.f32 %v7038, %v7857
  %v7924 = vadd.f32 %v7039, %v7860
  %v7925 = vadd.f32 %v7040, %v7865
  %v7926 = vadd.f32 %v7041, %v7868
  %v7927 = vadd.f32 %v7042, %v7873
  %v7928 = vadd.f32 %v7043, %v7876
  %v7929 = vadd.f32 %v7044, %v7881
  %v7930 = vadd.f32 %v7045, %v7884
  %v7931 = vadd.f32 %v7046, %v7889
  %v7932 = vadd.f32 %v7047, %v7892
  %v7933 = vadd.f32 %v7048, %v7897
  %v7934 = vadd.f32 %v7049, %v7900
  %vm7935 = vcmask 523264
  %v7936 = vsel %vm7935, %v7581, -inf
  %7937 = vmax.xlane.f32.xlu0 %v7936
  %v7938 = vpop.xlane.xlu0 %7937
  %v7939 = vsel %vm7935, %v7582, -inf
  %7940 = vmax.xlane.f32.xlu0 %v7939
  %v7941 = vpop.xlane.xlu0 %7940
  %v7942 = vsel %vm7935, %v7583, -inf
  %7943 = vmax.xlane.f32.xlu0 %v7942
  %v7944 = vpop.xlane.xlu0 %7943
  %v7945 = vsel %vm7935, %v7584, -inf
  %7946 = vmax.xlane.f32.xlu0 %v7945
  %v7947 = vpop.xlane.xlu0 %7946
  %v7948 = vsel %vm7935, %v7585, -inf
  %7949 = vmax.xlane.f32.xlu0 %v7948
  %v7950 = vpop.xlane.xlu0 %7949
  %v7951 = vsel %vm7935, %v7586, -inf
  %7952 = vmax.xlane.f32.xlu0 %v7951
  %v7953 = vpop.xlane.xlu0 %7952
  %v7954 = vsel %vm7935, %v7587, -inf
  %7955 = vmax.xlane.f32.xlu0 %v7954
  %v7956 = vpop.xlane.xlu0 %7955
  %v7957 = vsel %vm7935, %v7588, -inf
  %7958 = vmax.xlane.f32.xlu0 %v7957
  %v7959 = vpop.xlane.xlu0 %7958
  %v7960 = vsel %vm7935, %v7589, -inf
  %7961 = vmax.xlane.f32.xlu0 %v7960
  %v7962 = vpop.xlane.xlu0 %7961
  %v7963 = vsel %vm7935, %v7590, -inf
  %7964 = vmax.xlane.f32.xlu0 %v7963
  %v7965 = vpop.xlane.xlu0 %7964
  %v7966 = vsel %vm7935, %v7591, -inf
  %7967 = vmax.xlane.f32.xlu0 %v7966
  %v7968 = vpop.xlane.xlu0 %7967
  %v7969 = vsel %vm7935, %v7592, -inf
  %7970 = vmax.xlane.f32.xlu0 %v7969
  %v7971 = vpop.xlane.xlu0 %7970
  %v7972 = vsel %vm7935, %v7593, -inf
  %7973 = vmax.xlane.f32.xlu0 %v7972
  %v7974 = vpop.xlane.xlu0 %7973
  %v7975 = vsel %vm7935, %v7594, -inf
  %7976 = vmax.xlane.f32.xlu0 %v7975
  %v7977 = vpop.xlane.xlu0 %7976
  %v7978 = vsel %vm7935, %v7595, -inf
  %7979 = vmax.xlane.f32.xlu0 %v7978
  %v7980 = vpop.xlane.xlu0 %7979
  %v7981 = vsel %vm7935, %v7596, -inf
  %7982 = vmax.xlane.f32.xlu0 %v7981
  %v7983 = vpop.xlane.xlu0 %7982
  %v7984 = vsel %vm7935, %v7597, -inf
  %7985 = vmax.xlane.f32.xlu0 %v7984
  %v7986 = vpop.xlane.xlu0 %7985
  %v7987 = vsel %vm7935, %v7598, -inf
  %7988 = vmax.xlane.f32.xlu0 %v7987
  %v7989 = vpop.xlane.xlu0 %7988
  %v7990 = vsel %vm7935, %v7599, -inf
  %7991 = vmax.xlane.f32.xlu0 %v7990
  %v7992 = vpop.xlane.xlu0 %7991
  %v7993 = vsel %vm7935, %v7600, -inf
  %7994 = vmax.xlane.f32.xlu0 %v7993
  %v7995 = vpop.xlane.xlu0 %7994
  %v7996 = vsel %vm7935, %v7601, -inf
  %7997 = vmax.xlane.f32.xlu0 %v7996
  %v7998 = vpop.xlane.xlu0 %7997
  %v7999 = vsel %vm7935, %v7602, -inf
  %8000 = vmax.xlane.f32.xlu0 %v7999
  %v8001 = vpop.xlane.xlu0 %8000
  %v8002 = vsel %vm7935, %v7603, -inf
  %8003 = vmax.xlane.f32.xlu0 %v8002
  %v8004 = vpop.xlane.xlu0 %8003
  %v8005 = vsel %vm7935, %v7604, -inf
  %8006 = vmax.xlane.f32.xlu0 %v8005
  %v8007 = vpop.xlane.xlu0 %8006
  %v8008 = vsel %vm7935, %v7605, -inf
  %8009 = vmax.xlane.f32.xlu0 %v8008
  %v8010 = vpop.xlane.xlu0 %8009
  %v8011 = vsel %vm7935, %v7606, -inf
  %8012 = vmax.xlane.f32.xlu0 %v8011
  %v8013 = vpop.xlane.xlu0 %8012
  %v8014 = vsel %vm7935, %v7607, -inf
  %8015 = vmax.xlane.f32.xlu0 %v8014
  %v8016 = vpop.xlane.xlu0 %8015
  %v8017 = vsel %vm7935, %v7608, -inf
  %8018 = vmax.xlane.f32.xlu0 %v8017
  %v8019 = vpop.xlane.xlu0 %8018
  %v8020 = vsel %vm7935, %v7609, -inf
  %8021 = vmax.xlane.f32.xlu0 %v8020
  %v8022 = vpop.xlane.xlu0 %8021
  %v8023 = vsel %vm7935, %v7610, -inf
  %8024 = vmax.xlane.f32.xlu0 %v8023
  %v8025 = vpop.xlane.xlu0 %8024
  %v8026 = vsel %vm7935, %v7611, -inf
  %8027 = vmax.xlane.f32.xlu0 %v8026
  %v8028 = vpop.xlane.xlu0 %8027
  %v8029 = vsel %vm7935, %v7612, -inf
  %8030 = vmax.xlane.f32.xlu0 %v8029
  %v8031 = vpop.xlane.xlu0 %8030
  %v8032 = vsub.f32 %v7581, %v7938
  %v8033 = vsub.f32 %v7582, %v7941
  %v8034 = vsub.f32 %v7583, %v7944
  %v8035 = vsub.f32 %v7584, %v7947
  %v8036 = vsub.f32 %v7585, %v7950
  %v8037 = vsub.f32 %v7586, %v7953
  %v8038 = vsub.f32 %v7587, %v7956
  %v8039 = vsub.f32 %v7588, %v7959
  %v8040 = vsub.f32 %v7589, %v7962
  %v8041 = vsub.f32 %v7590, %v7965
  %v8042 = vsub.f32 %v7591, %v7968
  %v8043 = vsub.f32 %v7592, %v7971
  %v8044 = vsub.f32 %v7593, %v7974
  %v8045 = vsub.f32 %v7594, %v7977
  %v8046 = vsub.f32 %v7595, %v7980
  %v8047 = vsub.f32 %v7596, %v7983
  %v8048 = vsub.f32 %v7597, %v7986
  %v8049 = vsub.f32 %v7598, %v7989
  %v8050 = vsub.f32 %v7599, %v7992
  %v8051 = vsub.f32 %v7600, %v7995
  %v8052 = vsub.f32 %v7601, %v7998
  %v8053 = vsub.f32 %v7602, %v8001
  %v8054 = vsub.f32 %v7603, %v8004
  %v8055 = vsub.f32 %v7604, %v8007
  %v8056 = vsub.f32 %v7605, %v8010
  %v8057 = vsub.f32 %v7606, %v8013
  %v8058 = vsub.f32 %v7607, %v8016
  %v8059 = vsub.f32 %v7608, %v8019
  %v8060 = vsub.f32 %v7609, %v8022
  %v8061 = vsub.f32 %v7610, %v8025
  %v8062 = vsub.f32 %v7611, %v8028
  %v8063 = vsub.f32 %v7612, %v8031
  %v8064 = vmul.f32 %v8032, 1.442695
  %v8065 = vpow.pop %v8064
  %v8066 = vmul.f32 %v8033, 1.442695
  %v8067 = vpow.pop %v8066
  %v8068 = vmul.f32 %v8034, 1.442695
  %v8069 = vpow.pop %v8068
  %v8070 = vmul.f32 %v8035, 1.442695
  %v8071 = vpow.pop %v8070
  %v8072 = vmul.f32 %v8036, 1.442695
  %v8073 = vpow.pop %v8072
  %v8074 = vmul.f32 %v8037, 1.442695
  %v8075 = vpow.pop %v8074
  %v8076 = vmul.f32 %v8038, 1.442695
  %v8077 = vpow.pop %v8076
  %v8078 = vmul.f32 %v8039, 1.442695
  %v8079 = vpow.pop %v8078
  %v8080 = vmul.f32 %v8040, 1.442695
  %v8081 = vpow.pop %v8080
  %v8082 = vmul.f32 %v8041, 1.442695
  %v8083 = vpow.pop %v8082
  %v8084 = vmul.f32 %v8042, 1.442695
  %v8085 = vpow.pop %v8084
  %v8086 = vmul.f32 %v8043, 1.442695
  %v8087 = vpow.pop %v8086
  %v8088 = vmul.f32 %v8044, 1.442695
  %v8089 = vpow.pop %v8088
  %v8090 = vmul.f32 %v8045, 1.442695
  %v8091 = vpow.pop %v8090
  %v8092 = vmul.f32 %v8046, 1.442695
  %v8093 = vpow.pop %v8092
  %v8094 = vmul.f32 %v8047, 1.442695
  %v8095 = vpow.pop %v8094
  %v8096 = vmul.f32 %v8048, 1.442695
  %v8097 = vpow.pop %v8096
  %v8098 = vmul.f32 %v8049, 1.442695
  %v8099 = vpow.pop %v8098
  %v8100 = vmul.f32 %v8050, 1.442695
  %v8101 = vpow.pop %v8100
  %v8102 = vmul.f32 %v8051, 1.442695
  %v8103 = vpow.pop %v8102
  %v8104 = vmul.f32 %v8052, 1.442695
  %v8105 = vpow.pop %v8104
  %v8106 = vmul.f32 %v8053, 1.442695
  %v8107 = vpow.pop %v8106
  %v8108 = vmul.f32 %v8054, 1.442695
  %v8109 = vpow.pop %v8108
  %v8110 = vmul.f32 %v8055, 1.442695
  %v8111 = vpow.pop %v8110
  %v8112 = vmul.f32 %v8056, 1.442695
  %v8113 = vpow.pop %v8112
  %v8114 = vmul.f32 %v8057, 1.442695
  %v8115 = vpow.pop %v8114
  %v8116 = vmul.f32 %v8058, 1.442695
  %v8117 = vpow.pop %v8116
  %v8118 = vmul.f32 %v8059, 1.442695
  %v8119 = vpow.pop %v8118
  %v8120 = vmul.f32 %v8060, 1.442695
  %v8121 = vpow.pop %v8120
  %v8122 = vmul.f32 %v8061, 1.442695
  %v8123 = vpow.pop %v8122
  %v8124 = vmul.f32 %v8062, 1.442695
  %v8125 = vpow.pop %v8124
  %v8126 = vmul.f32 %v8063, 1.442695
  %v8127 = vpow.pop %v8126
  %v8128 = vsel %vm7935, %v8065, 0.0
  %8129 = vadd.xlane.f32.xlu0 %v8128
  %v8130 = vpop.xlane.xlu0 %8129
  %v8131 = vsel %vm7935, %v8067, 0.0
  %8132 = vadd.xlane.f32.xlu0 %v8131
  %v8133 = vpop.xlane.xlu0 %8132
  %v8134 = vsel %vm7935, %v8069, 0.0
  %8135 = vadd.xlane.f32.xlu0 %v8134
  %v8136 = vpop.xlane.xlu0 %8135
  %v8137 = vsel %vm7935, %v8071, 0.0
  %8138 = vadd.xlane.f32.xlu0 %v8137
  %v8139 = vpop.xlane.xlu0 %8138
  %v8140 = vsel %vm7935, %v8073, 0.0
  %8141 = vadd.xlane.f32.xlu0 %v8140
  %v8142 = vpop.xlane.xlu0 %8141
  %v8143 = vsel %vm7935, %v8075, 0.0
  %8144 = vadd.xlane.f32.xlu0 %v8143
  %v8145 = vpop.xlane.xlu0 %8144
  %v8146 = vsel %vm7935, %v8077, 0.0
  %8147 = vadd.xlane.f32.xlu0 %v8146
  %v8148 = vpop.xlane.xlu0 %8147
  %v8149 = vsel %vm7935, %v8079, 0.0
  %8150 = vadd.xlane.f32.xlu0 %v8149
  %v8151 = vpop.xlane.xlu0 %8150
  %v8152 = vsel %vm7935, %v8081, 0.0
  %8153 = vadd.xlane.f32.xlu0 %v8152
  %v8154 = vpop.xlane.xlu0 %8153
  %v8155 = vsel %vm7935, %v8083, 0.0
  %8156 = vadd.xlane.f32.xlu0 %v8155
  %v8157 = vpop.xlane.xlu0 %8156
  %v8158 = vsel %vm7935, %v8085, 0.0
  %8159 = vadd.xlane.f32.xlu0 %v8158
  %v8160 = vpop.xlane.xlu0 %8159
  %v8161 = vsel %vm7935, %v8087, 0.0
  %8162 = vadd.xlane.f32.xlu0 %v8161
  %v8163 = vpop.xlane.xlu0 %8162
  %v8164 = vsel %vm7935, %v8089, 0.0
  %8165 = vadd.xlane.f32.xlu0 %v8164
  %v8166 = vpop.xlane.xlu0 %8165
  %v8167 = vsel %vm7935, %v8091, 0.0
  %8168 = vadd.xlane.f32.xlu0 %v8167
  %v8169 = vpop.xlane.xlu0 %8168
  %v8170 = vsel %vm7935, %v8093, 0.0
  %8171 = vadd.xlane.f32.xlu0 %v8170
  %v8172 = vpop.xlane.xlu0 %8171
  %v8173 = vsel %vm7935, %v8095, 0.0
  %8174 = vadd.xlane.f32.xlu0 %v8173
  %v8175 = vpop.xlane.xlu0 %8174
  %v8176 = vsel %vm7935, %v8097, 0.0
  %8177 = vadd.xlane.f32.xlu0 %v8176
  %v8178 = vpop.xlane.xlu0 %8177
  %v8179 = vsel %vm7935, %v8099, 0.0
  %8180 = vadd.xlane.f32.xlu0 %v8179
  %v8181 = vpop.xlane.xlu0 %8180
  %v8182 = vsel %vm7935, %v8101, 0.0
  %8183 = vadd.xlane.f32.xlu0 %v8182
  %v8184 = vpop.xlane.xlu0 %8183
  %v8185 = vsel %vm7935, %v8103, 0.0
  %8186 = vadd.xlane.f32.xlu0 %v8185
  %v8187 = vpop.xlane.xlu0 %8186
  %v8188 = vsel %vm7935, %v8105, 0.0
  %8189 = vadd.xlane.f32.xlu0 %v8188
  %v8190 = vpop.xlane.xlu0 %8189
  %v8191 = vsel %vm7935, %v8107, 0.0
  %8192 = vadd.xlane.f32.xlu0 %v8191
  %v8193 = vpop.xlane.xlu0 %8192
  %v8194 = vsel %vm7935, %v8109, 0.0
  %8195 = vadd.xlane.f32.xlu0 %v8194
  %v8196 = vpop.xlane.xlu0 %8195
  %v8197 = vsel %vm7935, %v8111, 0.0
  %8198 = vadd.xlane.f32.xlu0 %v8197
  %v8199 = vpop.xlane.xlu0 %8198
  %v8200 = vsel %vm7935, %v8113, 0.0
  %8201 = vadd.xlane.f32.xlu0 %v8200
  %v8202 = vpop.xlane.xlu0 %8201
  %v8203 = vsel %vm7935, %v8115, 0.0
  %8204 = vadd.xlane.f32.xlu0 %v8203
  %v8205 = vpop.xlane.xlu0 %8204
  %v8206 = vsel %vm7935, %v8117, 0.0
  %8207 = vadd.xlane.f32.xlu0 %v8206
  %v8208 = vpop.xlane.xlu0 %8207
  %v8209 = vsel %vm7935, %v8119, 0.0
  %8210 = vadd.xlane.f32.xlu0 %v8209
  %v8211 = vpop.xlane.xlu0 %8210
  %v8212 = vsel %vm7935, %v8121, 0.0
  %8213 = vadd.xlane.f32.xlu0 %v8212
  %v8214 = vpop.xlane.xlu0 %8213
  %v8215 = vsel %vm7935, %v8123, 0.0
  %8216 = vadd.xlane.f32.xlu0 %v8215
  %v8217 = vpop.xlane.xlu0 %8216
  %v8218 = vsel %vm7935, %v8125, 0.0
  %8219 = vadd.xlane.f32.xlu0 %v8218
  %v8220 = vpop.xlane.xlu0 %8219
  %v8221 = vsel %vm7935, %v8127, 0.0
  %8222 = vadd.xlane.f32.xlu0 %v8221
  %v8223 = vpop.xlane.xlu0 %8222
  %v8224 = vmul.f32 %v8065, %v7903
  %v8225 = vmul.f32 %v8067, %v7904
  %v8226 = vmul.f32 %v8069, %v7905
  %v8227 = vmul.f32 %v8071, %v7906
  %v8228 = vmul.f32 %v8073, %v7907
  %v8229 = vmul.f32 %v8075, %v7908
  %v8230 = vmul.f32 %v8077, %v7909
  %v8231 = vmul.f32 %v8079, %v7910
  %v8232 = vmul.f32 %v8081, %v7911
  %v8233 = vmul.f32 %v8083, %v7912
  %v8234 = vmul.f32 %v8085, %v7913
  %v8235 = vmul.f32 %v8087, %v7914
  %v8236 = vmul.f32 %v8089, %v7915
  %v8237 = vmul.f32 %v8091, %v7916
  %v8238 = vmul.f32 %v8093, %v7917
  %v8239 = vmul.f32 %v8095, %v7918
  %v8240 = vmul.f32 %v8097, %v7919
  %v8241 = vmul.f32 %v8099, %v7920
  %v8242 = vmul.f32 %v8101, %v7921
  %v8243 = vmul.f32 %v8103, %v7922
  %v8244 = vmul.f32 %v8105, %v7923
  %v8245 = vmul.f32 %v8107, %v7924
  %v8246 = vmul.f32 %v8109, %v7925
  %v8247 = vmul.f32 %v8111, %v7926
  %v8248 = vmul.f32 %v8113, %v7927
  %v8249 = vmul.f32 %v8115, %v7928
  %v8250 = vmul.f32 %v8117, %v7929
  %v8251 = vmul.f32 %v8119, %v7930
  %v8252 = vmul.f32 %v8121, %v7931
  %v8253 = vmul.f32 %v8123, %v7932
  %v8254 = vmul.f32 %v8125, %v7933
  %v8255 = vmul.f32 %v8127, %v7934
  %v8256 = vsel %vm7935, %v8224, 0.0
  %8257 = vadd.xlane.f32.xlu0 %v8256
  %v8258 = vpop.xlane.xlu0 %8257
  %v8259 = vsel %vm7935, %v8225, 0.0
  %8260 = vadd.xlane.f32.xlu0 %v8259
  %v8261 = vpop.xlane.xlu0 %8260
  %v8262 = vsel %vm7935, %v8226, 0.0
  %8263 = vadd.xlane.f32.xlu0 %v8262
  %v8264 = vpop.xlane.xlu0 %8263
  %v8265 = vsel %vm7935, %v8227, 0.0
  %8266 = vadd.xlane.f32.xlu0 %v8265
  %v8267 = vpop.xlane.xlu0 %8266
  %v8268 = vsel %vm7935, %v8228, 0.0
  %8269 = vadd.xlane.f32.xlu0 %v8268
  %v8270 = vpop.xlane.xlu0 %8269
  %v8271 = vsel %vm7935, %v8229, 0.0
  %8272 = vadd.xlane.f32.xlu0 %v8271
  %v8273 = vpop.xlane.xlu0 %8272
  %v8274 = vsel %vm7935, %v8230, 0.0
  %8275 = vadd.xlane.f32.xlu0 %v8274
  %v8276 = vpop.xlane.xlu0 %8275
  %v8277 = vsel %vm7935, %v8231, 0.0
  %8278 = vadd.xlane.f32.xlu0 %v8277
  %v8279 = vpop.xlane.xlu0 %8278
  %v8280 = vsel %vm7935, %v8232, 0.0
  %8281 = vadd.xlane.f32.xlu0 %v8280
  %v8282 = vpop.xlane.xlu0 %8281
  %v8283 = vsel %vm7935, %v8233, 0.0
  %8284 = vadd.xlane.f32.xlu0 %v8283
  %v8285 = vpop.xlane.xlu0 %8284
  %v8286 = vsel %vm7935, %v8234, 0.0
  %8287 = vadd.xlane.f32.xlu0 %v8286
  %v8288 = vpop.xlane.xlu0 %8287
  %v8289 = vsel %vm7935, %v8235, 0.0
  %8290 = vadd.xlane.f32.xlu0 %v8289
  %v8291 = vpop.xlane.xlu0 %8290
  %v8292 = vsel %vm7935, %v8236, 0.0
  %8293 = vadd.xlane.f32.xlu0 %v8292
  %v8294 = vpop.xlane.xlu0 %8293
  %v8295 = vsel %vm7935, %v8237, 0.0
  %8296 = vadd.xlane.f32.xlu0 %v8295
  %v8297 = vpop.xlane.xlu0 %8296
  %v8298 = vsel %vm7935, %v8238, 0.0
  %8299 = vadd.xlane.f32.xlu0 %v8298
  %v8300 = vpop.xlane.xlu0 %8299
  %v8301 = vsel %vm7935, %v8239, 0.0
  %8302 = vadd.xlane.f32.xlu0 %v8301
  %v8303 = vpop.xlane.xlu0 %8302
  %v8304 = vsel %vm7935, %v8240, 0.0
  %8305 = vadd.xlane.f32.xlu0 %v8304
  %v8306 = vpop.xlane.xlu0 %8305
  %v8307 = vsel %vm7935, %v8241, 0.0
  %8308 = vadd.xlane.f32.xlu0 %v8307
  %v8309 = vpop.xlane.xlu0 %8308
  %v8310 = vsel %vm7935, %v8242, 0.0
  %8311 = vadd.xlane.f32.xlu0 %v8310
  %v8312 = vpop.xlane.xlu0 %8311
  %v8313 = vsel %vm7935, %v8243, 0.0
  %8314 = vadd.xlane.f32.xlu0 %v8313
  %v8315 = vpop.xlane.xlu0 %8314
  %v8316 = vsel %vm7935, %v8244, 0.0
  %8317 = vadd.xlane.f32.xlu0 %v8316
  %v8318 = vpop.xlane.xlu0 %8317
  %v8319 = vsel %vm7935, %v8245, 0.0
  %8320 = vadd.xlane.f32.xlu0 %v8319
  %v8321 = vpop.xlane.xlu0 %8320
  %v8322 = vsel %vm7935, %v8246, 0.0
  %8323 = vadd.xlane.f32.xlu0 %v8322
  %v8324 = vpop.xlane.xlu0 %8323
  %v8325 = vsel %vm7935, %v8247, 0.0
  %8326 = vadd.xlane.f32.xlu0 %v8325
  %v8327 = vpop.xlane.xlu0 %8326
  %v8328 = vsel %vm7935, %v8248, 0.0
  %8329 = vadd.xlane.f32.xlu0 %v8328
  %v8330 = vpop.xlane.xlu0 %8329
  %v8331 = vsel %vm7935, %v8249, 0.0
  %8332 = vadd.xlane.f32.xlu0 %v8331
  %v8333 = vpop.xlane.xlu0 %8332
  %v8334 = vsel %vm7935, %v8250, 0.0
  %8335 = vadd.xlane.f32.xlu0 %v8334
  %v8336 = vpop.xlane.xlu0 %8335
  %v8337 = vsel %vm7935, %v8251, 0.0
  %8338 = vadd.xlane.f32.xlu0 %v8337
  %v8339 = vpop.xlane.xlu0 %8338
  %v8340 = vsel %vm7935, %v8252, 0.0
  %8341 = vadd.xlane.f32.xlu0 %v8340
  %v8342 = vpop.xlane.xlu0 %8341
  %v8343 = vsel %vm7935, %v8253, 0.0
  %8344 = vadd.xlane.f32.xlu0 %v8343
  %v8345 = vpop.xlane.xlu0 %8344
  %v8346 = vsel %vm7935, %v8254, 0.0
  %8347 = vadd.xlane.f32.xlu0 %v8346
  %v8348 = vpop.xlane.xlu0 %8347
  %v8349 = vsel %vm7935, %v8255, 0.0
  %8350 = vadd.xlane.f32.xlu0 %v8349
  %v8351 = vpop.xlane.xlu0 %8350
  %v8352 = vrcp.pop %v8130
  %v8353 = vrcp.pop %v8133
  %v8354 = vrcp.pop %v8136
  %v8355 = vrcp.pop %v8139
  %v8356 = vrcp.pop %v8142
  %v8357 = vrcp.pop %v8145
  %v8358 = vrcp.pop %v8148
  %v8359 = vrcp.pop %v8151
  %v8360 = vrcp.pop %v8154
  %v8361 = vrcp.pop %v8157
  %v8362 = vrcp.pop %v8160
  %v8363 = vrcp.pop %v8163
  %v8364 = vrcp.pop %v8166
  %v8365 = vrcp.pop %v8169
  %v8366 = vrcp.pop %v8172
  %v8367 = vrcp.pop %v8175
  %v8368 = vrcp.pop %v8178
  %v8369 = vrcp.pop %v8181
  %v8370 = vrcp.pop %v8184
  %v8371 = vrcp.pop %v8187
  %v8372 = vrcp.pop %v8190
  %v8373 = vrcp.pop %v8193
  %v8374 = vrcp.pop %v8196
  %v8375 = vrcp.pop %v8199
  %v8376 = vrcp.pop %v8202
  %v8377 = vrcp.pop %v8205
  %v8378 = vrcp.pop %v8208
  %v8379 = vrcp.pop %v8211
  %v8380 = vrcp.pop %v8214
  %v8381 = vrcp.pop %v8217
  %v8382 = vrcp.pop %v8220
  %v8383 = vrcp.pop %v8223
  %v8384 = vmul.f32 %v8258, %v8352
  %v8385 = vmul.f32 %v8261, %v8353
  %v8386 = vmul.f32 %v8264, %v8354
  %v8387 = vmul.f32 %v8267, %v8355
  %v8388 = vmul.f32 %v8270, %v8356
  %v8389 = vmul.f32 %v8273, %v8357
  %v8390 = vmul.f32 %v8276, %v8358
  %v8391 = vmul.f32 %v8279, %v8359
  %v8392 = vmul.f32 %v8282, %v8360
  %v8393 = vmul.f32 %v8285, %v8361
  %v8394 = vmul.f32 %v8288, %v8362
  %v8395 = vmul.f32 %v8291, %v8363
  %v8396 = vmul.f32 %v8294, %v8364
  %v8397 = vmul.f32 %v8297, %v8365
  %v8398 = vmul.f32 %v8300, %v8366
  %v8399 = vmul.f32 %v8303, %v8367
  %v8400 = vmul.f32 %v8306, %v8368
  %v8401 = vmul.f32 %v8309, %v8369
  %v8402 = vmul.f32 %v8312, %v8370
  %v8403 = vmul.f32 %v8315, %v8371
  %v8404 = vmul.f32 %v8318, %v8372
  %v8405 = vmul.f32 %v8321, %v8373
  %v8406 = vmul.f32 %v8324, %v8374
  %v8407 = vmul.f32 %v8327, %v8375
  %v8408 = vmul.f32 %v8330, %v8376
  %v8409 = vmul.f32 %v8333, %v8377
  %v8410 = vmul.f32 %v8336, %v8378
  %v8411 = vmul.f32 %v8339, %v8379
  %v8412 = vmul.f32 %v8342, %v8380
  %v8413 = vmul.f32 %v8345, %v8381
  %v8414 = vmul.f32 %v8348, %v8382
  %v8415 = vmul.f32 %v8351, %v8383
  %8416 = vst [vmem:[%s8] sm:$0xff] %v8384
  %8417 = vst [vmem:[%s8 + $0x8] sm:$0xff] %v8385
  %8418 = vst [vmem:[%s8 + $0x10] sm:$0xff] %v8386
  %8419 = vst [vmem:[%s8 + $0x18] sm:$0xff] %v8387
  %8420 = vst [vmem:[%s8 + $0x20] sm:$0xff] %v8388
  %8421 = vst [vmem:[%s8 + $0x28] sm:$0xff] %v8389
  %8422 = vst [vmem:[%s8 + $0x30] sm:$0xff] %v8390
  %8423 = vst [vmem:[%s8 + $0x38] sm:$0xff] %v8391
  %8424 = vst [vmem:[%s8 + $0x40] sm:$0xff] %v8392
  %8425 = vst [vmem:[%s8 + $0x48] sm:$0xff] %v8393
  %8426 = vst [vmem:[%s8 + $0x50] sm:$0xff] %v8394
  %8427 = vst [vmem:[%s8 + $0x58] sm:$0xff] %v8395
  %8428 = vst [vmem:[%s8 + $0x60] sm:$0xff] %v8396
  %8429 = vst [vmem:[%s8 + $0x68] sm:$0xff] %v8397
  %8430 = vst [vmem:[%s8 + $0x70] sm:$0xff] %v8398
  %8431 = vst [vmem:[%s8 + $0x78] sm:$0xff] %v8399
  %8432 = vst [vmem:[%s8 + $0x80] sm:$0xff] %v8400
  %8433 = vst [vmem:[%s8 + $0x88] sm:$0xff] %v8401
  %8434 = vst [vmem:[%s8 + $0x90] sm:$0xff] %v8402
  %8435 = vst [vmem:[%s8 + $0x98] sm:$0xff] %v8403
  %8436 = vst [vmem:[%s8 + $0xa0] sm:$0xff] %v8404
  %8437 = vst [vmem:[%s8 + $0xa8] sm:$0xff] %v8405
  %8438 = vst [vmem:[%s8 + $0xb0] sm:$0xff] %v8406
  %8439 = vst [vmem:[%s8 + $0xb8] sm:$0xff] %v8407
  %8440 = vst [vmem:[%s8 + $0xc0] sm:$0xff] %v8408
  %8441 = vst [vmem:[%s8 + $0xc8] sm:$0xff] %v8409
  %8442 = vst [vmem:[%s8 + $0xd0] sm:$0xff] %v8410
  %8443 = vst [vmem:[%s8 + $0xd8] sm:$0xff] %v8411
  %8444 = vst [vmem:[%s8 + $0xe0] sm:$0xff] %v8412
  %8445 = vst [vmem:[%s8 + $0xe8] sm:$0xff] %v8413
  %8446 = vst [vmem:[%s8 + $0xf0] sm:$0xff] %v8414
  %8447 = vst [vmem:[%s8 + $0xf8] sm:$0xff] %v8415
  // Predicated region
  $region34: #{gfrl_afm_forward.1} parent=0 // pred_check
    _
  $region35: #{gfrl_afm_forward.1} parent=0 // pred_check_branch
    %8449 = sbr.rel (0) target = $region37
  $region36: #{gfrl_afm_forward.1} parent=0 // pred_region
    _
  $region37: #{gfrl_afm_forward.1} parent=0 // pred_fallthru
    _
  // Predicated region
  $region38: #{gfrl_afm_forward.1} parent=0 // pred_check
    _
  $region39: #{gfrl_afm_forward.1} parent=0 // pred_check_branch
    %8451 = sbr.rel (0) target = $region41
  $region40: #{gfrl_afm_forward.1} parent=0 // pred_region
    _
  $region41: #{gfrl_afm_forward.1} parent=0 // pred_fallthru
    _

</llo_original>
